<compile_context>
chip_gen: v6e
topology: v6e:2x2x1
jax: 0.10.0
libtpu: 0.0.40
codegen_flags: <defaults>
</compile_context>

<pallas_src>
import functools
import math

import jax
import jax.numpy as jnp
from jax import lax
from jax.experimental import pallas as pl
from jax.experimental.pallas import tpu as pltpu


# --------------------------------------------------------------------------- #
# In-kernel helpers: static zero-filled shifts along the lane (last) axis.
# --------------------------------------------------------------------------- #
def _shift_right_lanes(x, k):
    """out[..., i] = x[..., i-k] for i >= k, else 0 (k is a static int)."""
    if k <= 0:
        return x
    pad = jnp.zeros(x.shape[:-1] + (k,), x.dtype)
    return jnp.concatenate([pad, x[..., : x.shape[-1] - k]], axis=-1)


def _shift_left_lanes(x, k):
    """out[..., i] = x[..., i+k] for i < S-k, else 0 (k is a static int)."""
    if k <= 0:
        return x
    pad = jnp.zeros(x.shape[:-1] + (k,), x.dtype)
    return jnp.concatenate([x[..., k:], pad], axis=-1)


# --------------------------------------------------------------------------- #
# Kernel: one (batch, H-tile) grid step.
# --------------------------------------------------------------------------- #
def _sine3d_kernel(mask_ref, didx_ref, out_ref, *, H, W, D, tile_h, c_int,
                   half, channels, temperature, normalize, scale):
    """
    mask_ref: (H, S) int8   one batch element, 0 = valid / 1 = padded, S = W*D.
    didx_ref: (1, S) int32  lane l -> d index (l % D), for segmented scans.
    out_ref : (channels, tile_h, S) float32.
    """
    t = pl.program_id(1)
    h0 = t * tile_h
    if tile_h % 8 == 0:
        h0 = pl.multiple_of(h0, 8)

    nm_full = 1.0 - mask_ref[...].astype(jnp.float32)                 # (H, S)
    if tile_h == H:
        nm_tile = nm_full
    else:
        nm_tile = 1.0 - mask_ref[pl.ds(h0, tile_h)].astype(jnp.float32)  # (tile_h, S)
    d_idx = didx_ref[...]                                             # (1, S)

    # ---- cumsum over H (torch dim 1): one triangular MXU matmul -------------
    row = lax.broadcasted_iota(jnp.int32, (tile_h, H), 0) + h0        # global h
    col = lax.broadcasted_iota(jnp.int32, (tile_h, H), 1)
    l_tri = (col <= row).astype(jnp.float32)                          # (tile_h, H)
    x_e = jnp.dot(l_tri, nm_full, preferred_element_type=jnp.float32)  # (tile_h, S)
    x_tot = jnp.sum(nm_full, axis=0, keepdims=True)                   # (1, S)

    # ---- cumsum over W (stride D on the flattened lane axis) ----------------
    y_e = nm_tile
    m = 1
    while m < W:
        y_e = y_e + _shift_right_lanes(y_e, m * D)
        m *= 2

    # ---- cumsum over D (stride 1, segments of length D) ---------------------
    z_e = nm_tile
    m = 1
    while m < D:
        z_e = z_e + jnp.where(d_idx >= m, _shift_right_lanes(z_e, m), 0.0)
        m *= 2

    if normalize:
        eps = 1e-6
        # Broadcast each line's total (value at the last W / last D position)
        # with a suffix-max doubling sweep (the cumsums are non-decreasing).
        y_den = y_e
        m = 1
        while m < W:
            y_den = jnp.maximum(y_den, _shift_left_lanes(y_den, m * D))
            m *= 2
        z_den = z_e
        m = 1
        while m < D:
            z_den = jnp.where(d_idx < (D - m),
                              jnp.maximum(z_den, _shift_left_lanes(z_den, m)),
                              z_den)
            m *= 2
        x_n = (x_e - 0.5) * (scale * pl.reciprocal(x_tot + eps, approx=False))
        y_n = (y_e - 0.5) * (scale * pl.reciprocal(y_den + eps, approx=False))
        z_n = (z_e - 0.5) * (scale * pl.reciprocal(z_den + eps, approx=False))
    else:
        x_n, y_n, z_n = x_e, y_e, z_e

    # ---- sin/cos expansion -------------------------------------------------
    # torch channel order: cat((pos_y, pos_x, pos_z), dim=4); each slab is laid
    # out [sin(f_0..f_{half-1}) | cos(f_0..f_{half-1})] because torch.stack at
    # dim=4 of the 5-D tensor inserts the sin/cos axis BEFORE the frequency
    # axis.  dim_t[2j] == dim_t[2j+1] == temperature ** (2j / c_int).
    # Channels beyond `channels` (the 3*c_int padding) are never computed.
    for k, emb in enumerate((y_n, x_n, z_n)):
        base = k * c_int
        n_sin = max(0, min(half, channels - base))
        n_cos = max(0, min(half, channels - base - half))
        for j in range(max(n_sin, n_cos)):
            inv_f = float(temperature) ** (-2.0 * j / c_int)          # 1/dim_t[2j]
            arg = emb * inv_f                                         # (tile_h, S)
            if j < n_sin:
                out_ref[base + j] = jnp.sin(arg)
            if j < n_cos:
                out_ref[base + half + j] = jnp.cos(arg)


# --------------------------------------------------------------------------- #
# Wrapper
# --------------------------------------------------------------------------- #
def _pick_tile_h(H, channels, S, target_bytes=2 * 1024 * 1024):
    """Largest H tile (multiple of 8, dividing H) whose f32 output block fits
    target_bytes; falls back to the full H extent."""
    per_h = channels * S * 4
    if H * per_h <= target_bytes or H % 8 != 0:
        return H
    best = 8
    t = 8
    while t <= H:
        if H % t == 0 and t * per_h <= target_bytes:
            best = t
        t += 8
    return best


def position_embedding_sine_3d(mask, *, channels=64, temperature=10000,
                               normalize=True, scale=None):
    """mask: bool [B, H, W, D] (True = padded). Returns f32 [B, channels, H, W, D]."""
    if scale is not None and normalize is False:
        raise ValueError('normalize should be True if scale is passed')
    if scale is None:
        scale = 2 * math.pi
    c_int = int(math.ceil(channels / 6) * 2)     # per-axis channel count (even)
    half = c_int // 2
    B, H, W, D = mask.shape
    S = W * D

    tile_h = _pick_tile_h(H, channels, S)
    n_h_tiles = H // tile_h

    # Glue (free / tiny): lane-dense flattening, int8 mask, (1, S) d-index map.
    mask_i8 = mask.reshape(B, H, S).astype(jnp.int8)
    d_idx = (jnp.arange(S, dtype=jnp.int32) % D).reshape(1, S)

    kernel = functools.partial(
        _sine3d_kernel, H=H, W=W, D=D, tile_h=tile_h, c_int=c_int, half=half,
        channels=channels, temperature=float(temperature),
        normalize=bool(normalize), scale=float(scale))

    out = pl.pallas_call(
        kernel,
        out_shape=jax.ShapeDtypeStruct((B, channels, H, S), jnp.float32),
        grid=(B, n_h_tiles),
        in_specs=[
            pl.BlockSpec((None, H, S), lambda b, t: (b, 0, 0)),
            pl.BlockSpec((1, S), lambda b, t: (0, 0)),
        ],
        out_specs=pl.BlockSpec((None, channels, tile_h, S),
                               lambda b, t: (b, 0, t, 0)),
        compiler_params=pltpu.CompilerParams(
            dimension_semantics=("parallel", "parallel"),
            vmem_limit_bytes=48 * 1024 * 1024),
        cost_estimate=pl.CostEstimate(
            flops=int(2 * B * channels * H * S + 2 * B * H * H * S),
            transcendentals=int(B * channels * H * S),
            bytes_accessed=int(4 * B * channels * H * S + B * H * S + 4 * S)),
    )(mask_i8, d_idx)

    # Free contiguous reshape back to (B, channels, H, W, D).
    return out.reshape(B, channels, H, W, D)


# --------------------------------------------------------------------------- #
# Pure-JAX reference (direct transcription of the PyTorch module) + demo.
# --------------------------------------------------------------------------- #
def _reference(mask, *, channels=64, temperature=10000, normalize=True, scale=None):
    if scale is None:
        scale = 2 * math.pi
    c_int = int(math.ceil(channels / 6) * 2)
    not_mask = (~mask).astype(jnp.float32)
    x_embed = jnp.cumsum(not_mask, axis=1)
    y_embed = jnp.cumsum(not_mask, axis=2)
    z_embed = jnp.cumsum(not_mask, axis=3)
    if normalize:
        eps = 1e-6
        x_embed = (x_embed - 0.5) / (x_embed[:, -1:, :, :] + eps) * scale
        y_embed = (y_embed - 0.5) / (y_embed[:, :, -1:, :] + eps) * scale
        z_embed = (z_embed - 0.5) / (z_embed[:, :, :, -1:] + eps) * scale
    dim_t = jnp.arange(c_int, dtype=jnp.float32)
    dim_t = temperature ** (2 * (dim_t // 2) / c_int)

    def expand(e):
        p = e[..., None] / dim_t
        # torch.stack((sin(p[...,0::2]), cos(p[...,1::2])), dim=4).flatten(4)
        # == [all sin | all cos] along the channel axis.
        return jnp.concatenate([jnp.sin(p[..., 0::2]), jnp.cos(p[..., 1::2])], axis=-1)

    pos = jnp.concatenate([expand(y_embed), expand(x_embed), expand(z_embed)], axis=-1)
    pos = jnp.transpose(pos, (0, 4, 1, 2, 3))
    return pos[:, :channels]


if __name__ == "__main__":
    key = jax.random.PRNGKey(0)
    B, H, W, D = 2, 8, 8, 8
    mask = jax.random.bernoulli(key, 0.25, (B, H, W, D))   # True = padded
    # Guarantee every H/W/D line has at least one valid entry so normalisation
    # denominators are well conditioned for the numerical check below.
    mask = mask.at[:, 0, :, :].set(False)
    mask = mask.at[:, :, 0, :].set(False)
    mask = mask.at[:, :, :, 0].set(False)

    pos = jax.block_until_ready(position_embedding_sine_3d(mask, channels=64))
    assert pos.shape == (B, 64, H, W, D) and pos.dtype == jnp.float32

    ref = jax.block_until_ready(_reference(mask, channels=64))
    err = float(jnp.max(jnp.abs(pos - ref)))
    assert err < 5e-4, f"max abs error vs reference: {err}"
    print("KERNEL_OK")
</pallas_src>

<mosaic_0001>
module attributes {stable_mosaic.version = 11 : i64} {
  func.func @_sine3d_kernel(%arg0: i32, %arg1: i32, %arg2: memref<1x8x64xi8, #tpu.memory_space<vmem>>, %arg3: memref<1x64xi32, #tpu.memory_space<vmem>>, %arg4: memref<1x64x8x64xf32, #tpu.memory_space<vmem>>) attributes {dimension_semantics = [#tpu.dimension_semantics<parallel>, #tpu.dimension_semantics<parallel>], iteration_bounds = array<i64: 2, 1>, scalar_prefetch = 0 : i64, scratch_operands = 0 : i64, tpu.core_type = #tpu.core_type<tc>, window_params = [{transform_indices = @transform_0, window_bounds = array<i64: 1, 8, 64>}, {pipeline_mode = #tpu.pipeline_mode<synchronous>, transform_indices = @transform_1, window_bounds = array<i64: 1, 64>}, {transform_indices = @transform_2, window_bounds = array<i64: 1, 64, 8, 64>}]} {
    %c8_i32 = arith.constant 8 : i32
    %0 = arith.muli %arg1, %c8_i32 : i32
    %1 = tpu.assume_multiple %0, 8 : i32
    %c0 = arith.constant 0 : index
    %c0_0 = arith.constant 0 : index
    %c0_1 = arith.constant 0 : index
    %2 = vector.load %arg2[%c0, %c0_0, %c0_1] : memref<1x8x64xi8, #tpu.memory_space<vmem>>, vector<1x8x64xi8>
    %3 = vector.shape_cast %2 : vector<1x8x64xi8> to vector<8x64xi8>
    %4 = arith.sitofp %3 : vector<8x64xi8> to vector<8x64xf32>
    %cst = arith.constant 1.000000e+00 : f32
    %5 = vector.broadcast %cst : f32 to vector<8x64xf32>
    %6 = arith.subf %5, %4 : vector<8x64xf32>
    %c0_2 = arith.constant 0 : index
    %c0_3 = arith.constant 0 : index
    %7 = vector.load %arg3[%c0_2, %c0_3] : memref<1x64xi32, #tpu.memory_space<vmem>>, vector<1x64xi32>
    %8 = tpu.iota {dimensions = array<i32: 0>} : vector<8x8xi32>
    %9 = vector.broadcast %1 : i32 to vector<8x8xi32>
    %10 = arith.addi %8, %9 : vector<8x8xi32>
    %11 = tpu.iota {dimensions = array<i32: 1>} : vector<8x8xi32>
    %12 = arith.cmpi sle, %11, %10 : vector<8x8xi32>
    %13 = arith.extui %12 : vector<8x8xi1> to vector<8x8xi32>
    %14 = arith.sitofp %13 : vector<8x8xi32> to vector<8x8xf32>
    %cst_4 = arith.constant dense<0.000000e+00> : vector<8x64xf32>
    %15 = tpu.matmul %14, %6, %cst_4 {dimension_numbers = #tpu.dot_dimension_numbers<[1], [0], [0], [1], [0, 0, 1, 1], [], []>} : vector<8x8xf32>, vector<8x64xf32>, vector<8x64xf32> -> vector<8x64xf32>
    %cst_5 = arith.constant dense<0.000000e+00> : vector<64xf32>
    %16 = vector.multi_reduction <add>, %6, %cst_5 [0] : vector<8x64xf32> to vector<64xf32>
    %17 = vector.shape_cast %16 : vector<64xf32> to vector<1x64xf32>
    %cst_6 = arith.constant 0.000000e+00 : f32
    %18 = vector.broadcast %cst_6 : f32 to vector<8x8xf32>
    %19 = vector.extract_strided_slice %6 {offsets = [0, 0], sizes = [8, 56], strides = [1, 1]} : vector<8x64xf32> to vector<8x56xf32>
    %20 = tpu.concatenate %18, %19 in 1 : vector<8x8xf32>, vector<8x56xf32> -> vector<8x64xf32>
    %21 = arith.addf %6, %20 : vector<8x64xf32>
    %cst_7 = arith.constant 0.000000e+00 : f32
    %22 = vector.broadcast %cst_7 : f32 to vector<8x16xf32>
    %23 = vector.extract_strided_slice %21 {offsets = [0, 0], sizes = [8, 48], strides = [1, 1]} : vector<8x64xf32> to vector<8x48xf32>
    %24 = tpu.concatenate %22, %23 in 1 : vector<8x16xf32>, vector<8x48xf32> -> vector<8x64xf32>
    %25 = arith.addf %21, %24 : vector<8x64xf32>
    %cst_8 = arith.constant 0.000000e+00 : f32
    %26 = vector.broadcast %cst_8 : f32 to vector<8x32xf32>
    %27 = vector.extract_strided_slice %25 {offsets = [0, 0], sizes = [8, 32], strides = [1, 1]} : vector<8x64xf32> to vector<8x32xf32>
    %28 = tpu.concatenate %26, %27 in 1 : vector<8x32xf32>, vector<8x32xf32> -> vector<8x64xf32>
    %29 = arith.addf %25, %28 : vector<8x64xf32>
    %c1_i32 = arith.constant 1 : i32
    %30 = vector.broadcast %c1_i32 : i32 to vector<1x64xi32>
    %31 = arith.cmpi sge, %7, %30 : vector<1x64xi32>
    %cst_9 = arith.constant 0.000000e+00 : f32
    %32 = vector.broadcast %cst_9 : f32 to vector<8x1xf32>
    %33 = vector.extract_strided_slice %6 {offsets = [0, 0], sizes = [8, 63], strides = [1, 1]} : vector<8x64xf32> to vector<8x63xf32>
    %34 = tpu.concatenate %32, %33 in 1 : vector<8x1xf32>, vector<8x63xf32> -> vector<8x64xf32>
    %cst_10 = arith.constant 0.000000e+00 : f32
    %35 = vector.shape_cast %31 : vector<1x64xi1> to vector<1x64xi1>
    %36 = vector.broadcast %35 : vector<1x64xi1> to vector<8x64xi1>
    %37 = vector.broadcast %cst_10 : f32 to vector<8x64xf32>
    %38 = arith.select %36, %34, %37 : vector<8x64xi1>, vector<8x64xf32>
    %39 = arith.addf %6, %38 : vector<8x64xf32>
    %c2_i32 = arith.constant 2 : i32
    %40 = vector.broadcast %c2_i32 : i32 to vector<1x64xi32>
    %41 = arith.cmpi sge, %7, %40 : vector<1x64xi32>
    %cst_11 = arith.constant 0.000000e+00 : f32
    %42 = vector.broadcast %cst_11 : f32 to vector<8x2xf32>
    %43 = vector.extract_strided_slice %39 {offsets = [0, 0], sizes = [8, 62], strides = [1, 1]} : vector<8x64xf32> to vector<8x62xf32>
    %44 = tpu.concatenate %42, %43 in 1 : vector<8x2xf32>, vector<8x62xf32> -> vector<8x64xf32>
    %cst_12 = arith.constant 0.000000e+00 : f32
    %45 = vector.shape_cast %41 : vector<1x64xi1> to vector<1x64xi1>
    %46 = vector.broadcast %45 : vector<1x64xi1> to vector<8x64xi1>
    %47 = vector.broadcast %cst_12 : f32 to vector<8x64xf32>
    %48 = arith.select %46, %44, %47 : vector<8x64xi1>, vector<8x64xf32>
    %49 = arith.addf %39, %48 : vector<8x64xf32>
    %c4_i32 = arith.constant 4 : i32
    %50 = vector.broadcast %c4_i32 : i32 to vector<1x64xi32>
    %51 = arith.cmpi sge, %7, %50 : vector<1x64xi32>
    %cst_13 = arith.constant 0.000000e+00 : f32
    %52 = vector.broadcast %cst_13 : f32 to vector<8x4xf32>
    %53 = vector.extract_strided_slice %49 {offsets = [0, 0], sizes = [8, 60], strides = [1, 1]} : vector<8x64xf32> to vector<8x60xf32>
    %54 = tpu.concatenate %52, %53 in 1 : vector<8x4xf32>, vector<8x60xf32> -> vector<8x64xf32>
    %cst_14 = arith.constant 0.000000e+00 : f32
    %55 = vector.shape_cast %51 : vector<1x64xi1> to vector<1x64xi1>
    %56 = vector.broadcast %55 : vector<1x64xi1> to vector<8x64xi1>
    %57 = vector.broadcast %cst_14 : f32 to vector<8x64xf32>
    %58 = arith.select %56, %54, %57 : vector<8x64xi1>, vector<8x64xf32>
    %59 = arith.addf %49, %58 : vector<8x64xf32>
    %cst_15 = arith.constant 0.000000e+00 : f32
    %60 = vector.broadcast %cst_15 : f32 to vector<8x8xf32>
    %61 = vector.extract_strided_slice %29 {offsets = [0, 8], sizes = [8, 56], strides = [1, 1]} : vector<8x64xf32> to vector<8x56xf32>
    %62 = tpu.concatenate %61, %60 in 1 : vector<8x56xf32>, vector<8x8xf32> -> vector<8x64xf32>
    %63 = arith.maximumf %29, %62 : vector<8x64xf32>
    %cst_16 = arith.constant 0.000000e+00 : f32
    %64 = vector.broadcast %cst_16 : f32 to vector<8x16xf32>
    %65 = vector.extract_strided_slice %63 {offsets = [0, 16], sizes = [8, 48], strides = [1, 1]} : vector<8x64xf32> to vector<8x48xf32>
    %66 = tpu.concatenate %65, %64 in 1 : vector<8x48xf32>, vector<8x16xf32> -> vector<8x64xf32>
    %67 = arith.maximumf %63, %66 : vector<8x64xf32>
    %cst_17 = arith.constant 0.000000e+00 : f32
    %68 = vector.broadcast %cst_17 : f32 to vector<8x32xf32>
    %69 = vector.extract_strided_slice %67 {offsets = [0, 32], sizes = [8, 32], strides = [1, 1]} : vector<8x64xf32> to vector<8x32xf32>
    %70 = tpu.concatenate %69, %68 in 1 : vector<8x32xf32>, vector<8x32xf32> -> vector<8x64xf32>
    %71 = arith.maximumf %67, %70 : vector<8x64xf32>
    %c7_i32 = arith.constant 7 : i32
    %72 = vector.broadcast %c7_i32 : i32 to vector<1x64xi32>
    %73 = arith.cmpi slt, %7, %72 : vector<1x64xi32>
    %cst_18 = arith.constant 0.000000e+00 : f32
    %74 = vector.broadcast %cst_18 : f32 to vector<8x1xf32>
    %75 = vector.extract_strided_slice %59 {offsets = [0, 1], sizes = [8, 63], strides = [1, 1]} : vector<8x64xf32> to vector<8x63xf32>
    %76 = tpu.concatenate %75, %74 in 1 : vector<8x63xf32>, vector<8x1xf32> -> vector<8x64xf32>
    %77 = arith.maximumf %59, %76 : vector<8x64xf32>
    %78 = vector.shape_cast %73 : vector<1x64xi1> to vector<1x64xi1>
    %79 = vector.broadcast %78 : vector<1x64xi1> to vector<8x64xi1>
    %80 = arith.select %79, %77, %59 : vector<8x64xi1>, vector<8x64xf32>
    %c6_i32 = arith.constant 6 : i32
    %81 = vector.broadcast %c6_i32 : i32 to vector<1x64xi32>
    %82 = arith.cmpi slt, %7, %81 : vector<1x64xi32>
    %cst_19 = arith.constant 0.000000e+00 : f32
    %83 = vector.broadcast %cst_19 : f32 to vector<8x2xf32>
    %84 = vector.extract_strided_slice %80 {offsets = [0, 2], sizes = [8, 62], strides = [1, 1]} : vector<8x64xf32> to vector<8x62xf32>
    %85 = tpu.concatenate %84, %83 in 1 : vector<8x62xf32>, vector<8x2xf32> -> vector<8x64xf32>
    %86 = arith.maximumf %80, %85 : vector<8x64xf32>
    %87 = vector.shape_cast %82 : vector<1x64xi1> to vector<1x64xi1>
    %88 = vector.broadcast %87 : vector<1x64xi1> to vector<8x64xi1>
    %89 = arith.select %88, %86, %80 : vector<8x64xi1>, vector<8x64xf32>
    %c4_i32_20 = arith.constant 4 : i32
    %90 = vector.broadcast %c4_i32_20 : i32 to vector<1x64xi32>
    %91 = arith.cmpi slt, %7, %90 : vector<1x64xi32>
    %cst_21 = arith.constant 0.000000e+00 : f32
    %92 = vector.broadcast %cst_21 : f32 to vector<8x4xf32>
    %93 = vector.extract_strided_slice %89 {offsets = [0, 4], sizes = [8, 60], strides = [1, 1]} : vector<8x64xf32> to vector<8x60xf32>
    %94 = tpu.concatenate %93, %92 in 1 : vector<8x60xf32>, vector<8x4xf32> -> vector<8x64xf32>
    %95 = arith.maximumf %89, %94 : vector<8x64xf32>
    %96 = vector.shape_cast %91 : vector<1x64xi1> to vector<1x64xi1>
    %97 = vector.broadcast %96 : vector<1x64xi1> to vector<8x64xi1>
    %98 = arith.select %97, %95, %89 : vector<8x64xi1>, vector<8x64xf32>
    %cst_22 = arith.constant 5.000000e-01 : f32
    %99 = vector.broadcast %cst_22 : f32 to vector<8x64xf32>
    %100 = arith.subf %15, %99 : vector<8x64xf32>
    %cst_23 = arith.constant 9.99999997E-7 : f32
    %101 = vector.broadcast %cst_23 : f32 to vector<1x64xf32>
    %102 = arith.addf %17, %101 : vector<1x64xf32>
    %103 = tpu.reciprocal %102 : vector<1x64xf32> -> vector<1x64xf32>
    %cst_24 = arith.constant 6.28318548 : f32
    %104 = vector.broadcast %cst_24 : f32 to vector<1x64xf32>
    %105 = arith.mulf %104, %103 : vector<1x64xf32>
    %106 = vector.broadcast %105 : vector<1x64xf32> to vector<8x64xf32>
    %107 = arith.mulf %100, %106 : vector<8x64xf32>
    %cst_25 = arith.constant 5.000000e-01 : f32
    %108 = vector.broadcast %cst_25 : f32 to vector<8x64xf32>
    %109 = arith.subf %29, %108 : vector<8x64xf32>
    %cst_26 = arith.constant 9.99999997E-7 : f32
    %110 = vector.broadcast %cst_26 : f32 to vector<8x64xf32>
    %111 = arith.addf %71, %110 : vector<8x64xf32>
    %112 = tpu.reciprocal %111 : vector<8x64xf32> -> vector<8x64xf32>
    %cst_27 = arith.constant 6.28318548 : f32
    %113 = vector.broadcast %cst_27 : f32 to vector<8x64xf32>
    %114 = arith.mulf %113, %112 : vector<8x64xf32>
    %115 = arith.mulf %109, %114 : vector<8x64xf32>
    %cst_28 = arith.constant 5.000000e-01 : f32
    %116 = vector.broadcast %cst_28 : f32 to vector<8x64xf32>
    %117 = arith.subf %59, %116 : vector<8x64xf32>
    %cst_29 = arith.constant 9.99999997E-7 : f32
    %118 = vector.broadcast %cst_29 : f32 to vector<8x64xf32>
    %119 = arith.addf %98, %118 : vector<8x64xf32>
    %120 = tpu.reciprocal %119 : vector<8x64xf32> -> vector<8x64xf32>
    %cst_30 = arith.constant 6.28318548 : f32
    %121 = vector.broadcast %cst_30 : f32 to vector<8x64xf32>
    %122 = arith.mulf %121, %120 : vector<8x64xf32>
    %123 = arith.mulf %117, %122 : vector<8x64xf32>
    %cst_31 = arith.constant 1.000000e+00 : f32
    %124 = vector.broadcast %cst_31 : f32 to vector<8x64xf32>
    %125 = arith.mulf %115, %124 : vector<8x64xf32>
    %126 = math.sin %125 : vector<8x64xf32>
    %c0_32 = arith.constant 0 : index
    %c0_33 = arith.constant 0 : index
    %c0_34 = arith.constant 0 : index
    %c0_35 = arith.constant 0 : index
    %127 = vector.load %arg4[%c0_32, %c0_33, %c0_34, %c0_35] : memref<1x64x8x64xf32, #tpu.memory_space<vmem>>, vector<1x1x8x64xf32>
    %128 = vector.shape_cast %127 : vector<1x1x8x64xf32> to vector<8x64xf32>
    %129 = vector.shape_cast %126 : vector<8x64xf32> to vector<1x1x8x64xf32>
    tpu.vector_store %arg4[%c0_32, %c0_33, %c0_34, %c0_35], %129 {strides = array<i32>} : memref<1x64x8x64xf32, #tpu.memory_space<vmem>>, vector<1x1x8x64xf32>,
    %130 = math.cos %125 : vector<8x64xf32>
    %c0_36 = arith.constant 0 : index
    %c11 = arith.constant 11 : index
    %c0_37 = arith.constant 0 : index
    %c0_38 = arith.constant 0 : index
    %131 = vector.load %arg4[%c0_36, %c11, %c0_37, %c0_38] : memref<1x64x8x64xf32, #tpu.memory_space<vmem>>, vector<1x1x8x64xf32>
    %132 = vector.shape_cast %131 : vector<1x1x8x64xf32> to vector<8x64xf32>
    %133 = vector.shape_cast %130 : vector<8x64xf32> to vector<1x1x8x64xf32>
    tpu.vector_store %arg4[%c0_36, %c11, %c0_37, %c0_38], %133 {strides = array<i32>} : memref<1x64x8x64xf32, #tpu.memory_space<vmem>>, vector<1x1x8x64xf32>,
    %cst_39 = arith.constant 0.43287614 : f32
    %134 = vector.broadcast %cst_39 : f32 to vector<8x64xf32>
    %135 = arith.mulf %115, %134 : vector<8x64xf32>
    %136 = math.sin %135 : vector<8x64xf32>
    %c0_40 = arith.constant 0 : index
    %c1 = arith.constant 1 : index
    %c0_41 = arith.constant 0 : index
    %c0_42 = arith.constant 0 : index
    %137 = vector.load %arg4[%c0_40, %c1, %c0_41, %c0_42] : memref<1x64x8x64xf32, #tpu.memory_space<vmem>>, vector<1x1x8x64xf32>
    %138 = vector.shape_cast %137 : vector<1x1x8x64xf32> to vector<8x64xf32>
    %139 = vector.shape_cast %136 : vector<8x64xf32> to vector<1x1x8x64xf32>
    tpu.vector_store %arg4[%c0_40, %c1, %c0_41, %c0_42], %139 {strides = array<i32>} : memref<1x64x8x64xf32, #tpu.memory_space<vmem>>, vector<1x1x8x64xf32>,
    %140 = math.cos %135 : vector<8x64xf32>
    %c0_43 = arith.constant 0 : index
    %c12 = arith.constant 12 : index
    %c0_44 = arith.constant 0 : index
    %c0_45 = arith.constant 0 : index
    %141 = vector.load %arg4[%c0_43, %c12, %c0_44, %c0_45] : memref<1x64x8x64xf32, #tpu.memory_space<vmem>>, vector<1x1x8x64xf32>
    %142 = vector.shape_cast %141 : vector<1x1x8x64xf32> to vector<8x64xf32>
    %143 = vector.shape_cast %140 : vector<8x64xf32> to vector<1x1x8x64xf32>
    tpu.vector_store %arg4[%c0_43, %c12, %c0_44, %c0_45], %143 {strides = array<i32>} : memref<1x64x8x64xf32, #tpu.memory_space<vmem>>, vector<1x1x8x64xf32>,
    %cst_46 = arith.constant 0.187381744 : f32
    %144 = vector.broadcast %cst_46 : f32 to vector<8x64xf32>
    %145 = arith.mulf %115, %144 : vector<8x64xf32>
    %146 = math.sin %145 : vector<8x64xf32>
    %c0_47 = arith.constant 0 : index
    %c2 = arith.constant 2 : index
    %c0_48 = arith.constant 0 : index
    %c0_49 = arith.constant 0 : index
    %147 = vector.load %arg4[%c0_47, %c2, %c0_48, %c0_49] : memref<1x64x8x64xf32, #tpu.memory_space<vmem>>, vector<1x1x8x64xf32>
    %148 = vector.shape_cast %147 : vector<1x1x8x64xf32> to vector<8x64xf32>
    %149 = vector.shape_cast %146 : vector<8x64xf32> to vector<1x1x8x64xf32>
    tpu.vector_store %arg4[%c0_47, %c2, %c0_48, %c0_49], %149 {strides = array<i32>} : memref<1x64x8x64xf32, #tpu.memory_space<vmem>>, vector<1x1x8x64xf32>,
    %150 = math.cos %145 : vector<8x64xf32>
    %c0_50 = arith.constant 0 : index
    %c13 = arith.constant 13 : index
    %c0_51 = arith.constant 0 : index
    %c0_52 = arith.constant 0 : index
    %151 = vector.load %arg4[%c0_50, %c13, %c0_51, %c0_52] : memref<1x64x8x64xf32, #tpu.memory_space<vmem>>, vector<1x1x8x64xf32>
    %152 = vector.shape_cast %151 : vector<1x1x8x64xf32> to vector<8x64xf32>
    %153 = vector.shape_cast %150 : vector<8x64xf32> to vector<1x1x8x64xf32>
    tpu.vector_store %arg4[%c0_50, %c13, %c0_51, %c0_52], %153 {strides = array<i32>} : memref<1x64x8x64xf32, #tpu.memory_space<vmem>>, vector<1x1x8x64xf32>,
    %cst_53 = arith.constant 0.0811130852 : f32
    %154 = vector.broadcast %cst_53 : f32 to vector<8x64xf32>
    %155 = arith.mulf %115, %154 : vector<8x64xf32>
    %156 = math.sin %155 : vector<8x64xf32>
    %c0_54 = arith.constant 0 : index
    %c3 = arith.constant 3 : index
    %c0_55 = arith.constant 0 : index
    %c0_56 = arith.constant 0 : index
    %157 = vector.load %arg4[%c0_54, %c3, %c0_55, %c0_56] : memref<1x64x8x64xf32, #tpu.memory_space<vmem>>, vector<1x1x8x64xf32>
    %158 = vector.shape_cast %157 : vector<1x1x8x64xf32> to vector<8x64xf32>
    %159 = vector.shape_cast %156 : vector<8x64xf32> to vector<1x1x8x64xf32>
    tpu.vector_store %arg4[%c0_54, %c3, %c0_55, %c0_56], %159 {strides = array<i32>} : memref<1x64x8x64xf32, #tpu.memory_space<vmem>>, vector<1x1x8x64xf32>,
    %160 = math.cos %155 : vector<8x64xf32>
    %c0_57 = arith.constant 0 : index
    %c14 = arith.constant 14 : index
    %c0_58 = arith.constant 0 : index
    %c0_59 = arith.constant 0 : index
    %161 = vector.load %arg4[%c0_57, %c14, %c0_58, %c0_59] : memref<1x64x8x64xf32, #tpu.memory_space<vmem>>, vector<1x1x8x64xf32>
    %162 = vector.shape_cast %161 : vector<1x1x8x64xf32> to vector<8x64xf32>
    %163 = vector.shape_cast %160 : vector<8x64xf32> to vector<1x1x8x64xf32>
    tpu.vector_store %arg4[%c0_57, %c14, %c0_58, %c0_59], %163 {strides = array<i32>} : memref<1x64x8x64xf32, #tpu.memory_space<vmem>>, vector<1x1x8x64xf32>,
    %cst_60 = arith.constant 0.035111919 : f32
    %164 = vector.broadcast %cst_60 : f32 to vector<8x64xf32>
    %165 = arith.mulf %115, %164 : vector<8x64xf32>
    %166 = math.sin %165 : vector<8x64xf32>
    %c0_61 = arith.constant 0 : index
    %c4 = arith.constant 4 : index
    %c0_62 = arith.constant 0 : index
    %c0_63 = arith.constant 0 : index
    %167 = vector.load %arg4[%c0_61, %c4, %c0_62, %c0_63] : memref<1x64x8x64xf32, #tpu.memory_space<vmem>>, vector<1x1x8x64xf32>
    %168 = vector.shape_cast %167 : vector<1x1x8x64xf32> to vector<8x64xf32>
    %169 = vector.shape_cast %166 : vector<8x64xf32> to vector<1x1x8x64xf32>
    tpu.vector_store %arg4[%c0_61, %c4, %c0_62, %c0_63], %169 {strides = array<i32>} : memref<1x64x8x64xf32, #tpu.memory_space<vmem>>, vector<1x1x8x64xf32>,
    %170 = math.cos %165 : vector<8x64xf32>
    %c0_64 = arith.constant 0 : index
    %c15 = arith.constant 15 : index
    %c0_65 = arith.constant 0 : index
    %c0_66 = arith.constant 0 : index
    %171 = vector.load %arg4[%c0_64, %c15, %c0_65, %c0_66] : memref<1x64x8x64xf32, #tpu.memory_space<vmem>>, vector<1x1x8x64xf32>
    %172 = vector.shape_cast %171 : vector<1x1x8x64xf32> to vector<8x64xf32>
    %173 = vector.shape_cast %170 : vector<8x64xf32> to vector<1x1x8x64xf32>
    tpu.vector_store %arg4[%c0_64, %c15, %c0_65, %c0_66], %173 {strides = array<i32>} : memref<1x64x8x64xf32, #tpu.memory_space<vmem>>, vector<1x1x8x64xf32>,
    %cst_67 = arith.constant 0.0151991108 : f32
    %174 = vector.broadcast %cst_67 : f32 to vector<8x64xf32>
    %175 = arith.mulf %115, %174 : vector<8x64xf32>
    %176 = math.sin %175 : vector<8x64xf32>
    %c0_68 = arith.constant 0 : index
    %c5 = arith.constant 5 : index
    %c0_69 = arith.constant 0 : index
    %c0_70 = arith.constant 0 : index
    %177 = vector.load %arg4[%c0_68, %c5, %c0_69, %c0_70] : memref<1x64x8x64xf32, #tpu.memory_space<vmem>>, vector<1x1x8x64xf32>
    %178 = vector.shape_cast %177 : vector<1x1x8x64xf32> to vector<8x64xf32>
    %179 = vector.shape_cast %176 : vector<8x64xf32> to vector<1x1x8x64xf32>
    tpu.vector_store %arg4[%c0_68, %c5, %c0_69, %c0_70], %179 {strides = array<i32>} : memref<1x64x8x64xf32, #tpu.memory_space<vmem>>, vector<1x1x8x64xf32>,
    %180 = math.cos %175 : vector<8x64xf32>
    %c0_71 = arith.constant 0 : index
    %c16 = arith.constant 16 : index
    %c0_72 = arith.constant 0 : index
    %c0_73 = arith.constant 0 : index
    %181 = vector.load %arg4[%c0_71, %c16, %c0_72, %c0_73] : memref<1x64x8x64xf32, #tpu.memory_space<vmem>>, vector<1x1x8x64xf32>
    %182 = vector.shape_cast %181 : vector<1x1x8x64xf32> to vector<8x64xf32>
    %183 = vector.shape_cast %180 : vector<8x64xf32> to vector<1x1x8x64xf32>
    tpu.vector_store %arg4[%c0_71, %c16, %c0_72, %c0_73], %183 {strides = array<i32>} : memref<1x64x8x64xf32, #tpu.memory_space<vmem>>, vector<1x1x8x64xf32>,
    %cst_74 = arith.constant 0.00657933205 : f32
    %184 = vector.broadcast %cst_74 : f32 to vector<8x64xf32>
    %185 = arith.mulf %115, %184 : vector<8x64xf32>
    %186 = math.sin %185 : vector<8x64xf32>
    %c0_75 = arith.constant 0 : index
    %c6 = arith.constant 6 : index
    %c0_76 = arith.constant 0 : index
    %c0_77 = arith.constant 0 : index
    %187 = vector.load %arg4[%c0_75, %c6, %c0_76, %c0_77] : memref<1x64x8x64xf32, #tpu.memory_space<vmem>>, vector<1x1x8x64xf32>
    %188 = vector.shape_cast %187 : vector<1x1x8x64xf32> to vector<8x64xf32>
    %189 = vector.shape_cast %186 : vector<8x64xf32> to vector<1x1x8x64xf32>
    tpu.vector_store %arg4[%c0_75, %c6, %c0_76, %c0_77], %189 {strides = array<i32>} : memref<1x64x8x64xf32, #tpu.memory_space<vmem>>, vector<1x1x8x64xf32>,
    %190 = math.cos %185 : vector<8x64xf32>
    %c0_78 = arith.constant 0 : index
    %c17 = arith.constant 17 : index
    %c0_79 = arith.constant 0 : index
    %c0_80 = arith.constant 0 : index
    %191 = vector.load %arg4[%c0_78, %c17, %c0_79, %c0_80] : memref<1x64x8x64xf32, #tpu.memory_space<vmem>>, vector<1x1x8x64xf32>
    %192 = vector.shape_cast %191 : vector<1x1x8x64xf32> to vector<8x64xf32>
    %193 = vector.shape_cast %190 : vector<8x64xf32> to vector<1x1x8x64xf32>
    tpu.vector_store %arg4[%c0_78, %c17, %c0_79, %c0_80], %193 {strides = array<i32>} : memref<1x64x8x64xf32, #tpu.memory_space<vmem>>, vector<1x1x8x64xf32>,
    %cst_81 = arith.constant 0.00284803589 : f32
    %194 = vector.broadcast %cst_81 : f32 to vector<8x64xf32>
    %195 = arith.mulf %115, %194 : vector<8x64xf32>
    %196 = math.sin %195 : vector<8x64xf32>
    %c0_82 = arith.constant 0 : index
    %c7 = arith.constant 7 : index
    %c0_83 = arith.constant 0 : index
    %c0_84 = arith.constant 0 : index
    %197 = vector.load %arg4[%c0_82, %c7, %c0_83, %c0_84] : memref<1x64x8x64xf32, #tpu.memory_space<vmem>>, vector<1x1x8x64xf32>
    %198 = vector.shape_cast %197 : vector<1x1x8x64xf32> to vector<8x64xf32>
    %199 = vector.shape_cast %196 : vector<8x64xf32> to vector<1x1x8x64xf32>
    tpu.vector_store %arg4[%c0_82, %c7, %c0_83, %c0_84], %199 {strides = array<i32>} : memref<1x64x8x64xf32, #tpu.memory_space<vmem>>, vector<1x1x8x64xf32>,
    %200 = math.cos %195 : vector<8x64xf32>
    %c0_85 = arith.constant 0 : index
    %c18 = arith.constant 18 : index
    %c0_86 = arith.constant 0 : index
    %c0_87 = arith.constant 0 : index
    %201 = vector.load %arg4[%c0_85, %c18, %c0_86, %c0_87] : memref<1x64x8x64xf32, #tpu.memory_space<vmem>>, vector<1x1x8x64xf32>
    %202 = vector.shape_cast %201 : vector<1x1x8x64xf32> to vector<8x64xf32>
    %203 = vector.shape_cast %200 : vector<8x64xf32> to vector<1x1x8x64xf32>
    tpu.vector_store %arg4[%c0_85, %c18, %c0_86, %c0_87], %203 {strides = array<i32>} : memref<1x64x8x64xf32, #tpu.memory_space<vmem>>, vector<1x1x8x64xf32>,
    %cst_88 = arith.constant 0.00123284676 : f32
    %204 = vector.broadcast %cst_88 : f32 to vector<8x64xf32>
    %205 = arith.mulf %115, %204 : vector<8x64xf32>
    %206 = math.sin %205 : vector<8x64xf32>
    %c0_89 = arith.constant 0 : index
    %c8 = arith.constant 8 : index
    %c0_90 = arith.constant 0 : index
    %c0_91 = arith.constant 0 : index
    %207 = vector.load %arg4[%c0_89, %c8, %c0_90, %c0_91] : memref<1x64x8x64xf32, #tpu.memory_space<vmem>>, vector<1x1x8x64xf32>
    %208 = vector.shape_cast %207 : vector<1x1x8x64xf32> to vector<8x64xf32>
    %209 = vector.shape_cast %206 : vector<8x64xf32> to vector<1x1x8x64xf32>
    tpu.vector_store %arg4[%c0_89, %c8, %c0_90, %c0_91], %209 {strides = array<i32>} : memref<1x64x8x64xf32, #tpu.memory_space<vmem>>, vector<1x1x8x64xf32>,
    %210 = math.cos %205 : vector<8x64xf32>
    %c0_92 = arith.constant 0 : index
    %c19 = arith.constant 19 : index
    %c0_93 = arith.constant 0 : index
    %c0_94 = arith.constant 0 : index
    %211 = vector.load %arg4[%c0_92, %c19, %c0_93, %c0_94] : memref<1x64x8x64xf32, #tpu.memory_space<vmem>>, vector<1x1x8x64xf32>
    %212 = vector.shape_cast %211 : vector<1x1x8x64xf32> to vector<8x64xf32>
    %213 = vector.shape_cast %210 : vector<8x64xf32> to vector<1x1x8x64xf32>
    tpu.vector_store %arg4[%c0_92, %c19, %c0_93, %c0_94], %213 {strides = array<i32>} : memref<1x64x8x64xf32, #tpu.memory_space<vmem>>, vector<1x1x8x64xf32>,
    %cst_95 = arith.constant 5.33669896E-4 : f32
    %214 = vector.broadcast %cst_95 : f32 to vector<8x64xf32>
    %215 = arith.mulf %115, %214 : vector<8x64xf32>
    %216 = math.sin %215 : vector<8x64xf32>
    %c0_96 = arith.constant 0 : index
    %c9 = arith.constant 9 : index
    %c0_97 = arith.constant 0 : index
    %c0_98 = arith.constant 0 : index
    %217 = vector.load %arg4[%c0_96, %c9, %c0_97, %c0_98] : memref<1x64x8x64xf32, #tpu.memory_space<vmem>>, vector<1x1x8x64xf32>
    %218 = vector.shape_cast %217 : vector<1x1x8x64xf32> to vector<8x64xf32>
    %219 = vector.shape_cast %216 : vector<8x64xf32> to vector<1x1x8x64xf32>
    tpu.vector_store %arg4[%c0_96, %c9, %c0_97, %c0_98], %219 {strides = array<i32>} : memref<1x64x8x64xf32, #tpu.memory_space<vmem>>, vector<1x1x8x64xf32>,
    %220 = math.cos %215 : vector<8x64xf32>
    %c0_99 = arith.constant 0 : index
    %c20 = arith.constant 20 : index
    %c0_100 = arith.constant 0 : index
    %c0_101 = arith.constant 0 : index
    %221 = vector.load %arg4[%c0_99, %c20, %c0_100, %c0_101] : memref<1x64x8x64xf32, #tpu.memory_space<vmem>>, vector<1x1x8x64xf32>
    %222 = vector.shape_cast %221 : vector<1x1x8x64xf32> to vector<8x64xf32>
    %223 = vector.shape_cast %220 : vector<8x64xf32> to vector<1x1x8x64xf32>
    tpu.vector_store %arg4[%c0_99, %c20, %c0_100, %c0_101], %223 {strides = array<i32>} : memref<1x64x8x64xf32, #tpu.memory_space<vmem>>, vector<1x1x8x64xf32>,
    %cst_102 = arith.constant 2.31012964E-4 : f32
    %224 = vector.broadcast %cst_102 : f32 to vector<8x64xf32>
    %225 = arith.mulf %115, %224 : vector<8x64xf32>
    %226 = math.sin %225 : vector<8x64xf32>
    %c0_103 = arith.constant 0 : index
    %c10 = arith.constant 10 : index
    %c0_104 = arith.constant 0 : index
    %c0_105 = arith.constant 0 : index
    %227 = vector.load %arg4[%c0_103, %c10, %c0_104, %c0_105] : memref<1x64x8x64xf32, #tpu.memory_space<vmem>>, vector<1x1x8x64xf32>
    %228 = vector.shape_cast %227 : vector<1x1x8x64xf32> to vector<8x64xf32>
    %229 = vector.shape_cast %226 : vector<8x64xf32> to vector<1x1x8x64xf32>
    tpu.vector_store %arg4[%c0_103, %c10, %c0_104, %c0_105], %229 {strides = array<i32>} : memref<1x64x8x64xf32, #tpu.memory_space<vmem>>, vector<1x1x8x64xf32>,
    %230 = math.cos %225 : vector<8x64xf32>
    %c0_106 = arith.constant 0 : index
    %c21 = arith.constant 21 : index
    %c0_107 = arith.constant 0 : index
    %c0_108 = arith.constant 0 : index
    %231 = vector.load %arg4[%c0_106, %c21, %c0_107, %c0_108] : memref<1x64x8x64xf32, #tpu.memory_space<vmem>>, vector<1x1x8x64xf32>
    %232 = vector.shape_cast %231 : vector<1x1x8x64xf32> to vector<8x64xf32>
    %233 = vector.shape_cast %230 : vector<8x64xf32> to vector<1x1x8x64xf32>
    tpu.vector_store %arg4[%c0_106, %c21, %c0_107, %c0_108], %233 {strides = array<i32>} : memref<1x64x8x64xf32, #tpu.memory_space<vmem>>, vector<1x1x8x64xf32>,
    %cst_109 = arith.constant 1.000000e+00 : f32
    %234 = vector.broadcast %cst_109 : f32 to vector<8x64xf32>
    %235 = arith.mulf %107, %234 : vector<8x64xf32>
    %236 = math.sin %235 : vector<8x64xf32>
    %c0_110 = arith.constant 0 : index
    %c22 = arith.constant 22 : index
    %c0_111 = arith.constant 0 : index
    %c0_112 = arith.constant 0 : index
    %237 = vector.load %arg4[%c0_110, %c22, %c0_111, %c0_112] : memref<1x64x8x64xf32, #tpu.memory_space<vmem>>, vector<1x1x8x64xf32>
    %238 = vector.shape_cast %237 : vector<1x1x8x64xf32> to vector<8x64xf32>
    %239 = vector.shape_cast %236 : vector<8x64xf32> to vector<1x1x8x64xf32>
    tpu.vector_store %arg4[%c0_110, %c22, %c0_111, %c0_112], %239 {strides = array<i32>} : memref<1x64x8x64xf32, #tpu.memory_space<vmem>>, vector<1x1x8x64xf32>,
    %240 = math.cos %235 : vector<8x64xf32>
    %c0_113 = arith.constant 0 : index
    %c33 = arith.constant 33 : index
    %c0_114 = arith.constant 0 : index
    %c0_115 = arith.constant 0 : index
    %241 = vector.load %arg4[%c0_113, %c33, %c0_114, %c0_115] : memref<1x64x8x64xf32, #tpu.memory_space<vmem>>, vector<1x1x8x64xf32>
    %242 = vector.shape_cast %241 : vector<1x1x8x64xf32> to vector<8x64xf32>
    %243 = vector.shape_cast %240 : vector<8x64xf32> to vector<1x1x8x64xf32>
    tpu.vector_store %arg4[%c0_113, %c33, %c0_114, %c0_115], %243 {strides = array<i32>} : memref<1x64x8x64xf32, #tpu.memory_space<vmem>>, vector<1x1x8x64xf32>,
    %cst_116 = arith.constant 0.43287614 : f32
    %244 = vector.broadcast %cst_116 : f32 to vector<8x64xf32>
    %245 = arith.mulf %107, %244 : vector<8x64xf32>
    %246 = math.sin %245 : vector<8x64xf32>
    %c0_117 = arith.constant 0 : index
    %c23 = arith.constant 23 : index
    %c0_118 = arith.constant 0 : index
    %c0_119 = arith.constant 0 : index
    %247 = vector.load %arg4[%c0_117, %c23, %c0_118, %c0_119] : memref<1x64x8x64xf32, #tpu.memory_space<vmem>>, vector<1x1x8x64xf32>
    %248 = vector.shape_cast %247 : vector<1x1x8x64xf32> to vector<8x64xf32>
    %249 = vector.shape_cast %246 : vector<8x64xf32> to vector<1x1x8x64xf32>
    tpu.vector_store %arg4[%c0_117, %c23, %c0_118, %c0_119], %249 {strides = array<i32>} : memref<1x64x8x64xf32, #tpu.memory_space<vmem>>, vector<1x1x8x64xf32>,
    %250 = math.cos %245 : vector<8x64xf32>
    %c0_120 = arith.constant 0 : index
    %c34 = arith.constant 34 : index
    %c0_121 = arith.constant 0 : index
    %c0_122 = arith.constant 0 : index
    %251 = vector.load %arg4[%c0_120, %c34, %c0_121, %c0_122] : memref<1x64x8x64xf32, #tpu.memory_space<vmem>>, vector<1x1x8x64xf32>
    %252 = vector.shape_cast %251 : vector<1x1x8x64xf32> to vector<8x64xf32>
    %253 = vector.shape_cast %250 : vector<8x64xf32> to vector<1x1x8x64xf32>
    tpu.vector_store %arg4[%c0_120, %c34, %c0_121, %c0_122], %253 {strides = array<i32>} : memref<1x64x8x64xf32, #tpu.memory_space<vmem>>, vector<1x1x8x64xf32>,
    %cst_123 = arith.constant 0.187381744 : f32
    %254 = vector.broadcast %cst_123 : f32 to vector<8x64xf32>
    %255 = arith.mulf %107, %254 : vector<8x64xf32>
    %256 = math.sin %255 : vector<8x64xf32>
    %c0_124 = arith.constant 0 : index
    %c24 = arith.constant 24 : index
    %c0_125 = arith.constant 0 : index
    %c0_126 = arith.constant 0 : index
    %257 = vector.load %arg4[%c0_124, %c24, %c0_125, %c0_126] : memref<1x64x8x64xf32, #tpu.memory_space<vmem>>, vector<1x1x8x64xf32>
    %258 = vector.shape_cast %257 : vector<1x1x8x64xf32> to vector<8x64xf32>
    %259 = vector.shape_cast %256 : vector<8x64xf32> to vector<1x1x8x64xf32>
    tpu.vector_store %arg4[%c0_124, %c24, %c0_125, %c0_126], %259 {strides = array<i32>} : memref<1x64x8x64xf32, #tpu.memory_space<vmem>>, vector<1x1x8x64xf32>,
    %260 = math.cos %255 : vector<8x64xf32>
    %c0_127 = arith.constant 0 : index
    %c35 = arith.constant 35 : index
    %c0_128 = arith.constant 0 : index
    %c0_129 = arith.constant 0 : index
    %261 = vector.load %arg4[%c0_127, %c35, %c0_128, %c0_129] : memref<1x64x8x64xf32, #tpu.memory_space<vmem>>, vector<1x1x8x64xf32>
    %262 = vector.shape_cast %261 : vector<1x1x8x64xf32> to vector<8x64xf32>
    %263 = vector.shape_cast %260 : vector<8x64xf32> to vector<1x1x8x64xf32>
    tpu.vector_store %arg4[%c0_127, %c35, %c0_128, %c0_129], %263 {strides = array<i32>} : memref<1x64x8x64xf32, #tpu.memory_space<vmem>>, vector<1x1x8x64xf32>,
    %cst_130 = arith.constant 0.0811130852 : f32
    %264 = vector.broadcast %cst_130 : f32 to vector<8x64xf32>
    %265 = arith.mulf %107, %264 : vector<8x64xf32>
    %266 = math.sin %265 : vector<8x64xf32>
    %c0_131 = arith.constant 0 : index
    %c25 = arith.constant 25 : index
    %c0_132 = arith.constant 0 : index
    %c0_133 = arith.constant 0 : index
    %267 = vector.load %arg4[%c0_131, %c25, %c0_132, %c0_133] : memref<1x64x8x64xf32, #tpu.memory_space<vmem>>, vector<1x1x8x64xf32>
    %268 = vector.shape_cast %267 : vector<1x1x8x64xf32> to vector<8x64xf32>
    %269 = vector.shape_cast %266 : vector<8x64xf32> to vector<1x1x8x64xf32>
    tpu.vector_store %arg4[%c0_131, %c25, %c0_132, %c0_133], %269 {strides = array<i32>} : memref<1x64x8x64xf32, #tpu.memory_space<vmem>>, vector<1x1x8x64xf32>,
    %270 = math.cos %265 : vector<8x64xf32>
    %c0_134 = arith.constant 0 : index
    %c36 = arith.constant 36 : index
    %c0_135 = arith.constant 0 : index
    %c0_136 = arith.constant 0 : index
    %271 = vector.load %arg4[%c0_134, %c36, %c0_135, %c0_136] : memref<1x64x8x64xf32, #tpu.memory_space<vmem>>, vector<1x1x8x64xf32>
    %272 = vector.shape_cast %271 : vector<1x1x8x64xf32> to vector<8x64xf32>
    %273 = vector.shape_cast %270 : vector<8x64xf32> to vector<1x1x8x64xf32>
    tpu.vector_store %arg4[%c0_134, %c36, %c0_135, %c0_136], %273 {strides = array<i32>} : memref<1x64x8x64xf32, #tpu.memory_space<vmem>>, vector<1x1x8x64xf32>,
    %cst_137 = arith.constant 0.035111919 : f32
    %274 = vector.broadcast %cst_137 : f32 to vector<8x64xf32>
    %275 = arith.mulf %107, %274 : vector<8x64xf32>
    %276 = math.sin %275 : vector<8x64xf32>
    %c0_138 = arith.constant 0 : index
    %c26 = arith.constant 26 : index
    %c0_139 = arith.constant 0 : index
    %c0_140 = arith.constant 0 : index
    %277 = vector.load %arg4[%c0_138, %c26, %c0_139, %c0_140] : memref<1x64x8x64xf32, #tpu.memory_space<vmem>>, vector<1x1x8x64xf32>
    %278 = vector.shape_cast %277 : vector<1x1x8x64xf32> to vector<8x64xf32>
    %279 = vector.shape_cast %276 : vector<8x64xf32> to vector<1x1x8x64xf32>
    tpu.vector_store %arg4[%c0_138, %c26, %c0_139, %c0_140], %279 {strides = array<i32>} : memref<1x64x8x64xf32, #tpu.memory_space<vmem>>, vector<1x1x8x64xf32>,
    %280 = math.cos %275 : vector<8x64xf32>
    %c0_141 = arith.constant 0 : index
    %c37 = arith.constant 37 : index
    %c0_142 = arith.constant 0 : index
    %c0_143 = arith.constant 0 : index
    %281 = vector.load %arg4[%c0_141, %c37, %c0_142, %c0_143] : memref<1x64x8x64xf32, #tpu.memory_space<vmem>>, vector<1x1x8x64xf32>
    %282 = vector.shape_cast %281 : vector<1x1x8x64xf32> to vector<8x64xf32>
    %283 = vector.shape_cast %280 : vector<8x64xf32> to vector<1x1x8x64xf32>
    tpu.vector_store %arg4[%c0_141, %c37, %c0_142, %c0_143], %283 {strides = array<i32>} : memref<1x64x8x64xf32, #tpu.memory_space<vmem>>, vector<1x1x8x64xf32>,
    %cst_144 = arith.constant 0.0151991108 : f32
    %284 = vector.broadcast %cst_144 : f32 to vector<8x64xf32>
    %285 = arith.mulf %107, %284 : vector<8x64xf32>
    %286 = math.sin %285 : vector<8x64xf32>
    %c0_145 = arith.constant 0 : index
    %c27 = arith.constant 27 : index
    %c0_146 = arith.constant 0 : index
    %c0_147 = arith.constant 0 : index
    %287 = vector.load %arg4[%c0_145, %c27, %c0_146, %c0_147] : memref<1x64x8x64xf32, #tpu.memory_space<vmem>>, vector<1x1x8x64xf32>
    %288 = vector.shape_cast %287 : vector<1x1x8x64xf32> to vector<8x64xf32>
    %289 = vector.shape_cast %286 : vector<8x64xf32> to vector<1x1x8x64xf32>
    tpu.vector_store %arg4[%c0_145, %c27, %c0_146, %c0_147], %289 {strides = array<i32>} : memref<1x64x8x64xf32, #tpu.memory_space<vmem>>, vector<1x1x8x64xf32>,
    %290 = math.cos %285 : vector<8x64xf32>
    %c0_148 = arith.constant 0 : index
    %c38 = arith.constant 38 : index
    %c0_149 = arith.constant 0 : index
    %c0_150 = arith.constant 0 : index
    %291 = vector.load %arg4[%c0_148, %c38, %c0_149, %c0_150] : memref<1x64x8x64xf32, #tpu.memory_space<vmem>>, vector<1x1x8x64xf32>
    %292 = vector.shape_cast %291 : vector<1x1x8x64xf32> to vector<8x64xf32>
    %293 = vector.shape_cast %290 : vector<8x64xf32> to vector<1x1x8x64xf32>
    tpu.vector_store %arg4[%c0_148, %c38, %c0_149, %c0_150], %293 {strides = array<i32>} : memref<1x64x8x64xf32, #tpu.memory_space<vmem>>, vector<1x1x8x64xf32>,
    %cst_151 = arith.constant 0.00657933205 : f32
    %294 = vector.broadcast %cst_151 : f32 to vector<8x64xf32>
    %295 = arith.mulf %107, %294 : vector<8x64xf32>
    %296 = math.sin %295 : vector<8x64xf32>
    %c0_152 = arith.constant 0 : index
    %c28 = arith.constant 28 : index
    %c0_153 = arith.constant 0 : index
    %c0_154 = arith.constant 0 : index
    %297 = vector.load %arg4[%c0_152, %c28, %c0_153, %c0_154] : memref<1x64x8x64xf32, #tpu.memory_space<vmem>>, vector<1x1x8x64xf32>
    %298 = vector.shape_cast %297 : vector<1x1x8x64xf32> to vector<8x64xf32>
    %299 = vector.shape_cast %296 : vector<8x64xf32> to vector<1x1x8x64xf32>
    tpu.vector_store %arg4[%c0_152, %c28, %c0_153, %c0_154], %299 {strides = array<i32>} : memref<1x64x8x64xf32, #tpu.memory_space<vmem>>, vector<1x1x8x64xf32>,
    %300 = math.cos %295 : vector<8x64xf32>
    %c0_155 = arith.constant 0 : index
    %c39 = arith.constant 39 : index
    %c0_156 = arith.constant 0 : index
    %c0_157 = arith.constant 0 : index
    %301 = vector.load %arg4[%c0_155, %c39, %c0_156, %c0_157] : memref<1x64x8x64xf32, #tpu.memory_space<vmem>>, vector<1x1x8x64xf32>
    %302 = vector.shape_cast %301 : vector<1x1x8x64xf32> to vector<8x64xf32>
    %303 = vector.shape_cast %300 : vector<8x64xf32> to vector<1x1x8x64xf32>
    tpu.vector_store %arg4[%c0_155, %c39, %c0_156, %c0_157], %303 {strides = array<i32>} : memref<1x64x8x64xf32, #tpu.memory_space<vmem>>, vector<1x1x8x64xf32>,
    %cst_158 = arith.constant 0.00284803589 : f32
    %304 = vector.broadcast %cst_158 : f32 to vector<8x64xf32>
    %305 = arith.mulf %107, %304 : vector<8x64xf32>
    %306 = math.sin %305 : vector<8x64xf32>
    %c0_159 = arith.constant 0 : index
    %c29 = arith.constant 29 : index
    %c0_160 = arith.constant 0 : index
    %c0_161 = arith.constant 0 : index
    %307 = vector.load %arg4[%c0_159, %c29, %c0_160, %c0_161] : memref<1x64x8x64xf32, #tpu.memory_space<vmem>>, vector<1x1x8x64xf32>
    %308 = vector.shape_cast %307 : vector<1x1x8x64xf32> to vector<8x64xf32>
    %309 = vector.shape_cast %306 : vector<8x64xf32> to vector<1x1x8x64xf32>
    tpu.vector_store %arg4[%c0_159, %c29, %c0_160, %c0_161], %309 {strides = array<i32>} : memref<1x64x8x64xf32, #tpu.memory_space<vmem>>, vector<1x1x8x64xf32>,
    %310 = math.cos %305 : vector<8x64xf32>
    %c0_162 = arith.constant 0 : index
    %c40 = arith.constant 40 : index
    %c0_163 = arith.constant 0 : index
    %c0_164 = arith.constant 0 : index
    %311 = vector.load %arg4[%c0_162, %c40, %c0_163, %c0_164] : memref<1x64x8x64xf32, #tpu.memory_space<vmem>>, vector<1x1x8x64xf32>
    %312 = vector.shape_cast %311 : vector<1x1x8x64xf32> to vector<8x64xf32>
    %313 = vector.shape_cast %310 : vector<8x64xf32> to vector<1x1x8x64xf32>
    tpu.vector_store %arg4[%c0_162, %c40, %c0_163, %c0_164], %313 {strides = array<i32>} : memref<1x64x8x64xf32, #tpu.memory_space<vmem>>, vector<1x1x8x64xf32>,
    %cst_165 = arith.constant 0.00123284676 : f32
    %314 = vector.broadcast %cst_165 : f32 to vector<8x64xf32>
    %315 = arith.mulf %107, %314 : vector<8x64xf32>
    %316 = math.sin %315 : vector<8x64xf32>
    %c0_166 = arith.constant 0 : index
    %c30 = arith.constant 30 : index
    %c0_167 = arith.constant 0 : index
    %c0_168 = arith.constant 0 : index
    %317 = vector.load %arg4[%c0_166, %c30, %c0_167, %c0_168] : memref<1x64x8x64xf32, #tpu.memory_space<vmem>>, vector<1x1x8x64xf32>
    %318 = vector.shape_cast %317 : vector<1x1x8x64xf32> to vector<8x64xf32>
    %319 = vector.shape_cast %316 : vector<8x64xf32> to vector<1x1x8x64xf32>
    tpu.vector_store %arg4[%c0_166, %c30, %c0_167, %c0_168], %319 {strides = array<i32>} : memref<1x64x8x64xf32, #tpu.memory_space<vmem>>, vector<1x1x8x64xf32>,
    %320 = math.cos %315 : vector<8x64xf32>
    %c0_169 = arith.constant 0 : index
    %c41 = arith.constant 41 : index
    %c0_170 = arith.constant 0 : index
    %c0_171 = arith.constant 0 : index
    %321 = vector.load %arg4[%c0_169, %c41, %c0_170, %c0_171] : memref<1x64x8x64xf32, #tpu.memory_space<vmem>>, vector<1x1x8x64xf32>
    %322 = vector.shape_cast %321 : vector<1x1x8x64xf32> to vector<8x64xf32>
    %323 = vector.shape_cast %320 : vector<8x64xf32> to vector<1x1x8x64xf32>
    tpu.vector_store %arg4[%c0_169, %c41, %c0_170, %c0_171], %323 {strides = array<i32>} : memref<1x64x8x64xf32, #tpu.memory_space<vmem>>, vector<1x1x8x64xf32>,
    %cst_172 = arith.constant 5.33669896E-4 : f32
    %324 = vector.broadcast %cst_172 : f32 to vector<8x64xf32>
    %325 = arith.mulf %107, %324 : vector<8x64xf32>
    %326 = math.sin %325 : vector<8x64xf32>
    %c0_173 = arith.constant 0 : index
    %c31 = arith.constant 31 : index
    %c0_174 = arith.constant 0 : index
    %c0_175 = arith.constant 0 : index
    %327 = vector.load %arg4[%c0_173, %c31, %c0_174, %c0_175] : memref<1x64x8x64xf32, #tpu.memory_space<vmem>>, vector<1x1x8x64xf32>
    %328 = vector.shape_cast %327 : vector<1x1x8x64xf32> to vector<8x64xf32>
    %329 = vector.shape_cast %326 : vector<8x64xf32> to vector<1x1x8x64xf32>
    tpu.vector_store %arg4[%c0_173, %c31, %c0_174, %c0_175], %329 {strides = array<i32>} : memref<1x64x8x64xf32, #tpu.memory_space<vmem>>, vector<1x1x8x64xf32>,
    %330 = math.cos %325 : vector<8x64xf32>
    %c0_176 = arith.constant 0 : index
    %c42 = arith.constant 42 : index
    %c0_177 = arith.constant 0 : index
    %c0_178 = arith.constant 0 : index
    %331 = vector.load %arg4[%c0_176, %c42, %c0_177, %c0_178] : memref<1x64x8x64xf32, #tpu.memory_space<vmem>>, vector<1x1x8x64xf32>
    %332 = vector.shape_cast %331 : vector<1x1x8x64xf32> to vector<8x64xf32>
    %333 = vector.shape_cast %330 : vector<8x64xf32> to vector<1x1x8x64xf32>
    tpu.vector_store %arg4[%c0_176, %c42, %c0_177, %c0_178], %333 {strides = array<i32>} : memref<1x64x8x64xf32, #tpu.memory_space<vmem>>, vector<1x1x8x64xf32>,
    %cst_179 = arith.constant 2.31012964E-4 : f32
    %334 = vector.broadcast %cst_179 : f32 to vector<8x64xf32>
    %335 = arith.mulf %107, %334 : vector<8x64xf32>
    %336 = math.sin %335 : vector<8x64xf32>
    %c0_180 = arith.constant 0 : index
    %c32 = arith.constant 32 : index
    %c0_181 = arith.constant 0 : index
    %c0_182 = arith.constant 0 : index
    %337 = vector.load %arg4[%c0_180, %c32, %c0_181, %c0_182] : memref<1x64x8x64xf32, #tpu.memory_space<vmem>>, vector<1x1x8x64xf32>
    %338 = vector.shape_cast %337 : vector<1x1x8x64xf32> to vector<8x64xf32>
    %339 = vector.shape_cast %336 : vector<8x64xf32> to vector<1x1x8x64xf32>
    tpu.vector_store %arg4[%c0_180, %c32, %c0_181, %c0_182], %339 {strides = array<i32>} : memref<1x64x8x64xf32, #tpu.memory_space<vmem>>, vector<1x1x8x64xf32>,
    %340 = math.cos %335 : vector<8x64xf32>
    %c0_183 = arith.constant 0 : index
    %c43 = arith.constant 43 : index
    %c0_184 = arith.constant 0 : index
    %c0_185 = arith.constant 0 : index
    %341 = vector.load %arg4[%c0_183, %c43, %c0_184, %c0_185] : memref<1x64x8x64xf32, #tpu.memory_space<vmem>>, vector<1x1x8x64xf32>
    %342 = vector.shape_cast %341 : vector<1x1x8x64xf32> to vector<8x64xf32>
    %343 = vector.shape_cast %340 : vector<8x64xf32> to vector<1x1x8x64xf32>
    tpu.vector_store %arg4[%c0_183, %c43, %c0_184, %c0_185], %343 {strides = array<i32>} : memref<1x64x8x64xf32, #tpu.memory_space<vmem>>, vector<1x1x8x64xf32>,
    %cst_186 = arith.constant 1.000000e+00 : f32
    %344 = vector.broadcast %cst_186 : f32 to vector<8x64xf32>
    %345 = arith.mulf %123, %344 : vector<8x64xf32>
    %346 = math.sin %345 : vector<8x64xf32>
    %c0_187 = arith.constant 0 : index
    %c44 = arith.constant 44 : index
    %c0_188 = arith.constant 0 : index
    %c0_189 = arith.constant 0 : index
    %347 = vector.load %arg4[%c0_187, %c44, %c0_188, %c0_189] : memref<1x64x8x64xf32, #tpu.memory_space<vmem>>, vector<1x1x8x64xf32>
    %348 = vector.shape_cast %347 : vector<1x1x8x64xf32> to vector<8x64xf32>
    %349 = vector.shape_cast %346 : vector<8x64xf32> to vector<1x1x8x64xf32>
    tpu.vector_store %arg4[%c0_187, %c44, %c0_188, %c0_189], %349 {strides = array<i32>} : memref<1x64x8x64xf32, #tpu.memory_space<vmem>>, vector<1x1x8x64xf32>,
    %350 = math.cos %345 : vector<8x64xf32>
    %c0_190 = arith.constant 0 : index
    %c55 = arith.constant 55 : index
    %c0_191 = arith.constant 0 : index
    %c0_192 = arith.constant 0 : index
    %351 = vector.load %arg4[%c0_190, %c55, %c0_191, %c0_192] : memref<1x64x8x64xf32, #tpu.memory_space<vmem>>, vector<1x1x8x64xf32>
    %352 = vector.shape_cast %351 : vector<1x1x8x64xf32> to vector<8x64xf32>
    %353 = vector.shape_cast %350 : vector<8x64xf32> to vector<1x1x8x64xf32>
    tpu.vector_store %arg4[%c0_190, %c55, %c0_191, %c0_192], %353 {strides = array<i32>} : memref<1x64x8x64xf32, #tpu.memory_space<vmem>>, vector<1x1x8x64xf32>,
    %cst_193 = arith.constant 0.43287614 : f32
    %354 = vector.broadcast %cst_193 : f32 to vector<8x64xf32>
    %355 = arith.mulf %123, %354 : vector<8x64xf32>
    %356 = math.sin %355 : vector<8x64xf32>
    %c0_194 = arith.constant 0 : index
    %c45 = arith.constant 45 : index
    %c0_195 = arith.constant 0 : index
    %c0_196 = arith.constant 0 : index
    %357 = vector.load %arg4[%c0_194, %c45, %c0_195, %c0_196] : memref<1x64x8x64xf32, #tpu.memory_space<vmem>>, vector<1x1x8x64xf32>
    %358 = vector.shape_cast %357 : vector<1x1x8x64xf32> to vector<8x64xf32>
    %359 = vector.shape_cast %356 : vector<8x64xf32> to vector<1x1x8x64xf32>
    tpu.vector_store %arg4[%c0_194, %c45, %c0_195, %c0_196], %359 {strides = array<i32>} : memref<1x64x8x64xf32, #tpu.memory_space<vmem>>, vector<1x1x8x64xf32>,
    %360 = math.cos %355 : vector<8x64xf32>
    %c0_197 = arith.constant 0 : index
    %c56 = arith.constant 56 : index
    %c0_198 = arith.constant 0 : index
    %c0_199 = arith.constant 0 : index
    %361 = vector.load %arg4[%c0_197, %c56, %c0_198, %c0_199] : memref<1x64x8x64xf32, #tpu.memory_space<vmem>>, vector<1x1x8x64xf32>
    %362 = vector.shape_cast %361 : vector<1x1x8x64xf32> to vector<8x64xf32>
    %363 = vector.shape_cast %360 : vector<8x64xf32> to vector<1x1x8x64xf32>
    tpu.vector_store %arg4[%c0_197, %c56, %c0_198, %c0_199], %363 {strides = array<i32>} : memref<1x64x8x64xf32, #tpu.memory_space<vmem>>, vector<1x1x8x64xf32>,
    %cst_200 = arith.constant 0.187381744 : f32
    %364 = vector.broadcast %cst_200 : f32 to vector<8x64xf32>
    %365 = arith.mulf %123, %364 : vector<8x64xf32>
    %366 = math.sin %365 : vector<8x64xf32>
    %c0_201 = arith.constant 0 : index
    %c46 = arith.constant 46 : index
    %c0_202 = arith.constant 0 : index
    %c0_203 = arith.constant 0 : index
    %367 = vector.load %arg4[%c0_201, %c46, %c0_202, %c0_203] : memref<1x64x8x64xf32, #tpu.memory_space<vmem>>, vector<1x1x8x64xf32>
    %368 = vector.shape_cast %367 : vector<1x1x8x64xf32> to vector<8x64xf32>
    %369 = vector.shape_cast %366 : vector<8x64xf32> to vector<1x1x8x64xf32>
    tpu.vector_store %arg4[%c0_201, %c46, %c0_202, %c0_203], %369 {strides = array<i32>} : memref<1x64x8x64xf32, #tpu.memory_space<vmem>>, vector<1x1x8x64xf32>,
    %370 = math.cos %365 : vector<8x64xf32>
    %c0_204 = arith.constant 0 : index
    %c57 = arith.constant 57 : index
    %c0_205 = arith.constant 0 : index
    %c0_206 = arith.constant 0 : index
    %371 = vector.load %arg4[%c0_204, %c57, %c0_205, %c0_206] : memref<1x64x8x64xf32, #tpu.memory_space<vmem>>, vector<1x1x8x64xf32>
    %372 = vector.shape_cast %371 : vector<1x1x8x64xf32> to vector<8x64xf32>
    %373 = vector.shape_cast %370 : vector<8x64xf32> to vector<1x1x8x64xf32>
    tpu.vector_store %arg4[%c0_204, %c57, %c0_205, %c0_206], %373 {strides = array<i32>} : memref<1x64x8x64xf32, #tpu.memory_space<vmem>>, vector<1x1x8x64xf32>,
    %cst_207 = arith.constant 0.0811130852 : f32
    %374 = vector.broadcast %cst_207 : f32 to vector<8x64xf32>
    %375 = arith.mulf %123, %374 : vector<8x64xf32>
    %376 = math.sin %375 : vector<8x64xf32>
    %c0_208 = arith.constant 0 : index
    %c47 = arith.constant 47 : index
    %c0_209 = arith.constant 0 : index
    %c0_210 = arith.constant 0 : index
    %377 = vector.load %arg4[%c0_208, %c47, %c0_209, %c0_210] : memref<1x64x8x64xf32, #tpu.memory_space<vmem>>, vector<1x1x8x64xf32>
    %378 = vector.shape_cast %377 : vector<1x1x8x64xf32> to vector<8x64xf32>
    %379 = vector.shape_cast %376 : vector<8x64xf32> to vector<1x1x8x64xf32>
    tpu.vector_store %arg4[%c0_208, %c47, %c0_209, %c0_210], %379 {strides = array<i32>} : memref<1x64x8x64xf32, #tpu.memory_space<vmem>>, vector<1x1x8x64xf32>,
    %380 = math.cos %375 : vector<8x64xf32>
    %c0_211 = arith.constant 0 : index
    %c58 = arith.constant 58 : index
    %c0_212 = arith.constant 0 : index
    %c0_213 = arith.constant 0 : index
    %381 = vector.load %arg4[%c0_211, %c58, %c0_212, %c0_213] : memref<1x64x8x64xf32, #tpu.memory_space<vmem>>, vector<1x1x8x64xf32>
    %382 = vector.shape_cast %381 : vector<1x1x8x64xf32> to vector<8x64xf32>
    %383 = vector.shape_cast %380 : vector<8x64xf32> to vector<1x1x8x64xf32>
    tpu.vector_store %arg4[%c0_211, %c58, %c0_212, %c0_213], %383 {strides = array<i32>} : memref<1x64x8x64xf32, #tpu.memory_space<vmem>>, vector<1x1x8x64xf32>,
    %cst_214 = arith.constant 0.035111919 : f32
    %384 = vector.broadcast %cst_214 : f32 to vector<8x64xf32>
    %385 = arith.mulf %123, %384 : vector<8x64xf32>
    %386 = math.sin %385 : vector<8x64xf32>
    %c0_215 = arith.constant 0 : index
    %c48 = arith.constant 48 : index
    %c0_216 = arith.constant 0 : index
    %c0_217 = arith.constant 0 : index
    %387 = vector.load %arg4[%c0_215, %c48, %c0_216, %c0_217] : memref<1x64x8x64xf32, #tpu.memory_space<vmem>>, vector<1x1x8x64xf32>
    %388 = vector.shape_cast %387 : vector<1x1x8x64xf32> to vector<8x64xf32>
    %389 = vector.shape_cast %386 : vector<8x64xf32> to vector<1x1x8x64xf32>
    tpu.vector_store %arg4[%c0_215, %c48, %c0_216, %c0_217], %389 {strides = array<i32>} : memref<1x64x8x64xf32, #tpu.memory_space<vmem>>, vector<1x1x8x64xf32>,
    %390 = math.cos %385 : vector<8x64xf32>
    %c0_218 = arith.constant 0 : index
    %c59 = arith.constant 59 : index
    %c0_219 = arith.constant 0 : index
    %c0_220 = arith.constant 0 : index
    %391 = vector.load %arg4[%c0_218, %c59, %c0_219, %c0_220] : memref<1x64x8x64xf32, #tpu.memory_space<vmem>>, vector<1x1x8x64xf32>
    %392 = vector.shape_cast %391 : vector<1x1x8x64xf32> to vector<8x64xf32>
    %393 = vector.shape_cast %390 : vector<8x64xf32> to vector<1x1x8x64xf32>
    tpu.vector_store %arg4[%c0_218, %c59, %c0_219, %c0_220], %393 {strides = array<i32>} : memref<1x64x8x64xf32, #tpu.memory_space<vmem>>, vector<1x1x8x64xf32>,
    %cst_221 = arith.constant 0.0151991108 : f32
    %394 = vector.broadcast %cst_221 : f32 to vector<8x64xf32>
    %395 = arith.mulf %123, %394 : vector<8x64xf32>
    %396 = math.sin %395 : vector<8x64xf32>
    %c0_222 = arith.constant 0 : index
    %c49 = arith.constant 49 : index
    %c0_223 = arith.constant 0 : index
    %c0_224 = arith.constant 0 : index
    %397 = vector.load %arg4[%c0_222, %c49, %c0_223, %c0_224] : memref<1x64x8x64xf32, #tpu.memory_space<vmem>>, vector<1x1x8x64xf32>
    %398 = vector.shape_cast %397 : vector<1x1x8x64xf32> to vector<8x64xf32>
    %399 = vector.shape_cast %396 : vector<8x64xf32> to vector<1x1x8x64xf32>
    tpu.vector_store %arg4[%c0_222, %c49, %c0_223, %c0_224], %399 {strides = array<i32>} : memref<1x64x8x64xf32, #tpu.memory_space<vmem>>, vector<1x1x8x64xf32>,
    %400 = math.cos %395 : vector<8x64xf32>
    %c0_225 = arith.constant 0 : index
    %c60 = arith.constant 60 : index
    %c0_226 = arith.constant 0 : index
    %c0_227 = arith.constant 0 : index
    %401 = vector.load %arg4[%c0_225, %c60, %c0_226, %c0_227] : memref<1x64x8x64xf32, #tpu.memory_space<vmem>>, vector<1x1x8x64xf32>
    %402 = vector.shape_cast %401 : vector<1x1x8x64xf32> to vector<8x64xf32>
    %403 = vector.shape_cast %400 : vector<8x64xf32> to vector<1x1x8x64xf32>
    tpu.vector_store %arg4[%c0_225, %c60, %c0_226, %c0_227], %403 {strides = array<i32>} : memref<1x64x8x64xf32, #tpu.memory_space<vmem>>, vector<1x1x8x64xf32>,
    %cst_228 = arith.constant 0.00657933205 : f32
    %404 = vector.broadcast %cst_228 : f32 to vector<8x64xf32>
    %405 = arith.mulf %123, %404 : vector<8x64xf32>
    %406 = math.sin %405 : vector<8x64xf32>
    %c0_229 = arith.constant 0 : index
    %c50 = arith.constant 50 : index
    %c0_230 = arith.constant 0 : index
    %c0_231 = arith.constant 0 : index
    %407 = vector.load %arg4[%c0_229, %c50, %c0_230, %c0_231] : memref<1x64x8x64xf32, #tpu.memory_space<vmem>>, vector<1x1x8x64xf32>
    %408 = vector.shape_cast %407 : vector<1x1x8x64xf32> to vector<8x64xf32>
    %409 = vector.shape_cast %406 : vector<8x64xf32> to vector<1x1x8x64xf32>
    tpu.vector_store %arg4[%c0_229, %c50, %c0_230, %c0_231], %409 {strides = array<i32>} : memref<1x64x8x64xf32, #tpu.memory_space<vmem>>, vector<1x1x8x64xf32>,
    %410 = math.cos %405 : vector<8x64xf32>
    %c0_232 = arith.constant 0 : index
    %c61 = arith.constant 61 : index
    %c0_233 = arith.constant 0 : index
    %c0_234 = arith.constant 0 : index
    %411 = vector.load %arg4[%c0_232, %c61, %c0_233, %c0_234] : memref<1x64x8x64xf32, #tpu.memory_space<vmem>>, vector<1x1x8x64xf32>
    %412 = vector.shape_cast %411 : vector<1x1x8x64xf32> to vector<8x64xf32>
    %413 = vector.shape_cast %410 : vector<8x64xf32> to vector<1x1x8x64xf32>
    tpu.vector_store %arg4[%c0_232, %c61, %c0_233, %c0_234], %413 {strides = array<i32>} : memref<1x64x8x64xf32, #tpu.memory_space<vmem>>, vector<1x1x8x64xf32>,
    %cst_235 = arith.constant 0.00284803589 : f32
    %414 = vector.broadcast %cst_235 : f32 to vector<8x64xf32>
    %415 = arith.mulf %123, %414 : vector<8x64xf32>
    %416 = math.sin %415 : vector<8x64xf32>
    %c0_236 = arith.constant 0 : index
    %c51 = arith.constant 51 : index
    %c0_237 = arith.constant 0 : index
    %c0_238 = arith.constant 0 : index
    %417 = vector.load %arg4[%c0_236, %c51, %c0_237, %c0_238] : memref<1x64x8x64xf32, #tpu.memory_space<vmem>>, vector<1x1x8x64xf32>
    %418 = vector.shape_cast %417 : vector<1x1x8x64xf32> to vector<8x64xf32>
    %419 = vector.shape_cast %416 : vector<8x64xf32> to vector<1x1x8x64xf32>
    tpu.vector_store %arg4[%c0_236, %c51, %c0_237, %c0_238], %419 {strides = array<i32>} : memref<1x64x8x64xf32, #tpu.memory_space<vmem>>, vector<1x1x8x64xf32>,
    %420 = math.cos %415 : vector<8x64xf32>
    %c0_239 = arith.constant 0 : index
    %c62 = arith.constant 62 : index
    %c0_240 = arith.constant 0 : index
    %c0_241 = arith.constant 0 : index
    %421 = vector.load %arg4[%c0_239, %c62, %c0_240, %c0_241] : memref<1x64x8x64xf32, #tpu.memory_space<vmem>>, vector<1x1x8x64xf32>
    %422 = vector.shape_cast %421 : vector<1x1x8x64xf32> to vector<8x64xf32>
    %423 = vector.shape_cast %420 : vector<8x64xf32> to vector<1x1x8x64xf32>
    tpu.vector_store %arg4[%c0_239, %c62, %c0_240, %c0_241], %423 {strides = array<i32>} : memref<1x64x8x64xf32, #tpu.memory_space<vmem>>, vector<1x1x8x64xf32>,
    %cst_242 = arith.constant 0.00123284676 : f32
    %424 = vector.broadcast %cst_242 : f32 to vector<8x64xf32>
    %425 = arith.mulf %123, %424 : vector<8x64xf32>
    %426 = math.sin %425 : vector<8x64xf32>
    %c0_243 = arith.constant 0 : index
    %c52 = arith.constant 52 : index
    %c0_244 = arith.constant 0 : index
    %c0_245 = arith.constant 0 : index
    %427 = vector.load %arg4[%c0_243, %c52, %c0_244, %c0_245] : memref<1x64x8x64xf32, #tpu.memory_space<vmem>>, vector<1x1x8x64xf32>
    %428 = vector.shape_cast %427 : vector<1x1x8x64xf32> to vector<8x64xf32>
    %429 = vector.shape_cast %426 : vector<8x64xf32> to vector<1x1x8x64xf32>
    tpu.vector_store %arg4[%c0_243, %c52, %c0_244, %c0_245], %429 {strides = array<i32>} : memref<1x64x8x64xf32, #tpu.memory_space<vmem>>, vector<1x1x8x64xf32>,
    %430 = math.cos %425 : vector<8x64xf32>
    %c0_246 = arith.constant 0 : index
    %c63 = arith.constant 63 : index
    %c0_247 = arith.constant 0 : index
    %c0_248 = arith.constant 0 : index
    %431 = vector.load %arg4[%c0_246, %c63, %c0_247, %c0_248] : memref<1x64x8x64xf32, #tpu.memory_space<vmem>>, vector<1x1x8x64xf32>
    %432 = vector.shape_cast %431 : vector<1x1x8x64xf32> to vector<8x64xf32>
    %433 = vector.shape_cast %430 : vector<8x64xf32> to vector<1x1x8x64xf32>
    tpu.vector_store %arg4[%c0_246, %c63, %c0_247, %c0_248], %433 {strides = array<i32>} : memref<1x64x8x64xf32, #tpu.memory_space<vmem>>, vector<1x1x8x64xf32>,
    %cst_249 = arith.constant 5.33669896E-4 : f32
    %434 = vector.broadcast %cst_249 : f32 to vector<8x64xf32>
    %435 = arith.mulf %123, %434 : vector<8x64xf32>
    %436 = math.sin %435 : vector<8x64xf32>
    %c0_250 = arith.constant 0 : index
    %c53 = arith.constant 53 : index
    %c0_251 = arith.constant 0 : index
    %c0_252 = arith.constant 0 : index
    %437 = vector.load %arg4[%c0_250, %c53, %c0_251, %c0_252] : memref<1x64x8x64xf32, #tpu.memory_space<vmem>>, vector<1x1x8x64xf32>
    %438 = vector.shape_cast %437 : vector<1x1x8x64xf32> to vector<8x64xf32>
    %439 = vector.shape_cast %436 : vector<8x64xf32> to vector<1x1x8x64xf32>
    tpu.vector_store %arg4[%c0_250, %c53, %c0_251, %c0_252], %439 {strides = array<i32>} : memref<1x64x8x64xf32, #tpu.memory_space<vmem>>, vector<1x1x8x64xf32>,
    %cst_253 = arith.constant 2.31012964E-4 : f32
    %440 = vector.broadcast %cst_253 : f32 to vector<8x64xf32>
    %441 = arith.mulf %123, %440 : vector<8x64xf32>
    %442 = math.sin %441 : vector<8x64xf32>
    %c0_254 = arith.constant 0 : index
    %c54 = arith.constant 54 : index
    %c0_255 = arith.constant 0 : index
    %c0_256 = arith.constant 0 : index
    %443 = vector.load %arg4[%c0_254, %c54, %c0_255, %c0_256] : memref<1x64x8x64xf32, #tpu.memory_space<vmem>>, vector<1x1x8x64xf32>
    %444 = vector.shape_cast %443 : vector<1x1x8x64xf32> to vector<8x64xf32>
    %445 = vector.shape_cast %442 : vector<8x64xf32> to vector<1x1x8x64xf32>
    tpu.vector_store %arg4[%c0_254, %c54, %c0_255, %c0_256], %445 {strides = array<i32>} : memref<1x64x8x64xf32, #tpu.memory_space<vmem>>, vector<1x1x8x64xf32>,
    return
  }
  func.func @transform_0(%arg0: i32, %arg1: i32) -> (i32, i32, i32) {
    %c0_i32 = arith.constant 0 : i32
    %c0_i32_0 = arith.constant 0 : i32
    %c0_i32_1 = arith.constant 0 : i32
    return %arg0, %c0_i32, %c0_i32_0 : i32, i32, i32
  }
  func.func @transform_1(%arg0: i32, %arg1: i32) -> (i32, i32) {
    %c0_i32 = arith.constant 0 : i32
    %c0_i32_0 = arith.constant 0 : i32
    %c0_i32_1 = arith.constant 0 : i32
    return %c0_i32, %c0_i32_0 : i32, i32
  }
  func.func @transform_2(%arg0: i32, %arg1: i32) -> (i32, i32, i32, i32) {
    %c0_i32 = arith.constant 0 : i32
    %c0_i32_0 = arith.constant 0 : i32
    %c0_i32_1 = arith.constant 0 : i32
    return %arg0, %c0_i32, %arg1, %c0_i32_0 : i32, i32, i32, i32
  }
}

</mosaic_0001>

<llo_original>
// kernel: tpu_custom_call.1
$region0: #{tpu_custom_call.1}
  #allocation0 [shape = 'u32[]', space=smem, size = 0x4, offset = 0x4, fixed_abs, tag = 'smem constant byte address 0x4 - core index']
  #allocation1 [shape = 'u32[144,128]{1,0:T(1,128)}', space=vmem, size = 0x12000, scoped, tag = 'internal scratch']
  %s0 = inlined_call_operand.hbm [shape: s8[2,8,64], index: 0, kind: input, shape index: {}]
  %s1 = inlined_call_operand.vmem [shape: s32[1,64], index: 1, kind: input, shape index: {}]
  %s2 = inlined_call_operand.hbm [shape: f32[2,64,8,64], index: 2, kind: output, shape index: {}]
  %s3 = sld [smem:[#allocation0]]
  $region45: #{tpu_custom_call.1} parent=0
    _
  %s5 = ssub.s32 1, %s3
  %s6 = scalar_select 0, %s5, %s3
  $region1: #{tpu_custom_call.1} parent=0
    #allocation2 [shape = 'u8[2048]{0}', space=vmem, size = 0x800, scoped, tag = 'input window, operand 0']
    #allocation3 [shape = 's32[2]{0}', space=sflag, size = 0x8, scoped, tag = 'scoped memory for tpu_custom_call.1']
    #allocation4 [shape = 's32[2]{0}', space=sflag, size = 0x8, scoped, tag = 'scoped memory for tpu_custom_call.1']
    #allocation5 [shape = 'u8[524288]{0}', space=vmem, size = 0x80000, scoped, tag = 'output window, operand 0']
    %7 = vsyncpa [#allocation3], 0
    %s8 = scalar_lea.sflag [#allocation3], 1
    %9 = vsyncpa %s8, 0
    %10 = vsyncpa [#allocation4], 0
    %s11 = scalar_lea.sflag [#allocation4], 1
    %12 = vsyncpa %s11, 0
    loop: start=0, step=1, limit=4
    $region2: #{tpu_custom_call.1} parent=1 // loop_pre_header
      _
    $region3: #{tpu_custom_call.1} parent=1 // loop_header
      %s14 = sphi 0, %s18
      %p15 = scmp.ge.s32.totalorder %s14, 4
      %s21 = sphi 0, %s33
      %s22 = sphi 0, %s29
      %s23 = sphi 0, %s21
      %s24 = sphi 0, %s22
      %s25 = sphi 0, %s23
      %s26 = sphi 0, %s24
      %s36 = sphi 0, %s38
      %s39 = sphi 0, %s36
      %s40 = sphi 0, %s39
      %s56 = sphi 0, %s40
      %s60 = sphi 0, %s60
      %s62 = sphi 0, %s60
      %s63 = sphi 0, %s62
      %s77 = sphi 0, %s63
      %s85 = sphi 0, %s87
      %s88 = sphi 0, %s85
      %s89 = sphi 0, %s88
      %s105 = sphi 0, %s89
    $region4: #{tpu_custom_call.1} parent=1 // loop_header_branch
      %17 = sbr.rel (%p15) target = $region8
    $region5: #{tpu_custom_call.1} parent=1 // loop_body
      %s19 = ssub.s32 %s14, 1
      %s20 = ssub.s32 %s14, 2
      %s27 = sadd.s32 1, %s22
      %p28 = scmp.ge.s32.totalorder %s27, 1
      %s29 = scalar_select %p28, 0, %s27
      %s30 = sadd.s32 1, %s21
      %s31 = scalar_select %p28, %s30, %s21
      %p32 = scmp.ge.s32.totalorder %s31, 2
      %s33 = scalar_select %p32, 0, %s31
      %s34 = ssub.s32 %s21, %s33
      %p35 = scmp.eq.s32.totalorder %s34, 0
      %s37 = sadd.s32 %s36, 1
      %s38 = scalar_select %p35, %s36, %s37
      %p41 = pneg %p35
      %p42 = scmp.eq.s32.totalorder %s14, 1
      %p43 = por %p41, %p42
      %p44 = scmp.ne.s32.totalorder %s36, %s39
      %p45 = scmp.eq.s32.totalorder %s14, 0
      %p46 = por %p44, %p45
      %p47 = scmp.ne.s32.totalorder %s36, %s39
      %p48 = scmp.eq.s32.totalorder %s19, 1
      %p49 = por %p47, %p48
      %p50 = scmp.ne.s32.totalorder %s39, %s40
      %p51 = scmp.eq.s32.totalorder %s19, 0
      %p52 = por %p50, %p51
      %p53 = scmp.ne.s32.totalorder %s39, %s40
      %p54 = scmp.eq.s32.totalorder %s20, 1
      %p55 = por %p53, %p54
      %p57 = scmp.ne.s32.totalorder %s40, %s56
      %p58 = scmp.eq.s32.totalorder %s20, 0
      %p59 = por %p57, %p58
      %s61 = sadd.s32 %s60, 1
      %p64 = scmp.eq.s32.totalorder %s14, 1
      %p65 = scmp.ne.s32.totalorder %s60, %s62
      %p66 = scmp.eq.s32.totalorder %s14, 0
      %p67 = por %p65, %p66
      %p68 = scmp.ne.s32.totalorder %s60, %s62
      %p69 = scmp.eq.s32.totalorder %s19, 1
      %p70 = por %p68, %p69
      %p71 = scmp.ne.s32.totalorder %s62, %s63
      %p72 = scmp.eq.s32.totalorder %s19, 0
      %p73 = por %p71, %p72
      %p74 = scmp.ne.s32.totalorder %s62, %s63
      %p75 = scmp.eq.s32.totalorder %s20, 1
      %p76 = por %p74, %p75
      %p78 = scmp.ne.s32.totalorder %s63, %s77
      %p79 = scmp.eq.s32.totalorder %s20, 0
      %p80 = por %p78, %p79
      %s81 = ssub.s32 %s21, %s33
      %s82 = ssub.s32 %s22, %s29
      %s83 = sor.u32 %s81, %s82
      %p84 = scmp.eq.s32.totalorder %s83, 0
      %s86 = sadd.s32 %s85, 1
      %s87 = scalar_select %p84, %s85, %s86
      %p90 = pneg %p84
      %p91 = scmp.eq.s32.totalorder %s14, 1
      %p92 = por %p90, %p91
      %p93 = scmp.ne.s32.totalorder %s85, %s88
      %p94 = scmp.eq.s32.totalorder %s14, 0
      %p95 = por %p93, %p94
      %p96 = scmp.ne.s32.totalorder %s85, %s88
      %p97 = scmp.eq.s32.totalorder %s19, 1
      %p98 = por %p96, %p97
      %p99 = scmp.ne.s32.totalorder %s88, %s89
      %p100 = scmp.eq.s32.totalorder %s19, 0
      %p101 = por %p99, %p100
      %p102 = scmp.ne.s32.totalorder %s88, %s89
      %p103 = scmp.eq.s32.totalorder %s20, 1
      %p104 = por %p102, %p103
      %p106 = scmp.ne.s32.totalorder %s89, %s105
      %p107 = scmp.eq.s32.totalorder %s20, 0
      %p108 = por %p106, %p107
      %p109 = scmp.le.s32.totalorder 1, %s14
      %p110 = scmp.lt.s32.totalorder %s14, 3
      %p111 = pnand %p109, %p110
      %p112 = pneg %p111
      // Predicated region
      $region9: #{tpu_custom_call.1} parent=5 // pred_check
        _
      $region10: #{tpu_custom_call.1} parent=5 // pred_check_branch
        %114 = sbr.rel (%p111) target = $region12
      $region11: #{tpu_custom_call.1} parent=5 // pred_region
        %s115 = ssub.s32 %s14, 1
        // Predicated region
        $region13: #{tpu_custom_call.1} parent=11 // pred_check
          %p116 = pneg %p73
        $region14: #{tpu_custom_call.1} parent=11 // pred_check_branch
          %118 = sbr.rel (%p116) target = $region16
        $region15: #{tpu_custom_call.1} parent=11 // pred_region
          _
        $region16: #{tpu_custom_call.1} parent=11 // pred_fallthru
          _
      $region12: #{tpu_custom_call.1} parent=5 // pred_fallthru
        _
      %p119 = scmp.lt.s32.totalorder %s14, 2
      // Predicated region
      $region17: #{tpu_custom_call.1} parent=5 // pred_check
        %p120 = pneg %p119
      $region18: #{tpu_custom_call.1} parent=5 // pred_check_branch
        %122 = sbr.rel (%p120) target = $region20
      $region19: #{tpu_custom_call.1} parent=5 // pred_region
        // Predicated region
        $region21: #{tpu_custom_call.1} parent=19 // pred_check
          %p123 = pneg %p46
        $region22: #{tpu_custom_call.1} parent=19 // pred_check_branch
          %125 = sbr.rel (%p123) target = $region24
        $region23: #{tpu_custom_call.1} parent=19 // pred_region
          %s126 = sand.u32 %s36, 1
          %s127 = scalar_lea.sflag [#allocation3], %s126
          %s128 = sand.u32 %s36, 1
          %s129 = smul.addr %s128, 2
          %s130 = scalar_lea.vmem [#allocation2], %s129
          %s132 = ssub.s32 32, 32
          %133 = vsyncadd %s127, %s132
          %s134 = smul.addr %s21, 32
          %s135 = scalar_lea.hbm %s0, %s134
          %s137 = sshll.u32 %s130, 4
          %s138 = int_to_ptr.vmem [resolvable:$true] %s137
          %140 = dma.hbm_to_vmem [thread:$0]  %s135, 32, %s138, %s127
        $region24: #{tpu_custom_call.1} parent=19 // pred_fallthru
          _
      $region20: #{tpu_custom_call.1} parent=5 // pred_fallthru
        _
      %p141 = scmp.le.s32.totalorder 1, %s14
      %p142 = scmp.lt.s32.totalorder %s14, 3
      %p143 = pnand %p141, %p142
      %p144 = pneg %p143
      // Predicated region
      $region25: #{tpu_custom_call.1} parent=5 // pred_check
        _
      $region26: #{tpu_custom_call.1} parent=5 // pred_check_branch
        %146 = sbr.rel (%p143) target = $region28
      $region27: #{tpu_custom_call.1} parent=5 // pred_region
        %s147 = ssub.s32 %s14, 1
        %s148 = sand.u32 %s39, 1
        %s149 = scalar_lea.sflag [#allocation3], %s148
        %s150 = sand.u32 %s39, 1
        %s151 = smul.addr %s150, 2
        %s152 = scalar_lea.vmem [#allocation2], %s151
        // Predicated region
        $region29: #{tpu_custom_call.1} parent=27 // pred_check
          %p153 = pneg %p52
        $region30: #{tpu_custom_call.1} parent=27 // pred_check_branch
          %155 = sbr.rel (%p153) target = $region32
        $region31: #{tpu_custom_call.1} parent=27 // pred_region
          %156 = dma.done %s149, 32
        $region32: #{tpu_custom_call.1} parent=27 // pred_fallthru
          _
        %s157 = sand.u32 %s39, 1
        %s158 = scalar_lea.sflag [#allocation3], %s157
        %s159 = sand.u32 %s39, 1
        %s160 = smul.addr %s159, 2
        %s161 = scalar_lea.vmem [#allocation2], %s160
        %p162 = pneg %p52
        %p163 = pneg %p49
        %p164 = pneg %p73
        %p165 = pneg %p70
        %p166 = pneg %p101
        %p167 = pneg %p98
        %s168 = sand.u32 %s88, 1
        %s169 = scalar_lea.sflag [#allocation4], %s168
        %s170 = sand.u32 %s88, 1
        %s171 = smul.addr %s170, 512
        %s172 = scalar_lea.vmem [#allocation5], %s171
        %s173 = smul.u32 %s24, 8
        %v174 = vld [vmem:[%s152] sm:$0x3]
        %v175 = vunpack.c.0.s8 %v174
        %v176 = vcvt.s32.f32 %v175
        %v177 = vsub.f32 1.0, %v176
        %v178 = vld [vmem:[%s1] sm:$0x1]
        %v179 = vlaneseq
        %v180 = vshrl.u32 %v179, 7
        %v181 = vstv %s173
        %v182 = vadd.s32 %v180, %v181
        %v183 = vlaneseq
        %v184 = vand.u32 %v183, 127
        %vm185 = vcmp.le.s32.totalorder %v184, %v182
        %v186 = vsel %vm185, 1, 0
        %v187 = vcvt.s32.f32 %v186
        %vm188 = vcmask 64512
        %v190 = vsel %vm188, %v187, 0
        %192 = vmatprep.subr.mxu0 0.0
        %193 = vmatpush1.msra.mxu0 0.0
        %194 = vmatprep.subr.mxu0 0.0
        %195 = vmatpush1.msra.mxu0 0.0
        %196 = vmatprep.subr.mxu0 0.0
        %197 = vmatpush1.msra.mxu0 0.0
        %198 = vmatprep.subr.mxu0 0.0
        %199 = vmatpush1.msra.mxu0 0.0
        %200 = vmatprep.subr.mxu0 0.0
        %201 = vmatpush1.msra.mxu0 0.0
        %202 = vmatprep.subr.mxu0 0.0
        %203 = vmatpush1.msra.mxu0 0.0
        %204 = vmatprep.subr.mxu0 0.0
        %205 = vmatpush1.msra.mxu0 0.0
        %206 = vmatprep.subr.mxu0 0.0
        %207 = vmatpush1.msra.mxu0 0.0
        %208 = vmatprep.subr.mxu0 0.0
        %209 = vmatpush1.msra.mxu0 0.0
        %210 = vmatprep.subr.mxu0 0.0
        %211 = vmatpush1.msra.mxu0 0.0
        %212 = vmatprep.subr.mxu0 0.0
        %213 = vmatpush1.msra.mxu0 0.0
        %214 = vmatprep.subr.mxu0 0.0
        %215 = vmatpush1.msra.mxu0 0.0
        %216 = vmatprep.subr.mxu0 0.0
        %217 = vmatpush1.msra.mxu0 0.0
        %218 = vmatprep.subr.mxu0 0.0
        %219 = vmatpush1.msra.mxu0 0.0
        %220 = vmatprep.subr.mxu0 0.0
        %221 = vmatpush1.msra.mxu0 0.0
        %222 = vmatprep.subr.mxu0 0.0
        %223 = vmatpush1.msra.mxu0 %v177
        %224 = vmatprep.subr.mxu0 0.0
        %225 = vmatpush2.msra.mxu0 0.0
        %226 = vmatprep.subr.mxu0 0.0
        %227 = vmatpush2.msra.mxu0 0.0
        %228 = vmatprep.subr.mxu0 0.0
        %229 = vmatpush2.msra.mxu0 0.0
        %230 = vmatprep.subr.mxu0 0.0
        %231 = vmatpush2.msra.mxu0 0.0
        %232 = vmatprep.subr.mxu0 0.0
        %233 = vmatpush2.msra.mxu0 0.0
        %234 = vmatprep.subr.mxu0 0.0
        %235 = vmatpush2.msra.mxu0 0.0
        %236 = vmatprep.subr.mxu0 0.0
        %237 = vmatpush2.msra.mxu0 0.0
        %238 = vmatprep.subr.mxu0 0.0
        %239 = vmatpush2.msra.mxu0 0.0
        %240 = vmatprep.subr.mxu0 0.0
        %241 = vmatpush2.msra.mxu0 0.0
        %242 = vmatprep.subr.mxu0 0.0
        %243 = vmatpush2.msra.mxu0 0.0
        %244 = vmatprep.subr.mxu0 0.0
        %245 = vmatpush2.msra.mxu0 0.0
        %246 = vmatprep.subr.mxu0 0.0
        %247 = vmatpush2.msra.mxu0 0.0
        %248 = vmatprep.subr.mxu0 0.0
        %249 = vmatpush2.msra.mxu0 0.0
        %250 = vmatprep.subr.mxu0 0.0
        %251 = vmatpush2.msra.mxu0 0.0
        %252 = vmatprep.subr.mxu0 0.0
        %253 = vmatpush2.msra.mxu0 0.0
        %254 = vmatprep.subr.mxu0 0.0
        %255 = vmatpush2.msra.mxu0 0.0
        %256 = vmatprep.mubr.f32.mxu0 0.0
        %257 = vmatmul.mubr.f32.gmra.mxu0 %v190
        %v258 = vpop.f32.mrf.mxu0
        %v259 = vadd.f32 0.0, %v258
        %v260 = vpop.f32.mrf.mxu0
        %261 = vdwg.mxu0
        %vm262 = vcmask 523264
        %v263 = vsel %vm262, %v177, 0.0
        %v264 = vrot.slane %v263, 4
        %v265 = vadd.f32 %v263, %v264
        %v266 = vrot.slane %v265, 2
        %v267 = vadd.f32 %v265, %v266
        %v268 = vrot.slane %v267, 1
        %v269 = vadd.f32 %v267, %v268
        %271 = vrot.lane.b32.xlu0 %v177, 8
        %v272 = vpop.permute.xlu0 %271
        %v274 = vsel %vm188, 0.0, %v272
        %v275 = vadd.f32 %v177, %v274
        %277 = vrot.lane.b32.xlu0 %v275, 16
        %v278 = vpop.permute.xlu0 %277
        %vm280 = vcmask 130048
        %v281 = vsel %vm280, 0.0, %v278
        %v282 = vadd.f32 %v275, %v281
        %284 = vrot.lane.b32.xlu0 %v282, 32
        %v285 = vpop.permute.xlu0 %284
        %vm287 = vcmask 261120
        %v288 = vsel %vm287, 0.0, %v285
        %v289 = vadd.f32 %v282, %v288
        %vm290 = vcmp.ge.s32.totalorder %v178, 1
        %291 = vrot.lane.b32.xlu0 %v177, 1
        %v292 = vpop.permute.xlu0 %291
        %vm294 = vcmask 7168
        %v295 = vsel %vm294, 0.0, %v292
        %v296 = vsel %vm290, 1, 0
        %v297 = vlaneseq
        %v298 = vshrl.u32 %v297, 7
        %v299 = vsub.s32 0, %v298
        %v300 = vrot.slane %v296, %v299
        %vm301 = vcmp.eq.s32.totalorder %v300, 1
        %v302 = vsel %vm301, %v295, 0.0
        %v303 = vadd.f32 %v177, %v302
        %vm304 = vcmp.ge.s32.totalorder %v178, 2
        %306 = vrot.lane.b32.xlu0 %v303, 2
        %v307 = vpop.permute.xlu0 %306
        %vm309 = vcmask 15360
        %v310 = vsel %vm309, 0.0, %v307
        %v311 = vsel %vm304, 1, 0
        %v312 = vlaneseq
        %v313 = vshrl.u32 %v312, 7
        %v314 = vsub.s32 0, %v313
        %v315 = vrot.slane %v311, %v314
        %vm316 = vcmp.eq.s32.totalorder %v315, 1
        %v317 = vsel %vm316, %v310, 0.0
        %v318 = vadd.f32 %v303, %v317
        %vm319 = vcmp.ge.s32.totalorder %v178, 4
        %321 = vrot.lane.b32.xlu0 %v318, 4
        %v322 = vpop.permute.xlu0 %321
        %vm324 = vcmask 31744
        %v325 = vsel %vm324, 0.0, %v322
        %v326 = vsel %vm319, 1, 0
        %v327 = vlaneseq
        %v328 = vshrl.u32 %v327, 7
        %v329 = vsub.s32 0, %v328
        %v330 = vrot.slane %v326, %v329
        %vm331 = vcmp.eq.s32.totalorder %v330, 1
        %v332 = vsel %vm331, %v325, 0.0
        %v333 = vadd.f32 %v318, %v332
        %335 = vrot.lane.b32.xlu0 %v289, 120
        %v336 = vpop.permute.xlu0 %335
        %vm338 = vcmask 457728
        %v339 = vsel %vm338, %v336, 0.0
        %v340 = vmax.f32 %v289, %v339
        %342 = vrot.lane.b32.xlu0 %v340, 112
        %v343 = vpop.permute.xlu0 %342
        %vm345 = vcmask 392192
        %v346 = vsel %vm345, %v343, 0.0
        %v347 = vmax.f32 %v340, %v346
        %349 = vrot.lane.b32.xlu0 %v347, 96
        %v350 = vpop.permute.xlu0 %349
        %v352 = vsel %vm287, %v350, 0.0
        %v353 = vmax.f32 %v347, %v352
        %vm354 = vcmp.lt.s32.totalorder %v178, 7
        %356 = vrot.lane.b32.xlu0 %v333, 127
        %v357 = vpop.permute.xlu0 %356
        %vm359 = vcmask 515072
        %v360 = vsel %vm359, %v357, 0.0
        %v361 = vmax.f32 %v333, %v360
        %v362 = vsel %vm354, 1, 0
        %v363 = vlaneseq
        %v364 = vshrl.u32 %v363, 7
        %v365 = vsub.s32 0, %v364
        %v366 = vrot.slane %v362, %v365
        %vm367 = vcmp.eq.s32.totalorder %v366, 1
        %v368 = vsel %vm367, %v361, %v333
        %vm369 = vcmp.lt.s32.totalorder %v178, 6
        %371 = vrot.lane.b32.xlu0 %v368, 126
        %v372 = vpop.permute.xlu0 %371
        %vm374 = vcmask 506880
        %v375 = vsel %vm374, %v372, 0.0
        %v376 = vmax.f32 %v368, %v375
        %v377 = vsel %vm369, 1, 0
        %v378 = vlaneseq
        %v379 = vshrl.u32 %v378, 7
        %v380 = vsub.s32 0, %v379
        %v381 = vrot.slane %v377, %v380
        %vm382 = vcmp.eq.s32.totalorder %v381, 1
        %v383 = vsel %vm382, %v376, %v368
        %vm384 = vcmp.lt.s32.totalorder %v178, 4
        %386 = vrot.lane.b32.xlu0 %v383, 124
        %v387 = vpop.permute.xlu0 %386
        %vm389 = vcmask 490496
        %v390 = vsel %vm389, %v387, 0.0
        %v391 = vmax.f32 %v383, %v390
        %v392 = vsel %vm384, 1, 0
        %v393 = vlaneseq
        %v394 = vshrl.u32 %v393, 7
        %v395 = vsub.s32 0, %v394
        %v396 = vrot.slane %v392, %v395
        %vm397 = vcmp.eq.s32.totalorder %v396, 1
        %v398 = vsel %vm397, %v391, %v383
        %v399 = vsub.f32 %v259, 0.5
        %v400 = vadd.f32 %v269, 1e-06
        %v401 = vrcp.pop %v400
        %v402 = vmul.f32 %v401, 6.2831855
        %v403 = vmul.f32 %v399, %v402
        %v404 = vsub.f32 %v289, 0.5
        %v405 = vadd.f32 %v353, 1e-06
        %v406 = vrcp.pop %v405
        %v407 = vmul.f32 %v406, 6.2831855
        %v408 = vmul.f32 %v404, %v407
        %v409 = vsub.f32 %v333, 0.5
        %v410 = vadd.f32 %v398, 1e-06
        %v411 = vrcp.pop %v410
        %v412 = vmul.f32 %v411, 6.2831855
        %v413 = vmul.f32 %v409, %v412
        %v414 = vand.u32 2147483647, %v408
        %vm415 = vcmp.le.f32.partialorder %v414, 0.7853982
        %vm416 = vcmp.lt.s32.totalorder %v408, 0
        %v417 = vand.u32 %v408, 2139095040
        %v418 = vshrl.u32 %v417, 23
        %v419 = vsub.s32 %v418, 127
        %v420 = vand.u32 2147483647, %v408
        %v421 = vand.u32 %v420, 8388607
        %v422 = vor.u32 %v421, 8388608
        %v423 = vsub.s32 0, %v422
        %v424 = vadd.s32 %v419, 1
        %vm425 = vcmp.gt.s32.totalorder %v424, 0
        %v426 = vsel %vm425, %v424, 0
        %v427 = vshrl.u32 %v426, 5
        %v428 = vand.u32 %v426, 31
        %v429 = vsub.s32 32, %v428
        %v430 = vshrl.u32 683565275, %v429
        %v431 = vshll.u32 683565275, %v428
        %v432 = vshrl.u32 2475754826, %v429
        %v433 = vor.u32 %v431, %v432
        %v434 = vshll.u32 2475754826, %v428
        %v435 = vshrl.u32 2131351028, %v429
        %v436 = vor.u32 %v434, %v435
        %v437 = vshll.u32 2131351028, %v428
        %v438 = vshrl.u32 2102212464, %v429
        %v439 = vor.u32 %v437, %v438
        %v440 = vshll.u32 2102212464, %v428
        %v441 = vshrl.u32 920167782, %v429
        %v442 = vor.u32 %v440, %v441
        %v443 = vshll.u32 920167782, %v428
        %v444 = vshrl.u32 1326507024, %v429
        %v445 = vor.u32 %v443, %v444
        %vm446 = vcmp.lt.s32.totalorder %v427, 1
        %vm447 = vcmp.lt.s32.totalorder %v427, 2
        %vm448 = vcmp.lt.s32.totalorder %v427, 3
        %vm449 = vcmp.lt.s32.totalorder %v427, 4
        %v450 = vsel %vm446, %v430, %v433
        %v451 = vsel %vm449, %v439, 2102212464
        %v452 = vsel %vm448, %v436, %v451
        %v453 = vsel %vm447, %v450, %v452
        %v454 = vsel %vm446, %v433, %v436
        %v455 = vsel %vm449, %v442, 920167782
        %v456 = vsel %vm448, %v439, %v455
        %v457 = vsel %vm447, %v454, %v456
        %v458 = vsel %vm446, %v436, %v439
        %v459 = vsel %vm449, %v445, 1326507024
        %v460 = vsel %vm448, %v442, %v459
        %v461 = vsel %vm447, %v458, %v460
        %v462 = vshll.u32 %v422, 8
        %v463 = vmul.u32.u64.compose %v462, %v461
        %v464 = vextract.low.u32 %v463
        %v465 = vextract.high.u32 %v463
        %v466 = vmul.u32.u64.compose %v462, %v457
        %v467 = vextract.low.u32 %v466
        %v468 = vextract.high.u32 %v466
        %v469 = vmul.u32 %v462, %v453
        %v470 = vadd.s32 %v465, %v467
        %vm471 = vc.u32 %v465, %v467
        %v472 = vadd.s32 %v468, 1
        %v473 = vsel %vm471, %v472, %v468
        %v474 = vadd.s32 %v469, %v473
        %v475 = vadd.s32 %v474, 536870912
        %v476 = vshrl.u32 %v475, 30
        %v477 = vshll.u32 %v476, 30
        %v478 = vsub.s32 %v474, %v477
        %vm479 = vcmp.lt.s32.totalorder %v478, 0
        %v480 = vsub.s32 0, %v478
        %v481 = vsel %vm479, %v480, %v478
        %v482 = vclz %v481
        %v483 = vsub.s32 %v482, 2
        %vm484 = vcmp.gt.s32.totalorder 0, %v483
        %v485 = vsel %vm484, 0, %v483
        %v486 = vsub.s32 32, %v485
        %v487 = vshll.u32 %v478, %v485
        %v488 = vshrl.u32 %v470, %v486
        %v489 = vor.u32 %v487, %v488
        %v490 = vsub.s32 4294967266, %v485
        %v491 = vadd.s32 %v490, 127
        %v492 = vshll.u32 %v491, 23
        %v493 = vor.u32 4788187, %v492
        %v494 = vand.u32 2147483647, %v493
        %v496 = vcvt.s32.f32 %v489
        %v497 = vmul.f32 %v496, %v494
        %v498 = vxor.u32 %v497, 2147483648
        %v499 = vsel %vm416, %v498, %v497
        %v500 = vsub.s32 4, %v476
        %v501 = vsel %vm416, %v500, %v476
        %v502 = vsel %vm415, %v408, %v499
        %v503 = vsel %vm415, 0, %v501
        %v504 = vcosq.f32.pop %v502
        %v505 = vsinq.f32.pop %v502
        %vm506 = vweird.f32 %v408
        %v507 = vadd.s32 %v503, 3
        %v508 = vand.u32 %v507, 3
        %vm509 = vcmp.lt.s32.totalorder %v508, 2
        %vm510 = vcmp.eq.s32.totalorder %v508, 0
        %v511 = vxor.u32 %v505, 2147483648
        %v512 = vsel %vm510, %v504, %v511
        %vm513 = vcmp.eq.s32.totalorder %v508, 2
        %v514 = vxor.u32 %v504, 2147483648
        %v515 = vsel %vm513, %v514, %v505
        %v516 = vsel %vm509, %v512, %v515
        %v517 = vsel %vm506, nan, %v516
        %518 = vst.msk [vmem:[%s172] sm:$0xff] %vm262, %v517
        %v519 = vand.u32 2147483647, %v408
        %vm520 = vcmp.le.f32.partialorder %v519, 0.7853982
        %vm521 = vcmp.lt.s32.totalorder %v408, 0
        %v522 = vand.u32 %v408, 2139095040
        %v523 = vshrl.u32 %v522, 23
        %v524 = vsub.s32 %v523, 127
        %v525 = vand.u32 2147483647, %v408
        %v526 = vand.u32 %v525, 8388607
        %v527 = vor.u32 %v526, 8388608
        %v528 = vsub.s32 0, %v527
        %v529 = vadd.s32 %v524, 1
        %vm530 = vcmp.gt.s32.totalorder %v529, 0
        %v531 = vsel %vm530, %v529, 0
        %v532 = vshrl.u32 %v531, 5
        %v533 = vand.u32 %v531, 31
        %v534 = vsub.s32 32, %v533
        %v535 = vshrl.u32 683565275, %v534
        %v536 = vshll.u32 683565275, %v533
        %v537 = vshrl.u32 2475754826, %v534
        %v538 = vor.u32 %v536, %v537
        %v539 = vshll.u32 2475754826, %v533
        %v540 = vshrl.u32 2131351028, %v534
        %v541 = vor.u32 %v539, %v540
        %v542 = vshll.u32 2131351028, %v533
        %v543 = vshrl.u32 2102212464, %v534
        %v544 = vor.u32 %v542, %v543
        %v545 = vshll.u32 2102212464, %v533
        %v546 = vshrl.u32 920167782, %v534
        %v547 = vor.u32 %v545, %v546
        %v548 = vshll.u32 920167782, %v533
        %v549 = vshrl.u32 1326507024, %v534
        %v550 = vor.u32 %v548, %v549
        %vm551 = vcmp.lt.s32.totalorder %v532, 1
        %vm552 = vcmp.lt.s32.totalorder %v532, 2
        %vm553 = vcmp.lt.s32.totalorder %v532, 3
        %vm554 = vcmp.lt.s32.totalorder %v532, 4
        %v555 = vsel %vm551, %v535, %v538
        %v556 = vsel %vm554, %v544, 2102212464
        %v557 = vsel %vm553, %v541, %v556
        %v558 = vsel %vm552, %v555, %v557
        %v559 = vsel %vm551, %v538, %v541
        %v560 = vsel %vm554, %v547, 920167782
        %v561 = vsel %vm553, %v544, %v560
        %v562 = vsel %vm552, %v559, %v561
        %v563 = vsel %vm551, %v541, %v544
        %v564 = vsel %vm554, %v550, 1326507024
        %v565 = vsel %vm553, %v547, %v564
        %v566 = vsel %vm552, %v563, %v565
        %v567 = vshll.u32 %v527, 8
        %v568 = vmul.u32.u64.compose %v567, %v566
        %v569 = vextract.low.u32 %v568
        %v570 = vextract.high.u32 %v568
        %v571 = vmul.u32.u64.compose %v567, %v562
        %v572 = vextract.low.u32 %v571
        %v573 = vextract.high.u32 %v571
        %v574 = vmul.u32 %v567, %v558
        %v575 = vadd.s32 %v570, %v572
        %vm576 = vc.u32 %v570, %v572
        %v577 = vadd.s32 %v573, 1
        %v578 = vsel %vm576, %v577, %v573
        %v579 = vadd.s32 %v574, %v578
        %v580 = vadd.s32 %v579, 536870912
        %v581 = vshrl.u32 %v580, 30
        %v582 = vshll.u32 %v581, 30
        %v583 = vsub.s32 %v579, %v582
        %vm584 = vcmp.lt.s32.totalorder %v583, 0
        %v585 = vsub.s32 0, %v583
        %v586 = vsel %vm584, %v585, %v583
        %v587 = vclz %v586
        %v588 = vsub.s32 %v587, 2
        %vm589 = vcmp.gt.s32.totalorder 0, %v588
        %v590 = vsel %vm589, 0, %v588
        %v591 = vsub.s32 32, %v590
        %v592 = vshll.u32 %v583, %v590
        %v593 = vshrl.u32 %v575, %v591
        %v594 = vor.u32 %v592, %v593
        %v595 = vsub.s32 4294967266, %v590
        %v596 = vadd.s32 %v595, 127
        %v597 = vshll.u32 %v596, 23
        %v598 = vor.u32 4788187, %v597
        %v599 = vand.u32 2147483647, %v598
        %v601 = vcvt.s32.f32 %v594
        %v602 = vmul.f32 %v601, %v599
        %v603 = vxor.u32 %v602, 2147483648
        %v604 = vsel %vm521, %v603, %v602
        %v605 = vsub.s32 4, %v581
        %v606 = vsel %vm521, %v605, %v581
        %v607 = vsel %vm520, %v408, %v604
        %v608 = vsel %vm520, 0, %v606
        %v609 = vcosq.f32.pop %v607
        %v610 = vsinq.f32.pop %v607
        %vm611 = vweird.f32 %v408
        %v612 = vand.u32 %v608, 3
        %vm613 = vcmp.lt.s32.totalorder %v612, 2
        %vm614 = vcmp.eq.s32.totalorder %v612, 0
        %v615 = vxor.u32 %v610, 2147483648
        %v616 = vsel %vm614, %v609, %v615
        %vm617 = vcmp.eq.s32.totalorder %v612, 2
        %v618 = vxor.u32 %v609, 2147483648
        %v619 = vsel %vm617, %v618, %v610
        %v620 = vsel %vm613, %v616, %v619
        %v621 = vsel %vm611, nan, %v620
        %s622 = scalar_lea.vmem %s172, 88 [#allocation5]
        %623 = vst.msk [vmem:[%s622] sm:$0xff] %vm262, %v621
        %v624 = vmul.f32 %v408, 0.43287614
        %v625 = vand.u32 2147483647, %v624
        %vm626 = vcmp.le.f32.partialorder %v625, 0.7853982
        %vm627 = vcmp.lt.s32.totalorder %v624, 0
        %v628 = vand.u32 %v624, 2139095040
        %v629 = vshrl.u32 %v628, 23
        %v630 = vsub.s32 %v629, 127
        %v631 = vand.u32 2147483647, %v624
        %v632 = vand.u32 %v631, 8388607
        %v633 = vor.u32 %v632, 8388608
        %v634 = vsub.s32 0, %v633
        %v635 = vadd.s32 %v630, 1
        %vm636 = vcmp.gt.s32.totalorder %v635, 0
        %v637 = vsel %vm636, %v635, 0
        %v638 = vshrl.u32 %v637, 5
        %v639 = vand.u32 %v637, 31
        %v640 = vsub.s32 32, %v639
        %v641 = vshrl.u32 683565275, %v640
        %v642 = vshll.u32 683565275, %v639
        %v643 = vshrl.u32 2475754826, %v640
        %v644 = vor.u32 %v642, %v643
        %v645 = vshll.u32 2475754826, %v639
        %v646 = vshrl.u32 2131351028, %v640
        %v647 = vor.u32 %v645, %v646
        %v648 = vshll.u32 2131351028, %v639
        %v649 = vshrl.u32 2102212464, %v640
        %v650 = vor.u32 %v648, %v649
        %v651 = vshll.u32 2102212464, %v639
        %v652 = vshrl.u32 920167782, %v640
        %v653 = vor.u32 %v651, %v652
        %v654 = vshll.u32 920167782, %v639
        %v655 = vshrl.u32 1326507024, %v640
        %v656 = vor.u32 %v654, %v655
        %vm657 = vcmp.lt.s32.totalorder %v638, 1
        %vm658 = vcmp.lt.s32.totalorder %v638, 2
        %vm659 = vcmp.lt.s32.totalorder %v638, 3
        %vm660 = vcmp.lt.s32.totalorder %v638, 4
        %v661 = vsel %vm657, %v641, %v644
        %v662 = vsel %vm660, %v650, 2102212464
        %v663 = vsel %vm659, %v647, %v662
        %v664 = vsel %vm658, %v661, %v663
        %v665 = vsel %vm657, %v644, %v647
        %v666 = vsel %vm660, %v653, 920167782
        %v667 = vsel %vm659, %v650, %v666
        %v668 = vsel %vm658, %v665, %v667
        %v669 = vsel %vm657, %v647, %v650
        %v670 = vsel %vm660, %v656, 1326507024
        %v671 = vsel %vm659, %v653, %v670
        %v672 = vsel %vm658, %v669, %v671
        %v673 = vshll.u32 %v633, 8
        %v674 = vmul.u32.u64.compose %v673, %v672
        %v675 = vextract.low.u32 %v674
        %v676 = vextract.high.u32 %v674
        %v677 = vmul.u32.u64.compose %v673, %v668
        %v678 = vextract.low.u32 %v677
        %v679 = vextract.high.u32 %v677
        %v680 = vmul.u32 %v673, %v664
        %v681 = vadd.s32 %v676, %v678
        %vm682 = vc.u32 %v676, %v678
        %v683 = vadd.s32 %v679, 1
        %v684 = vsel %vm682, %v683, %v679
        %v685 = vadd.s32 %v680, %v684
        %v686 = vadd.s32 %v685, 536870912
        %v687 = vshrl.u32 %v686, 30
        %v688 = vshll.u32 %v687, 30
        %v689 = vsub.s32 %v685, %v688
        %vm690 = vcmp.lt.s32.totalorder %v689, 0
        %v691 = vsub.s32 0, %v689
        %v692 = vsel %vm690, %v691, %v689
        %v693 = vclz %v692
        %v694 = vsub.s32 %v693, 2
        %vm695 = vcmp.gt.s32.totalorder 0, %v694
        %v696 = vsel %vm695, 0, %v694
        %v697 = vsub.s32 32, %v696
        %v698 = vshll.u32 %v689, %v696
        %v699 = vshrl.u32 %v681, %v697
        %v700 = vor.u32 %v698, %v699
        %v701 = vsub.s32 4294967266, %v696
        %v702 = vadd.s32 %v701, 127
        %v703 = vshll.u32 %v702, 23
        %v704 = vor.u32 4788187, %v703
        %v705 = vand.u32 2147483647, %v704
        %v707 = vcvt.s32.f32 %v700
        %v708 = vmul.f32 %v707, %v705
        %v709 = vxor.u32 %v708, 2147483648
        %v710 = vsel %vm627, %v709, %v708
        %v711 = vsub.s32 4, %v687
        %v712 = vsel %vm627, %v711, %v687
        %v713 = vsel %vm626, %v624, %v710
        %v714 = vsel %vm626, 0, %v712
        %v715 = vcosq.f32.pop %v713
        %v716 = vsinq.f32.pop %v713
        %vm717 = vweird.f32 %v624
        %v718 = vadd.s32 %v714, 3
        %v719 = vand.u32 %v718, 3
        %vm720 = vcmp.lt.s32.totalorder %v719, 2
        %vm721 = vcmp.eq.s32.totalorder %v719, 0
        %v722 = vxor.u32 %v716, 2147483648
        %v723 = vsel %vm721, %v715, %v722
        %vm724 = vcmp.eq.s32.totalorder %v719, 2
        %v725 = vxor.u32 %v715, 2147483648
        %v726 = vsel %vm724, %v725, %v716
        %v727 = vsel %vm720, %v723, %v726
        %v728 = vsel %vm717, nan, %v727
        %s729 = scalar_lea.vmem %s172, 8 [#allocation5]
        %730 = vst.msk [vmem:[%s729] sm:$0xff] %vm262, %v728
        %v731 = vand.u32 2147483647, %v624
        %vm732 = vcmp.le.f32.partialorder %v731, 0.7853982
        %vm733 = vcmp.lt.s32.totalorder %v624, 0
        %v734 = vand.u32 %v624, 2139095040
        %v735 = vshrl.u32 %v734, 23
        %v736 = vsub.s32 %v735, 127
        %v737 = vand.u32 2147483647, %v624
        %v738 = vand.u32 %v737, 8388607
        %v739 = vor.u32 %v738, 8388608
        %v740 = vsub.s32 0, %v739
        %v741 = vadd.s32 %v736, 1
        %vm742 = vcmp.gt.s32.totalorder %v741, 0
        %v743 = vsel %vm742, %v741, 0
        %v744 = vshrl.u32 %v743, 5
        %v745 = vand.u32 %v743, 31
        %v746 = vsub.s32 32, %v745
        %v747 = vshrl.u32 683565275, %v746
        %v748 = vshll.u32 683565275, %v745
        %v749 = vshrl.u32 2475754826, %v746
        %v750 = vor.u32 %v748, %v749
        %v751 = vshll.u32 2475754826, %v745
        %v752 = vshrl.u32 2131351028, %v746
        %v753 = vor.u32 %v751, %v752
        %v754 = vshll.u32 2131351028, %v745
        %v755 = vshrl.u32 2102212464, %v746
        %v756 = vor.u32 %v754, %v755
        %v757 = vshll.u32 2102212464, %v745
        %v758 = vshrl.u32 920167782, %v746
        %v759 = vor.u32 %v757, %v758
        %v760 = vshll.u32 920167782, %v745
        %v761 = vshrl.u32 1326507024, %v746
        %v762 = vor.u32 %v760, %v761
        %vm763 = vcmp.lt.s32.totalorder %v744, 1
        %vm764 = vcmp.lt.s32.totalorder %v744, 2
        %vm765 = vcmp.lt.s32.totalorder %v744, 3
        %vm766 = vcmp.lt.s32.totalorder %v744, 4
        %v767 = vsel %vm763, %v747, %v750
        %v768 = vsel %vm766, %v756, 2102212464
        %v769 = vsel %vm765, %v753, %v768
        %v770 = vsel %vm764, %v767, %v769
        %v771 = vsel %vm763, %v750, %v753
        %v772 = vsel %vm766, %v759, 920167782
        %v773 = vsel %vm765, %v756, %v772
        %v774 = vsel %vm764, %v771, %v773
        %v775 = vsel %vm763, %v753, %v756
        %v776 = vsel %vm766, %v762, 1326507024
        %v777 = vsel %vm765, %v759, %v776
        %v778 = vsel %vm764, %v775, %v777
        %v779 = vshll.u32 %v739, 8
        %v780 = vmul.u32.u64.compose %v779, %v778
        %v781 = vextract.low.u32 %v780
        %v782 = vextract.high.u32 %v780
        %v783 = vmul.u32.u64.compose %v779, %v774
        %v784 = vextract.low.u32 %v783
        %v785 = vextract.high.u32 %v783
        %v786 = vmul.u32 %v779, %v770
        %v787 = vadd.s32 %v782, %v784
        %vm788 = vc.u32 %v782, %v784
        %v789 = vadd.s32 %v785, 1
        %v790 = vsel %vm788, %v789, %v785
        %v791 = vadd.s32 %v786, %v790
        %v792 = vadd.s32 %v791, 536870912
        %v793 = vshrl.u32 %v792, 30
        %v794 = vshll.u32 %v793, 30
        %v795 = vsub.s32 %v791, %v794
        %vm796 = vcmp.lt.s32.totalorder %v795, 0
        %v797 = vsub.s32 0, %v795
        %v798 = vsel %vm796, %v797, %v795
        %v799 = vclz %v798
        %v800 = vsub.s32 %v799, 2
        %vm801 = vcmp.gt.s32.totalorder 0, %v800
        %v802 = vsel %vm801, 0, %v800
        %v803 = vsub.s32 32, %v802
        %v804 = vshll.u32 %v795, %v802
        %v805 = vshrl.u32 %v787, %v803
        %v806 = vor.u32 %v804, %v805
        %v807 = vsub.s32 4294967266, %v802
        %v808 = vadd.s32 %v807, 127
        %v809 = vshll.u32 %v808, 23
        %v810 = vor.u32 4788187, %v809
        %v811 = vand.u32 2147483647, %v810
        %v813 = vcvt.s32.f32 %v806
        %v814 = vmul.f32 %v813, %v811
        %v815 = vxor.u32 %v814, 2147483648
        %v816 = vsel %vm733, %v815, %v814
        %v817 = vsub.s32 4, %v793
        %v818 = vsel %vm733, %v817, %v793
        %v819 = vsel %vm732, %v624, %v816
        %v820 = vsel %vm732, 0, %v818
        %v821 = vcosq.f32.pop %v819
        %v822 = vsinq.f32.pop %v819
        %vm823 = vweird.f32 %v624
        %v824 = vand.u32 %v820, 3
        %vm825 = vcmp.lt.s32.totalorder %v824, 2
        %vm826 = vcmp.eq.s32.totalorder %v824, 0
        %v827 = vxor.u32 %v822, 2147483648
        %v828 = vsel %vm826, %v821, %v827
        %vm829 = vcmp.eq.s32.totalorder %v824, 2
        %v830 = vxor.u32 %v821, 2147483648
        %v831 = vsel %vm829, %v830, %v822
        %v832 = vsel %vm825, %v828, %v831
        %v833 = vsel %vm823, nan, %v832
        %s834 = scalar_lea.vmem %s172, 96 [#allocation5]
        %835 = vst.msk [vmem:[%s834] sm:$0xff] %vm262, %v833
        %v836 = vmul.f32 %v408, 0.18738174
        %v837 = vand.u32 2147483647, %v836
        %vm838 = vcmp.le.f32.partialorder %v837, 0.7853982
        %vm839 = vcmp.lt.s32.totalorder %v836, 0
        %v840 = vand.u32 %v836, 2139095040
        %v841 = vshrl.u32 %v840, 23
        %v842 = vsub.s32 %v841, 127
        %v843 = vand.u32 2147483647, %v836
        %v844 = vand.u32 %v843, 8388607
        %v845 = vor.u32 %v844, 8388608
        %v846 = vsub.s32 0, %v845
        %v847 = vadd.s32 %v842, 1
        %vm848 = vcmp.gt.s32.totalorder %v847, 0
        %v849 = vsel %vm848, %v847, 0
        %v850 = vshrl.u32 %v849, 5
        %v851 = vand.u32 %v849, 31
        %v852 = vsub.s32 32, %v851
        %v853 = vshrl.u32 683565275, %v852
        %v854 = vshll.u32 683565275, %v851
        %v855 = vshrl.u32 2475754826, %v852
        %v856 = vor.u32 %v854, %v855
        %v857 = vshll.u32 2475754826, %v851
        %v858 = vshrl.u32 2131351028, %v852
        %v859 = vor.u32 %v857, %v858
        %v860 = vshll.u32 2131351028, %v851
        %v861 = vshrl.u32 2102212464, %v852
        %v862 = vor.u32 %v860, %v861
        %v863 = vshll.u32 2102212464, %v851
        %v864 = vshrl.u32 920167782, %v852
        %v865 = vor.u32 %v863, %v864
        %v866 = vshll.u32 920167782, %v851
        %v867 = vshrl.u32 1326507024, %v852
        %v868 = vor.u32 %v866, %v867
        %vm869 = vcmp.lt.s32.totalorder %v850, 1
        %vm870 = vcmp.lt.s32.totalorder %v850, 2
        %vm871 = vcmp.lt.s32.totalorder %v850, 3
        %vm872 = vcmp.lt.s32.totalorder %v850, 4
        %v873 = vsel %vm869, %v853, %v856
        %v874 = vsel %vm872, %v862, 2102212464
        %v875 = vsel %vm871, %v859, %v874
        %v876 = vsel %vm870, %v873, %v875
        %v877 = vsel %vm869, %v856, %v859
        %v878 = vsel %vm872, %v865, 920167782
        %v879 = vsel %vm871, %v862, %v878
        %v880 = vsel %vm870, %v877, %v879
        %v881 = vsel %vm869, %v859, %v862
        %v882 = vsel %vm872, %v868, 1326507024
        %v883 = vsel %vm871, %v865, %v882
        %v884 = vsel %vm870, %v881, %v883
        %v885 = vshll.u32 %v845, 8
        %v886 = vmul.u32.u64.compose %v885, %v884
        %v887 = vextract.low.u32 %v886
        %v888 = vextract.high.u32 %v886
        %v889 = vmul.u32.u64.compose %v885, %v880
        %v890 = vextract.low.u32 %v889
        %v891 = vextract.high.u32 %v889
        %v892 = vmul.u32 %v885, %v876
        %v893 = vadd.s32 %v888, %v890
        %vm894 = vc.u32 %v888, %v890
        %v895 = vadd.s32 %v891, 1
        %v896 = vsel %vm894, %v895, %v891
        %v897 = vadd.s32 %v892, %v896
        %v898 = vadd.s32 %v897, 536870912
        %v899 = vshrl.u32 %v898, 30
        %v900 = vshll.u32 %v899, 30
        %v901 = vsub.s32 %v897, %v900
        %vm902 = vcmp.lt.s32.totalorder %v901, 0
        %v903 = vsub.s32 0, %v901
        %v904 = vsel %vm902, %v903, %v901
        %v905 = vclz %v904
        %v906 = vsub.s32 %v905, 2
        %vm907 = vcmp.gt.s32.totalorder 0, %v906
        %v908 = vsel %vm907, 0, %v906
        %v909 = vsub.s32 32, %v908
        %v910 = vshll.u32 %v901, %v908
        %v911 = vshrl.u32 %v893, %v909
        %v912 = vor.u32 %v910, %v911
        %v913 = vsub.s32 4294967266, %v908
        %v914 = vadd.s32 %v913, 127
        %v915 = vshll.u32 %v914, 23
        %v916 = vor.u32 4788187, %v915
        %v917 = vand.u32 2147483647, %v916
        %v919 = vcvt.s32.f32 %v912
        %v920 = vmul.f32 %v919, %v917
        %v921 = vxor.u32 %v920, 2147483648
        %v922 = vsel %vm839, %v921, %v920
        %v923 = vsub.s32 4, %v899
        %v924 = vsel %vm839, %v923, %v899
        %v925 = vsel %vm838, %v836, %v922
        %v926 = vsel %vm838, 0, %v924
        %v927 = vcosq.f32.pop %v925
        %v928 = vsinq.f32.pop %v925
        %vm929 = vweird.f32 %v836
        %v930 = vadd.s32 %v926, 3
        %v931 = vand.u32 %v930, 3
        %vm932 = vcmp.lt.s32.totalorder %v931, 2
        %vm933 = vcmp.eq.s32.totalorder %v931, 0
        %v934 = vxor.u32 %v928, 2147483648
        %v935 = vsel %vm933, %v927, %v934
        %vm936 = vcmp.eq.s32.totalorder %v931, 2
        %v937 = vxor.u32 %v927, 2147483648
        %v938 = vsel %vm936, %v937, %v928
        %v939 = vsel %vm932, %v935, %v938
        %v940 = vsel %vm929, nan, %v939
        %s941 = scalar_lea.vmem %s172, 16 [#allocation5]
        %942 = vst.msk [vmem:[%s941] sm:$0xff] %vm262, %v940
        %v943 = vand.u32 2147483647, %v836
        %vm944 = vcmp.le.f32.partialorder %v943, 0.7853982
        %vm945 = vcmp.lt.s32.totalorder %v836, 0
        %v946 = vand.u32 %v836, 2139095040
        %v947 = vshrl.u32 %v946, 23
        %v948 = vsub.s32 %v947, 127
        %v949 = vand.u32 2147483647, %v836
        %v950 = vand.u32 %v949, 8388607
        %v951 = vor.u32 %v950, 8388608
        %v952 = vsub.s32 0, %v951
        %v953 = vadd.s32 %v948, 1
        %vm954 = vcmp.gt.s32.totalorder %v953, 0
        %v955 = vsel %vm954, %v953, 0
        %v956 = vshrl.u32 %v955, 5
        %v957 = vand.u32 %v955, 31
        %v958 = vsub.s32 32, %v957
        %v959 = vshrl.u32 683565275, %v958
        %v960 = vshll.u32 683565275, %v957
        %v961 = vshrl.u32 2475754826, %v958
        %v962 = vor.u32 %v960, %v961
        %v963 = vshll.u32 2475754826, %v957
        %v964 = vshrl.u32 2131351028, %v958
        %v965 = vor.u32 %v963, %v964
        %v966 = vshll.u32 2131351028, %v957
        %v967 = vshrl.u32 2102212464, %v958
        %v968 = vor.u32 %v966, %v967
        %v969 = vshll.u32 2102212464, %v957
        %v970 = vshrl.u32 920167782, %v958
        %v971 = vor.u32 %v969, %v970
        %v972 = vshll.u32 920167782, %v957
        %v973 = vshrl.u32 1326507024, %v958
        %v974 = vor.u32 %v972, %v973
        %vm975 = vcmp.lt.s32.totalorder %v956, 1
        %vm976 = vcmp.lt.s32.totalorder %v956, 2
        %vm977 = vcmp.lt.s32.totalorder %v956, 3
        %vm978 = vcmp.lt.s32.totalorder %v956, 4
        %v979 = vsel %vm975, %v959, %v962
        %v980 = vsel %vm978, %v968, 2102212464
        %v981 = vsel %vm977, %v965, %v980
        %v982 = vsel %vm976, %v979, %v981
        %v983 = vsel %vm975, %v962, %v965
        %v984 = vsel %vm978, %v971, 920167782
        %v985 = vsel %vm977, %v968, %v984
        %v986 = vsel %vm976, %v983, %v985
        %v987 = vsel %vm975, %v965, %v968
        %v988 = vsel %vm978, %v974, 1326507024
        %v989 = vsel %vm977, %v971, %v988
        %v990 = vsel %vm976, %v987, %v989
        %v991 = vshll.u32 %v951, 8
        %v992 = vmul.u32.u64.compose %v991, %v990
        %v993 = vextract.low.u32 %v992
        %v994 = vextract.high.u32 %v992
        %v995 = vmul.u32.u64.compose %v991, %v986
        %v996 = vextract.low.u32 %v995
        %v997 = vextract.high.u32 %v995
        %v998 = vmul.u32 %v991, %v982
        %v999 = vadd.s32 %v994, %v996
        %vm1000 = vc.u32 %v994, %v996
        %v1001 = vadd.s32 %v997, 1
        %v1002 = vsel %vm1000, %v1001, %v997
        %v1003 = vadd.s32 %v998, %v1002
        %v1004 = vadd.s32 %v1003, 536870912
        %v1005 = vshrl.u32 %v1004, 30
        %v1006 = vshll.u32 %v1005, 30
        %v1007 = vsub.s32 %v1003, %v1006
        %vm1008 = vcmp.lt.s32.totalorder %v1007, 0
        %v1009 = vsub.s32 0, %v1007
        %v1010 = vsel %vm1008, %v1009, %v1007
        %v1011 = vclz %v1010
        %v1012 = vsub.s32 %v1011, 2
        %vm1013 = vcmp.gt.s32.totalorder 0, %v1012
        %v1014 = vsel %vm1013, 0, %v1012
        %v1015 = vsub.s32 32, %v1014
        %v1016 = vshll.u32 %v1007, %v1014
        %v1017 = vshrl.u32 %v999, %v1015
        %v1018 = vor.u32 %v1016, %v1017
        %v1019 = vsub.s32 4294967266, %v1014
        %v1020 = vadd.s32 %v1019, 127
        %v1021 = vshll.u32 %v1020, 23
        %v1022 = vor.u32 4788187, %v1021
        %v1023 = vand.u32 2147483647, %v1022
        %v1025 = vcvt.s32.f32 %v1018
        %v1026 = vmul.f32 %v1025, %v1023
        %v1027 = vxor.u32 %v1026, 2147483648
        %v1028 = vsel %vm945, %v1027, %v1026
        %v1029 = vsub.s32 4, %v1005
        %v1030 = vsel %vm945, %v1029, %v1005
        %v1031 = vsel %vm944, %v836, %v1028
        %v1032 = vsel %vm944, 0, %v1030
        %v1033 = vcosq.f32.pop %v1031
        %v1034 = vsinq.f32.pop %v1031
        %vm1035 = vweird.f32 %v836
        %v1036 = vand.u32 %v1032, 3
        %vm1037 = vcmp.lt.s32.totalorder %v1036, 2
        %vm1038 = vcmp.eq.s32.totalorder %v1036, 0
        %v1039 = vxor.u32 %v1034, 2147483648
        %v1040 = vsel %vm1038, %v1033, %v1039
        %vm1041 = vcmp.eq.s32.totalorder %v1036, 2
        %v1042 = vxor.u32 %v1033, 2147483648
        %v1043 = vsel %vm1041, %v1042, %v1034
        %v1044 = vsel %vm1037, %v1040, %v1043
        %v1045 = vsel %vm1035, nan, %v1044
        %s1046 = scalar_lea.vmem %s172, 104 [#allocation5]
        %1047 = vst.msk [vmem:[%s1046] sm:$0xff] %vm262, %v1045
        %v1048 = vmul.f32 %v408, 0.081113085
        %v1049 = vand.u32 2147483647, %v1048
        %vm1050 = vcmp.le.f32.partialorder %v1049, 0.7853982
        %vm1051 = vcmp.lt.s32.totalorder %v1048, 0
        %v1052 = vand.u32 %v1048, 2139095040
        %v1053 = vshrl.u32 %v1052, 23
        %v1054 = vsub.s32 %v1053, 127
        %v1055 = vand.u32 2147483647, %v1048
        %v1056 = vand.u32 %v1055, 8388607
        %v1057 = vor.u32 %v1056, 8388608
        %v1058 = vsub.s32 0, %v1057
        %v1059 = vadd.s32 %v1054, 1
        %vm1060 = vcmp.gt.s32.totalorder %v1059, 0
        %v1061 = vsel %vm1060, %v1059, 0
        %v1062 = vshrl.u32 %v1061, 5
        %v1063 = vand.u32 %v1061, 31
        %v1064 = vsub.s32 32, %v1063
        %v1065 = vshrl.u32 683565275, %v1064
        %v1066 = vshll.u32 683565275, %v1063
        %v1067 = vshrl.u32 2475754826, %v1064
        %v1068 = vor.u32 %v1066, %v1067
        %v1069 = vshll.u32 2475754826, %v1063
        %v1070 = vshrl.u32 2131351028, %v1064
        %v1071 = vor.u32 %v1069, %v1070
        %v1072 = vshll.u32 2131351028, %v1063
        %v1073 = vshrl.u32 2102212464, %v1064
        %v1074 = vor.u32 %v1072, %v1073
        %v1075 = vshll.u32 2102212464, %v1063
        %v1076 = vshrl.u32 920167782, %v1064
        %v1077 = vor.u32 %v1075, %v1076
        %v1078 = vshll.u32 920167782, %v1063
        %v1079 = vshrl.u32 1326507024, %v1064
        %v1080 = vor.u32 %v1078, %v1079
        %vm1081 = vcmp.lt.s32.totalorder %v1062, 1
        %vm1082 = vcmp.lt.s32.totalorder %v1062, 2
        %vm1083 = vcmp.lt.s32.totalorder %v1062, 3
        %vm1084 = vcmp.lt.s32.totalorder %v1062, 4
        %v1085 = vsel %vm1081, %v1065, %v1068
        %v1086 = vsel %vm1084, %v1074, 2102212464
        %v1087 = vsel %vm1083, %v1071, %v1086
        %v1088 = vsel %vm1082, %v1085, %v1087
        %v1089 = vsel %vm1081, %v1068, %v1071
        %v1090 = vsel %vm1084, %v1077, 920167782
        %v1091 = vsel %vm1083, %v1074, %v1090
        %v1092 = vsel %vm1082, %v1089, %v1091
        %v1093 = vsel %vm1081, %v1071, %v1074
        %v1094 = vsel %vm1084, %v1080, 1326507024
        %v1095 = vsel %vm1083, %v1077, %v1094
        %v1096 = vsel %vm1082, %v1093, %v1095
        %v1097 = vshll.u32 %v1057, 8
        %v1098 = vmul.u32.u64.compose %v1097, %v1096
        %v1099 = vextract.low.u32 %v1098
        %v1100 = vextract.high.u32 %v1098
        %v1101 = vmul.u32.u64.compose %v1097, %v1092
        %v1102 = vextract.low.u32 %v1101
        %v1103 = vextract.high.u32 %v1101
        %v1104 = vmul.u32 %v1097, %v1088
        %v1105 = vadd.s32 %v1100, %v1102
        %vm1106 = vc.u32 %v1100, %v1102
        %v1107 = vadd.s32 %v1103, 1
        %v1108 = vsel %vm1106, %v1107, %v1103
        %v1109 = vadd.s32 %v1104, %v1108
        %v1110 = vadd.s32 %v1109, 536870912
        %v1111 = vshrl.u32 %v1110, 30
        %v1112 = vshll.u32 %v1111, 30
        %v1113 = vsub.s32 %v1109, %v1112
        %vm1114 = vcmp.lt.s32.totalorder %v1113, 0
        %v1115 = vsub.s32 0, %v1113
        %v1116 = vsel %vm1114, %v1115, %v1113
        %v1117 = vclz %v1116
        %v1118 = vsub.s32 %v1117, 2
        %vm1119 = vcmp.gt.s32.totalorder 0, %v1118
        %v1120 = vsel %vm1119, 0, %v1118
        %v1121 = vsub.s32 32, %v1120
        %v1122 = vshll.u32 %v1113, %v1120
        %v1123 = vshrl.u32 %v1105, %v1121
        %v1124 = vor.u32 %v1122, %v1123
        %v1125 = vsub.s32 4294967266, %v1120
        %v1126 = vadd.s32 %v1125, 127
        %v1127 = vshll.u32 %v1126, 23
        %v1128 = vor.u32 4788187, %v1127
        %v1129 = vand.u32 2147483647, %v1128
        %v1131 = vcvt.s32.f32 %v1124
        %v1132 = vmul.f32 %v1131, %v1129
        %v1133 = vxor.u32 %v1132, 2147483648
        %v1134 = vsel %vm1051, %v1133, %v1132
        %v1135 = vsub.s32 4, %v1111
        %v1136 = vsel %vm1051, %v1135, %v1111
        %v1137 = vsel %vm1050, %v1048, %v1134
        %v1138 = vsel %vm1050, 0, %v1136
        %v1139 = vcosq.f32.pop %v1137
        %v1140 = vsinq.f32.pop %v1137
        %vm1141 = vweird.f32 %v1048
        %v1142 = vadd.s32 %v1138, 3
        %v1143 = vand.u32 %v1142, 3
        %vm1144 = vcmp.lt.s32.totalorder %v1143, 2
        %vm1145 = vcmp.eq.s32.totalorder %v1143, 0
        %v1146 = vxor.u32 %v1140, 2147483648
        %v1147 = vsel %vm1145, %v1139, %v1146
        %vm1148 = vcmp.eq.s32.totalorder %v1143, 2
        %v1149 = vxor.u32 %v1139, 2147483648
        %v1150 = vsel %vm1148, %v1149, %v1140
        %v1151 = vsel %vm1144, %v1147, %v1150
        %v1152 = vsel %vm1141, nan, %v1151
        %s1153 = scalar_lea.vmem %s172, 24 [#allocation5]
        %1154 = vst.msk [vmem:[%s1153] sm:$0xff] %vm262, %v1152
        %v1155 = vand.u32 2147483647, %v1048
        %vm1156 = vcmp.le.f32.partialorder %v1155, 0.7853982
        %vm1157 = vcmp.lt.s32.totalorder %v1048, 0
        %v1158 = vand.u32 %v1048, 2139095040
        %v1159 = vshrl.u32 %v1158, 23
        %v1160 = vsub.s32 %v1159, 127
        %v1161 = vand.u32 2147483647, %v1048
        %v1162 = vand.u32 %v1161, 8388607
        %v1163 = vor.u32 %v1162, 8388608
        %v1164 = vsub.s32 0, %v1163
        %v1165 = vadd.s32 %v1160, 1
        %vm1166 = vcmp.gt.s32.totalorder %v1165, 0
        %v1167 = vsel %vm1166, %v1165, 0
        %v1168 = vshrl.u32 %v1167, 5
        %v1169 = vand.u32 %v1167, 31
        %v1170 = vsub.s32 32, %v1169
        %v1171 = vshrl.u32 683565275, %v1170
        %v1172 = vshll.u32 683565275, %v1169
        %v1173 = vshrl.u32 2475754826, %v1170
        %v1174 = vor.u32 %v1172, %v1173
        %v1175 = vshll.u32 2475754826, %v1169
        %v1176 = vshrl.u32 2131351028, %v1170
        %v1177 = vor.u32 %v1175, %v1176
        %v1178 = vshll.u32 2131351028, %v1169
        %v1179 = vshrl.u32 2102212464, %v1170
        %v1180 = vor.u32 %v1178, %v1179
        %v1181 = vshll.u32 2102212464, %v1169
        %v1182 = vshrl.u32 920167782, %v1170
        %v1183 = vor.u32 %v1181, %v1182
        %v1184 = vshll.u32 920167782, %v1169
        %v1185 = vshrl.u32 1326507024, %v1170
        %v1186 = vor.u32 %v1184, %v1185
        %vm1187 = vcmp.lt.s32.totalorder %v1168, 1
        %vm1188 = vcmp.lt.s32.totalorder %v1168, 2
        %vm1189 = vcmp.lt.s32.totalorder %v1168, 3
        %vm1190 = vcmp.lt.s32.totalorder %v1168, 4
        %v1191 = vsel %vm1187, %v1171, %v1174
        %v1192 = vsel %vm1190, %v1180, 2102212464
        %v1193 = vsel %vm1189, %v1177, %v1192
        %v1194 = vsel %vm1188, %v1191, %v1193
        %v1195 = vsel %vm1187, %v1174, %v1177
        %v1196 = vsel %vm1190, %v1183, 920167782
        %v1197 = vsel %vm1189, %v1180, %v1196
        %v1198 = vsel %vm1188, %v1195, %v1197
        %v1199 = vsel %vm1187, %v1177, %v1180
        %v1200 = vsel %vm1190, %v1186, 1326507024
        %v1201 = vsel %vm1189, %v1183, %v1200
        %v1202 = vsel %vm1188, %v1199, %v1201
        %v1203 = vshll.u32 %v1163, 8
        %v1204 = vmul.u32.u64.compose %v1203, %v1202
        %v1205 = vextract.low.u32 %v1204
        %v1206 = vextract.high.u32 %v1204
        %v1207 = vmul.u32.u64.compose %v1203, %v1198
        %v1208 = vextract.low.u32 %v1207
        %v1209 = vextract.high.u32 %v1207
        %v1210 = vmul.u32 %v1203, %v1194
        %v1211 = vadd.s32 %v1206, %v1208
        %vm1212 = vc.u32 %v1206, %v1208
        %v1213 = vadd.s32 %v1209, 1
        %v1214 = vsel %vm1212, %v1213, %v1209
        %v1215 = vadd.s32 %v1210, %v1214
        %v1216 = vadd.s32 %v1215, 536870912
        %v1217 = vshrl.u32 %v1216, 30
        %v1218 = vshll.u32 %v1217, 30
        %v1219 = vsub.s32 %v1215, %v1218
        %vm1220 = vcmp.lt.s32.totalorder %v1219, 0
        %v1221 = vsub.s32 0, %v1219
        %v1222 = vsel %vm1220, %v1221, %v1219
        %v1223 = vclz %v1222
        %v1224 = vsub.s32 %v1223, 2
        %vm1225 = vcmp.gt.s32.totalorder 0, %v1224
        %v1226 = vsel %vm1225, 0, %v1224
        %v1227 = vsub.s32 32, %v1226
        %v1228 = vshll.u32 %v1219, %v1226
        %v1229 = vshrl.u32 %v1211, %v1227
        %v1230 = vor.u32 %v1228, %v1229
        %v1231 = vsub.s32 4294967266, %v1226
        %v1232 = vadd.s32 %v1231, 127
        %v1233 = vshll.u32 %v1232, 23
        %v1234 = vor.u32 4788187, %v1233
        %v1235 = vand.u32 2147483647, %v1234
        %v1237 = vcvt.s32.f32 %v1230
        %v1238 = vmul.f32 %v1237, %v1235
        %v1239 = vxor.u32 %v1238, 2147483648
        %v1240 = vsel %vm1157, %v1239, %v1238
        %v1241 = vsub.s32 4, %v1217
        %v1242 = vsel %vm1157, %v1241, %v1217
        %v1243 = vsel %vm1156, %v1048, %v1240
        %v1244 = vsel %vm1156, 0, %v1242
        %v1245 = vcosq.f32.pop %v1243
        %v1246 = vsinq.f32.pop %v1243
        %vm1247 = vweird.f32 %v1048
        %v1248 = vand.u32 %v1244, 3
        %vm1249 = vcmp.lt.s32.totalorder %v1248, 2
        %vm1250 = vcmp.eq.s32.totalorder %v1248, 0
        %v1251 = vxor.u32 %v1246, 2147483648
        %v1252 = vsel %vm1250, %v1245, %v1251
        %vm1253 = vcmp.eq.s32.totalorder %v1248, 2
        %v1254 = vxor.u32 %v1245, 2147483648
        %v1255 = vsel %vm1253, %v1254, %v1246
        %v1256 = vsel %vm1249, %v1252, %v1255
        %v1257 = vsel %vm1247, nan, %v1256
        %s1258 = scalar_lea.vmem %s172, 112 [#allocation5]
        %1259 = vst.msk [vmem:[%s1258] sm:$0xff] %vm262, %v1257
        %v1260 = vmul.f32 %v408, 0.03511192
        %v1261 = vand.u32 2147483647, %v1260
        %vm1262 = vcmp.le.f32.partialorder %v1261, 0.7853982
        %vm1263 = vcmp.lt.s32.totalorder %v1260, 0
        %v1264 = vand.u32 %v1260, 2139095040
        %v1265 = vshrl.u32 %v1264, 23
        %v1266 = vsub.s32 %v1265, 127
        %v1267 = vand.u32 2147483647, %v1260
        %v1268 = vand.u32 %v1267, 8388607
        %v1269 = vor.u32 %v1268, 8388608
        %v1270 = vsub.s32 0, %v1269
        %v1271 = vadd.s32 %v1266, 1
        %vm1272 = vcmp.gt.s32.totalorder %v1271, 0
        %v1273 = vsel %vm1272, %v1271, 0
        %v1274 = vshrl.u32 %v1273, 5
        %v1275 = vand.u32 %v1273, 31
        %v1276 = vsub.s32 32, %v1275
        %v1277 = vshrl.u32 683565275, %v1276
        %v1278 = vshll.u32 683565275, %v1275
        %v1279 = vshrl.u32 2475754826, %v1276
        %v1280 = vor.u32 %v1278, %v1279
        %v1281 = vshll.u32 2475754826, %v1275
        %v1282 = vshrl.u32 2131351028, %v1276
        %v1283 = vor.u32 %v1281, %v1282
        %v1284 = vshll.u32 2131351028, %v1275
        %v1285 = vshrl.u32 2102212464, %v1276
        %v1286 = vor.u32 %v1284, %v1285
        %v1287 = vshll.u32 2102212464, %v1275
        %v1288 = vshrl.u32 920167782, %v1276
        %v1289 = vor.u32 %v1287, %v1288
        %v1290 = vshll.u32 920167782, %v1275
        %v1291 = vshrl.u32 1326507024, %v1276
        %v1292 = vor.u32 %v1290, %v1291
        %vm1293 = vcmp.lt.s32.totalorder %v1274, 1
        %vm1294 = vcmp.lt.s32.totalorder %v1274, 2
        %vm1295 = vcmp.lt.s32.totalorder %v1274, 3
        %vm1296 = vcmp.lt.s32.totalorder %v1274, 4
        %v1297 = vsel %vm1293, %v1277, %v1280
        %v1298 = vsel %vm1296, %v1286, 2102212464
        %v1299 = vsel %vm1295, %v1283, %v1298
        %v1300 = vsel %vm1294, %v1297, %v1299
        %v1301 = vsel %vm1293, %v1280, %v1283
        %v1302 = vsel %vm1296, %v1289, 920167782
        %v1303 = vsel %vm1295, %v1286, %v1302
        %v1304 = vsel %vm1294, %v1301, %v1303
        %v1305 = vsel %vm1293, %v1283, %v1286
        %v1306 = vsel %vm1296, %v1292, 1326507024
        %v1307 = vsel %vm1295, %v1289, %v1306
        %v1308 = vsel %vm1294, %v1305, %v1307
        %v1309 = vshll.u32 %v1269, 8
        %v1310 = vmul.u32.u64.compose %v1309, %v1308
        %v1311 = vextract.low.u32 %v1310
        %v1312 = vextract.high.u32 %v1310
        %v1313 = vmul.u32.u64.compose %v1309, %v1304
        %v1314 = vextract.low.u32 %v1313
        %v1315 = vextract.high.u32 %v1313
        %v1316 = vmul.u32 %v1309, %v1300
        %v1317 = vadd.s32 %v1312, %v1314
        %vm1318 = vc.u32 %v1312, %v1314
        %v1319 = vadd.s32 %v1315, 1
        %v1320 = vsel %vm1318, %v1319, %v1315
        %v1321 = vadd.s32 %v1316, %v1320
        %v1322 = vadd.s32 %v1321, 536870912
        %v1323 = vshrl.u32 %v1322, 30
        %v1324 = vshll.u32 %v1323, 30
        %v1325 = vsub.s32 %v1321, %v1324
        %vm1326 = vcmp.lt.s32.totalorder %v1325, 0
        %v1327 = vsub.s32 0, %v1325
        %v1328 = vsel %vm1326, %v1327, %v1325
        %v1329 = vclz %v1328
        %v1330 = vsub.s32 %v1329, 2
        %vm1331 = vcmp.gt.s32.totalorder 0, %v1330
        %v1332 = vsel %vm1331, 0, %v1330
        %v1333 = vsub.s32 32, %v1332
        %v1334 = vshll.u32 %v1325, %v1332
        %v1335 = vshrl.u32 %v1317, %v1333
        %v1336 = vor.u32 %v1334, %v1335
        %v1337 = vsub.s32 4294967266, %v1332
        %v1338 = vadd.s32 %v1337, 127
        %v1339 = vshll.u32 %v1338, 23
        %v1340 = vor.u32 4788187, %v1339
        %v1341 = vand.u32 2147483647, %v1340
        %v1343 = vcvt.s32.f32 %v1336
        %v1344 = vmul.f32 %v1343, %v1341
        %v1345 = vxor.u32 %v1344, 2147483648
        %v1346 = vsel %vm1263, %v1345, %v1344
        %v1347 = vsub.s32 4, %v1323
        %v1348 = vsel %vm1263, %v1347, %v1323
        %v1349 = vsel %vm1262, %v1260, %v1346
        %v1350 = vsel %vm1262, 0, %v1348
        %v1351 = vcosq.f32.pop %v1349
        %v1352 = vsinq.f32.pop %v1349
        %vm1353 = vweird.f32 %v1260
        %v1354 = vadd.s32 %v1350, 3
        %v1355 = vand.u32 %v1354, 3
        %vm1356 = vcmp.lt.s32.totalorder %v1355, 2
        %vm1357 = vcmp.eq.s32.totalorder %v1355, 0
        %v1358 = vxor.u32 %v1352, 2147483648
        %v1359 = vsel %vm1357, %v1351, %v1358
        %vm1360 = vcmp.eq.s32.totalorder %v1355, 2
        %v1361 = vxor.u32 %v1351, 2147483648
        %v1362 = vsel %vm1360, %v1361, %v1352
        %v1363 = vsel %vm1356, %v1359, %v1362
        %v1364 = vsel %vm1353, nan, %v1363
        %s1365 = scalar_lea.vmem %s172, 32 [#allocation5]
        %1366 = vst.msk [vmem:[%s1365] sm:$0xff] %vm262, %v1364
        %v1367 = vand.u32 2147483647, %v1260
        %vm1368 = vcmp.le.f32.partialorder %v1367, 0.7853982
        %vm1369 = vcmp.lt.s32.totalorder %v1260, 0
        %v1370 = vand.u32 %v1260, 2139095040
        %v1371 = vshrl.u32 %v1370, 23
        %v1372 = vsub.s32 %v1371, 127
        %v1373 = vand.u32 2147483647, %v1260
        %v1374 = vand.u32 %v1373, 8388607
        %v1375 = vor.u32 %v1374, 8388608
        %v1376 = vsub.s32 0, %v1375
        %v1377 = vadd.s32 %v1372, 1
        %vm1378 = vcmp.gt.s32.totalorder %v1377, 0
        %v1379 = vsel %vm1378, %v1377, 0
        %v1380 = vshrl.u32 %v1379, 5
        %v1381 = vand.u32 %v1379, 31
        %v1382 = vsub.s32 32, %v1381
        %v1383 = vshrl.u32 683565275, %v1382
        %v1384 = vshll.u32 683565275, %v1381
        %v1385 = vshrl.u32 2475754826, %v1382
        %v1386 = vor.u32 %v1384, %v1385
        %v1387 = vshll.u32 2475754826, %v1381
        %v1388 = vshrl.u32 2131351028, %v1382
        %v1389 = vor.u32 %v1387, %v1388
        %v1390 = vshll.u32 2131351028, %v1381
        %v1391 = vshrl.u32 2102212464, %v1382
        %v1392 = vor.u32 %v1390, %v1391
        %v1393 = vshll.u32 2102212464, %v1381
        %v1394 = vshrl.u32 920167782, %v1382
        %v1395 = vor.u32 %v1393, %v1394
        %v1396 = vshll.u32 920167782, %v1381
        %v1397 = vshrl.u32 1326507024, %v1382
        %v1398 = vor.u32 %v1396, %v1397
        %vm1399 = vcmp.lt.s32.totalorder %v1380, 1
        %vm1400 = vcmp.lt.s32.totalorder %v1380, 2
        %vm1401 = vcmp.lt.s32.totalorder %v1380, 3
        %vm1402 = vcmp.lt.s32.totalorder %v1380, 4
        %v1403 = vsel %vm1399, %v1383, %v1386
        %v1404 = vsel %vm1402, %v1392, 2102212464
        %v1405 = vsel %vm1401, %v1389, %v1404
        %v1406 = vsel %vm1400, %v1403, %v1405
        %v1407 = vsel %vm1399, %v1386, %v1389
        %v1408 = vsel %vm1402, %v1395, 920167782
        %v1409 = vsel %vm1401, %v1392, %v1408
        %v1410 = vsel %vm1400, %v1407, %v1409
        %v1411 = vsel %vm1399, %v1389, %v1392
        %v1412 = vsel %vm1402, %v1398, 1326507024
        %v1413 = vsel %vm1401, %v1395, %v1412
        %v1414 = vsel %vm1400, %v1411, %v1413
        %v1415 = vshll.u32 %v1375, 8
        %v1416 = vmul.u32.u64.compose %v1415, %v1414
        %v1417 = vextract.low.u32 %v1416
        %v1418 = vextract.high.u32 %v1416
        %v1419 = vmul.u32.u64.compose %v1415, %v1410
        %v1420 = vextract.low.u32 %v1419
        %v1421 = vextract.high.u32 %v1419
        %v1422 = vmul.u32 %v1415, %v1406
        %v1423 = vadd.s32 %v1418, %v1420
        %vm1424 = vc.u32 %v1418, %v1420
        %v1425 = vadd.s32 %v1421, 1
        %v1426 = vsel %vm1424, %v1425, %v1421
        %v1427 = vadd.s32 %v1422, %v1426
        %v1428 = vadd.s32 %v1427, 536870912
        %v1429 = vshrl.u32 %v1428, 30
        %v1430 = vshll.u32 %v1429, 30
        %v1431 = vsub.s32 %v1427, %v1430
        %vm1432 = vcmp.lt.s32.totalorder %v1431, 0
        %v1433 = vsub.s32 0, %v1431
        %v1434 = vsel %vm1432, %v1433, %v1431
        %v1435 = vclz %v1434
        %v1436 = vsub.s32 %v1435, 2
        %vm1437 = vcmp.gt.s32.totalorder 0, %v1436
        %v1438 = vsel %vm1437, 0, %v1436
        %v1439 = vsub.s32 32, %v1438
        %v1440 = vshll.u32 %v1431, %v1438
        %v1441 = vshrl.u32 %v1423, %v1439
        %v1442 = vor.u32 %v1440, %v1441
        %v1443 = vsub.s32 4294967266, %v1438
        %v1444 = vadd.s32 %v1443, 127
        %v1445 = vshll.u32 %v1444, 23
        %v1446 = vor.u32 4788187, %v1445
        %v1447 = vand.u32 2147483647, %v1446
        %v1449 = vcvt.s32.f32 %v1442
        %v1450 = vmul.f32 %v1449, %v1447
        %v1451 = vxor.u32 %v1450, 2147483648
        %v1452 = vsel %vm1369, %v1451, %v1450
        %v1453 = vsub.s32 4, %v1429
        %v1454 = vsel %vm1369, %v1453, %v1429
        %v1455 = vsel %vm1368, %v1260, %v1452
        %v1456 = vsel %vm1368, 0, %v1454
        %v1457 = vcosq.f32.pop %v1455
        %v1458 = vsinq.f32.pop %v1455
        %vm1459 = vweird.f32 %v1260
        %v1460 = vand.u32 %v1456, 3
        %vm1461 = vcmp.lt.s32.totalorder %v1460, 2
        %vm1462 = vcmp.eq.s32.totalorder %v1460, 0
        %v1463 = vxor.u32 %v1458, 2147483648
        %v1464 = vsel %vm1462, %v1457, %v1463
        %vm1465 = vcmp.eq.s32.totalorder %v1460, 2
        %v1466 = vxor.u32 %v1457, 2147483648
        %v1467 = vsel %vm1465, %v1466, %v1458
        %v1468 = vsel %vm1461, %v1464, %v1467
        %v1469 = vsel %vm1459, nan, %v1468
        %s1470 = scalar_lea.vmem %s172, 120 [#allocation5]
        %1471 = vst.msk [vmem:[%s1470] sm:$0xff] %vm262, %v1469
        %v1472 = vmul.f32 %v408, 0.015199111
        %v1473 = vand.u32 2147483647, %v1472
        %vm1474 = vcmp.le.f32.partialorder %v1473, 0.7853982
        %vm1475 = vcmp.lt.s32.totalorder %v1472, 0
        %v1476 = vand.u32 %v1472, 2139095040
        %v1477 = vshrl.u32 %v1476, 23
        %v1478 = vsub.s32 %v1477, 127
        %v1479 = vand.u32 2147483647, %v1472
        %v1480 = vand.u32 %v1479, 8388607
        %v1481 = vor.u32 %v1480, 8388608
        %v1482 = vsub.s32 0, %v1481
        %v1483 = vadd.s32 %v1478, 1
        %vm1484 = vcmp.gt.s32.totalorder %v1483, 0
        %v1485 = vsel %vm1484, %v1483, 0
        %v1486 = vshrl.u32 %v1485, 5
        %v1487 = vand.u32 %v1485, 31
        %v1488 = vsub.s32 32, %v1487
        %v1489 = vshrl.u32 683565275, %v1488
        %v1490 = vshll.u32 683565275, %v1487
        %v1491 = vshrl.u32 2475754826, %v1488
        %v1492 = vor.u32 %v1490, %v1491
        %v1493 = vshll.u32 2475754826, %v1487
        %v1494 = vshrl.u32 2131351028, %v1488
        %v1495 = vor.u32 %v1493, %v1494
        %v1496 = vshll.u32 2131351028, %v1487
        %v1497 = vshrl.u32 2102212464, %v1488
        %v1498 = vor.u32 %v1496, %v1497
        %v1499 = vshll.u32 2102212464, %v1487
        %v1500 = vshrl.u32 920167782, %v1488
        %v1501 = vor.u32 %v1499, %v1500
        %v1502 = vshll.u32 920167782, %v1487
        %v1503 = vshrl.u32 1326507024, %v1488
        %v1504 = vor.u32 %v1502, %v1503
        %vm1505 = vcmp.lt.s32.totalorder %v1486, 1
        %vm1506 = vcmp.lt.s32.totalorder %v1486, 2
        %vm1507 = vcmp.lt.s32.totalorder %v1486, 3
        %vm1508 = vcmp.lt.s32.totalorder %v1486, 4
        %v1509 = vsel %vm1505, %v1489, %v1492
        %v1510 = vsel %vm1508, %v1498, 2102212464
        %v1511 = vsel %vm1507, %v1495, %v1510
        %v1512 = vsel %vm1506, %v1509, %v1511
        %v1513 = vsel %vm1505, %v1492, %v1495
        %v1514 = vsel %vm1508, %v1501, 920167782
        %v1515 = vsel %vm1507, %v1498, %v1514
        %v1516 = vsel %vm1506, %v1513, %v1515
        %v1517 = vsel %vm1505, %v1495, %v1498
        %v1518 = vsel %vm1508, %v1504, 1326507024
        %v1519 = vsel %vm1507, %v1501, %v1518
        %v1520 = vsel %vm1506, %v1517, %v1519
        %v1521 = vshll.u32 %v1481, 8
        %v1522 = vmul.u32.u64.compose %v1521, %v1520
        %v1523 = vextract.low.u32 %v1522
        %v1524 = vextract.high.u32 %v1522
        %v1525 = vmul.u32.u64.compose %v1521, %v1516
        %v1526 = vextract.low.u32 %v1525
        %v1527 = vextract.high.u32 %v1525
        %v1528 = vmul.u32 %v1521, %v1512
        %v1529 = vadd.s32 %v1524, %v1526
        %vm1530 = vc.u32 %v1524, %v1526
        %v1531 = vadd.s32 %v1527, 1
        %v1532 = vsel %vm1530, %v1531, %v1527
        %v1533 = vadd.s32 %v1528, %v1532
        %v1534 = vadd.s32 %v1533, 536870912
        %v1535 = vshrl.u32 %v1534, 30
        %v1536 = vshll.u32 %v1535, 30
        %v1537 = vsub.s32 %v1533, %v1536
        %vm1538 = vcmp.lt.s32.totalorder %v1537, 0
        %v1539 = vsub.s32 0, %v1537
        %v1540 = vsel %vm1538, %v1539, %v1537
        %v1541 = vclz %v1540
        %v1542 = vsub.s32 %v1541, 2
        %vm1543 = vcmp.gt.s32.totalorder 0, %v1542
        %v1544 = vsel %vm1543, 0, %v1542
        %v1545 = vsub.s32 32, %v1544
        %v1546 = vshll.u32 %v1537, %v1544
        %v1547 = vshrl.u32 %v1529, %v1545
        %v1548 = vor.u32 %v1546, %v1547
        %v1549 = vsub.s32 4294967266, %v1544
        %v1550 = vadd.s32 %v1549, 127
        %v1551 = vshll.u32 %v1550, 23
        %v1552 = vor.u32 4788187, %v1551
        %v1553 = vand.u32 2147483647, %v1552
        %v1555 = vcvt.s32.f32 %v1548
        %v1556 = vmul.f32 %v1555, %v1553
        %v1557 = vxor.u32 %v1556, 2147483648
        %v1558 = vsel %vm1475, %v1557, %v1556
        %v1559 = vsub.s32 4, %v1535
        %v1560 = vsel %vm1475, %v1559, %v1535
        %v1561 = vsel %vm1474, %v1472, %v1558
        %v1562 = vsel %vm1474, 0, %v1560
        %v1563 = vcosq.f32.pop %v1561
        %v1564 = vsinq.f32.pop %v1561
        %vm1565 = vweird.f32 %v1472
        %v1566 = vadd.s32 %v1562, 3
        %v1567 = vand.u32 %v1566, 3
        %vm1568 = vcmp.lt.s32.totalorder %v1567, 2
        %vm1569 = vcmp.eq.s32.totalorder %v1567, 0
        %v1570 = vxor.u32 %v1564, 2147483648
        %v1571 = vsel %vm1569, %v1563, %v1570
        %vm1572 = vcmp.eq.s32.totalorder %v1567, 2
        %v1573 = vxor.u32 %v1563, 2147483648
        %v1574 = vsel %vm1572, %v1573, %v1564
        %v1575 = vsel %vm1568, %v1571, %v1574
        %v1576 = vsel %vm1565, nan, %v1575
        %s1577 = scalar_lea.vmem %s172, 40 [#allocation5]
        %1578 = vst.msk [vmem:[%s1577] sm:$0xff] %vm262, %v1576
        %v1579 = vand.u32 2147483647, %v1472
        %vm1580 = vcmp.le.f32.partialorder %v1579, 0.7853982
        %vm1581 = vcmp.lt.s32.totalorder %v1472, 0
        %v1582 = vand.u32 %v1472, 2139095040
        %v1583 = vshrl.u32 %v1582, 23
        %v1584 = vsub.s32 %v1583, 127
        %v1585 = vand.u32 2147483647, %v1472
        %v1586 = vand.u32 %v1585, 8388607
        %v1587 = vor.u32 %v1586, 8388608
        %v1588 = vsub.s32 0, %v1587
        %v1589 = vadd.s32 %v1584, 1
        %vm1590 = vcmp.gt.s32.totalorder %v1589, 0
        %v1591 = vsel %vm1590, %v1589, 0
        %v1592 = vshrl.u32 %v1591, 5
        %v1593 = vand.u32 %v1591, 31
        %v1594 = vsub.s32 32, %v1593
        %v1595 = vshrl.u32 683565275, %v1594
        %v1596 = vshll.u32 683565275, %v1593
        %v1597 = vshrl.u32 2475754826, %v1594
        %v1598 = vor.u32 %v1596, %v1597
        %v1599 = vshll.u32 2475754826, %v1593
        %v1600 = vshrl.u32 2131351028, %v1594
        %v1601 = vor.u32 %v1599, %v1600
        %v1602 = vshll.u32 2131351028, %v1593
        %v1603 = vshrl.u32 2102212464, %v1594
        %v1604 = vor.u32 %v1602, %v1603
        %v1605 = vshll.u32 2102212464, %v1593
        %v1606 = vshrl.u32 920167782, %v1594
        %v1607 = vor.u32 %v1605, %v1606
        %v1608 = vshll.u32 920167782, %v1593
        %v1609 = vshrl.u32 1326507024, %v1594
        %v1610 = vor.u32 %v1608, %v1609
        %vm1611 = vcmp.lt.s32.totalorder %v1592, 1
        %vm1612 = vcmp.lt.s32.totalorder %v1592, 2
        %vm1613 = vcmp.lt.s32.totalorder %v1592, 3
        %vm1614 = vcmp.lt.s32.totalorder %v1592, 4
        %v1615 = vsel %vm1611, %v1595, %v1598
        %v1616 = vsel %vm1614, %v1604, 2102212464
        %v1617 = vsel %vm1613, %v1601, %v1616
        %v1618 = vsel %vm1612, %v1615, %v1617
        %v1619 = vsel %vm1611, %v1598, %v1601
        %v1620 = vsel %vm1614, %v1607, 920167782
        %v1621 = vsel %vm1613, %v1604, %v1620
        %v1622 = vsel %vm1612, %v1619, %v1621
        %v1623 = vsel %vm1611, %v1601, %v1604
        %v1624 = vsel %vm1614, %v1610, 1326507024
        %v1625 = vsel %vm1613, %v1607, %v1624
        %v1626 = vsel %vm1612, %v1623, %v1625
        %v1627 = vshll.u32 %v1587, 8
        %v1628 = vmul.u32.u64.compose %v1627, %v1626
        %v1629 = vextract.low.u32 %v1628
        %v1630 = vextract.high.u32 %v1628
        %v1631 = vmul.u32.u64.compose %v1627, %v1622
        %v1632 = vextract.low.u32 %v1631
        %v1633 = vextract.high.u32 %v1631
        %v1634 = vmul.u32 %v1627, %v1618
        %v1635 = vadd.s32 %v1630, %v1632
        %vm1636 = vc.u32 %v1630, %v1632
        %v1637 = vadd.s32 %v1633, 1
        %v1638 = vsel %vm1636, %v1637, %v1633
        %v1639 = vadd.s32 %v1634, %v1638
        %v1640 = vadd.s32 %v1639, 536870912
        %v1641 = vshrl.u32 %v1640, 30
        %v1642 = vshll.u32 %v1641, 30
        %v1643 = vsub.s32 %v1639, %v1642
        %vm1644 = vcmp.lt.s32.totalorder %v1643, 0
        %v1645 = vsub.s32 0, %v1643
        %v1646 = vsel %vm1644, %v1645, %v1643
        %v1647 = vclz %v1646
        %v1648 = vsub.s32 %v1647, 2
        %vm1649 = vcmp.gt.s32.totalorder 0, %v1648
        %v1650 = vsel %vm1649, 0, %v1648
        %v1651 = vsub.s32 32, %v1650
        %v1652 = vshll.u32 %v1643, %v1650
        %v1653 = vshrl.u32 %v1635, %v1651
        %v1654 = vor.u32 %v1652, %v1653
        %v1655 = vsub.s32 4294967266, %v1650
        %v1656 = vadd.s32 %v1655, 127
        %v1657 = vshll.u32 %v1656, 23
        %v1658 = vor.u32 4788187, %v1657
        %v1659 = vand.u32 2147483647, %v1658
        %v1661 = vcvt.s32.f32 %v1654
        %v1662 = vmul.f32 %v1661, %v1659
        %v1663 = vxor.u32 %v1662, 2147483648
        %v1664 = vsel %vm1581, %v1663, %v1662
        %v1665 = vsub.s32 4, %v1641
        %v1666 = vsel %vm1581, %v1665, %v1641
        %v1667 = vsel %vm1580, %v1472, %v1664
        %v1668 = vsel %vm1580, 0, %v1666
        %v1669 = vcosq.f32.pop %v1667
        %v1670 = vsinq.f32.pop %v1667
        %vm1671 = vweird.f32 %v1472
        %v1672 = vand.u32 %v1668, 3
        %vm1673 = vcmp.lt.s32.totalorder %v1672, 2
        %vm1674 = vcmp.eq.s32.totalorder %v1672, 0
        %v1675 = vxor.u32 %v1670, 2147483648
        %v1676 = vsel %vm1674, %v1669, %v1675
        %vm1677 = vcmp.eq.s32.totalorder %v1672, 2
        %v1678 = vxor.u32 %v1669, 2147483648
        %v1679 = vsel %vm1677, %v1678, %v1670
        %v1680 = vsel %vm1673, %v1676, %v1679
        %v1681 = vsel %vm1671, nan, %v1680
        %s1682 = scalar_lea.vmem %s172, 128 [#allocation5]
        %1683 = vst.msk [vmem:[%s1682] sm:$0xff] %vm262, %v1681
        %v1684 = vmul.f32 %v408, 0.006579332
        %v1685 = vand.u32 2147483647, %v1684
        %vm1686 = vcmp.le.f32.partialorder %v1685, 0.7853982
        %vm1687 = vcmp.lt.s32.totalorder %v1684, 0
        %v1688 = vand.u32 %v1684, 2139095040
        %v1689 = vshrl.u32 %v1688, 23
        %v1690 = vsub.s32 %v1689, 127
        %v1691 = vand.u32 2147483647, %v1684
        %v1692 = vand.u32 %v1691, 8388607
        %v1693 = vor.u32 %v1692, 8388608
        %v1694 = vsub.s32 0, %v1693
        %v1695 = vadd.s32 %v1690, 1
        %vm1696 = vcmp.gt.s32.totalorder %v1695, 0
        %v1697 = vsel %vm1696, %v1695, 0
        %v1698 = vshrl.u32 %v1697, 5
        %v1699 = vand.u32 %v1697, 31
        %v1700 = vsub.s32 32, %v1699
        %v1701 = vshrl.u32 683565275, %v1700
        %v1702 = vshll.u32 683565275, %v1699
        %v1703 = vshrl.u32 2475754826, %v1700
        %v1704 = vor.u32 %v1702, %v1703
        %v1705 = vshll.u32 2475754826, %v1699
        %v1706 = vshrl.u32 2131351028, %v1700
        %v1707 = vor.u32 %v1705, %v1706
        %v1708 = vshll.u32 2131351028, %v1699
        %v1709 = vshrl.u32 2102212464, %v1700
        %v1710 = vor.u32 %v1708, %v1709
        %v1711 = vshll.u32 2102212464, %v1699
        %v1712 = vshrl.u32 920167782, %v1700
        %v1713 = vor.u32 %v1711, %v1712
        %v1714 = vshll.u32 920167782, %v1699
        %v1715 = vshrl.u32 1326507024, %v1700
        %v1716 = vor.u32 %v1714, %v1715
        %vm1717 = vcmp.lt.s32.totalorder %v1698, 1
        %vm1718 = vcmp.lt.s32.totalorder %v1698, 2
        %vm1719 = vcmp.lt.s32.totalorder %v1698, 3
        %vm1720 = vcmp.lt.s32.totalorder %v1698, 4
        %v1721 = vsel %vm1717, %v1701, %v1704
        %v1722 = vsel %vm1720, %v1710, 2102212464
        %v1723 = vsel %vm1719, %v1707, %v1722
        %v1724 = vsel %vm1718, %v1721, %v1723
        %v1725 = vsel %vm1717, %v1704, %v1707
        %v1726 = vsel %vm1720, %v1713, 920167782
        %v1727 = vsel %vm1719, %v1710, %v1726
        %v1728 = vsel %vm1718, %v1725, %v1727
        %v1729 = vsel %vm1717, %v1707, %v1710
        %v1730 = vsel %vm1720, %v1716, 1326507024
        %v1731 = vsel %vm1719, %v1713, %v1730
        %v1732 = vsel %vm1718, %v1729, %v1731
        %v1733 = vshll.u32 %v1693, 8
        %v1734 = vmul.u32.u64.compose %v1733, %v1732
        %v1735 = vextract.low.u32 %v1734
        %v1736 = vextract.high.u32 %v1734
        %v1737 = vmul.u32.u64.compose %v1733, %v1728
        %v1738 = vextract.low.u32 %v1737
        %v1739 = vextract.high.u32 %v1737
        %v1740 = vmul.u32 %v1733, %v1724
        %v1741 = vadd.s32 %v1736, %v1738
        %vm1742 = vc.u32 %v1736, %v1738
        %v1743 = vadd.s32 %v1739, 1
        %v1744 = vsel %vm1742, %v1743, %v1739
        %v1745 = vadd.s32 %v1740, %v1744
        %v1746 = vadd.s32 %v1745, 536870912
        %v1747 = vshrl.u32 %v1746, 30
        %v1748 = vshll.u32 %v1747, 30
        %v1749 = vsub.s32 %v1745, %v1748
        %vm1750 = vcmp.lt.s32.totalorder %v1749, 0
        %v1751 = vsub.s32 0, %v1749
        %v1752 = vsel %vm1750, %v1751, %v1749
        %v1753 = vclz %v1752
        %v1754 = vsub.s32 %v1753, 2
        %vm1755 = vcmp.gt.s32.totalorder 0, %v1754
        %v1756 = vsel %vm1755, 0, %v1754
        %v1757 = vsub.s32 32, %v1756
        %v1758 = vshll.u32 %v1749, %v1756
        %v1759 = vshrl.u32 %v1741, %v1757
        %v1760 = vor.u32 %v1758, %v1759
        %v1761 = vsub.s32 4294967266, %v1756
        %v1762 = vadd.s32 %v1761, 127
        %v1763 = vshll.u32 %v1762, 23
        %v1764 = vor.u32 4788187, %v1763
        %v1765 = vand.u32 2147483647, %v1764
        %v1767 = vcvt.s32.f32 %v1760
        %v1768 = vmul.f32 %v1767, %v1765
        %v1769 = vxor.u32 %v1768, 2147483648
        %v1770 = vsel %vm1687, %v1769, %v1768
        %v1771 = vsub.s32 4, %v1747
        %v1772 = vsel %vm1687, %v1771, %v1747
        %v1773 = vsel %vm1686, %v1684, %v1770
        %v1774 = vsel %vm1686, 0, %v1772
        %v1775 = vcosq.f32.pop %v1773
        %v1776 = vsinq.f32.pop %v1773
        %vm1777 = vweird.f32 %v1684
        %v1778 = vadd.s32 %v1774, 3
        %v1779 = vand.u32 %v1778, 3
        %vm1780 = vcmp.lt.s32.totalorder %v1779, 2
        %vm1781 = vcmp.eq.s32.totalorder %v1779, 0
        %v1782 = vxor.u32 %v1776, 2147483648
        %v1783 = vsel %vm1781, %v1775, %v1782
        %vm1784 = vcmp.eq.s32.totalorder %v1779, 2
        %v1785 = vxor.u32 %v1775, 2147483648
        %v1786 = vsel %vm1784, %v1785, %v1776
        %v1787 = vsel %vm1780, %v1783, %v1786
        %v1788 = vsel %vm1777, nan, %v1787
        %s1789 = scalar_lea.vmem %s172, 48 [#allocation5]
        %1790 = vst.msk [vmem:[%s1789] sm:$0xff] %vm262, %v1788
        %v1791 = vand.u32 2147483647, %v1684
        %vm1792 = vcmp.le.f32.partialorder %v1791, 0.7853982
        %vm1793 = vcmp.lt.s32.totalorder %v1684, 0
        %v1794 = vand.u32 %v1684, 2139095040
        %v1795 = vshrl.u32 %v1794, 23
        %v1796 = vsub.s32 %v1795, 127
        %v1797 = vand.u32 2147483647, %v1684
        %v1798 = vand.u32 %v1797, 8388607
        %v1799 = vor.u32 %v1798, 8388608
        %v1800 = vsub.s32 0, %v1799
        %v1801 = vadd.s32 %v1796, 1
        %vm1802 = vcmp.gt.s32.totalorder %v1801, 0
        %v1803 = vsel %vm1802, %v1801, 0
        %v1804 = vshrl.u32 %v1803, 5
        %v1805 = vand.u32 %v1803, 31
        %v1806 = vsub.s32 32, %v1805
        %v1807 = vshrl.u32 683565275, %v1806
        %v1808 = vshll.u32 683565275, %v1805
        %v1809 = vshrl.u32 2475754826, %v1806
        %v1810 = vor.u32 %v1808, %v1809
        %v1811 = vshll.u32 2475754826, %v1805
        %v1812 = vshrl.u32 2131351028, %v1806
        %v1813 = vor.u32 %v1811, %v1812
        %v1814 = vshll.u32 2131351028, %v1805
        %v1815 = vshrl.u32 2102212464, %v1806
        %v1816 = vor.u32 %v1814, %v1815
        %v1817 = vshll.u32 2102212464, %v1805
        %v1818 = vshrl.u32 920167782, %v1806
        %v1819 = vor.u32 %v1817, %v1818
        %v1820 = vshll.u32 920167782, %v1805
        %v1821 = vshrl.u32 1326507024, %v1806
        %v1822 = vor.u32 %v1820, %v1821
        %vm1823 = vcmp.lt.s32.totalorder %v1804, 1
        %vm1824 = vcmp.lt.s32.totalorder %v1804, 2
        %vm1825 = vcmp.lt.s32.totalorder %v1804, 3
        %vm1826 = vcmp.lt.s32.totalorder %v1804, 4
        %v1827 = vsel %vm1823, %v1807, %v1810
        %v1828 = vsel %vm1826, %v1816, 2102212464
        %v1829 = vsel %vm1825, %v1813, %v1828
        %v1830 = vsel %vm1824, %v1827, %v1829
        %v1831 = vsel %vm1823, %v1810, %v1813
        %v1832 = vsel %vm1826, %v1819, 920167782
        %v1833 = vsel %vm1825, %v1816, %v1832
        %v1834 = vsel %vm1824, %v1831, %v1833
        %v1835 = vsel %vm1823, %v1813, %v1816
        %v1836 = vsel %vm1826, %v1822, 1326507024
        %v1837 = vsel %vm1825, %v1819, %v1836
        %v1838 = vsel %vm1824, %v1835, %v1837
        %v1839 = vshll.u32 %v1799, 8
        %v1840 = vmul.u32.u64.compose %v1839, %v1838
        %v1841 = vextract.low.u32 %v1840
        %v1842 = vextract.high.u32 %v1840
        %v1843 = vmul.u32.u64.compose %v1839, %v1834
        %v1844 = vextract.low.u32 %v1843
        %v1845 = vextract.high.u32 %v1843
        %v1846 = vmul.u32 %v1839, %v1830
        %v1847 = vadd.s32 %v1842, %v1844
        %vm1848 = vc.u32 %v1842, %v1844
        %v1849 = vadd.s32 %v1845, 1
        %v1850 = vsel %vm1848, %v1849, %v1845
        %v1851 = vadd.s32 %v1846, %v1850
        %v1852 = vadd.s32 %v1851, 536870912
        %v1853 = vshrl.u32 %v1852, 30
        %v1854 = vshll.u32 %v1853, 30
        %v1855 = vsub.s32 %v1851, %v1854
        %vm1856 = vcmp.lt.s32.totalorder %v1855, 0
        %v1857 = vsub.s32 0, %v1855
        %v1858 = vsel %vm1856, %v1857, %v1855
        %v1859 = vclz %v1858
        %v1860 = vsub.s32 %v1859, 2
        %vm1861 = vcmp.gt.s32.totalorder 0, %v1860
        %v1862 = vsel %vm1861, 0, %v1860
        %v1863 = vsub.s32 32, %v1862
        %v1864 = vshll.u32 %v1855, %v1862
        %v1865 = vshrl.u32 %v1847, %v1863
        %v1866 = vor.u32 %v1864, %v1865
        %v1867 = vsub.s32 4294967266, %v1862
        %v1868 = vadd.s32 %v1867, 127
        %v1869 = vshll.u32 %v1868, 23
        %v1870 = vor.u32 4788187, %v1869
        %v1871 = vand.u32 2147483647, %v1870
        %v1873 = vcvt.s32.f32 %v1866
        %v1874 = vmul.f32 %v1873, %v1871
        %v1875 = vxor.u32 %v1874, 2147483648
        %v1876 = vsel %vm1793, %v1875, %v1874
        %v1877 = vsub.s32 4, %v1853
        %v1878 = vsel %vm1793, %v1877, %v1853
        %v1879 = vsel %vm1792, %v1684, %v1876
        %v1880 = vsel %vm1792, 0, %v1878
        %v1881 = vcosq.f32.pop %v1879
        %v1882 = vsinq.f32.pop %v1879
        %vm1883 = vweird.f32 %v1684
        %v1884 = vand.u32 %v1880, 3
        %vm1885 = vcmp.lt.s32.totalorder %v1884, 2
        %vm1886 = vcmp.eq.s32.totalorder %v1884, 0
        %v1887 = vxor.u32 %v1882, 2147483648
        %v1888 = vsel %vm1886, %v1881, %v1887
        %vm1889 = vcmp.eq.s32.totalorder %v1884, 2
        %v1890 = vxor.u32 %v1881, 2147483648
        %v1891 = vsel %vm1889, %v1890, %v1882
        %v1892 = vsel %vm1885, %v1888, %v1891
        %v1893 = vsel %vm1883, nan, %v1892
        %s1894 = scalar_lea.vmem %s172, 136 [#allocation5]
        %1895 = vst.msk [vmem:[%s1894] sm:$0xff] %vm262, %v1893
        %v1896 = vmul.f32 %v408, 0.002848036
        %v1897 = vand.u32 2147483647, %v1896
        %vm1898 = vcmp.le.f32.partialorder %v1897, 0.7853982
        %vm1899 = vcmp.lt.s32.totalorder %v1896, 0
        %v1900 = vand.u32 %v1896, 2139095040
        %v1901 = vshrl.u32 %v1900, 23
        %v1902 = vsub.s32 %v1901, 127
        %v1903 = vand.u32 2147483647, %v1896
        %v1904 = vand.u32 %v1903, 8388607
        %v1905 = vor.u32 %v1904, 8388608
        %v1906 = vsub.s32 0, %v1905
        %v1907 = vadd.s32 %v1902, 1
        %vm1908 = vcmp.gt.s32.totalorder %v1907, 0
        %v1909 = vsel %vm1908, %v1907, 0
        %v1910 = vshrl.u32 %v1909, 5
        %v1911 = vand.u32 %v1909, 31
        %v1912 = vsub.s32 32, %v1911
        %v1913 = vshrl.u32 683565275, %v1912
        %v1914 = vshll.u32 683565275, %v1911
        %v1915 = vshrl.u32 2475754826, %v1912
        %v1916 = vor.u32 %v1914, %v1915
        %v1917 = vshll.u32 2475754826, %v1911
        %v1918 = vshrl.u32 2131351028, %v1912
        %v1919 = vor.u32 %v1917, %v1918
        %v1920 = vshll.u32 2131351028, %v1911
        %v1921 = vshrl.u32 2102212464, %v1912
        %v1922 = vor.u32 %v1920, %v1921
        %v1923 = vshll.u32 2102212464, %v1911
        %v1924 = vshrl.u32 920167782, %v1912
        %v1925 = vor.u32 %v1923, %v1924
        %v1926 = vshll.u32 920167782, %v1911
        %v1927 = vshrl.u32 1326507024, %v1912
        %v1928 = vor.u32 %v1926, %v1927
        %vm1929 = vcmp.lt.s32.totalorder %v1910, 1
        %vm1930 = vcmp.lt.s32.totalorder %v1910, 2
        %vm1931 = vcmp.lt.s32.totalorder %v1910, 3
        %vm1932 = vcmp.lt.s32.totalorder %v1910, 4
        %v1933 = vsel %vm1929, %v1913, %v1916
        %v1934 = vsel %vm1932, %v1922, 2102212464
        %v1935 = vsel %vm1931, %v1919, %v1934
        %v1936 = vsel %vm1930, %v1933, %v1935
        %v1937 = vsel %vm1929, %v1916, %v1919
        %v1938 = vsel %vm1932, %v1925, 920167782
        %v1939 = vsel %vm1931, %v1922, %v1938
        %v1940 = vsel %vm1930, %v1937, %v1939
        %v1941 = vsel %vm1929, %v1919, %v1922
        %v1942 = vsel %vm1932, %v1928, 1326507024
        %v1943 = vsel %vm1931, %v1925, %v1942
        %v1944 = vsel %vm1930, %v1941, %v1943
        %v1945 = vshll.u32 %v1905, 8
        %v1946 = vmul.u32.u64.compose %v1945, %v1944
        %v1947 = vextract.low.u32 %v1946
        %v1948 = vextract.high.u32 %v1946
        %v1949 = vmul.u32.u64.compose %v1945, %v1940
        %v1950 = vextract.low.u32 %v1949
        %v1951 = vextract.high.u32 %v1949
        %v1952 = vmul.u32 %v1945, %v1936
        %v1953 = vadd.s32 %v1948, %v1950
        %vm1954 = vc.u32 %v1948, %v1950
        %v1955 = vadd.s32 %v1951, 1
        %v1956 = vsel %vm1954, %v1955, %v1951
        %v1957 = vadd.s32 %v1952, %v1956
        %v1958 = vadd.s32 %v1957, 536870912
        %v1959 = vshrl.u32 %v1958, 30
        %v1960 = vshll.u32 %v1959, 30
        %v1961 = vsub.s32 %v1957, %v1960
        %vm1962 = vcmp.lt.s32.totalorder %v1961, 0
        %v1963 = vsub.s32 0, %v1961
        %v1964 = vsel %vm1962, %v1963, %v1961
        %v1965 = vclz %v1964
        %v1966 = vsub.s32 %v1965, 2
        %vm1967 = vcmp.gt.s32.totalorder 0, %v1966
        %v1968 = vsel %vm1967, 0, %v1966
        %v1969 = vsub.s32 32, %v1968
        %v1970 = vshll.u32 %v1961, %v1968
        %v1971 = vshrl.u32 %v1953, %v1969
        %v1972 = vor.u32 %v1970, %v1971
        %v1973 = vsub.s32 4294967266, %v1968
        %v1974 = vadd.s32 %v1973, 127
        %v1975 = vshll.u32 %v1974, 23
        %v1976 = vor.u32 4788187, %v1975
        %v1977 = vand.u32 2147483647, %v1976
        %v1979 = vcvt.s32.f32 %v1972
        %v1980 = vmul.f32 %v1979, %v1977
        %v1981 = vxor.u32 %v1980, 2147483648
        %v1982 = vsel %vm1899, %v1981, %v1980
        %v1983 = vsub.s32 4, %v1959
        %v1984 = vsel %vm1899, %v1983, %v1959
        %v1985 = vsel %vm1898, %v1896, %v1982
        %v1986 = vsel %vm1898, 0, %v1984
        %v1987 = vcosq.f32.pop %v1985
        %v1988 = vsinq.f32.pop %v1985
        %vm1989 = vweird.f32 %v1896
        %v1990 = vadd.s32 %v1986, 3
        %v1991 = vand.u32 %v1990, 3
        %vm1992 = vcmp.lt.s32.totalorder %v1991, 2
        %vm1993 = vcmp.eq.s32.totalorder %v1991, 0
        %v1994 = vxor.u32 %v1988, 2147483648
        %v1995 = vsel %vm1993, %v1987, %v1994
        %vm1996 = vcmp.eq.s32.totalorder %v1991, 2
        %v1997 = vxor.u32 %v1987, 2147483648
        %v1998 = vsel %vm1996, %v1997, %v1988
        %v1999 = vsel %vm1992, %v1995, %v1998
        %v2000 = vsel %vm1989, nan, %v1999
        %s2001 = scalar_lea.vmem %s172, 56 [#allocation5]
        %2002 = vst.msk [vmem:[%s2001] sm:$0xff] %vm262, %v2000
        %v2003 = vand.u32 2147483647, %v1896
        %vm2004 = vcmp.le.f32.partialorder %v2003, 0.7853982
        %vm2005 = vcmp.lt.s32.totalorder %v1896, 0
        %v2006 = vand.u32 %v1896, 2139095040
        %v2007 = vshrl.u32 %v2006, 23
        %v2008 = vsub.s32 %v2007, 127
        %v2009 = vand.u32 2147483647, %v1896
        %v2010 = vand.u32 %v2009, 8388607
        %v2011 = vor.u32 %v2010, 8388608
        %v2012 = vsub.s32 0, %v2011
        %v2013 = vadd.s32 %v2008, 1
        %vm2014 = vcmp.gt.s32.totalorder %v2013, 0
        %v2015 = vsel %vm2014, %v2013, 0
        %v2016 = vshrl.u32 %v2015, 5
        %v2017 = vand.u32 %v2015, 31
        %v2018 = vsub.s32 32, %v2017
        %v2019 = vshrl.u32 683565275, %v2018
        %v2020 = vshll.u32 683565275, %v2017
        %v2021 = vshrl.u32 2475754826, %v2018
        %v2022 = vor.u32 %v2020, %v2021
        %v2023 = vshll.u32 2475754826, %v2017
        %v2024 = vshrl.u32 2131351028, %v2018
        %v2025 = vor.u32 %v2023, %v2024
        %v2026 = vshll.u32 2131351028, %v2017
        %v2027 = vshrl.u32 2102212464, %v2018
        %v2028 = vor.u32 %v2026, %v2027
        %v2029 = vshll.u32 2102212464, %v2017
        %v2030 = vshrl.u32 920167782, %v2018
        %v2031 = vor.u32 %v2029, %v2030
        %v2032 = vshll.u32 920167782, %v2017
        %v2033 = vshrl.u32 1326507024, %v2018
        %v2034 = vor.u32 %v2032, %v2033
        %vm2035 = vcmp.lt.s32.totalorder %v2016, 1
        %vm2036 = vcmp.lt.s32.totalorder %v2016, 2
        %vm2037 = vcmp.lt.s32.totalorder %v2016, 3
        %vm2038 = vcmp.lt.s32.totalorder %v2016, 4
        %v2039 = vsel %vm2035, %v2019, %v2022
        %v2040 = vsel %vm2038, %v2028, 2102212464
        %v2041 = vsel %vm2037, %v2025, %v2040
        %v2042 = vsel %vm2036, %v2039, %v2041
        %v2043 = vsel %vm2035, %v2022, %v2025
        %v2044 = vsel %vm2038, %v2031, 920167782
        %v2045 = vsel %vm2037, %v2028, %v2044
        %v2046 = vsel %vm2036, %v2043, %v2045
        %v2047 = vsel %vm2035, %v2025, %v2028
        %v2048 = vsel %vm2038, %v2034, 1326507024
        %v2049 = vsel %vm2037, %v2031, %v2048
        %v2050 = vsel %vm2036, %v2047, %v2049
        %v2051 = vshll.u32 %v2011, 8
        %v2052 = vmul.u32.u64.compose %v2051, %v2050
        %v2053 = vextract.low.u32 %v2052
        %v2054 = vextract.high.u32 %v2052
        %v2055 = vmul.u32.u64.compose %v2051, %v2046
        %v2056 = vextract.low.u32 %v2055
        %v2057 = vextract.high.u32 %v2055
        %v2058 = vmul.u32 %v2051, %v2042
        %v2059 = vadd.s32 %v2054, %v2056
        %vm2060 = vc.u32 %v2054, %v2056
        %v2061 = vadd.s32 %v2057, 1
        %v2062 = vsel %vm2060, %v2061, %v2057
        %v2063 = vadd.s32 %v2058, %v2062
        %v2064 = vadd.s32 %v2063, 536870912
        %v2065 = vshrl.u32 %v2064, 30
        %v2066 = vshll.u32 %v2065, 30
        %v2067 = vsub.s32 %v2063, %v2066
        %vm2068 = vcmp.lt.s32.totalorder %v2067, 0
        %v2069 = vsub.s32 0, %v2067
        %v2070 = vsel %vm2068, %v2069, %v2067
        %v2071 = vclz %v2070
        %v2072 = vsub.s32 %v2071, 2
        %vm2073 = vcmp.gt.s32.totalorder 0, %v2072
        %v2074 = vsel %vm2073, 0, %v2072
        %v2075 = vsub.s32 32, %v2074
        %v2076 = vshll.u32 %v2067, %v2074
        %v2077 = vshrl.u32 %v2059, %v2075
        %v2078 = vor.u32 %v2076, %v2077
        %v2079 = vsub.s32 4294967266, %v2074
        %v2080 = vadd.s32 %v2079, 127
        %v2081 = vshll.u32 %v2080, 23
        %v2082 = vor.u32 4788187, %v2081
        %v2083 = vand.u32 2147483647, %v2082
        %v2085 = vcvt.s32.f32 %v2078
        %v2086 = vmul.f32 %v2085, %v2083
        %v2087 = vxor.u32 %v2086, 2147483648
        %v2088 = vsel %vm2005, %v2087, %v2086
        %v2089 = vsub.s32 4, %v2065
        %v2090 = vsel %vm2005, %v2089, %v2065
        %v2091 = vsel %vm2004, %v1896, %v2088
        %v2092 = vsel %vm2004, 0, %v2090
        %v2093 = vcosq.f32.pop %v2091
        %v2094 = vsinq.f32.pop %v2091
        %vm2095 = vweird.f32 %v1896
        %v2096 = vand.u32 %v2092, 3
        %vm2097 = vcmp.lt.s32.totalorder %v2096, 2
        %vm2098 = vcmp.eq.s32.totalorder %v2096, 0
        %v2099 = vxor.u32 %v2094, 2147483648
        %v2100 = vsel %vm2098, %v2093, %v2099
        %vm2101 = vcmp.eq.s32.totalorder %v2096, 2
        %v2102 = vxor.u32 %v2093, 2147483648
        %v2103 = vsel %vm2101, %v2102, %v2094
        %v2104 = vsel %vm2097, %v2100, %v2103
        %v2105 = vsel %vm2095, nan, %v2104
        %s2106 = scalar_lea.vmem %s172, 144 [#allocation5]
        %2107 = vst.msk [vmem:[%s2106] sm:$0xff] %vm262, %v2105
        %v2108 = vmul.f32 %v408, 0.0012328468
        %v2109 = vand.u32 2147483647, %v2108
        %vm2110 = vcmp.le.f32.partialorder %v2109, 0.7853982
        %vm2111 = vcmp.lt.s32.totalorder %v2108, 0
        %v2112 = vand.u32 %v2108, 2139095040
        %v2113 = vshrl.u32 %v2112, 23
        %v2114 = vsub.s32 %v2113, 127
        %v2115 = vand.u32 2147483647, %v2108
        %v2116 = vand.u32 %v2115, 8388607
        %v2117 = vor.u32 %v2116, 8388608
        %v2118 = vsub.s32 0, %v2117
        %v2119 = vadd.s32 %v2114, 1
        %vm2120 = vcmp.gt.s32.totalorder %v2119, 0
        %v2121 = vsel %vm2120, %v2119, 0
        %v2122 = vshrl.u32 %v2121, 5
        %v2123 = vand.u32 %v2121, 31
        %v2124 = vsub.s32 32, %v2123
        %v2125 = vshrl.u32 683565275, %v2124
        %v2126 = vshll.u32 683565275, %v2123
        %v2127 = vshrl.u32 2475754826, %v2124
        %v2128 = vor.u32 %v2126, %v2127
        %v2129 = vshll.u32 2475754826, %v2123
        %v2130 = vshrl.u32 2131351028, %v2124
        %v2131 = vor.u32 %v2129, %v2130
        %v2132 = vshll.u32 2131351028, %v2123
        %v2133 = vshrl.u32 2102212464, %v2124
        %v2134 = vor.u32 %v2132, %v2133
        %v2135 = vshll.u32 2102212464, %v2123
        %v2136 = vshrl.u32 920167782, %v2124
        %v2137 = vor.u32 %v2135, %v2136
        %v2138 = vshll.u32 920167782, %v2123
        %v2139 = vshrl.u32 1326507024, %v2124
        %v2140 = vor.u32 %v2138, %v2139
        %vm2141 = vcmp.lt.s32.totalorder %v2122, 1
        %vm2142 = vcmp.lt.s32.totalorder %v2122, 2
        %vm2143 = vcmp.lt.s32.totalorder %v2122, 3
        %vm2144 = vcmp.lt.s32.totalorder %v2122, 4
        %v2145 = vsel %vm2141, %v2125, %v2128
        %v2146 = vsel %vm2144, %v2134, 2102212464
        %v2147 = vsel %vm2143, %v2131, %v2146
        %v2148 = vsel %vm2142, %v2145, %v2147
        %v2149 = vsel %vm2141, %v2128, %v2131
        %v2150 = vsel %vm2144, %v2137, 920167782
        %v2151 = vsel %vm2143, %v2134, %v2150
        %v2152 = vsel %vm2142, %v2149, %v2151
        %v2153 = vsel %vm2141, %v2131, %v2134
        %v2154 = vsel %vm2144, %v2140, 1326507024
        %v2155 = vsel %vm2143, %v2137, %v2154
        %v2156 = vsel %vm2142, %v2153, %v2155
        %v2157 = vshll.u32 %v2117, 8
        %v2158 = vmul.u32.u64.compose %v2157, %v2156
        %v2159 = vextract.low.u32 %v2158
        %v2160 = vextract.high.u32 %v2158
        %v2161 = vmul.u32.u64.compose %v2157, %v2152
        %v2162 = vextract.low.u32 %v2161
        %v2163 = vextract.high.u32 %v2161
        %v2164 = vmul.u32 %v2157, %v2148
        %v2165 = vadd.s32 %v2160, %v2162
        %vm2166 = vc.u32 %v2160, %v2162
        %v2167 = vadd.s32 %v2163, 1
        %v2168 = vsel %vm2166, %v2167, %v2163
        %v2169 = vadd.s32 %v2164, %v2168
        %v2170 = vadd.s32 %v2169, 536870912
        %v2171 = vshrl.u32 %v2170, 30
        %v2172 = vshll.u32 %v2171, 30
        %v2173 = vsub.s32 %v2169, %v2172
        %vm2174 = vcmp.lt.s32.totalorder %v2173, 0
        %v2175 = vsub.s32 0, %v2173
        %v2176 = vsel %vm2174, %v2175, %v2173
        %v2177 = vclz %v2176
        %v2178 = vsub.s32 %v2177, 2
        %vm2179 = vcmp.gt.s32.totalorder 0, %v2178
        %v2180 = vsel %vm2179, 0, %v2178
        %v2181 = vsub.s32 32, %v2180
        %v2182 = vshll.u32 %v2173, %v2180
        %v2183 = vshrl.u32 %v2165, %v2181
        %v2184 = vor.u32 %v2182, %v2183
        %v2185 = vsub.s32 4294967266, %v2180
        %v2186 = vadd.s32 %v2185, 127
        %v2187 = vshll.u32 %v2186, 23
        %v2188 = vor.u32 4788187, %v2187
        %v2189 = vand.u32 2147483647, %v2188
        %v2191 = vcvt.s32.f32 %v2184
        %v2192 = vmul.f32 %v2191, %v2189
        %v2193 = vxor.u32 %v2192, 2147483648
        %v2194 = vsel %vm2111, %v2193, %v2192
        %v2195 = vsub.s32 4, %v2171
        %v2196 = vsel %vm2111, %v2195, %v2171
        %v2197 = vsel %vm2110, %v2108, %v2194
        %v2198 = vsel %vm2110, 0, %v2196
        %v2199 = vcosq.f32.pop %v2197
        %v2200 = vsinq.f32.pop %v2197
        %vm2201 = vweird.f32 %v2108
        %v2202 = vadd.s32 %v2198, 3
        %v2203 = vand.u32 %v2202, 3
        %vm2204 = vcmp.lt.s32.totalorder %v2203, 2
        %vm2205 = vcmp.eq.s32.totalorder %v2203, 0
        %v2206 = vxor.u32 %v2200, 2147483648
        %v2207 = vsel %vm2205, %v2199, %v2206
        %vm2208 = vcmp.eq.s32.totalorder %v2203, 2
        %v2209 = vxor.u32 %v2199, 2147483648
        %v2210 = vsel %vm2208, %v2209, %v2200
        %v2211 = vsel %vm2204, %v2207, %v2210
        %v2212 = vsel %vm2201, nan, %v2211
        %s2213 = scalar_lea.vmem %s172, 64 [#allocation5]
        %2214 = vst.msk [vmem:[%s2213] sm:$0xff] %vm262, %v2212
        %v2215 = vand.u32 2147483647, %v2108
        %vm2216 = vcmp.le.f32.partialorder %v2215, 0.7853982
        %vm2217 = vcmp.lt.s32.totalorder %v2108, 0
        %v2218 = vand.u32 %v2108, 2139095040
        %v2219 = vshrl.u32 %v2218, 23
        %v2220 = vsub.s32 %v2219, 127
        %v2221 = vand.u32 2147483647, %v2108
        %v2222 = vand.u32 %v2221, 8388607
        %v2223 = vor.u32 %v2222, 8388608
        %v2224 = vsub.s32 0, %v2223
        %v2225 = vadd.s32 %v2220, 1
        %vm2226 = vcmp.gt.s32.totalorder %v2225, 0
        %v2227 = vsel %vm2226, %v2225, 0
        %v2228 = vshrl.u32 %v2227, 5
        %v2229 = vand.u32 %v2227, 31
        %v2230 = vsub.s32 32, %v2229
        %v2231 = vshrl.u32 683565275, %v2230
        %v2232 = vshll.u32 683565275, %v2229
        %v2233 = vshrl.u32 2475754826, %v2230
        %v2234 = vor.u32 %v2232, %v2233
        %v2235 = vshll.u32 2475754826, %v2229
        %v2236 = vshrl.u32 2131351028, %v2230
        %v2237 = vor.u32 %v2235, %v2236
        %v2238 = vshll.u32 2131351028, %v2229
        %v2239 = vshrl.u32 2102212464, %v2230
        %v2240 = vor.u32 %v2238, %v2239
        %v2241 = vshll.u32 2102212464, %v2229
        %v2242 = vshrl.u32 920167782, %v2230
        %v2243 = vor.u32 %v2241, %v2242
        %v2244 = vshll.u32 920167782, %v2229
        %v2245 = vshrl.u32 1326507024, %v2230
        %v2246 = vor.u32 %v2244, %v2245
        %vm2247 = vcmp.lt.s32.totalorder %v2228, 1
        %vm2248 = vcmp.lt.s32.totalorder %v2228, 2
        %vm2249 = vcmp.lt.s32.totalorder %v2228, 3
        %vm2250 = vcmp.lt.s32.totalorder %v2228, 4
        %v2251 = vsel %vm2247, %v2231, %v2234
        %v2252 = vsel %vm2250, %v2240, 2102212464
        %v2253 = vsel %vm2249, %v2237, %v2252
        %v2254 = vsel %vm2248, %v2251, %v2253
        %v2255 = vsel %vm2247, %v2234, %v2237
        %v2256 = vsel %vm2250, %v2243, 920167782
        %v2257 = vsel %vm2249, %v2240, %v2256
        %v2258 = vsel %vm2248, %v2255, %v2257
        %v2259 = vsel %vm2247, %v2237, %v2240
        %v2260 = vsel %vm2250, %v2246, 1326507024
        %v2261 = vsel %vm2249, %v2243, %v2260
        %v2262 = vsel %vm2248, %v2259, %v2261
        %v2263 = vshll.u32 %v2223, 8
        %v2264 = vmul.u32.u64.compose %v2263, %v2262
        %v2265 = vextract.low.u32 %v2264
        %v2266 = vextract.high.u32 %v2264
        %v2267 = vmul.u32.u64.compose %v2263, %v2258
        %v2268 = vextract.low.u32 %v2267
        %v2269 = vextract.high.u32 %v2267
        %v2270 = vmul.u32 %v2263, %v2254
        %v2271 = vadd.s32 %v2266, %v2268
        %vm2272 = vc.u32 %v2266, %v2268
        %v2273 = vadd.s32 %v2269, 1
        %v2274 = vsel %vm2272, %v2273, %v2269
        %v2275 = vadd.s32 %v2270, %v2274
        %v2276 = vadd.s32 %v2275, 536870912
        %v2277 = vshrl.u32 %v2276, 30
        %v2278 = vshll.u32 %v2277, 30
        %v2279 = vsub.s32 %v2275, %v2278
        %vm2280 = vcmp.lt.s32.totalorder %v2279, 0
        %v2281 = vsub.s32 0, %v2279
        %v2282 = vsel %vm2280, %v2281, %v2279
        %v2283 = vclz %v2282
        %v2284 = vsub.s32 %v2283, 2
        %vm2285 = vcmp.gt.s32.totalorder 0, %v2284
        %v2286 = vsel %vm2285, 0, %v2284
        %v2287 = vsub.s32 32, %v2286
        %v2288 = vshll.u32 %v2279, %v2286
        %v2289 = vshrl.u32 %v2271, %v2287
        %v2290 = vor.u32 %v2288, %v2289
        %v2291 = vsub.s32 4294967266, %v2286
        %v2292 = vadd.s32 %v2291, 127
        %v2293 = vshll.u32 %v2292, 23
        %v2294 = vor.u32 4788187, %v2293
        %v2295 = vand.u32 2147483647, %v2294
        %v2297 = vcvt.s32.f32 %v2290
        %v2298 = vmul.f32 %v2297, %v2295
        %v2299 = vxor.u32 %v2298, 2147483648
        %v2300 = vsel %vm2217, %v2299, %v2298
        %v2301 = vsub.s32 4, %v2277
        %v2302 = vsel %vm2217, %v2301, %v2277
        %v2303 = vsel %vm2216, %v2108, %v2300
        %v2304 = vsel %vm2216, 0, %v2302
        %v2305 = vcosq.f32.pop %v2303
        %v2306 = vsinq.f32.pop %v2303
        %vm2307 = vweird.f32 %v2108
        %v2308 = vand.u32 %v2304, 3
        %vm2309 = vcmp.lt.s32.totalorder %v2308, 2
        %vm2310 = vcmp.eq.s32.totalorder %v2308, 0
        %v2311 = vxor.u32 %v2306, 2147483648
        %v2312 = vsel %vm2310, %v2305, %v2311
        %vm2313 = vcmp.eq.s32.totalorder %v2308, 2
        %v2314 = vxor.u32 %v2305, 2147483648
        %v2315 = vsel %vm2313, %v2314, %v2306
        %v2316 = vsel %vm2309, %v2312, %v2315
        %v2317 = vsel %vm2307, nan, %v2316
        %s2318 = scalar_lea.vmem %s172, 152 [#allocation5]
        %2319 = vst.msk [vmem:[%s2318] sm:$0xff] %vm262, %v2317
        %v2320 = vmul.f32 %v408, 0.0005336699
        %v2321 = vand.u32 2147483647, %v2320
        %vm2322 = vcmp.le.f32.partialorder %v2321, 0.7853982
        %vm2323 = vcmp.lt.s32.totalorder %v2320, 0
        %v2324 = vand.u32 %v2320, 2139095040
        %v2325 = vshrl.u32 %v2324, 23
        %v2326 = vsub.s32 %v2325, 127
        %v2327 = vand.u32 2147483647, %v2320
        %v2328 = vand.u32 %v2327, 8388607
        %v2329 = vor.u32 %v2328, 8388608
        %v2330 = vsub.s32 0, %v2329
        %v2331 = vadd.s32 %v2326, 1
        %vm2332 = vcmp.gt.s32.totalorder %v2331, 0
        %v2333 = vsel %vm2332, %v2331, 0
        %v2334 = vshrl.u32 %v2333, 5
        %v2335 = vand.u32 %v2333, 31
        %v2336 = vsub.s32 32, %v2335
        %v2337 = vshrl.u32 683565275, %v2336
        %v2338 = vshll.u32 683565275, %v2335
        %v2339 = vshrl.u32 2475754826, %v2336
        %v2340 = vor.u32 %v2338, %v2339
        %v2341 = vshll.u32 2475754826, %v2335
        %v2342 = vshrl.u32 2131351028, %v2336
        %v2343 = vor.u32 %v2341, %v2342
        %v2344 = vshll.u32 2131351028, %v2335
        %v2345 = vshrl.u32 2102212464, %v2336
        %v2346 = vor.u32 %v2344, %v2345
        %v2347 = vshll.u32 2102212464, %v2335
        %v2348 = vshrl.u32 920167782, %v2336
        %v2349 = vor.u32 %v2347, %v2348
        %v2350 = vshll.u32 920167782, %v2335
        %v2351 = vshrl.u32 1326507024, %v2336
        %v2352 = vor.u32 %v2350, %v2351
        %vm2353 = vcmp.lt.s32.totalorder %v2334, 1
        %vm2354 = vcmp.lt.s32.totalorder %v2334, 2
        %vm2355 = vcmp.lt.s32.totalorder %v2334, 3
        %vm2356 = vcmp.lt.s32.totalorder %v2334, 4
        %v2357 = vsel %vm2353, %v2337, %v2340
        %v2358 = vsel %vm2356, %v2346, 2102212464
        %v2359 = vsel %vm2355, %v2343, %v2358
        %v2360 = vsel %vm2354, %v2357, %v2359
        %v2361 = vsel %vm2353, %v2340, %v2343
        %v2362 = vsel %vm2356, %v2349, 920167782
        %v2363 = vsel %vm2355, %v2346, %v2362
        %v2364 = vsel %vm2354, %v2361, %v2363
        %v2365 = vsel %vm2353, %v2343, %v2346
        %v2366 = vsel %vm2356, %v2352, 1326507024
        %v2367 = vsel %vm2355, %v2349, %v2366
        %v2368 = vsel %vm2354, %v2365, %v2367
        %v2369 = vshll.u32 %v2329, 8
        %v2370 = vmul.u32.u64.compose %v2369, %v2368
        %v2371 = vextract.low.u32 %v2370
        %v2372 = vextract.high.u32 %v2370
        %v2373 = vmul.u32.u64.compose %v2369, %v2364
        %v2374 = vextract.low.u32 %v2373
        %v2375 = vextract.high.u32 %v2373
        %v2376 = vmul.u32 %v2369, %v2360
        %v2377 = vadd.s32 %v2372, %v2374
        %vm2378 = vc.u32 %v2372, %v2374
        %v2379 = vadd.s32 %v2375, 1
        %v2380 = vsel %vm2378, %v2379, %v2375
        %v2381 = vadd.s32 %v2376, %v2380
        %v2382 = vadd.s32 %v2381, 536870912
        %v2383 = vshrl.u32 %v2382, 30
        %v2384 = vshll.u32 %v2383, 30
        %v2385 = vsub.s32 %v2381, %v2384
        %vm2386 = vcmp.lt.s32.totalorder %v2385, 0
        %v2387 = vsub.s32 0, %v2385
        %v2388 = vsel %vm2386, %v2387, %v2385
        %v2389 = vclz %v2388
        %v2390 = vsub.s32 %v2389, 2
        %vm2391 = vcmp.gt.s32.totalorder 0, %v2390
        %v2392 = vsel %vm2391, 0, %v2390
        %v2393 = vsub.s32 32, %v2392
        %v2394 = vshll.u32 %v2385, %v2392
        %v2395 = vshrl.u32 %v2377, %v2393
        %v2396 = vor.u32 %v2394, %v2395
        %v2397 = vsub.s32 4294967266, %v2392
        %v2398 = vadd.s32 %v2397, 127
        %v2399 = vshll.u32 %v2398, 23
        %v2400 = vor.u32 4788187, %v2399
        %v2401 = vand.u32 2147483647, %v2400
        %v2403 = vcvt.s32.f32 %v2396
        %v2404 = vmul.f32 %v2403, %v2401
        %v2405 = vxor.u32 %v2404, 2147483648
        %v2406 = vsel %vm2323, %v2405, %v2404
        %v2407 = vsub.s32 4, %v2383
        %v2408 = vsel %vm2323, %v2407, %v2383
        %v2409 = vsel %vm2322, %v2320, %v2406
        %v2410 = vsel %vm2322, 0, %v2408
        %v2411 = vcosq.f32.pop %v2409
        %v2412 = vsinq.f32.pop %v2409
        %vm2413 = vweird.f32 %v2320
        %v2414 = vadd.s32 %v2410, 3
        %v2415 = vand.u32 %v2414, 3
        %vm2416 = vcmp.lt.s32.totalorder %v2415, 2
        %vm2417 = vcmp.eq.s32.totalorder %v2415, 0
        %v2418 = vxor.u32 %v2412, 2147483648
        %v2419 = vsel %vm2417, %v2411, %v2418
        %vm2420 = vcmp.eq.s32.totalorder %v2415, 2
        %v2421 = vxor.u32 %v2411, 2147483648
        %v2422 = vsel %vm2420, %v2421, %v2412
        %v2423 = vsel %vm2416, %v2419, %v2422
        %v2424 = vsel %vm2413, nan, %v2423
        %s2425 = scalar_lea.vmem %s172, 72 [#allocation5]
        %2426 = vst.msk [vmem:[%s2425] sm:$0xff] %vm262, %v2424
        %v2427 = vand.u32 2147483647, %v2320
        %vm2428 = vcmp.le.f32.partialorder %v2427, 0.7853982
        %vm2429 = vcmp.lt.s32.totalorder %v2320, 0
        %v2430 = vand.u32 %v2320, 2139095040
        %v2431 = vshrl.u32 %v2430, 23
        %v2432 = vsub.s32 %v2431, 127
        %v2433 = vand.u32 2147483647, %v2320
        %v2434 = vand.u32 %v2433, 8388607
        %v2435 = vor.u32 %v2434, 8388608
        %v2436 = vsub.s32 0, %v2435
        %v2437 = vadd.s32 %v2432, 1
        %vm2438 = vcmp.gt.s32.totalorder %v2437, 0
        %v2439 = vsel %vm2438, %v2437, 0
        %v2440 = vshrl.u32 %v2439, 5
        %v2441 = vand.u32 %v2439, 31
        %v2442 = vsub.s32 32, %v2441
        %v2443 = vshrl.u32 683565275, %v2442
        %v2444 = vshll.u32 683565275, %v2441
        %v2445 = vshrl.u32 2475754826, %v2442
        %v2446 = vor.u32 %v2444, %v2445
        %v2447 = vshll.u32 2475754826, %v2441
        %v2448 = vshrl.u32 2131351028, %v2442
        %v2449 = vor.u32 %v2447, %v2448
        %v2450 = vshll.u32 2131351028, %v2441
        %v2451 = vshrl.u32 2102212464, %v2442
        %v2452 = vor.u32 %v2450, %v2451
        %v2453 = vshll.u32 2102212464, %v2441
        %v2454 = vshrl.u32 920167782, %v2442
        %v2455 = vor.u32 %v2453, %v2454
        %v2456 = vshll.u32 920167782, %v2441
        %v2457 = vshrl.u32 1326507024, %v2442
        %v2458 = vor.u32 %v2456, %v2457
        %vm2459 = vcmp.lt.s32.totalorder %v2440, 1
        %vm2460 = vcmp.lt.s32.totalorder %v2440, 2
        %vm2461 = vcmp.lt.s32.totalorder %v2440, 3
        %vm2462 = vcmp.lt.s32.totalorder %v2440, 4
        %v2463 = vsel %vm2459, %v2443, %v2446
        %v2464 = vsel %vm2462, %v2452, 2102212464
        %v2465 = vsel %vm2461, %v2449, %v2464
        %v2466 = vsel %vm2460, %v2463, %v2465
        %v2467 = vsel %vm2459, %v2446, %v2449
        %v2468 = vsel %vm2462, %v2455, 920167782
        %v2469 = vsel %vm2461, %v2452, %v2468
        %v2470 = vsel %vm2460, %v2467, %v2469
        %v2471 = vsel %vm2459, %v2449, %v2452
        %v2472 = vsel %vm2462, %v2458, 1326507024
        %v2473 = vsel %vm2461, %v2455, %v2472
        %v2474 = vsel %vm2460, %v2471, %v2473
        %v2475 = vshll.u32 %v2435, 8
        %v2476 = vmul.u32.u64.compose %v2475, %v2474
        %v2477 = vextract.low.u32 %v2476
        %v2478 = vextract.high.u32 %v2476
        %v2479 = vmul.u32.u64.compose %v2475, %v2470
        %v2480 = vextract.low.u32 %v2479
        %v2481 = vextract.high.u32 %v2479
        %v2482 = vmul.u32 %v2475, %v2466
        %v2483 = vadd.s32 %v2478, %v2480
        %vm2484 = vc.u32 %v2478, %v2480
        %v2485 = vadd.s32 %v2481, 1
        %v2486 = vsel %vm2484, %v2485, %v2481
        %v2487 = vadd.s32 %v2482, %v2486
        %v2488 = vadd.s32 %v2487, 536870912
        %v2489 = vshrl.u32 %v2488, 30
        %v2490 = vshll.u32 %v2489, 30
        %v2491 = vsub.s32 %v2487, %v2490
        %vm2492 = vcmp.lt.s32.totalorder %v2491, 0
        %v2493 = vsub.s32 0, %v2491
        %v2494 = vsel %vm2492, %v2493, %v2491
        %v2495 = vclz %v2494
        %v2496 = vsub.s32 %v2495, 2
        %vm2497 = vcmp.gt.s32.totalorder 0, %v2496
        %v2498 = vsel %vm2497, 0, %v2496
        %v2499 = vsub.s32 32, %v2498
        %v2500 = vshll.u32 %v2491, %v2498
        %v2501 = vshrl.u32 %v2483, %v2499
        %v2502 = vor.u32 %v2500, %v2501
        %v2503 = vsub.s32 4294967266, %v2498
        %v2504 = vadd.s32 %v2503, 127
        %v2505 = vshll.u32 %v2504, 23
        %v2506 = vor.u32 4788187, %v2505
        %v2507 = vand.u32 2147483647, %v2506
        %v2509 = vcvt.s32.f32 %v2502
        %v2510 = vmul.f32 %v2509, %v2507
        %v2511 = vxor.u32 %v2510, 2147483648
        %v2512 = vsel %vm2429, %v2511, %v2510
        %v2513 = vsub.s32 4, %v2489
        %v2514 = vsel %vm2429, %v2513, %v2489
        %v2515 = vsel %vm2428, %v2320, %v2512
        %v2516 = vsel %vm2428, 0, %v2514
        %v2517 = vcosq.f32.pop %v2515
        %v2518 = vsinq.f32.pop %v2515
        %vm2519 = vweird.f32 %v2320
        %v2520 = vand.u32 %v2516, 3
        %vm2521 = vcmp.lt.s32.totalorder %v2520, 2
        %vm2522 = vcmp.eq.s32.totalorder %v2520, 0
        %v2523 = vxor.u32 %v2518, 2147483648
        %v2524 = vsel %vm2522, %v2517, %v2523
        %vm2525 = vcmp.eq.s32.totalorder %v2520, 2
        %v2526 = vxor.u32 %v2517, 2147483648
        %v2527 = vsel %vm2525, %v2526, %v2518
        %v2528 = vsel %vm2521, %v2524, %v2527
        %v2529 = vsel %vm2519, nan, %v2528
        %s2530 = scalar_lea.vmem %s172, 160 [#allocation5]
        %2531 = vst.msk [vmem:[%s2530] sm:$0xff] %vm262, %v2529
        %v2532 = vmul.f32 %v408, 0.00023101296
        %v2533 = vand.u32 2147483647, %v2532
        %vm2534 = vcmp.le.f32.partialorder %v2533, 0.7853982
        %vm2535 = vcmp.lt.s32.totalorder %v2532, 0
        %v2536 = vand.u32 %v2532, 2139095040
        %v2537 = vshrl.u32 %v2536, 23
        %v2538 = vsub.s32 %v2537, 127
        %v2539 = vand.u32 2147483647, %v2532
        %v2540 = vand.u32 %v2539, 8388607
        %v2541 = vor.u32 %v2540, 8388608
        %v2542 = vsub.s32 0, %v2541
        %v2543 = vadd.s32 %v2538, 1
        %vm2544 = vcmp.gt.s32.totalorder %v2543, 0
        %v2545 = vsel %vm2544, %v2543, 0
        %v2546 = vshrl.u32 %v2545, 5
        %v2547 = vand.u32 %v2545, 31
        %v2548 = vsub.s32 32, %v2547
        %v2549 = vshrl.u32 683565275, %v2548
        %v2550 = vshll.u32 683565275, %v2547
        %v2551 = vshrl.u32 2475754826, %v2548
        %v2552 = vor.u32 %v2550, %v2551
        %v2553 = vshll.u32 2475754826, %v2547
        %v2554 = vshrl.u32 2131351028, %v2548
        %v2555 = vor.u32 %v2553, %v2554
        %v2556 = vshll.u32 2131351028, %v2547
        %v2557 = vshrl.u32 2102212464, %v2548
        %v2558 = vor.u32 %v2556, %v2557
        %v2559 = vshll.u32 2102212464, %v2547
        %v2560 = vshrl.u32 920167782, %v2548
        %v2561 = vor.u32 %v2559, %v2560
        %v2562 = vshll.u32 920167782, %v2547
        %v2563 = vshrl.u32 1326507024, %v2548
        %v2564 = vor.u32 %v2562, %v2563
        %vm2565 = vcmp.lt.s32.totalorder %v2546, 1
        %vm2566 = vcmp.lt.s32.totalorder %v2546, 2
        %vm2567 = vcmp.lt.s32.totalorder %v2546, 3
        %vm2568 = vcmp.lt.s32.totalorder %v2546, 4
        %v2569 = vsel %vm2565, %v2549, %v2552
        %v2570 = vsel %vm2568, %v2558, 2102212464
        %v2571 = vsel %vm2567, %v2555, %v2570
        %v2572 = vsel %vm2566, %v2569, %v2571
        %v2573 = vsel %vm2565, %v2552, %v2555
        %v2574 = vsel %vm2568, %v2561, 920167782
        %v2575 = vsel %vm2567, %v2558, %v2574
        %v2576 = vsel %vm2566, %v2573, %v2575
        %v2577 = vsel %vm2565, %v2555, %v2558
        %v2578 = vsel %vm2568, %v2564, 1326507024
        %v2579 = vsel %vm2567, %v2561, %v2578
        %v2580 = vsel %vm2566, %v2577, %v2579
        %v2581 = vshll.u32 %v2541, 8
        %v2582 = vmul.u32.u64.compose %v2581, %v2580
        %v2583 = vextract.low.u32 %v2582
        %v2584 = vextract.high.u32 %v2582
        %v2585 = vmul.u32.u64.compose %v2581, %v2576
        %v2586 = vextract.low.u32 %v2585
        %v2587 = vextract.high.u32 %v2585
        %v2588 = vmul.u32 %v2581, %v2572
        %v2589 = vadd.s32 %v2584, %v2586
        %vm2590 = vc.u32 %v2584, %v2586
        %v2591 = vadd.s32 %v2587, 1
        %v2592 = vsel %vm2590, %v2591, %v2587
        %v2593 = vadd.s32 %v2588, %v2592
        %v2594 = vadd.s32 %v2593, 536870912
        %v2595 = vshrl.u32 %v2594, 30
        %v2596 = vshll.u32 %v2595, 30
        %v2597 = vsub.s32 %v2593, %v2596
        %vm2598 = vcmp.lt.s32.totalorder %v2597, 0
        %v2599 = vsub.s32 0, %v2597
        %v2600 = vsel %vm2598, %v2599, %v2597
        %v2601 = vclz %v2600
        %v2602 = vsub.s32 %v2601, 2
        %vm2603 = vcmp.gt.s32.totalorder 0, %v2602
        %v2604 = vsel %vm2603, 0, %v2602
        %v2605 = vsub.s32 32, %v2604
        %v2606 = vshll.u32 %v2597, %v2604
        %v2607 = vshrl.u32 %v2589, %v2605
        %v2608 = vor.u32 %v2606, %v2607
        %v2609 = vsub.s32 4294967266, %v2604
        %v2610 = vadd.s32 %v2609, 127
        %v2611 = vshll.u32 %v2610, 23
        %v2612 = vor.u32 4788187, %v2611
        %v2613 = vand.u32 2147483647, %v2612
        %v2615 = vcvt.s32.f32 %v2608
        %v2616 = vmul.f32 %v2615, %v2613
        %v2617 = vxor.u32 %v2616, 2147483648
        %v2618 = vsel %vm2535, %v2617, %v2616
        %v2619 = vsub.s32 4, %v2595
        %v2620 = vsel %vm2535, %v2619, %v2595
        %v2621 = vsel %vm2534, %v2532, %v2618
        %v2622 = vsel %vm2534, 0, %v2620
        %v2623 = vcosq.f32.pop %v2621
        %v2624 = vsinq.f32.pop %v2621
        %vm2625 = vweird.f32 %v2532
        %v2626 = vadd.s32 %v2622, 3
        %v2627 = vand.u32 %v2626, 3
        %vm2628 = vcmp.lt.s32.totalorder %v2627, 2
        %vm2629 = vcmp.eq.s32.totalorder %v2627, 0
        %v2630 = vxor.u32 %v2624, 2147483648
        %v2631 = vsel %vm2629, %v2623, %v2630
        %vm2632 = vcmp.eq.s32.totalorder %v2627, 2
        %v2633 = vxor.u32 %v2623, 2147483648
        %v2634 = vsel %vm2632, %v2633, %v2624
        %v2635 = vsel %vm2628, %v2631, %v2634
        %v2636 = vsel %vm2625, nan, %v2635
        %s2637 = scalar_lea.vmem %s172, 80 [#allocation5]
        %2638 = vst.msk [vmem:[%s2637] sm:$0xff] %vm262, %v2636
        %v2639 = vand.u32 2147483647, %v2532
        %vm2640 = vcmp.le.f32.partialorder %v2639, 0.7853982
        %vm2641 = vcmp.lt.s32.totalorder %v2532, 0
        %v2642 = vand.u32 %v2532, 2139095040
        %v2643 = vshrl.u32 %v2642, 23
        %v2644 = vsub.s32 %v2643, 127
        %v2645 = vand.u32 2147483647, %v2532
        %v2646 = vand.u32 %v2645, 8388607
        %v2647 = vor.u32 %v2646, 8388608
        %v2648 = vsub.s32 0, %v2647
        %v2649 = vadd.s32 %v2644, 1
        %vm2650 = vcmp.gt.s32.totalorder %v2649, 0
        %v2651 = vsel %vm2650, %v2649, 0
        %v2652 = vshrl.u32 %v2651, 5
        %v2653 = vand.u32 %v2651, 31
        %v2654 = vsub.s32 32, %v2653
        %v2655 = vshrl.u32 683565275, %v2654
        %v2656 = vshll.u32 683565275, %v2653
        %v2657 = vshrl.u32 2475754826, %v2654
        %v2658 = vor.u32 %v2656, %v2657
        %v2659 = vshll.u32 2475754826, %v2653
        %v2660 = vshrl.u32 2131351028, %v2654
        %v2661 = vor.u32 %v2659, %v2660
        %v2662 = vshll.u32 2131351028, %v2653
        %v2663 = vshrl.u32 2102212464, %v2654
        %v2664 = vor.u32 %v2662, %v2663
        %v2665 = vshll.u32 2102212464, %v2653
        %v2666 = vshrl.u32 920167782, %v2654
        %v2667 = vor.u32 %v2665, %v2666
        %v2668 = vshll.u32 920167782, %v2653
        %v2669 = vshrl.u32 1326507024, %v2654
        %v2670 = vor.u32 %v2668, %v2669
        %vm2671 = vcmp.lt.s32.totalorder %v2652, 1
        %vm2672 = vcmp.lt.s32.totalorder %v2652, 2
        %vm2673 = vcmp.lt.s32.totalorder %v2652, 3
        %vm2674 = vcmp.lt.s32.totalorder %v2652, 4
        %v2675 = vsel %vm2671, %v2655, %v2658
        %v2676 = vsel %vm2674, %v2664, 2102212464
        %v2677 = vsel %vm2673, %v2661, %v2676
        %v2678 = vsel %vm2672, %v2675, %v2677
        %v2679 = vsel %vm2671, %v2658, %v2661
        %v2680 = vsel %vm2674, %v2667, 920167782
        %v2681 = vsel %vm2673, %v2664, %v2680
        %v2682 = vsel %vm2672, %v2679, %v2681
        %v2683 = vsel %vm2671, %v2661, %v2664
        %v2684 = vsel %vm2674, %v2670, 1326507024
        %v2685 = vsel %vm2673, %v2667, %v2684
        %v2686 = vsel %vm2672, %v2683, %v2685
        %v2687 = vshll.u32 %v2647, 8
        %v2688 = vmul.u32.u64.compose %v2687, %v2686
        %v2689 = vextract.low.u32 %v2688
        %v2690 = vextract.high.u32 %v2688
        %v2691 = vmul.u32.u64.compose %v2687, %v2682
        %v2692 = vextract.low.u32 %v2691
        %v2693 = vextract.high.u32 %v2691
        %v2694 = vmul.u32 %v2687, %v2678
        %v2695 = vadd.s32 %v2690, %v2692
        %vm2696 = vc.u32 %v2690, %v2692
        %v2697 = vadd.s32 %v2693, 1
        %v2698 = vsel %vm2696, %v2697, %v2693
        %v2699 = vadd.s32 %v2694, %v2698
        %v2700 = vadd.s32 %v2699, 536870912
        %v2701 = vshrl.u32 %v2700, 30
        %v2702 = vshll.u32 %v2701, 30
        %v2703 = vsub.s32 %v2699, %v2702
        %vm2704 = vcmp.lt.s32.totalorder %v2703, 0
        %v2705 = vsub.s32 0, %v2703
        %v2706 = vsel %vm2704, %v2705, %v2703
        %v2707 = vclz %v2706
        %v2708 = vsub.s32 %v2707, 2
        %vm2709 = vcmp.gt.s32.totalorder 0, %v2708
        %v2710 = vsel %vm2709, 0, %v2708
        %v2711 = vsub.s32 32, %v2710
        %v2712 = vshll.u32 %v2703, %v2710
        %v2713 = vshrl.u32 %v2695, %v2711
        %v2714 = vor.u32 %v2712, %v2713
        %v2715 = vsub.s32 4294967266, %v2710
        %v2716 = vadd.s32 %v2715, 127
        %v2717 = vshll.u32 %v2716, 23
        %v2718 = vor.u32 4788187, %v2717
        %v2719 = vand.u32 2147483647, %v2718
        %v2721 = vcvt.s32.f32 %v2714
        %v2722 = vmul.f32 %v2721, %v2719
        %v2723 = vxor.u32 %v2722, 2147483648
        %v2724 = vsel %vm2641, %v2723, %v2722
        %v2725 = vsub.s32 4, %v2701
        %v2726 = vsel %vm2641, %v2725, %v2701
        %v2727 = vsel %vm2640, %v2532, %v2724
        %v2728 = vsel %vm2640, 0, %v2726
        %v2729 = vcosq.f32.pop %v2727
        %v2730 = vsinq.f32.pop %v2727
        %vm2731 = vweird.f32 %v2532
        %v2732 = vand.u32 %v2728, 3
        %vm2733 = vcmp.lt.s32.totalorder %v2732, 2
        %vm2734 = vcmp.eq.s32.totalorder %v2732, 0
        %v2735 = vxor.u32 %v2730, 2147483648
        %v2736 = vsel %vm2734, %v2729, %v2735
        %vm2737 = vcmp.eq.s32.totalorder %v2732, 2
        %v2738 = vxor.u32 %v2729, 2147483648
        %v2739 = vsel %vm2737, %v2738, %v2730
        %v2740 = vsel %vm2733, %v2736, %v2739
        %v2741 = vsel %vm2731, nan, %v2740
        %s2742 = scalar_lea.vmem %s172, 168 [#allocation5]
        %2743 = vst.msk [vmem:[%s2742] sm:$0xff] %vm262, %v2741
        %v2744 = vand.u32 2147483647, %v403
        %vm2745 = vcmp.le.f32.partialorder %v2744, 0.7853982
        %vm2746 = vcmp.lt.s32.totalorder %v403, 0
        %v2747 = vand.u32 %v403, 2139095040
        %v2748 = vshrl.u32 %v2747, 23
        %v2749 = vsub.s32 %v2748, 127
        %v2750 = vand.u32 2147483647, %v403
        %v2751 = vand.u32 %v2750, 8388607
        %v2752 = vor.u32 %v2751, 8388608
        %v2753 = vsub.s32 0, %v2752
        %v2754 = vadd.s32 %v2749, 1
        %vm2755 = vcmp.gt.s32.totalorder %v2754, 0
        %v2756 = vsel %vm2755, %v2754, 0
        %v2757 = vshrl.u32 %v2756, 5
        %v2758 = vand.u32 %v2756, 31
        %v2759 = vsub.s32 32, %v2758
        %v2760 = vshrl.u32 683565275, %v2759
        %v2761 = vshll.u32 683565275, %v2758
        %v2762 = vshrl.u32 2475754826, %v2759
        %v2763 = vor.u32 %v2761, %v2762
        %v2764 = vshll.u32 2475754826, %v2758
        %v2765 = vshrl.u32 2131351028, %v2759
        %v2766 = vor.u32 %v2764, %v2765
        %v2767 = vshll.u32 2131351028, %v2758
        %v2768 = vshrl.u32 2102212464, %v2759
        %v2769 = vor.u32 %v2767, %v2768
        %v2770 = vshll.u32 2102212464, %v2758
        %v2771 = vshrl.u32 920167782, %v2759
        %v2772 = vor.u32 %v2770, %v2771
        %v2773 = vshll.u32 920167782, %v2758
        %v2774 = vshrl.u32 1326507024, %v2759
        %v2775 = vor.u32 %v2773, %v2774
        %vm2776 = vcmp.lt.s32.totalorder %v2757, 1
        %vm2777 = vcmp.lt.s32.totalorder %v2757, 2
        %vm2778 = vcmp.lt.s32.totalorder %v2757, 3
        %vm2779 = vcmp.lt.s32.totalorder %v2757, 4
        %v2780 = vsel %vm2776, %v2760, %v2763
        %v2781 = vsel %vm2779, %v2769, 2102212464
        %v2782 = vsel %vm2778, %v2766, %v2781
        %v2783 = vsel %vm2777, %v2780, %v2782
        %v2784 = vsel %vm2776, %v2763, %v2766
        %v2785 = vsel %vm2779, %v2772, 920167782
        %v2786 = vsel %vm2778, %v2769, %v2785
        %v2787 = vsel %vm2777, %v2784, %v2786
        %v2788 = vsel %vm2776, %v2766, %v2769
        %v2789 = vsel %vm2779, %v2775, 1326507024
        %v2790 = vsel %vm2778, %v2772, %v2789
        %v2791 = vsel %vm2777, %v2788, %v2790
        %v2792 = vshll.u32 %v2752, 8
        %v2793 = vmul.u32.u64.compose %v2792, %v2791
        %v2794 = vextract.low.u32 %v2793
        %v2795 = vextract.high.u32 %v2793
        %v2796 = vmul.u32.u64.compose %v2792, %v2787
        %v2797 = vextract.low.u32 %v2796
        %v2798 = vextract.high.u32 %v2796
        %v2799 = vmul.u32 %v2792, %v2783
        %v2800 = vadd.s32 %v2795, %v2797
        %vm2801 = vc.u32 %v2795, %v2797
        %v2802 = vadd.s32 %v2798, 1
        %v2803 = vsel %vm2801, %v2802, %v2798
        %v2804 = vadd.s32 %v2799, %v2803
        %v2805 = vadd.s32 %v2804, 536870912
        %v2806 = vshrl.u32 %v2805, 30
        %v2807 = vshll.u32 %v2806, 30
        %v2808 = vsub.s32 %v2804, %v2807
        %vm2809 = vcmp.lt.s32.totalorder %v2808, 0
        %v2810 = vsub.s32 0, %v2808
        %v2811 = vsel %vm2809, %v2810, %v2808
        %v2812 = vclz %v2811
        %v2813 = vsub.s32 %v2812, 2
        %vm2814 = vcmp.gt.s32.totalorder 0, %v2813
        %v2815 = vsel %vm2814, 0, %v2813
        %v2816 = vsub.s32 32, %v2815
        %v2817 = vshll.u32 %v2808, %v2815
        %v2818 = vshrl.u32 %v2800, %v2816
        %v2819 = vor.u32 %v2817, %v2818
        %v2820 = vsub.s32 4294967266, %v2815
        %v2821 = vadd.s32 %v2820, 127
        %v2822 = vshll.u32 %v2821, 23
        %v2823 = vor.u32 4788187, %v2822
        %v2824 = vand.u32 2147483647, %v2823
        %v2826 = vcvt.s32.f32 %v2819
        %v2827 = vmul.f32 %v2826, %v2824
        %v2828 = vxor.u32 %v2827, 2147483648
        %v2829 = vsel %vm2746, %v2828, %v2827
        %v2830 = vsub.s32 4, %v2806
        %v2831 = vsel %vm2746, %v2830, %v2806
        %v2832 = vsel %vm2745, %v403, %v2829
        %v2833 = vsel %vm2745, 0, %v2831
        %v2834 = vcosq.f32.pop %v2832
        %v2835 = vsinq.f32.pop %v2832
        %vm2836 = vweird.f32 %v403
        %v2837 = vadd.s32 %v2833, 3
        %v2838 = vand.u32 %v2837, 3
        %vm2839 = vcmp.lt.s32.totalorder %v2838, 2
        %vm2840 = vcmp.eq.s32.totalorder %v2838, 0
        %v2841 = vxor.u32 %v2835, 2147483648
        %v2842 = vsel %vm2840, %v2834, %v2841
        %vm2843 = vcmp.eq.s32.totalorder %v2838, 2
        %v2844 = vxor.u32 %v2834, 2147483648
        %v2845 = vsel %vm2843, %v2844, %v2835
        %v2846 = vsel %vm2839, %v2842, %v2845
        %v2847 = vsel %vm2836, nan, %v2846
        %s2848 = scalar_lea.vmem %s172, 176 [#allocation5]
        %2849 = vst.msk [vmem:[%s2848] sm:$0xff] %vm262, %v2847
        %v2850 = vand.u32 2147483647, %v403
        %vm2851 = vcmp.le.f32.partialorder %v2850, 0.7853982
        %vm2852 = vcmp.lt.s32.totalorder %v403, 0
        %v2853 = vand.u32 %v403, 2139095040
        %v2854 = vshrl.u32 %v2853, 23
        %v2855 = vsub.s32 %v2854, 127
        %v2856 = vand.u32 2147483647, %v403
        %v2857 = vand.u32 %v2856, 8388607
        %v2858 = vor.u32 %v2857, 8388608
        %v2859 = vsub.s32 0, %v2858
        %v2860 = vadd.s32 %v2855, 1
        %vm2861 = vcmp.gt.s32.totalorder %v2860, 0
        %v2862 = vsel %vm2861, %v2860, 0
        %v2863 = vshrl.u32 %v2862, 5
        %v2864 = vand.u32 %v2862, 31
        %v2865 = vsub.s32 32, %v2864
        %v2866 = vshrl.u32 683565275, %v2865
        %v2867 = vshll.u32 683565275, %v2864
        %v2868 = vshrl.u32 2475754826, %v2865
        %v2869 = vor.u32 %v2867, %v2868
        %v2870 = vshll.u32 2475754826, %v2864
        %v2871 = vshrl.u32 2131351028, %v2865
        %v2872 = vor.u32 %v2870, %v2871
        %v2873 = vshll.u32 2131351028, %v2864
        %v2874 = vshrl.u32 2102212464, %v2865
        %v2875 = vor.u32 %v2873, %v2874
        %v2876 = vshll.u32 2102212464, %v2864
        %v2877 = vshrl.u32 920167782, %v2865
        %v2878 = vor.u32 %v2876, %v2877
        %v2879 = vshll.u32 920167782, %v2864
        %v2880 = vshrl.u32 1326507024, %v2865
        %v2881 = vor.u32 %v2879, %v2880
        %vm2882 = vcmp.lt.s32.totalorder %v2863, 1
        %vm2883 = vcmp.lt.s32.totalorder %v2863, 2
        %vm2884 = vcmp.lt.s32.totalorder %v2863, 3
        %vm2885 = vcmp.lt.s32.totalorder %v2863, 4
        %v2886 = vsel %vm2882, %v2866, %v2869
        %v2887 = vsel %vm2885, %v2875, 2102212464
        %v2888 = vsel %vm2884, %v2872, %v2887
        %v2889 = vsel %vm2883, %v2886, %v2888
        %v2890 = vsel %vm2882, %v2869, %v2872
        %v2891 = vsel %vm2885, %v2878, 920167782
        %v2892 = vsel %vm2884, %v2875, %v2891
        %v2893 = vsel %vm2883, %v2890, %v2892
        %v2894 = vsel %vm2882, %v2872, %v2875
        %v2895 = vsel %vm2885, %v2881, 1326507024
        %v2896 = vsel %vm2884, %v2878, %v2895
        %v2897 = vsel %vm2883, %v2894, %v2896
        %v2898 = vshll.u32 %v2858, 8
        %v2899 = vmul.u32.u64.compose %v2898, %v2897
        %v2900 = vextract.low.u32 %v2899
        %v2901 = vextract.high.u32 %v2899
        %v2902 = vmul.u32.u64.compose %v2898, %v2893
        %v2903 = vextract.low.u32 %v2902
        %v2904 = vextract.high.u32 %v2902
        %v2905 = vmul.u32 %v2898, %v2889
        %v2906 = vadd.s32 %v2901, %v2903
        %vm2907 = vc.u32 %v2901, %v2903
        %v2908 = vadd.s32 %v2904, 1
        %v2909 = vsel %vm2907, %v2908, %v2904
        %v2910 = vadd.s32 %v2905, %v2909
        %v2911 = vadd.s32 %v2910, 536870912
        %v2912 = vshrl.u32 %v2911, 30
        %v2913 = vshll.u32 %v2912, 30
        %v2914 = vsub.s32 %v2910, %v2913
        %vm2915 = vcmp.lt.s32.totalorder %v2914, 0
        %v2916 = vsub.s32 0, %v2914
        %v2917 = vsel %vm2915, %v2916, %v2914
        %v2918 = vclz %v2917
        %v2919 = vsub.s32 %v2918, 2
        %vm2920 = vcmp.gt.s32.totalorder 0, %v2919
        %v2921 = vsel %vm2920, 0, %v2919
        %v2922 = vsub.s32 32, %v2921
        %v2923 = vshll.u32 %v2914, %v2921
        %v2924 = vshrl.u32 %v2906, %v2922
        %v2925 = vor.u32 %v2923, %v2924
        %v2926 = vsub.s32 4294967266, %v2921
        %v2927 = vadd.s32 %v2926, 127
        %v2928 = vshll.u32 %v2927, 23
        %v2929 = vor.u32 4788187, %v2928
        %v2930 = vand.u32 2147483647, %v2929
        %v2932 = vcvt.s32.f32 %v2925
        %v2933 = vmul.f32 %v2932, %v2930
        %v2934 = vxor.u32 %v2933, 2147483648
        %v2935 = vsel %vm2852, %v2934, %v2933
        %v2936 = vsub.s32 4, %v2912
        %v2937 = vsel %vm2852, %v2936, %v2912
        %v2938 = vsel %vm2851, %v403, %v2935
        %v2939 = vsel %vm2851, 0, %v2937
        %v2940 = vcosq.f32.pop %v2938
        %v2941 = vsinq.f32.pop %v2938
        %vm2942 = vweird.f32 %v403
        %v2943 = vand.u32 %v2939, 3
        %vm2944 = vcmp.lt.s32.totalorder %v2943, 2
        %vm2945 = vcmp.eq.s32.totalorder %v2943, 0
        %v2946 = vxor.u32 %v2941, 2147483648
        %v2947 = vsel %vm2945, %v2940, %v2946
        %vm2948 = vcmp.eq.s32.totalorder %v2943, 2
        %v2949 = vxor.u32 %v2940, 2147483648
        %v2950 = vsel %vm2948, %v2949, %v2941
        %v2951 = vsel %vm2944, %v2947, %v2950
        %v2952 = vsel %vm2942, nan, %v2951
        %s2953 = scalar_lea.vmem %s172, 264 [#allocation5]
        %2954 = vst.msk [vmem:[%s2953] sm:$0xff] %vm262, %v2952
        %v2955 = vmul.f32 %v403, 0.43287614
        %v2956 = vand.u32 2147483647, %v2955
        %vm2957 = vcmp.le.f32.partialorder %v2956, 0.7853982
        %vm2958 = vcmp.lt.s32.totalorder %v2955, 0
        %v2959 = vand.u32 %v2955, 2139095040
        %v2960 = vshrl.u32 %v2959, 23
        %v2961 = vsub.s32 %v2960, 127
        %v2962 = vand.u32 2147483647, %v2955
        %v2963 = vand.u32 %v2962, 8388607
        %v2964 = vor.u32 %v2963, 8388608
        %v2965 = vsub.s32 0, %v2964
        %v2966 = vadd.s32 %v2961, 1
        %vm2967 = vcmp.gt.s32.totalorder %v2966, 0
        %v2968 = vsel %vm2967, %v2966, 0
        %v2969 = vshrl.u32 %v2968, 5
        %v2970 = vand.u32 %v2968, 31
        %v2971 = vsub.s32 32, %v2970
        %v2972 = vshrl.u32 683565275, %v2971
        %v2973 = vshll.u32 683565275, %v2970
        %v2974 = vshrl.u32 2475754826, %v2971
        %v2975 = vor.u32 %v2973, %v2974
        %v2976 = vshll.u32 2475754826, %v2970
        %v2977 = vshrl.u32 2131351028, %v2971
        %v2978 = vor.u32 %v2976, %v2977
        %v2979 = vshll.u32 2131351028, %v2970
        %v2980 = vshrl.u32 2102212464, %v2971
        %v2981 = vor.u32 %v2979, %v2980
        %v2982 = vshll.u32 2102212464, %v2970
        %v2983 = vshrl.u32 920167782, %v2971
        %v2984 = vor.u32 %v2982, %v2983
        %v2985 = vshll.u32 920167782, %v2970
        %v2986 = vshrl.u32 1326507024, %v2971
        %v2987 = vor.u32 %v2985, %v2986
        %vm2988 = vcmp.lt.s32.totalorder %v2969, 1
        %vm2989 = vcmp.lt.s32.totalorder %v2969, 2
        %vm2990 = vcmp.lt.s32.totalorder %v2969, 3
        %vm2991 = vcmp.lt.s32.totalorder %v2969, 4
        %v2992 = vsel %vm2988, %v2972, %v2975
        %v2993 = vsel %vm2991, %v2981, 2102212464
        %v2994 = vsel %vm2990, %v2978, %v2993
        %v2995 = vsel %vm2989, %v2992, %v2994
        %v2996 = vsel %vm2988, %v2975, %v2978
        %v2997 = vsel %vm2991, %v2984, 920167782
        %v2998 = vsel %vm2990, %v2981, %v2997
        %v2999 = vsel %vm2989, %v2996, %v2998
        %v3000 = vsel %vm2988, %v2978, %v2981
        %v3001 = vsel %vm2991, %v2987, 1326507024
        %v3002 = vsel %vm2990, %v2984, %v3001
        %v3003 = vsel %vm2989, %v3000, %v3002
        %v3004 = vshll.u32 %v2964, 8
        %v3005 = vmul.u32.u64.compose %v3004, %v3003
        %v3006 = vextract.low.u32 %v3005
        %v3007 = vextract.high.u32 %v3005
        %v3008 = vmul.u32.u64.compose %v3004, %v2999
        %v3009 = vextract.low.u32 %v3008
        %v3010 = vextract.high.u32 %v3008
        %v3011 = vmul.u32 %v3004, %v2995
        %v3012 = vadd.s32 %v3007, %v3009
        %vm3013 = vc.u32 %v3007, %v3009
        %v3014 = vadd.s32 %v3010, 1
        %v3015 = vsel %vm3013, %v3014, %v3010
        %v3016 = vadd.s32 %v3011, %v3015
        %v3017 = vadd.s32 %v3016, 536870912
        %v3018 = vshrl.u32 %v3017, 30
        %v3019 = vshll.u32 %v3018, 30
        %v3020 = vsub.s32 %v3016, %v3019
        %vm3021 = vcmp.lt.s32.totalorder %v3020, 0
        %v3022 = vsub.s32 0, %v3020
        %v3023 = vsel %vm3021, %v3022, %v3020
        %v3024 = vclz %v3023
        %v3025 = vsub.s32 %v3024, 2
        %vm3026 = vcmp.gt.s32.totalorder 0, %v3025
        %v3027 = vsel %vm3026, 0, %v3025
        %v3028 = vsub.s32 32, %v3027
        %v3029 = vshll.u32 %v3020, %v3027
        %v3030 = vshrl.u32 %v3012, %v3028
        %v3031 = vor.u32 %v3029, %v3030
        %v3032 = vsub.s32 4294967266, %v3027
        %v3033 = vadd.s32 %v3032, 127
        %v3034 = vshll.u32 %v3033, 23
        %v3035 = vor.u32 4788187, %v3034
        %v3036 = vand.u32 2147483647, %v3035
        %v3038 = vcvt.s32.f32 %v3031
        %v3039 = vmul.f32 %v3038, %v3036
        %v3040 = vxor.u32 %v3039, 2147483648
        %v3041 = vsel %vm2958, %v3040, %v3039
        %v3042 = vsub.s32 4, %v3018
        %v3043 = vsel %vm2958, %v3042, %v3018
        %v3044 = vsel %vm2957, %v2955, %v3041
        %v3045 = vsel %vm2957, 0, %v3043
        %v3046 = vcosq.f32.pop %v3044
        %v3047 = vsinq.f32.pop %v3044
        %vm3048 = vweird.f32 %v2955
        %v3049 = vadd.s32 %v3045, 3
        %v3050 = vand.u32 %v3049, 3
        %vm3051 = vcmp.lt.s32.totalorder %v3050, 2
        %vm3052 = vcmp.eq.s32.totalorder %v3050, 0
        %v3053 = vxor.u32 %v3047, 2147483648
        %v3054 = vsel %vm3052, %v3046, %v3053
        %vm3055 = vcmp.eq.s32.totalorder %v3050, 2
        %v3056 = vxor.u32 %v3046, 2147483648
        %v3057 = vsel %vm3055, %v3056, %v3047
        %v3058 = vsel %vm3051, %v3054, %v3057
        %v3059 = vsel %vm3048, nan, %v3058
        %s3060 = scalar_lea.vmem %s172, 184 [#allocation5]
        %3061 = vst.msk [vmem:[%s3060] sm:$0xff] %vm262, %v3059
        %v3062 = vand.u32 2147483647, %v2955
        %vm3063 = vcmp.le.f32.partialorder %v3062, 0.7853982
        %vm3064 = vcmp.lt.s32.totalorder %v2955, 0
        %v3065 = vand.u32 %v2955, 2139095040
        %v3066 = vshrl.u32 %v3065, 23
        %v3067 = vsub.s32 %v3066, 127
        %v3068 = vand.u32 2147483647, %v2955
        %v3069 = vand.u32 %v3068, 8388607
        %v3070 = vor.u32 %v3069, 8388608
        %v3071 = vsub.s32 0, %v3070
        %v3072 = vadd.s32 %v3067, 1
        %vm3073 = vcmp.gt.s32.totalorder %v3072, 0
        %v3074 = vsel %vm3073, %v3072, 0
        %v3075 = vshrl.u32 %v3074, 5
        %v3076 = vand.u32 %v3074, 31
        %v3077 = vsub.s32 32, %v3076
        %v3078 = vshrl.u32 683565275, %v3077
        %v3079 = vshll.u32 683565275, %v3076
        %v3080 = vshrl.u32 2475754826, %v3077
        %v3081 = vor.u32 %v3079, %v3080
        %v3082 = vshll.u32 2475754826, %v3076
        %v3083 = vshrl.u32 2131351028, %v3077
        %v3084 = vor.u32 %v3082, %v3083
        %v3085 = vshll.u32 2131351028, %v3076
        %v3086 = vshrl.u32 2102212464, %v3077
        %v3087 = vor.u32 %v3085, %v3086
        %v3088 = vshll.u32 2102212464, %v3076
        %v3089 = vshrl.u32 920167782, %v3077
        %v3090 = vor.u32 %v3088, %v3089
        %v3091 = vshll.u32 920167782, %v3076
        %v3092 = vshrl.u32 1326507024, %v3077
        %v3093 = vor.u32 %v3091, %v3092
        %vm3094 = vcmp.lt.s32.totalorder %v3075, 1
        %vm3095 = vcmp.lt.s32.totalorder %v3075, 2
        %vm3096 = vcmp.lt.s32.totalorder %v3075, 3
        %vm3097 = vcmp.lt.s32.totalorder %v3075, 4
        %v3098 = vsel %vm3094, %v3078, %v3081
        %v3099 = vsel %vm3097, %v3087, 2102212464
        %v3100 = vsel %vm3096, %v3084, %v3099
        %v3101 = vsel %vm3095, %v3098, %v3100
        %v3102 = vsel %vm3094, %v3081, %v3084
        %v3103 = vsel %vm3097, %v3090, 920167782
        %v3104 = vsel %vm3096, %v3087, %v3103
        %v3105 = vsel %vm3095, %v3102, %v3104
        %v3106 = vsel %vm3094, %v3084, %v3087
        %v3107 = vsel %vm3097, %v3093, 1326507024
        %v3108 = vsel %vm3096, %v3090, %v3107
        %v3109 = vsel %vm3095, %v3106, %v3108
        %v3110 = vshll.u32 %v3070, 8
        %v3111 = vmul.u32.u64.compose %v3110, %v3109
        %v3112 = vextract.low.u32 %v3111
        %v3113 = vextract.high.u32 %v3111
        %v3114 = vmul.u32.u64.compose %v3110, %v3105
        %v3115 = vextract.low.u32 %v3114
        %v3116 = vextract.high.u32 %v3114
        %v3117 = vmul.u32 %v3110, %v3101
        %v3118 = vadd.s32 %v3113, %v3115
        %vm3119 = vc.u32 %v3113, %v3115
        %v3120 = vadd.s32 %v3116, 1
        %v3121 = vsel %vm3119, %v3120, %v3116
        %v3122 = vadd.s32 %v3117, %v3121
        %v3123 = vadd.s32 %v3122, 536870912
        %v3124 = vshrl.u32 %v3123, 30
        %v3125 = vshll.u32 %v3124, 30
        %v3126 = vsub.s32 %v3122, %v3125
        %vm3127 = vcmp.lt.s32.totalorder %v3126, 0
        %v3128 = vsub.s32 0, %v3126
        %v3129 = vsel %vm3127, %v3128, %v3126
        %v3130 = vclz %v3129
        %v3131 = vsub.s32 %v3130, 2
        %vm3132 = vcmp.gt.s32.totalorder 0, %v3131
        %v3133 = vsel %vm3132, 0, %v3131
        %v3134 = vsub.s32 32, %v3133
        %v3135 = vshll.u32 %v3126, %v3133
        %v3136 = vshrl.u32 %v3118, %v3134
        %v3137 = vor.u32 %v3135, %v3136
        %v3138 = vsub.s32 4294967266, %v3133
        %v3139 = vadd.s32 %v3138, 127
        %v3140 = vshll.u32 %v3139, 23
        %v3141 = vor.u32 4788187, %v3140
        %v3142 = vand.u32 2147483647, %v3141
        %v3144 = vcvt.s32.f32 %v3137
        %v3145 = vmul.f32 %v3144, %v3142
        %v3146 = vxor.u32 %v3145, 2147483648
        %v3147 = vsel %vm3064, %v3146, %v3145
        %v3148 = vsub.s32 4, %v3124
        %v3149 = vsel %vm3064, %v3148, %v3124
        %v3150 = vsel %vm3063, %v2955, %v3147
        %v3151 = vsel %vm3063, 0, %v3149
        %v3152 = vcosq.f32.pop %v3150
        %v3153 = vsinq.f32.pop %v3150
        %vm3154 = vweird.f32 %v2955
        %v3155 = vand.u32 %v3151, 3
        %vm3156 = vcmp.lt.s32.totalorder %v3155, 2
        %vm3157 = vcmp.eq.s32.totalorder %v3155, 0
        %v3158 = vxor.u32 %v3153, 2147483648
        %v3159 = vsel %vm3157, %v3152, %v3158
        %vm3160 = vcmp.eq.s32.totalorder %v3155, 2
        %v3161 = vxor.u32 %v3152, 2147483648
        %v3162 = vsel %vm3160, %v3161, %v3153
        %v3163 = vsel %vm3156, %v3159, %v3162
        %v3164 = vsel %vm3154, nan, %v3163
        %s3165 = scalar_lea.vmem %s172, 272 [#allocation5]
        %3166 = vst.msk [vmem:[%s3165] sm:$0xff] %vm262, %v3164
        %v3167 = vmul.f32 %v403, 0.18738174
        %v3168 = vand.u32 2147483647, %v3167
        %vm3169 = vcmp.le.f32.partialorder %v3168, 0.7853982
        %vm3170 = vcmp.lt.s32.totalorder %v3167, 0
        %v3171 = vand.u32 %v3167, 2139095040
        %v3172 = vshrl.u32 %v3171, 23
        %v3173 = vsub.s32 %v3172, 127
        %v3174 = vand.u32 2147483647, %v3167
        %v3175 = vand.u32 %v3174, 8388607
        %v3176 = vor.u32 %v3175, 8388608
        %v3177 = vsub.s32 0, %v3176
        %v3178 = vadd.s32 %v3173, 1
        %vm3179 = vcmp.gt.s32.totalorder %v3178, 0
        %v3180 = vsel %vm3179, %v3178, 0
        %v3181 = vshrl.u32 %v3180, 5
        %v3182 = vand.u32 %v3180, 31
        %v3183 = vsub.s32 32, %v3182
        %v3184 = vshrl.u32 683565275, %v3183
        %v3185 = vshll.u32 683565275, %v3182
        %v3186 = vshrl.u32 2475754826, %v3183
        %v3187 = vor.u32 %v3185, %v3186
        %v3188 = vshll.u32 2475754826, %v3182
        %v3189 = vshrl.u32 2131351028, %v3183
        %v3190 = vor.u32 %v3188, %v3189
        %v3191 = vshll.u32 2131351028, %v3182
        %v3192 = vshrl.u32 2102212464, %v3183
        %v3193 = vor.u32 %v3191, %v3192
        %v3194 = vshll.u32 2102212464, %v3182
        %v3195 = vshrl.u32 920167782, %v3183
        %v3196 = vor.u32 %v3194, %v3195
        %v3197 = vshll.u32 920167782, %v3182
        %v3198 = vshrl.u32 1326507024, %v3183
        %v3199 = vor.u32 %v3197, %v3198
        %vm3200 = vcmp.lt.s32.totalorder %v3181, 1
        %vm3201 = vcmp.lt.s32.totalorder %v3181, 2
        %vm3202 = vcmp.lt.s32.totalorder %v3181, 3
        %vm3203 = vcmp.lt.s32.totalorder %v3181, 4
        %v3204 = vsel %vm3200, %v3184, %v3187
        %v3205 = vsel %vm3203, %v3193, 2102212464
        %v3206 = vsel %vm3202, %v3190, %v3205
        %v3207 = vsel %vm3201, %v3204, %v3206
        %v3208 = vsel %vm3200, %v3187, %v3190
        %v3209 = vsel %vm3203, %v3196, 920167782
        %v3210 = vsel %vm3202, %v3193, %v3209
        %v3211 = vsel %vm3201, %v3208, %v3210
        %v3212 = vsel %vm3200, %v3190, %v3193
        %v3213 = vsel %vm3203, %v3199, 1326507024
        %v3214 = vsel %vm3202, %v3196, %v3213
        %v3215 = vsel %vm3201, %v3212, %v3214
        %v3216 = vshll.u32 %v3176, 8
        %v3217 = vmul.u32.u64.compose %v3216, %v3215
        %v3218 = vextract.low.u32 %v3217
        %v3219 = vextract.high.u32 %v3217
        %v3220 = vmul.u32.u64.compose %v3216, %v3211
        %v3221 = vextract.low.u32 %v3220
        %v3222 = vextract.high.u32 %v3220
        %v3223 = vmul.u32 %v3216, %v3207
        %v3224 = vadd.s32 %v3219, %v3221
        %vm3225 = vc.u32 %v3219, %v3221
        %v3226 = vadd.s32 %v3222, 1
        %v3227 = vsel %vm3225, %v3226, %v3222
        %v3228 = vadd.s32 %v3223, %v3227
        %v3229 = vadd.s32 %v3228, 536870912
        %v3230 = vshrl.u32 %v3229, 30
        %v3231 = vshll.u32 %v3230, 30
        %v3232 = vsub.s32 %v3228, %v3231
        %vm3233 = vcmp.lt.s32.totalorder %v3232, 0
        %v3234 = vsub.s32 0, %v3232
        %v3235 = vsel %vm3233, %v3234, %v3232
        %v3236 = vclz %v3235
        %v3237 = vsub.s32 %v3236, 2
        %vm3238 = vcmp.gt.s32.totalorder 0, %v3237
        %v3239 = vsel %vm3238, 0, %v3237
        %v3240 = vsub.s32 32, %v3239
        %v3241 = vshll.u32 %v3232, %v3239
        %v3242 = vshrl.u32 %v3224, %v3240
        %v3243 = vor.u32 %v3241, %v3242
        %v3244 = vsub.s32 4294967266, %v3239
        %v3245 = vadd.s32 %v3244, 127
        %v3246 = vshll.u32 %v3245, 23
        %v3247 = vor.u32 4788187, %v3246
        %v3248 = vand.u32 2147483647, %v3247
        %v3250 = vcvt.s32.f32 %v3243
        %v3251 = vmul.f32 %v3250, %v3248
        %v3252 = vxor.u32 %v3251, 2147483648
        %v3253 = vsel %vm3170, %v3252, %v3251
        %v3254 = vsub.s32 4, %v3230
        %v3255 = vsel %vm3170, %v3254, %v3230
        %v3256 = vsel %vm3169, %v3167, %v3253
        %v3257 = vsel %vm3169, 0, %v3255
        %v3258 = vcosq.f32.pop %v3256
        %v3259 = vsinq.f32.pop %v3256
        %vm3260 = vweird.f32 %v3167
        %v3261 = vadd.s32 %v3257, 3
        %v3262 = vand.u32 %v3261, 3
        %vm3263 = vcmp.lt.s32.totalorder %v3262, 2
        %vm3264 = vcmp.eq.s32.totalorder %v3262, 0
        %v3265 = vxor.u32 %v3259, 2147483648
        %v3266 = vsel %vm3264, %v3258, %v3265
        %vm3267 = vcmp.eq.s32.totalorder %v3262, 2
        %v3268 = vxor.u32 %v3258, 2147483648
        %v3269 = vsel %vm3267, %v3268, %v3259
        %v3270 = vsel %vm3263, %v3266, %v3269
        %v3271 = vsel %vm3260, nan, %v3270
        %s3272 = scalar_lea.vmem %s172, 192 [#allocation5]
        %3273 = vst.msk [vmem:[%s3272] sm:$0xff] %vm262, %v3271
        %v3274 = vand.u32 2147483647, %v3167
        %vm3275 = vcmp.le.f32.partialorder %v3274, 0.7853982
        %vm3276 = vcmp.lt.s32.totalorder %v3167, 0
        %v3277 = vand.u32 %v3167, 2139095040
        %v3278 = vshrl.u32 %v3277, 23
        %v3279 = vsub.s32 %v3278, 127
        %v3280 = vand.u32 2147483647, %v3167
        %v3281 = vand.u32 %v3280, 8388607
        %v3282 = vor.u32 %v3281, 8388608
        %v3283 = vsub.s32 0, %v3282
        %v3284 = vadd.s32 %v3279, 1
        %vm3285 = vcmp.gt.s32.totalorder %v3284, 0
        %v3286 = vsel %vm3285, %v3284, 0
        %v3287 = vshrl.u32 %v3286, 5
        %v3288 = vand.u32 %v3286, 31
        %v3289 = vsub.s32 32, %v3288
        %v3290 = vshrl.u32 683565275, %v3289
        %v3291 = vshll.u32 683565275, %v3288
        %v3292 = vshrl.u32 2475754826, %v3289
        %v3293 = vor.u32 %v3291, %v3292
        %v3294 = vshll.u32 2475754826, %v3288
        %v3295 = vshrl.u32 2131351028, %v3289
        %v3296 = vor.u32 %v3294, %v3295
        %v3297 = vshll.u32 2131351028, %v3288
        %v3298 = vshrl.u32 2102212464, %v3289
        %v3299 = vor.u32 %v3297, %v3298
        %v3300 = vshll.u32 2102212464, %v3288
        %v3301 = vshrl.u32 920167782, %v3289
        %v3302 = vor.u32 %v3300, %v3301
        %v3303 = vshll.u32 920167782, %v3288
        %v3304 = vshrl.u32 1326507024, %v3289
        %v3305 = vor.u32 %v3303, %v3304
        %vm3306 = vcmp.lt.s32.totalorder %v3287, 1
        %vm3307 = vcmp.lt.s32.totalorder %v3287, 2
        %vm3308 = vcmp.lt.s32.totalorder %v3287, 3
        %vm3309 = vcmp.lt.s32.totalorder %v3287, 4
        %v3310 = vsel %vm3306, %v3290, %v3293
        %v3311 = vsel %vm3309, %v3299, 2102212464
        %v3312 = vsel %vm3308, %v3296, %v3311
        %v3313 = vsel %vm3307, %v3310, %v3312
        %v3314 = vsel %vm3306, %v3293, %v3296
        %v3315 = vsel %vm3309, %v3302, 920167782
        %v3316 = vsel %vm3308, %v3299, %v3315
        %v3317 = vsel %vm3307, %v3314, %v3316
        %v3318 = vsel %vm3306, %v3296, %v3299
        %v3319 = vsel %vm3309, %v3305, 1326507024
        %v3320 = vsel %vm3308, %v3302, %v3319
        %v3321 = vsel %vm3307, %v3318, %v3320
        %v3322 = vshll.u32 %v3282, 8
        %v3323 = vmul.u32.u64.compose %v3322, %v3321
        %v3324 = vextract.low.u32 %v3323
        %v3325 = vextract.high.u32 %v3323
        %v3326 = vmul.u32.u64.compose %v3322, %v3317
        %v3327 = vextract.low.u32 %v3326
        %v3328 = vextract.high.u32 %v3326
        %v3329 = vmul.u32 %v3322, %v3313
        %v3330 = vadd.s32 %v3325, %v3327
        %vm3331 = vc.u32 %v3325, %v3327
        %v3332 = vadd.s32 %v3328, 1
        %v3333 = vsel %vm3331, %v3332, %v3328
        %v3334 = vadd.s32 %v3329, %v3333
        %v3335 = vadd.s32 %v3334, 536870912
        %v3336 = vshrl.u32 %v3335, 30
        %v3337 = vshll.u32 %v3336, 30
        %v3338 = vsub.s32 %v3334, %v3337
        %vm3339 = vcmp.lt.s32.totalorder %v3338, 0
        %v3340 = vsub.s32 0, %v3338
        %v3341 = vsel %vm3339, %v3340, %v3338
        %v3342 = vclz %v3341
        %v3343 = vsub.s32 %v3342, 2
        %vm3344 = vcmp.gt.s32.totalorder 0, %v3343
        %v3345 = vsel %vm3344, 0, %v3343
        %v3346 = vsub.s32 32, %v3345
        %v3347 = vshll.u32 %v3338, %v3345
        %v3348 = vshrl.u32 %v3330, %v3346
        %v3349 = vor.u32 %v3347, %v3348
        %v3350 = vsub.s32 4294967266, %v3345
        %v3351 = vadd.s32 %v3350, 127
        %v3352 = vshll.u32 %v3351, 23
        %v3353 = vor.u32 4788187, %v3352
        %v3354 = vand.u32 2147483647, %v3353
        %v3356 = vcvt.s32.f32 %v3349
        %v3357 = vmul.f32 %v3356, %v3354
        %v3358 = vxor.u32 %v3357, 2147483648
        %v3359 = vsel %vm3276, %v3358, %v3357
        %v3360 = vsub.s32 4, %v3336
        %v3361 = vsel %vm3276, %v3360, %v3336
        %v3362 = vsel %vm3275, %v3167, %v3359
        %v3363 = vsel %vm3275, 0, %v3361
        %v3364 = vcosq.f32.pop %v3362
        %v3365 = vsinq.f32.pop %v3362
        %vm3366 = vweird.f32 %v3167
        %v3367 = vand.u32 %v3363, 3
        %vm3368 = vcmp.lt.s32.totalorder %v3367, 2
        %vm3369 = vcmp.eq.s32.totalorder %v3367, 0
        %v3370 = vxor.u32 %v3365, 2147483648
        %v3371 = vsel %vm3369, %v3364, %v3370
        %vm3372 = vcmp.eq.s32.totalorder %v3367, 2
        %v3373 = vxor.u32 %v3364, 2147483648
        %v3374 = vsel %vm3372, %v3373, %v3365
        %v3375 = vsel %vm3368, %v3371, %v3374
        %v3376 = vsel %vm3366, nan, %v3375
        %s3377 = scalar_lea.vmem %s172, 280 [#allocation5]
        %3378 = vst.msk [vmem:[%s3377] sm:$0xff] %vm262, %v3376
        %v3379 = vmul.f32 %v403, 0.081113085
        %v3380 = vand.u32 2147483647, %v3379
        %vm3381 = vcmp.le.f32.partialorder %v3380, 0.7853982
        %vm3382 = vcmp.lt.s32.totalorder %v3379, 0
        %v3383 = vand.u32 %v3379, 2139095040
        %v3384 = vshrl.u32 %v3383, 23
        %v3385 = vsub.s32 %v3384, 127
        %v3386 = vand.u32 2147483647, %v3379
        %v3387 = vand.u32 %v3386, 8388607
        %v3388 = vor.u32 %v3387, 8388608
        %v3389 = vsub.s32 0, %v3388
        %v3390 = vadd.s32 %v3385, 1
        %vm3391 = vcmp.gt.s32.totalorder %v3390, 0
        %v3392 = vsel %vm3391, %v3390, 0
        %v3393 = vshrl.u32 %v3392, 5
        %v3394 = vand.u32 %v3392, 31
        %v3395 = vsub.s32 32, %v3394
        %v3396 = vshrl.u32 683565275, %v3395
        %v3397 = vshll.u32 683565275, %v3394
        %v3398 = vshrl.u32 2475754826, %v3395
        %v3399 = vor.u32 %v3397, %v3398
        %v3400 = vshll.u32 2475754826, %v3394
        %v3401 = vshrl.u32 2131351028, %v3395
        %v3402 = vor.u32 %v3400, %v3401
        %v3403 = vshll.u32 2131351028, %v3394
        %v3404 = vshrl.u32 2102212464, %v3395
        %v3405 = vor.u32 %v3403, %v3404
        %v3406 = vshll.u32 2102212464, %v3394
        %v3407 = vshrl.u32 920167782, %v3395
        %v3408 = vor.u32 %v3406, %v3407
        %v3409 = vshll.u32 920167782, %v3394
        %v3410 = vshrl.u32 1326507024, %v3395
        %v3411 = vor.u32 %v3409, %v3410
        %vm3412 = vcmp.lt.s32.totalorder %v3393, 1
        %vm3413 = vcmp.lt.s32.totalorder %v3393, 2
        %vm3414 = vcmp.lt.s32.totalorder %v3393, 3
        %vm3415 = vcmp.lt.s32.totalorder %v3393, 4
        %v3416 = vsel %vm3412, %v3396, %v3399
        %v3417 = vsel %vm3415, %v3405, 2102212464
        %v3418 = vsel %vm3414, %v3402, %v3417
        %v3419 = vsel %vm3413, %v3416, %v3418
        %v3420 = vsel %vm3412, %v3399, %v3402
        %v3421 = vsel %vm3415, %v3408, 920167782
        %v3422 = vsel %vm3414, %v3405, %v3421
        %v3423 = vsel %vm3413, %v3420, %v3422
        %v3424 = vsel %vm3412, %v3402, %v3405
        %v3425 = vsel %vm3415, %v3411, 1326507024
        %v3426 = vsel %vm3414, %v3408, %v3425
        %v3427 = vsel %vm3413, %v3424, %v3426
        %v3428 = vshll.u32 %v3388, 8
        %v3429 = vmul.u32.u64.compose %v3428, %v3427
        %v3430 = vextract.low.u32 %v3429
        %v3431 = vextract.high.u32 %v3429
        %v3432 = vmul.u32.u64.compose %v3428, %v3423
        %v3433 = vextract.low.u32 %v3432
        %v3434 = vextract.high.u32 %v3432
        %v3435 = vmul.u32 %v3428, %v3419
        %v3436 = vadd.s32 %v3431, %v3433
        %vm3437 = vc.u32 %v3431, %v3433
        %v3438 = vadd.s32 %v3434, 1
        %v3439 = vsel %vm3437, %v3438, %v3434
        %v3440 = vadd.s32 %v3435, %v3439
        %v3441 = vadd.s32 %v3440, 536870912
        %v3442 = vshrl.u32 %v3441, 30
        %v3443 = vshll.u32 %v3442, 30
        %v3444 = vsub.s32 %v3440, %v3443
        %vm3445 = vcmp.lt.s32.totalorder %v3444, 0
        %v3446 = vsub.s32 0, %v3444
        %v3447 = vsel %vm3445, %v3446, %v3444
        %v3448 = vclz %v3447
        %v3449 = vsub.s32 %v3448, 2
        %vm3450 = vcmp.gt.s32.totalorder 0, %v3449
        %v3451 = vsel %vm3450, 0, %v3449
        %v3452 = vsub.s32 32, %v3451
        %v3453 = vshll.u32 %v3444, %v3451
        %v3454 = vshrl.u32 %v3436, %v3452
        %v3455 = vor.u32 %v3453, %v3454
        %v3456 = vsub.s32 4294967266, %v3451
        %v3457 = vadd.s32 %v3456, 127
        %v3458 = vshll.u32 %v3457, 23
        %v3459 = vor.u32 4788187, %v3458
        %v3460 = vand.u32 2147483647, %v3459
        %v3462 = vcvt.s32.f32 %v3455
        %v3463 = vmul.f32 %v3462, %v3460
        %v3464 = vxor.u32 %v3463, 2147483648
        %v3465 = vsel %vm3382, %v3464, %v3463
        %v3466 = vsub.s32 4, %v3442
        %v3467 = vsel %vm3382, %v3466, %v3442
        %v3468 = vsel %vm3381, %v3379, %v3465
        %v3469 = vsel %vm3381, 0, %v3467
        %v3470 = vcosq.f32.pop %v3468
        %v3471 = vsinq.f32.pop %v3468
        %vm3472 = vweird.f32 %v3379
        %v3473 = vadd.s32 %v3469, 3
        %v3474 = vand.u32 %v3473, 3
        %vm3475 = vcmp.lt.s32.totalorder %v3474, 2
        %vm3476 = vcmp.eq.s32.totalorder %v3474, 0
        %v3477 = vxor.u32 %v3471, 2147483648
        %v3478 = vsel %vm3476, %v3470, %v3477
        %vm3479 = vcmp.eq.s32.totalorder %v3474, 2
        %v3480 = vxor.u32 %v3470, 2147483648
        %v3481 = vsel %vm3479, %v3480, %v3471
        %v3482 = vsel %vm3475, %v3478, %v3481
        %v3483 = vsel %vm3472, nan, %v3482
        %s3484 = scalar_lea.vmem %s172, 200 [#allocation5]
        %3485 = vst.msk [vmem:[%s3484] sm:$0xff] %vm262, %v3483
        %v3486 = vand.u32 2147483647, %v3379
        %vm3487 = vcmp.le.f32.partialorder %v3486, 0.7853982
        %vm3488 = vcmp.lt.s32.totalorder %v3379, 0
        %v3489 = vand.u32 %v3379, 2139095040
        %v3490 = vshrl.u32 %v3489, 23
        %v3491 = vsub.s32 %v3490, 127
        %v3492 = vand.u32 2147483647, %v3379
        %v3493 = vand.u32 %v3492, 8388607
        %v3494 = vor.u32 %v3493, 8388608
        %v3495 = vsub.s32 0, %v3494
        %v3496 = vadd.s32 %v3491, 1
        %vm3497 = vcmp.gt.s32.totalorder %v3496, 0
        %v3498 = vsel %vm3497, %v3496, 0
        %v3499 = vshrl.u32 %v3498, 5
        %v3500 = vand.u32 %v3498, 31
        %v3501 = vsub.s32 32, %v3500
        %v3502 = vshrl.u32 683565275, %v3501
        %v3503 = vshll.u32 683565275, %v3500
        %v3504 = vshrl.u32 2475754826, %v3501
        %v3505 = vor.u32 %v3503, %v3504
        %v3506 = vshll.u32 2475754826, %v3500
        %v3507 = vshrl.u32 2131351028, %v3501
        %v3508 = vor.u32 %v3506, %v3507
        %v3509 = vshll.u32 2131351028, %v3500
        %v3510 = vshrl.u32 2102212464, %v3501
        %v3511 = vor.u32 %v3509, %v3510
        %v3512 = vshll.u32 2102212464, %v3500
        %v3513 = vshrl.u32 920167782, %v3501
        %v3514 = vor.u32 %v3512, %v3513
        %v3515 = vshll.u32 920167782, %v3500
        %v3516 = vshrl.u32 1326507024, %v3501
        %v3517 = vor.u32 %v3515, %v3516
        %vm3518 = vcmp.lt.s32.totalorder %v3499, 1
        %vm3519 = vcmp.lt.s32.totalorder %v3499, 2
        %vm3520 = vcmp.lt.s32.totalorder %v3499, 3
        %vm3521 = vcmp.lt.s32.totalorder %v3499, 4
        %v3522 = vsel %vm3518, %v3502, %v3505
        %v3523 = vsel %vm3521, %v3511, 2102212464
        %v3524 = vsel %vm3520, %v3508, %v3523
        %v3525 = vsel %vm3519, %v3522, %v3524
        %v3526 = vsel %vm3518, %v3505, %v3508
        %v3527 = vsel %vm3521, %v3514, 920167782
        %v3528 = vsel %vm3520, %v3511, %v3527
        %v3529 = vsel %vm3519, %v3526, %v3528
        %v3530 = vsel %vm3518, %v3508, %v3511
        %v3531 = vsel %vm3521, %v3517, 1326507024
        %v3532 = vsel %vm3520, %v3514, %v3531
        %v3533 = vsel %vm3519, %v3530, %v3532
        %v3534 = vshll.u32 %v3494, 8
        %v3535 = vmul.u32.u64.compose %v3534, %v3533
        %v3536 = vextract.low.u32 %v3535
        %v3537 = vextract.high.u32 %v3535
        %v3538 = vmul.u32.u64.compose %v3534, %v3529
        %v3539 = vextract.low.u32 %v3538
        %v3540 = vextract.high.u32 %v3538
        %v3541 = vmul.u32 %v3534, %v3525
        %v3542 = vadd.s32 %v3537, %v3539
        %vm3543 = vc.u32 %v3537, %v3539
        %v3544 = vadd.s32 %v3540, 1
        %v3545 = vsel %vm3543, %v3544, %v3540
        %v3546 = vadd.s32 %v3541, %v3545
        %v3547 = vadd.s32 %v3546, 536870912
        %v3548 = vshrl.u32 %v3547, 30
        %v3549 = vshll.u32 %v3548, 30
        %v3550 = vsub.s32 %v3546, %v3549
        %vm3551 = vcmp.lt.s32.totalorder %v3550, 0
        %v3552 = vsub.s32 0, %v3550
        %v3553 = vsel %vm3551, %v3552, %v3550
        %v3554 = vclz %v3553
        %v3555 = vsub.s32 %v3554, 2
        %vm3556 = vcmp.gt.s32.totalorder 0, %v3555
        %v3557 = vsel %vm3556, 0, %v3555
        %v3558 = vsub.s32 32, %v3557
        %v3559 = vshll.u32 %v3550, %v3557
        %v3560 = vshrl.u32 %v3542, %v3558
        %v3561 = vor.u32 %v3559, %v3560
        %v3562 = vsub.s32 4294967266, %v3557
        %v3563 = vadd.s32 %v3562, 127
        %v3564 = vshll.u32 %v3563, 23
        %v3565 = vor.u32 4788187, %v3564
        %v3566 = vand.u32 2147483647, %v3565
        %v3568 = vcvt.s32.f32 %v3561
        %v3569 = vmul.f32 %v3568, %v3566
        %v3570 = vxor.u32 %v3569, 2147483648
        %v3571 = vsel %vm3488, %v3570, %v3569
        %v3572 = vsub.s32 4, %v3548
        %v3573 = vsel %vm3488, %v3572, %v3548
        %v3574 = vsel %vm3487, %v3379, %v3571
        %v3575 = vsel %vm3487, 0, %v3573
        %v3576 = vcosq.f32.pop %v3574
        %v3577 = vsinq.f32.pop %v3574
        %vm3578 = vweird.f32 %v3379
        %v3579 = vand.u32 %v3575, 3
        %vm3580 = vcmp.lt.s32.totalorder %v3579, 2
        %vm3581 = vcmp.eq.s32.totalorder %v3579, 0
        %v3582 = vxor.u32 %v3577, 2147483648
        %v3583 = vsel %vm3581, %v3576, %v3582
        %vm3584 = vcmp.eq.s32.totalorder %v3579, 2
        %v3585 = vxor.u32 %v3576, 2147483648
        %v3586 = vsel %vm3584, %v3585, %v3577
        %v3587 = vsel %vm3580, %v3583, %v3586
        %v3588 = vsel %vm3578, nan, %v3587
        %s3589 = scalar_lea.vmem %s172, 288 [#allocation5]
        %3590 = vst.msk [vmem:[%s3589] sm:$0xff] %vm262, %v3588
        %v3591 = vmul.f32 %v403, 0.03511192
        %v3592 = vand.u32 2147483647, %v3591
        %vm3593 = vcmp.le.f32.partialorder %v3592, 0.7853982
        %vm3594 = vcmp.lt.s32.totalorder %v3591, 0
        %v3595 = vand.u32 %v3591, 2139095040
        %v3596 = vshrl.u32 %v3595, 23
        %v3597 = vsub.s32 %v3596, 127
        %v3598 = vand.u32 2147483647, %v3591
        %v3599 = vand.u32 %v3598, 8388607
        %v3600 = vor.u32 %v3599, 8388608
        %v3601 = vsub.s32 0, %v3600
        %v3602 = vadd.s32 %v3597, 1
        %vm3603 = vcmp.gt.s32.totalorder %v3602, 0
        %v3604 = vsel %vm3603, %v3602, 0
        %v3605 = vshrl.u32 %v3604, 5
        %v3606 = vand.u32 %v3604, 31
        %v3607 = vsub.s32 32, %v3606
        %v3608 = vshrl.u32 683565275, %v3607
        %v3609 = vshll.u32 683565275, %v3606
        %v3610 = vshrl.u32 2475754826, %v3607
        %v3611 = vor.u32 %v3609, %v3610
        %v3612 = vshll.u32 2475754826, %v3606
        %v3613 = vshrl.u32 2131351028, %v3607
        %v3614 = vor.u32 %v3612, %v3613
        %v3615 = vshll.u32 2131351028, %v3606
        %v3616 = vshrl.u32 2102212464, %v3607
        %v3617 = vor.u32 %v3615, %v3616
        %v3618 = vshll.u32 2102212464, %v3606
        %v3619 = vshrl.u32 920167782, %v3607
        %v3620 = vor.u32 %v3618, %v3619
        %v3621 = vshll.u32 920167782, %v3606
        %v3622 = vshrl.u32 1326507024, %v3607
        %v3623 = vor.u32 %v3621, %v3622
        %vm3624 = vcmp.lt.s32.totalorder %v3605, 1
        %vm3625 = vcmp.lt.s32.totalorder %v3605, 2
        %vm3626 = vcmp.lt.s32.totalorder %v3605, 3
        %vm3627 = vcmp.lt.s32.totalorder %v3605, 4
        %v3628 = vsel %vm3624, %v3608, %v3611
        %v3629 = vsel %vm3627, %v3617, 2102212464
        %v3630 = vsel %vm3626, %v3614, %v3629
        %v3631 = vsel %vm3625, %v3628, %v3630
        %v3632 = vsel %vm3624, %v3611, %v3614
        %v3633 = vsel %vm3627, %v3620, 920167782
        %v3634 = vsel %vm3626, %v3617, %v3633
        %v3635 = vsel %vm3625, %v3632, %v3634
        %v3636 = vsel %vm3624, %v3614, %v3617
        %v3637 = vsel %vm3627, %v3623, 1326507024
        %v3638 = vsel %vm3626, %v3620, %v3637
        %v3639 = vsel %vm3625, %v3636, %v3638
        %v3640 = vshll.u32 %v3600, 8
        %v3641 = vmul.u32.u64.compose %v3640, %v3639
        %v3642 = vextract.low.u32 %v3641
        %v3643 = vextract.high.u32 %v3641
        %v3644 = vmul.u32.u64.compose %v3640, %v3635
        %v3645 = vextract.low.u32 %v3644
        %v3646 = vextract.high.u32 %v3644
        %v3647 = vmul.u32 %v3640, %v3631
        %v3648 = vadd.s32 %v3643, %v3645
        %vm3649 = vc.u32 %v3643, %v3645
        %v3650 = vadd.s32 %v3646, 1
        %v3651 = vsel %vm3649, %v3650, %v3646
        %v3652 = vadd.s32 %v3647, %v3651
        %v3653 = vadd.s32 %v3652, 536870912
        %v3654 = vshrl.u32 %v3653, 30
        %v3655 = vshll.u32 %v3654, 30
        %v3656 = vsub.s32 %v3652, %v3655
        %vm3657 = vcmp.lt.s32.totalorder %v3656, 0
        %v3658 = vsub.s32 0, %v3656
        %v3659 = vsel %vm3657, %v3658, %v3656
        %v3660 = vclz %v3659
        %v3661 = vsub.s32 %v3660, 2
        %vm3662 = vcmp.gt.s32.totalorder 0, %v3661
        %v3663 = vsel %vm3662, 0, %v3661
        %v3664 = vsub.s32 32, %v3663
        %v3665 = vshll.u32 %v3656, %v3663
        %v3666 = vshrl.u32 %v3648, %v3664
        %v3667 = vor.u32 %v3665, %v3666
        %v3668 = vsub.s32 4294967266, %v3663
        %v3669 = vadd.s32 %v3668, 127
        %v3670 = vshll.u32 %v3669, 23
        %v3671 = vor.u32 4788187, %v3670
        %v3672 = vand.u32 2147483647, %v3671
        %v3674 = vcvt.s32.f32 %v3667
        %v3675 = vmul.f32 %v3674, %v3672
        %v3676 = vxor.u32 %v3675, 2147483648
        %v3677 = vsel %vm3594, %v3676, %v3675
        %v3678 = vsub.s32 4, %v3654
        %v3679 = vsel %vm3594, %v3678, %v3654
        %v3680 = vsel %vm3593, %v3591, %v3677
        %v3681 = vsel %vm3593, 0, %v3679
        %v3682 = vcosq.f32.pop %v3680
        %v3683 = vsinq.f32.pop %v3680
        %vm3684 = vweird.f32 %v3591
        %v3685 = vadd.s32 %v3681, 3
        %v3686 = vand.u32 %v3685, 3
        %vm3687 = vcmp.lt.s32.totalorder %v3686, 2
        %vm3688 = vcmp.eq.s32.totalorder %v3686, 0
        %v3689 = vxor.u32 %v3683, 2147483648
        %v3690 = vsel %vm3688, %v3682, %v3689
        %vm3691 = vcmp.eq.s32.totalorder %v3686, 2
        %v3692 = vxor.u32 %v3682, 2147483648
        %v3693 = vsel %vm3691, %v3692, %v3683
        %v3694 = vsel %vm3687, %v3690, %v3693
        %v3695 = vsel %vm3684, nan, %v3694
        %s3696 = scalar_lea.vmem %s172, 208 [#allocation5]
        %3697 = vst.msk [vmem:[%s3696] sm:$0xff] %vm262, %v3695
        %v3698 = vand.u32 2147483647, %v3591
        %vm3699 = vcmp.le.f32.partialorder %v3698, 0.7853982
        %vm3700 = vcmp.lt.s32.totalorder %v3591, 0
        %v3701 = vand.u32 %v3591, 2139095040
        %v3702 = vshrl.u32 %v3701, 23
        %v3703 = vsub.s32 %v3702, 127
        %v3704 = vand.u32 2147483647, %v3591
        %v3705 = vand.u32 %v3704, 8388607
        %v3706 = vor.u32 %v3705, 8388608
        %v3707 = vsub.s32 0, %v3706
        %v3708 = vadd.s32 %v3703, 1
        %vm3709 = vcmp.gt.s32.totalorder %v3708, 0
        %v3710 = vsel %vm3709, %v3708, 0
        %v3711 = vshrl.u32 %v3710, 5
        %v3712 = vand.u32 %v3710, 31
        %v3713 = vsub.s32 32, %v3712
        %v3714 = vshrl.u32 683565275, %v3713
        %v3715 = vshll.u32 683565275, %v3712
        %v3716 = vshrl.u32 2475754826, %v3713
        %v3717 = vor.u32 %v3715, %v3716
        %v3718 = vshll.u32 2475754826, %v3712
        %v3719 = vshrl.u32 2131351028, %v3713
        %v3720 = vor.u32 %v3718, %v3719
        %v3721 = vshll.u32 2131351028, %v3712
        %v3722 = vshrl.u32 2102212464, %v3713
        %v3723 = vor.u32 %v3721, %v3722
        %v3724 = vshll.u32 2102212464, %v3712
        %v3725 = vshrl.u32 920167782, %v3713
        %v3726 = vor.u32 %v3724, %v3725
        %v3727 = vshll.u32 920167782, %v3712
        %v3728 = vshrl.u32 1326507024, %v3713
        %v3729 = vor.u32 %v3727, %v3728
        %vm3730 = vcmp.lt.s32.totalorder %v3711, 1
        %vm3731 = vcmp.lt.s32.totalorder %v3711, 2
        %vm3732 = vcmp.lt.s32.totalorder %v3711, 3
        %vm3733 = vcmp.lt.s32.totalorder %v3711, 4
        %v3734 = vsel %vm3730, %v3714, %v3717
        %v3735 = vsel %vm3733, %v3723, 2102212464
        %v3736 = vsel %vm3732, %v3720, %v3735
        %v3737 = vsel %vm3731, %v3734, %v3736
        %v3738 = vsel %vm3730, %v3717, %v3720
        %v3739 = vsel %vm3733, %v3726, 920167782
        %v3740 = vsel %vm3732, %v3723, %v3739
        %v3741 = vsel %vm3731, %v3738, %v3740
        %v3742 = vsel %vm3730, %v3720, %v3723
        %v3743 = vsel %vm3733, %v3729, 1326507024
        %v3744 = vsel %vm3732, %v3726, %v3743
        %v3745 = vsel %vm3731, %v3742, %v3744
        %v3746 = vshll.u32 %v3706, 8
        %v3747 = vmul.u32.u64.compose %v3746, %v3745
        %v3748 = vextract.low.u32 %v3747
        %v3749 = vextract.high.u32 %v3747
        %v3750 = vmul.u32.u64.compose %v3746, %v3741
        %v3751 = vextract.low.u32 %v3750
        %v3752 = vextract.high.u32 %v3750
        %v3753 = vmul.u32 %v3746, %v3737
        %v3754 = vadd.s32 %v3749, %v3751
        %vm3755 = vc.u32 %v3749, %v3751
        %v3756 = vadd.s32 %v3752, 1
        %v3757 = vsel %vm3755, %v3756, %v3752
        %v3758 = vadd.s32 %v3753, %v3757
        %v3759 = vadd.s32 %v3758, 536870912
        %v3760 = vshrl.u32 %v3759, 30
        %v3761 = vshll.u32 %v3760, 30
        %v3762 = vsub.s32 %v3758, %v3761
        %vm3763 = vcmp.lt.s32.totalorder %v3762, 0
        %v3764 = vsub.s32 0, %v3762
        %v3765 = vsel %vm3763, %v3764, %v3762
        %v3766 = vclz %v3765
        %v3767 = vsub.s32 %v3766, 2
        %vm3768 = vcmp.gt.s32.totalorder 0, %v3767
        %v3769 = vsel %vm3768, 0, %v3767
        %v3770 = vsub.s32 32, %v3769
        %v3771 = vshll.u32 %v3762, %v3769
        %v3772 = vshrl.u32 %v3754, %v3770
        %v3773 = vor.u32 %v3771, %v3772
        %v3774 = vsub.s32 4294967266, %v3769
        %v3775 = vadd.s32 %v3774, 127
        %v3776 = vshll.u32 %v3775, 23
        %v3777 = vor.u32 4788187, %v3776
        %v3778 = vand.u32 2147483647, %v3777
        %v3780 = vcvt.s32.f32 %v3773
        %v3781 = vmul.f32 %v3780, %v3778
        %v3782 = vxor.u32 %v3781, 2147483648
        %v3783 = vsel %vm3700, %v3782, %v3781
        %v3784 = vsub.s32 4, %v3760
        %v3785 = vsel %vm3700, %v3784, %v3760
        %v3786 = vsel %vm3699, %v3591, %v3783
        %v3787 = vsel %vm3699, 0, %v3785
        %v3788 = vcosq.f32.pop %v3786
        %v3789 = vsinq.f32.pop %v3786
        %vm3790 = vweird.f32 %v3591
        %v3791 = vand.u32 %v3787, 3
        %vm3792 = vcmp.lt.s32.totalorder %v3791, 2
        %vm3793 = vcmp.eq.s32.totalorder %v3791, 0
        %v3794 = vxor.u32 %v3789, 2147483648
        %v3795 = vsel %vm3793, %v3788, %v3794
        %vm3796 = vcmp.eq.s32.totalorder %v3791, 2
        %v3797 = vxor.u32 %v3788, 2147483648
        %v3798 = vsel %vm3796, %v3797, %v3789
        %v3799 = vsel %vm3792, %v3795, %v3798
        %v3800 = vsel %vm3790, nan, %v3799
        %s3801 = scalar_lea.vmem %s172, 296 [#allocation5]
        %3802 = vst.msk [vmem:[%s3801] sm:$0xff] %vm262, %v3800
        %v3803 = vmul.f32 %v403, 0.015199111
        %v3804 = vand.u32 2147483647, %v3803
        %vm3805 = vcmp.le.f32.partialorder %v3804, 0.7853982
        %vm3806 = vcmp.lt.s32.totalorder %v3803, 0
        %v3807 = vand.u32 %v3803, 2139095040
        %v3808 = vshrl.u32 %v3807, 23
        %v3809 = vsub.s32 %v3808, 127
        %v3810 = vand.u32 2147483647, %v3803
        %v3811 = vand.u32 %v3810, 8388607
        %v3812 = vor.u32 %v3811, 8388608
        %v3813 = vsub.s32 0, %v3812
        %v3814 = vadd.s32 %v3809, 1
        %vm3815 = vcmp.gt.s32.totalorder %v3814, 0
        %v3816 = vsel %vm3815, %v3814, 0
        %v3817 = vshrl.u32 %v3816, 5
        %v3818 = vand.u32 %v3816, 31
        %v3819 = vsub.s32 32, %v3818
        %v3820 = vshrl.u32 683565275, %v3819
        %v3821 = vshll.u32 683565275, %v3818
        %v3822 = vshrl.u32 2475754826, %v3819
        %v3823 = vor.u32 %v3821, %v3822
        %v3824 = vshll.u32 2475754826, %v3818
        %v3825 = vshrl.u32 2131351028, %v3819
        %v3826 = vor.u32 %v3824, %v3825
        %v3827 = vshll.u32 2131351028, %v3818
        %v3828 = vshrl.u32 2102212464, %v3819
        %v3829 = vor.u32 %v3827, %v3828
        %v3830 = vshll.u32 2102212464, %v3818
        %v3831 = vshrl.u32 920167782, %v3819
        %v3832 = vor.u32 %v3830, %v3831
        %v3833 = vshll.u32 920167782, %v3818
        %v3834 = vshrl.u32 1326507024, %v3819
        %v3835 = vor.u32 %v3833, %v3834
        %vm3836 = vcmp.lt.s32.totalorder %v3817, 1
        %vm3837 = vcmp.lt.s32.totalorder %v3817, 2
        %vm3838 = vcmp.lt.s32.totalorder %v3817, 3
        %vm3839 = vcmp.lt.s32.totalorder %v3817, 4
        %v3840 = vsel %vm3836, %v3820, %v3823
        %v3841 = vsel %vm3839, %v3829, 2102212464
        %v3842 = vsel %vm3838, %v3826, %v3841
        %v3843 = vsel %vm3837, %v3840, %v3842
        %v3844 = vsel %vm3836, %v3823, %v3826
        %v3845 = vsel %vm3839, %v3832, 920167782
        %v3846 = vsel %vm3838, %v3829, %v3845
        %v3847 = vsel %vm3837, %v3844, %v3846
        %v3848 = vsel %vm3836, %v3826, %v3829
        %v3849 = vsel %vm3839, %v3835, 1326507024
        %v3850 = vsel %vm3838, %v3832, %v3849
        %v3851 = vsel %vm3837, %v3848, %v3850
        %v3852 = vshll.u32 %v3812, 8
        %v3853 = vmul.u32.u64.compose %v3852, %v3851
        %v3854 = vextract.low.u32 %v3853
        %v3855 = vextract.high.u32 %v3853
        %v3856 = vmul.u32.u64.compose %v3852, %v3847
        %v3857 = vextract.low.u32 %v3856
        %v3858 = vextract.high.u32 %v3856
        %v3859 = vmul.u32 %v3852, %v3843
        %v3860 = vadd.s32 %v3855, %v3857
        %vm3861 = vc.u32 %v3855, %v3857
        %v3862 = vadd.s32 %v3858, 1
        %v3863 = vsel %vm3861, %v3862, %v3858
        %v3864 = vadd.s32 %v3859, %v3863
        %v3865 = vadd.s32 %v3864, 536870912
        %v3866 = vshrl.u32 %v3865, 30
        %v3867 = vshll.u32 %v3866, 30
        %v3868 = vsub.s32 %v3864, %v3867
        %vm3869 = vcmp.lt.s32.totalorder %v3868, 0
        %v3870 = vsub.s32 0, %v3868
        %v3871 = vsel %vm3869, %v3870, %v3868
        %v3872 = vclz %v3871
        %v3873 = vsub.s32 %v3872, 2
        %vm3874 = vcmp.gt.s32.totalorder 0, %v3873
        %v3875 = vsel %vm3874, 0, %v3873
        %v3876 = vsub.s32 32, %v3875
        %v3877 = vshll.u32 %v3868, %v3875
        %v3878 = vshrl.u32 %v3860, %v3876
        %v3879 = vor.u32 %v3877, %v3878
        %v3880 = vsub.s32 4294967266, %v3875
        %v3881 = vadd.s32 %v3880, 127
        %v3882 = vshll.u32 %v3881, 23
        %v3883 = vor.u32 4788187, %v3882
        %v3884 = vand.u32 2147483647, %v3883
        %v3886 = vcvt.s32.f32 %v3879
        %v3887 = vmul.f32 %v3886, %v3884
        %v3888 = vxor.u32 %v3887, 2147483648
        %v3889 = vsel %vm3806, %v3888, %v3887
        %v3890 = vsub.s32 4, %v3866
        %v3891 = vsel %vm3806, %v3890, %v3866
        %v3892 = vsel %vm3805, %v3803, %v3889
        %v3893 = vsel %vm3805, 0, %v3891
        %v3894 = vcosq.f32.pop %v3892
        %v3895 = vsinq.f32.pop %v3892
        %vm3896 = vweird.f32 %v3803
        %v3897 = vadd.s32 %v3893, 3
        %v3898 = vand.u32 %v3897, 3
        %vm3899 = vcmp.lt.s32.totalorder %v3898, 2
        %vm3900 = vcmp.eq.s32.totalorder %v3898, 0
        %v3901 = vxor.u32 %v3895, 2147483648
        %v3902 = vsel %vm3900, %v3894, %v3901
        %vm3903 = vcmp.eq.s32.totalorder %v3898, 2
        %v3904 = vxor.u32 %v3894, 2147483648
        %v3905 = vsel %vm3903, %v3904, %v3895
        %v3906 = vsel %vm3899, %v3902, %v3905
        %v3907 = vsel %vm3896, nan, %v3906
        %s3908 = scalar_lea.vmem %s172, 216 [#allocation5]
        %3909 = vst.msk [vmem:[%s3908] sm:$0xff] %vm262, %v3907
        %v3910 = vand.u32 2147483647, %v3803
        %vm3911 = vcmp.le.f32.partialorder %v3910, 0.7853982
        %vm3912 = vcmp.lt.s32.totalorder %v3803, 0
        %v3913 = vand.u32 %v3803, 2139095040
        %v3914 = vshrl.u32 %v3913, 23
        %v3915 = vsub.s32 %v3914, 127
        %v3916 = vand.u32 2147483647, %v3803
        %v3917 = vand.u32 %v3916, 8388607
        %v3918 = vor.u32 %v3917, 8388608
        %v3919 = vsub.s32 0, %v3918
        %v3920 = vadd.s32 %v3915, 1
        %vm3921 = vcmp.gt.s32.totalorder %v3920, 0
        %v3922 = vsel %vm3921, %v3920, 0
        %v3923 = vshrl.u32 %v3922, 5
        %v3924 = vand.u32 %v3922, 31
        %v3925 = vsub.s32 32, %v3924
        %v3926 = vshrl.u32 683565275, %v3925
        %v3927 = vshll.u32 683565275, %v3924
        %v3928 = vshrl.u32 2475754826, %v3925
        %v3929 = vor.u32 %v3927, %v3928
        %v3930 = vshll.u32 2475754826, %v3924
        %v3931 = vshrl.u32 2131351028, %v3925
        %v3932 = vor.u32 %v3930, %v3931
        %v3933 = vshll.u32 2131351028, %v3924
        %v3934 = vshrl.u32 2102212464, %v3925
        %v3935 = vor.u32 %v3933, %v3934
        %v3936 = vshll.u32 2102212464, %v3924
        %v3937 = vshrl.u32 920167782, %v3925
        %v3938 = vor.u32 %v3936, %v3937
        %v3939 = vshll.u32 920167782, %v3924
        %v3940 = vshrl.u32 1326507024, %v3925
        %v3941 = vor.u32 %v3939, %v3940
        %vm3942 = vcmp.lt.s32.totalorder %v3923, 1
        %vm3943 = vcmp.lt.s32.totalorder %v3923, 2
        %vm3944 = vcmp.lt.s32.totalorder %v3923, 3
        %vm3945 = vcmp.lt.s32.totalorder %v3923, 4
        %v3946 = vsel %vm3942, %v3926, %v3929
        %v3947 = vsel %vm3945, %v3935, 2102212464
        %v3948 = vsel %vm3944, %v3932, %v3947
        %v3949 = vsel %vm3943, %v3946, %v3948
        %v3950 = vsel %vm3942, %v3929, %v3932
        %v3951 = vsel %vm3945, %v3938, 920167782
        %v3952 = vsel %vm3944, %v3935, %v3951
        %v3953 = vsel %vm3943, %v3950, %v3952
        %v3954 = vsel %vm3942, %v3932, %v3935
        %v3955 = vsel %vm3945, %v3941, 1326507024
        %v3956 = vsel %vm3944, %v3938, %v3955
        %v3957 = vsel %vm3943, %v3954, %v3956
        %v3958 = vshll.u32 %v3918, 8
        %v3959 = vmul.u32.u64.compose %v3958, %v3957
        %v3960 = vextract.low.u32 %v3959
        %v3961 = vextract.high.u32 %v3959
        %v3962 = vmul.u32.u64.compose %v3958, %v3953
        %v3963 = vextract.low.u32 %v3962
        %v3964 = vextract.high.u32 %v3962
        %v3965 = vmul.u32 %v3958, %v3949
        %v3966 = vadd.s32 %v3961, %v3963
        %vm3967 = vc.u32 %v3961, %v3963
        %v3968 = vadd.s32 %v3964, 1
        %v3969 = vsel %vm3967, %v3968, %v3964
        %v3970 = vadd.s32 %v3965, %v3969
        %v3971 = vadd.s32 %v3970, 536870912
        %v3972 = vshrl.u32 %v3971, 30
        %v3973 = vshll.u32 %v3972, 30
        %v3974 = vsub.s32 %v3970, %v3973
        %vm3975 = vcmp.lt.s32.totalorder %v3974, 0
        %v3976 = vsub.s32 0, %v3974
        %v3977 = vsel %vm3975, %v3976, %v3974
        %v3978 = vclz %v3977
        %v3979 = vsub.s32 %v3978, 2
        %vm3980 = vcmp.gt.s32.totalorder 0, %v3979
        %v3981 = vsel %vm3980, 0, %v3979
        %v3982 = vsub.s32 32, %v3981
        %v3983 = vshll.u32 %v3974, %v3981
        %v3984 = vshrl.u32 %v3966, %v3982
        %v3985 = vor.u32 %v3983, %v3984
        %v3986 = vsub.s32 4294967266, %v3981
        %v3987 = vadd.s32 %v3986, 127
        %v3988 = vshll.u32 %v3987, 23
        %v3989 = vor.u32 4788187, %v3988
        %v3990 = vand.u32 2147483647, %v3989
        %v3992 = vcvt.s32.f32 %v3985
        %v3993 = vmul.f32 %v3992, %v3990
        %v3994 = vxor.u32 %v3993, 2147483648
        %v3995 = vsel %vm3912, %v3994, %v3993
        %v3996 = vsub.s32 4, %v3972
        %v3997 = vsel %vm3912, %v3996, %v3972
        %v3998 = vsel %vm3911, %v3803, %v3995
        %v3999 = vsel %vm3911, 0, %v3997
        %v4000 = vcosq.f32.pop %v3998
        %v4001 = vsinq.f32.pop %v3998
        %vm4002 = vweird.f32 %v3803
        %v4003 = vand.u32 %v3999, 3
        %vm4004 = vcmp.lt.s32.totalorder %v4003, 2
        %vm4005 = vcmp.eq.s32.totalorder %v4003, 0
        %v4006 = vxor.u32 %v4001, 2147483648
        %v4007 = vsel %vm4005, %v4000, %v4006
        %vm4008 = vcmp.eq.s32.totalorder %v4003, 2
        %v4009 = vxor.u32 %v4000, 2147483648
        %v4010 = vsel %vm4008, %v4009, %v4001
        %v4011 = vsel %vm4004, %v4007, %v4010
        %v4012 = vsel %vm4002, nan, %v4011
        %s4013 = scalar_lea.vmem %s172, 304 [#allocation5]
        %4014 = vst.msk [vmem:[%s4013] sm:$0xff] %vm262, %v4012
        %v4015 = vmul.f32 %v403, 0.006579332
        %v4016 = vand.u32 2147483647, %v4015
        %vm4017 = vcmp.le.f32.partialorder %v4016, 0.7853982
        %vm4018 = vcmp.lt.s32.totalorder %v4015, 0
        %v4019 = vand.u32 %v4015, 2139095040
        %v4020 = vshrl.u32 %v4019, 23
        %v4021 = vsub.s32 %v4020, 127
        %v4022 = vand.u32 2147483647, %v4015
        %v4023 = vand.u32 %v4022, 8388607
        %v4024 = vor.u32 %v4023, 8388608
        %v4025 = vsub.s32 0, %v4024
        %v4026 = vadd.s32 %v4021, 1
        %vm4027 = vcmp.gt.s32.totalorder %v4026, 0
        %v4028 = vsel %vm4027, %v4026, 0
        %v4029 = vshrl.u32 %v4028, 5
        %v4030 = vand.u32 %v4028, 31
        %v4031 = vsub.s32 32, %v4030
        %v4032 = vshrl.u32 683565275, %v4031
        %v4033 = vshll.u32 683565275, %v4030
        %v4034 = vshrl.u32 2475754826, %v4031
        %v4035 = vor.u32 %v4033, %v4034
        %v4036 = vshll.u32 2475754826, %v4030
        %v4037 = vshrl.u32 2131351028, %v4031
        %v4038 = vor.u32 %v4036, %v4037
        %v4039 = vshll.u32 2131351028, %v4030
        %v4040 = vshrl.u32 2102212464, %v4031
        %v4041 = vor.u32 %v4039, %v4040
        %v4042 = vshll.u32 2102212464, %v4030
        %v4043 = vshrl.u32 920167782, %v4031
        %v4044 = vor.u32 %v4042, %v4043
        %v4045 = vshll.u32 920167782, %v4030
        %v4046 = vshrl.u32 1326507024, %v4031
        %v4047 = vor.u32 %v4045, %v4046
        %vm4048 = vcmp.lt.s32.totalorder %v4029, 1
        %vm4049 = vcmp.lt.s32.totalorder %v4029, 2
        %vm4050 = vcmp.lt.s32.totalorder %v4029, 3
        %vm4051 = vcmp.lt.s32.totalorder %v4029, 4
        %v4052 = vsel %vm4048, %v4032, %v4035
        %v4053 = vsel %vm4051, %v4041, 2102212464
        %v4054 = vsel %vm4050, %v4038, %v4053
        %v4055 = vsel %vm4049, %v4052, %v4054
        %v4056 = vsel %vm4048, %v4035, %v4038
        %v4057 = vsel %vm4051, %v4044, 920167782
        %v4058 = vsel %vm4050, %v4041, %v4057
        %v4059 = vsel %vm4049, %v4056, %v4058
        %v4060 = vsel %vm4048, %v4038, %v4041
        %v4061 = vsel %vm4051, %v4047, 1326507024
        %v4062 = vsel %vm4050, %v4044, %v4061
        %v4063 = vsel %vm4049, %v4060, %v4062
        %v4064 = vshll.u32 %v4024, 8
        %v4065 = vmul.u32.u64.compose %v4064, %v4063
        %v4066 = vextract.low.u32 %v4065
        %v4067 = vextract.high.u32 %v4065
        %v4068 = vmul.u32.u64.compose %v4064, %v4059
        %v4069 = vextract.low.u32 %v4068
        %v4070 = vextract.high.u32 %v4068
        %v4071 = vmul.u32 %v4064, %v4055
        %v4072 = vadd.s32 %v4067, %v4069
        %vm4073 = vc.u32 %v4067, %v4069
        %v4074 = vadd.s32 %v4070, 1
        %v4075 = vsel %vm4073, %v4074, %v4070
        %v4076 = vadd.s32 %v4071, %v4075
        %v4077 = vadd.s32 %v4076, 536870912
        %v4078 = vshrl.u32 %v4077, 30
        %v4079 = vshll.u32 %v4078, 30
        %v4080 = vsub.s32 %v4076, %v4079
        %vm4081 = vcmp.lt.s32.totalorder %v4080, 0
        %v4082 = vsub.s32 0, %v4080
        %v4083 = vsel %vm4081, %v4082, %v4080
        %v4084 = vclz %v4083
        %v4085 = vsub.s32 %v4084, 2
        %vm4086 = vcmp.gt.s32.totalorder 0, %v4085
        %v4087 = vsel %vm4086, 0, %v4085
        %v4088 = vsub.s32 32, %v4087
        %v4089 = vshll.u32 %v4080, %v4087
        %v4090 = vshrl.u32 %v4072, %v4088
        %v4091 = vor.u32 %v4089, %v4090
        %v4092 = vsub.s32 4294967266, %v4087
        %v4093 = vadd.s32 %v4092, 127
        %v4094 = vshll.u32 %v4093, 23
        %v4095 = vor.u32 4788187, %v4094
        %v4096 = vand.u32 2147483647, %v4095
        %v4098 = vcvt.s32.f32 %v4091
        %v4099 = vmul.f32 %v4098, %v4096
        %v4100 = vxor.u32 %v4099, 2147483648
        %v4101 = vsel %vm4018, %v4100, %v4099
        %v4102 = vsub.s32 4, %v4078
        %v4103 = vsel %vm4018, %v4102, %v4078
        %v4104 = vsel %vm4017, %v4015, %v4101
        %v4105 = vsel %vm4017, 0, %v4103
        %v4106 = vcosq.f32.pop %v4104
        %v4107 = vsinq.f32.pop %v4104
        %vm4108 = vweird.f32 %v4015
        %v4109 = vadd.s32 %v4105, 3
        %v4110 = vand.u32 %v4109, 3
        %vm4111 = vcmp.lt.s32.totalorder %v4110, 2
        %vm4112 = vcmp.eq.s32.totalorder %v4110, 0
        %v4113 = vxor.u32 %v4107, 2147483648
        %v4114 = vsel %vm4112, %v4106, %v4113
        %vm4115 = vcmp.eq.s32.totalorder %v4110, 2
        %v4116 = vxor.u32 %v4106, 2147483648
        %v4117 = vsel %vm4115, %v4116, %v4107
        %v4118 = vsel %vm4111, %v4114, %v4117
        %v4119 = vsel %vm4108, nan, %v4118
        %s4120 = scalar_lea.vmem %s172, 224 [#allocation5]
        %4121 = vst.msk [vmem:[%s4120] sm:$0xff] %vm262, %v4119
        %v4122 = vand.u32 2147483647, %v4015
        %vm4123 = vcmp.le.f32.partialorder %v4122, 0.7853982
        %vm4124 = vcmp.lt.s32.totalorder %v4015, 0
        %v4125 = vand.u32 %v4015, 2139095040
        %v4126 = vshrl.u32 %v4125, 23
        %v4127 = vsub.s32 %v4126, 127
        %v4128 = vand.u32 2147483647, %v4015
        %v4129 = vand.u32 %v4128, 8388607
        %v4130 = vor.u32 %v4129, 8388608
        %v4131 = vsub.s32 0, %v4130
        %v4132 = vadd.s32 %v4127, 1
        %vm4133 = vcmp.gt.s32.totalorder %v4132, 0
        %v4134 = vsel %vm4133, %v4132, 0
        %v4135 = vshrl.u32 %v4134, 5
        %v4136 = vand.u32 %v4134, 31
        %v4137 = vsub.s32 32, %v4136
        %v4138 = vshrl.u32 683565275, %v4137
        %v4139 = vshll.u32 683565275, %v4136
        %v4140 = vshrl.u32 2475754826, %v4137
        %v4141 = vor.u32 %v4139, %v4140
        %v4142 = vshll.u32 2475754826, %v4136
        %v4143 = vshrl.u32 2131351028, %v4137
        %v4144 = vor.u32 %v4142, %v4143
        %v4145 = vshll.u32 2131351028, %v4136
        %v4146 = vshrl.u32 2102212464, %v4137
        %v4147 = vor.u32 %v4145, %v4146
        %v4148 = vshll.u32 2102212464, %v4136
        %v4149 = vshrl.u32 920167782, %v4137
        %v4150 = vor.u32 %v4148, %v4149
        %v4151 = vshll.u32 920167782, %v4136
        %v4152 = vshrl.u32 1326507024, %v4137
        %v4153 = vor.u32 %v4151, %v4152
        %vm4154 = vcmp.lt.s32.totalorder %v4135, 1
        %vm4155 = vcmp.lt.s32.totalorder %v4135, 2
        %vm4156 = vcmp.lt.s32.totalorder %v4135, 3
        %vm4157 = vcmp.lt.s32.totalorder %v4135, 4
        %v4158 = vsel %vm4154, %v4138, %v4141
        %v4159 = vsel %vm4157, %v4147, 2102212464
        %v4160 = vsel %vm4156, %v4144, %v4159
        %v4161 = vsel %vm4155, %v4158, %v4160
        %v4162 = vsel %vm4154, %v4141, %v4144
        %v4163 = vsel %vm4157, %v4150, 920167782
        %v4164 = vsel %vm4156, %v4147, %v4163
        %v4165 = vsel %vm4155, %v4162, %v4164
        %v4166 = vsel %vm4154, %v4144, %v4147
        %v4167 = vsel %vm4157, %v4153, 1326507024
        %v4168 = vsel %vm4156, %v4150, %v4167
        %v4169 = vsel %vm4155, %v4166, %v4168
        %v4170 = vshll.u32 %v4130, 8
        %v4171 = vmul.u32.u64.compose %v4170, %v4169
        %v4172 = vextract.low.u32 %v4171
        %v4173 = vextract.high.u32 %v4171
        %v4174 = vmul.u32.u64.compose %v4170, %v4165
        %v4175 = vextract.low.u32 %v4174
        %v4176 = vextract.high.u32 %v4174
        %v4177 = vmul.u32 %v4170, %v4161
        %v4178 = vadd.s32 %v4173, %v4175
        %vm4179 = vc.u32 %v4173, %v4175
        %v4180 = vadd.s32 %v4176, 1
        %v4181 = vsel %vm4179, %v4180, %v4176
        %v4182 = vadd.s32 %v4177, %v4181
        %v4183 = vadd.s32 %v4182, 536870912
        %v4184 = vshrl.u32 %v4183, 30
        %v4185 = vshll.u32 %v4184, 30
        %v4186 = vsub.s32 %v4182, %v4185
        %vm4187 = vcmp.lt.s32.totalorder %v4186, 0
        %v4188 = vsub.s32 0, %v4186
        %v4189 = vsel %vm4187, %v4188, %v4186
        %v4190 = vclz %v4189
        %v4191 = vsub.s32 %v4190, 2
        %vm4192 = vcmp.gt.s32.totalorder 0, %v4191
        %v4193 = vsel %vm4192, 0, %v4191
        %v4194 = vsub.s32 32, %v4193
        %v4195 = vshll.u32 %v4186, %v4193
        %v4196 = vshrl.u32 %v4178, %v4194
        %v4197 = vor.u32 %v4195, %v4196
        %v4198 = vsub.s32 4294967266, %v4193
        %v4199 = vadd.s32 %v4198, 127
        %v4200 = vshll.u32 %v4199, 23
        %v4201 = vor.u32 4788187, %v4200
        %v4202 = vand.u32 2147483647, %v4201
        %v4204 = vcvt.s32.f32 %v4197
        %v4205 = vmul.f32 %v4204, %v4202
        %v4206 = vxor.u32 %v4205, 2147483648
        %v4207 = vsel %vm4124, %v4206, %v4205
        %v4208 = vsub.s32 4, %v4184
        %v4209 = vsel %vm4124, %v4208, %v4184
        %v4210 = vsel %vm4123, %v4015, %v4207
        %v4211 = vsel %vm4123, 0, %v4209
        %v4212 = vcosq.f32.pop %v4210
        %v4213 = vsinq.f32.pop %v4210
        %vm4214 = vweird.f32 %v4015
        %v4215 = vand.u32 %v4211, 3
        %vm4216 = vcmp.lt.s32.totalorder %v4215, 2
        %vm4217 = vcmp.eq.s32.totalorder %v4215, 0
        %v4218 = vxor.u32 %v4213, 2147483648
        %v4219 = vsel %vm4217, %v4212, %v4218
        %vm4220 = vcmp.eq.s32.totalorder %v4215, 2
        %v4221 = vxor.u32 %v4212, 2147483648
        %v4222 = vsel %vm4220, %v4221, %v4213
        %v4223 = vsel %vm4216, %v4219, %v4222
        %v4224 = vsel %vm4214, nan, %v4223
        %s4225 = scalar_lea.vmem %s172, 312 [#allocation5]
        %4226 = vst.msk [vmem:[%s4225] sm:$0xff] %vm262, %v4224
        %v4227 = vmul.f32 %v403, 0.002848036
        %v4228 = vand.u32 2147483647, %v4227
        %vm4229 = vcmp.le.f32.partialorder %v4228, 0.7853982
        %vm4230 = vcmp.lt.s32.totalorder %v4227, 0
        %v4231 = vand.u32 %v4227, 2139095040
        %v4232 = vshrl.u32 %v4231, 23
        %v4233 = vsub.s32 %v4232, 127
        %v4234 = vand.u32 2147483647, %v4227
        %v4235 = vand.u32 %v4234, 8388607
        %v4236 = vor.u32 %v4235, 8388608
        %v4237 = vsub.s32 0, %v4236
        %v4238 = vadd.s32 %v4233, 1
        %vm4239 = vcmp.gt.s32.totalorder %v4238, 0
        %v4240 = vsel %vm4239, %v4238, 0
        %v4241 = vshrl.u32 %v4240, 5
        %v4242 = vand.u32 %v4240, 31
        %v4243 = vsub.s32 32, %v4242
        %v4244 = vshrl.u32 683565275, %v4243
        %v4245 = vshll.u32 683565275, %v4242
        %v4246 = vshrl.u32 2475754826, %v4243
        %v4247 = vor.u32 %v4245, %v4246
        %v4248 = vshll.u32 2475754826, %v4242
        %v4249 = vshrl.u32 2131351028, %v4243
        %v4250 = vor.u32 %v4248, %v4249
        %v4251 = vshll.u32 2131351028, %v4242
        %v4252 = vshrl.u32 2102212464, %v4243
        %v4253 = vor.u32 %v4251, %v4252
        %v4254 = vshll.u32 2102212464, %v4242
        %v4255 = vshrl.u32 920167782, %v4243
        %v4256 = vor.u32 %v4254, %v4255
        %v4257 = vshll.u32 920167782, %v4242
        %v4258 = vshrl.u32 1326507024, %v4243
        %v4259 = vor.u32 %v4257, %v4258
        %vm4260 = vcmp.lt.s32.totalorder %v4241, 1
        %vm4261 = vcmp.lt.s32.totalorder %v4241, 2
        %vm4262 = vcmp.lt.s32.totalorder %v4241, 3
        %vm4263 = vcmp.lt.s32.totalorder %v4241, 4
        %v4264 = vsel %vm4260, %v4244, %v4247
        %v4265 = vsel %vm4263, %v4253, 2102212464
        %v4266 = vsel %vm4262, %v4250, %v4265
        %v4267 = vsel %vm4261, %v4264, %v4266
        %v4268 = vsel %vm4260, %v4247, %v4250
        %v4269 = vsel %vm4263, %v4256, 920167782
        %v4270 = vsel %vm4262, %v4253, %v4269
        %v4271 = vsel %vm4261, %v4268, %v4270
        %v4272 = vsel %vm4260, %v4250, %v4253
        %v4273 = vsel %vm4263, %v4259, 1326507024
        %v4274 = vsel %vm4262, %v4256, %v4273
        %v4275 = vsel %vm4261, %v4272, %v4274
        %v4276 = vshll.u32 %v4236, 8
        %v4277 = vmul.u32.u64.compose %v4276, %v4275
        %v4278 = vextract.low.u32 %v4277
        %v4279 = vextract.high.u32 %v4277
        %v4280 = vmul.u32.u64.compose %v4276, %v4271
        %v4281 = vextract.low.u32 %v4280
        %v4282 = vextract.high.u32 %v4280
        %v4283 = vmul.u32 %v4276, %v4267
        %v4284 = vadd.s32 %v4279, %v4281
        %vm4285 = vc.u32 %v4279, %v4281
        %v4286 = vadd.s32 %v4282, 1
        %v4287 = vsel %vm4285, %v4286, %v4282
        %v4288 = vadd.s32 %v4283, %v4287
        %v4289 = vadd.s32 %v4288, 536870912
        %v4290 = vshrl.u32 %v4289, 30
        %v4291 = vshll.u32 %v4290, 30
        %v4292 = vsub.s32 %v4288, %v4291
        %vm4293 = vcmp.lt.s32.totalorder %v4292, 0
        %v4294 = vsub.s32 0, %v4292
        %v4295 = vsel %vm4293, %v4294, %v4292
        %v4296 = vclz %v4295
        %v4297 = vsub.s32 %v4296, 2
        %vm4298 = vcmp.gt.s32.totalorder 0, %v4297
        %v4299 = vsel %vm4298, 0, %v4297
        %v4300 = vsub.s32 32, %v4299
        %v4301 = vshll.u32 %v4292, %v4299
        %v4302 = vshrl.u32 %v4284, %v4300
        %v4303 = vor.u32 %v4301, %v4302
        %v4304 = vsub.s32 4294967266, %v4299
        %v4305 = vadd.s32 %v4304, 127
        %v4306 = vshll.u32 %v4305, 23
        %v4307 = vor.u32 4788187, %v4306
        %v4308 = vand.u32 2147483647, %v4307
        %v4310 = vcvt.s32.f32 %v4303
        %v4311 = vmul.f32 %v4310, %v4308
        %v4312 = vxor.u32 %v4311, 2147483648
        %v4313 = vsel %vm4230, %v4312, %v4311
        %v4314 = vsub.s32 4, %v4290
        %v4315 = vsel %vm4230, %v4314, %v4290
        %v4316 = vsel %vm4229, %v4227, %v4313
        %v4317 = vsel %vm4229, 0, %v4315
        %v4318 = vcosq.f32.pop %v4316
        %v4319 = vsinq.f32.pop %v4316
        %vm4320 = vweird.f32 %v4227
        %v4321 = vadd.s32 %v4317, 3
        %v4322 = vand.u32 %v4321, 3
        %vm4323 = vcmp.lt.s32.totalorder %v4322, 2
        %vm4324 = vcmp.eq.s32.totalorder %v4322, 0
        %v4325 = vxor.u32 %v4319, 2147483648
        %v4326 = vsel %vm4324, %v4318, %v4325
        %vm4327 = vcmp.eq.s32.totalorder %v4322, 2
        %v4328 = vxor.u32 %v4318, 2147483648
        %v4329 = vsel %vm4327, %v4328, %v4319
        %v4330 = vsel %vm4323, %v4326, %v4329
        %v4331 = vsel %vm4320, nan, %v4330
        %s4332 = scalar_lea.vmem %s172, 232 [#allocation5]
        %4333 = vst.msk [vmem:[%s4332] sm:$0xff] %vm262, %v4331
        %v4334 = vand.u32 2147483647, %v4227
        %vm4335 = vcmp.le.f32.partialorder %v4334, 0.7853982
        %vm4336 = vcmp.lt.s32.totalorder %v4227, 0
        %v4337 = vand.u32 %v4227, 2139095040
        %v4338 = vshrl.u32 %v4337, 23
        %v4339 = vsub.s32 %v4338, 127
        %v4340 = vand.u32 2147483647, %v4227
        %v4341 = vand.u32 %v4340, 8388607
        %v4342 = vor.u32 %v4341, 8388608
        %v4343 = vsub.s32 0, %v4342
        %v4344 = vadd.s32 %v4339, 1
        %vm4345 = vcmp.gt.s32.totalorder %v4344, 0
        %v4346 = vsel %vm4345, %v4344, 0
        %v4347 = vshrl.u32 %v4346, 5
        %v4348 = vand.u32 %v4346, 31
        %v4349 = vsub.s32 32, %v4348
        %v4350 = vshrl.u32 683565275, %v4349
        %v4351 = vshll.u32 683565275, %v4348
        %v4352 = vshrl.u32 2475754826, %v4349
        %v4353 = vor.u32 %v4351, %v4352
        %v4354 = vshll.u32 2475754826, %v4348
        %v4355 = vshrl.u32 2131351028, %v4349
        %v4356 = vor.u32 %v4354, %v4355
        %v4357 = vshll.u32 2131351028, %v4348
        %v4358 = vshrl.u32 2102212464, %v4349
        %v4359 = vor.u32 %v4357, %v4358
        %v4360 = vshll.u32 2102212464, %v4348
        %v4361 = vshrl.u32 920167782, %v4349
        %v4362 = vor.u32 %v4360, %v4361
        %v4363 = vshll.u32 920167782, %v4348
        %v4364 = vshrl.u32 1326507024, %v4349
        %v4365 = vor.u32 %v4363, %v4364
        %vm4366 = vcmp.lt.s32.totalorder %v4347, 1
        %vm4367 = vcmp.lt.s32.totalorder %v4347, 2
        %vm4368 = vcmp.lt.s32.totalorder %v4347, 3
        %vm4369 = vcmp.lt.s32.totalorder %v4347, 4
        %v4370 = vsel %vm4366, %v4350, %v4353
        %v4371 = vsel %vm4369, %v4359, 2102212464
        %v4372 = vsel %vm4368, %v4356, %v4371
        %v4373 = vsel %vm4367, %v4370, %v4372
        %v4374 = vsel %vm4366, %v4353, %v4356
        %v4375 = vsel %vm4369, %v4362, 920167782
        %v4376 = vsel %vm4368, %v4359, %v4375
        %v4377 = vsel %vm4367, %v4374, %v4376
        %v4378 = vsel %vm4366, %v4356, %v4359
        %v4379 = vsel %vm4369, %v4365, 1326507024
        %v4380 = vsel %vm4368, %v4362, %v4379
        %v4381 = vsel %vm4367, %v4378, %v4380
        %v4382 = vshll.u32 %v4342, 8
        %v4383 = vmul.u32.u64.compose %v4382, %v4381
        %v4384 = vextract.low.u32 %v4383
        %v4385 = vextract.high.u32 %v4383
        %v4386 = vmul.u32.u64.compose %v4382, %v4377
        %v4387 = vextract.low.u32 %v4386
        %v4388 = vextract.high.u32 %v4386
        %v4389 = vmul.u32 %v4382, %v4373
        %v4390 = vadd.s32 %v4385, %v4387
        %vm4391 = vc.u32 %v4385, %v4387
        %v4392 = vadd.s32 %v4388, 1
        %v4393 = vsel %vm4391, %v4392, %v4388
        %v4394 = vadd.s32 %v4389, %v4393
        %v4395 = vadd.s32 %v4394, 536870912
        %v4396 = vshrl.u32 %v4395, 30
        %v4397 = vshll.u32 %v4396, 30
        %v4398 = vsub.s32 %v4394, %v4397
        %vm4399 = vcmp.lt.s32.totalorder %v4398, 0
        %v4400 = vsub.s32 0, %v4398
        %v4401 = vsel %vm4399, %v4400, %v4398
        %v4402 = vclz %v4401
        %v4403 = vsub.s32 %v4402, 2
        %vm4404 = vcmp.gt.s32.totalorder 0, %v4403
        %v4405 = vsel %vm4404, 0, %v4403
        %v4406 = vsub.s32 32, %v4405
        %v4407 = vshll.u32 %v4398, %v4405
        %v4408 = vshrl.u32 %v4390, %v4406
        %v4409 = vor.u32 %v4407, %v4408
        %v4410 = vsub.s32 4294967266, %v4405
        %v4411 = vadd.s32 %v4410, 127
        %v4412 = vshll.u32 %v4411, 23
        %v4413 = vor.u32 4788187, %v4412
        %v4414 = vand.u32 2147483647, %v4413
        %v4416 = vcvt.s32.f32 %v4409
        %v4417 = vmul.f32 %v4416, %v4414
        %v4418 = vxor.u32 %v4417, 2147483648
        %v4419 = vsel %vm4336, %v4418, %v4417
        %v4420 = vsub.s32 4, %v4396
        %v4421 = vsel %vm4336, %v4420, %v4396
        %v4422 = vsel %vm4335, %v4227, %v4419
        %v4423 = vsel %vm4335, 0, %v4421
        %v4424 = vcosq.f32.pop %v4422
        %v4425 = vsinq.f32.pop %v4422
        %vm4426 = vweird.f32 %v4227
        %v4427 = vand.u32 %v4423, 3
        %vm4428 = vcmp.lt.s32.totalorder %v4427, 2
        %vm4429 = vcmp.eq.s32.totalorder %v4427, 0
        %v4430 = vxor.u32 %v4425, 2147483648
        %v4431 = vsel %vm4429, %v4424, %v4430
        %vm4432 = vcmp.eq.s32.totalorder %v4427, 2
        %v4433 = vxor.u32 %v4424, 2147483648
        %v4434 = vsel %vm4432, %v4433, %v4425
        %v4435 = vsel %vm4428, %v4431, %v4434
        %v4436 = vsel %vm4426, nan, %v4435
        %s4437 = scalar_lea.vmem %s172, 320 [#allocation5]
        %4438 = vst.msk [vmem:[%s4437] sm:$0xff] %vm262, %v4436
        %v4439 = vmul.f32 %v403, 0.0012328468
        %v4440 = vand.u32 2147483647, %v4439
        %vm4441 = vcmp.le.f32.partialorder %v4440, 0.7853982
        %vm4442 = vcmp.lt.s32.totalorder %v4439, 0
        %v4443 = vand.u32 %v4439, 2139095040
        %v4444 = vshrl.u32 %v4443, 23
        %v4445 = vsub.s32 %v4444, 127
        %v4446 = vand.u32 2147483647, %v4439
        %v4447 = vand.u32 %v4446, 8388607
        %v4448 = vor.u32 %v4447, 8388608
        %v4449 = vsub.s32 0, %v4448
        %v4450 = vadd.s32 %v4445, 1
        %vm4451 = vcmp.gt.s32.totalorder %v4450, 0
        %v4452 = vsel %vm4451, %v4450, 0
        %v4453 = vshrl.u32 %v4452, 5
        %v4454 = vand.u32 %v4452, 31
        %v4455 = vsub.s32 32, %v4454
        %v4456 = vshrl.u32 683565275, %v4455
        %v4457 = vshll.u32 683565275, %v4454
        %v4458 = vshrl.u32 2475754826, %v4455
        %v4459 = vor.u32 %v4457, %v4458
        %v4460 = vshll.u32 2475754826, %v4454
        %v4461 = vshrl.u32 2131351028, %v4455
        %v4462 = vor.u32 %v4460, %v4461
        %v4463 = vshll.u32 2131351028, %v4454
        %v4464 = vshrl.u32 2102212464, %v4455
        %v4465 = vor.u32 %v4463, %v4464
        %v4466 = vshll.u32 2102212464, %v4454
        %v4467 = vshrl.u32 920167782, %v4455
        %v4468 = vor.u32 %v4466, %v4467
        %v4469 = vshll.u32 920167782, %v4454
        %v4470 = vshrl.u32 1326507024, %v4455
        %v4471 = vor.u32 %v4469, %v4470
        %vm4472 = vcmp.lt.s32.totalorder %v4453, 1
        %vm4473 = vcmp.lt.s32.totalorder %v4453, 2
        %vm4474 = vcmp.lt.s32.totalorder %v4453, 3
        %vm4475 = vcmp.lt.s32.totalorder %v4453, 4
        %v4476 = vsel %vm4472, %v4456, %v4459
        %v4477 = vsel %vm4475, %v4465, 2102212464
        %v4478 = vsel %vm4474, %v4462, %v4477
        %v4479 = vsel %vm4473, %v4476, %v4478
        %v4480 = vsel %vm4472, %v4459, %v4462
        %v4481 = vsel %vm4475, %v4468, 920167782
        %v4482 = vsel %vm4474, %v4465, %v4481
        %v4483 = vsel %vm4473, %v4480, %v4482
        %v4484 = vsel %vm4472, %v4462, %v4465
        %v4485 = vsel %vm4475, %v4471, 1326507024
        %v4486 = vsel %vm4474, %v4468, %v4485
        %v4487 = vsel %vm4473, %v4484, %v4486
        %v4488 = vshll.u32 %v4448, 8
        %v4489 = vmul.u32.u64.compose %v4488, %v4487
        %v4490 = vextract.low.u32 %v4489
        %v4491 = vextract.high.u32 %v4489
        %v4492 = vmul.u32.u64.compose %v4488, %v4483
        %v4493 = vextract.low.u32 %v4492
        %v4494 = vextract.high.u32 %v4492
        %v4495 = vmul.u32 %v4488, %v4479
        %v4496 = vadd.s32 %v4491, %v4493
        %vm4497 = vc.u32 %v4491, %v4493
        %v4498 = vadd.s32 %v4494, 1
        %v4499 = vsel %vm4497, %v4498, %v4494
        %v4500 = vadd.s32 %v4495, %v4499
        %v4501 = vadd.s32 %v4500, 536870912
        %v4502 = vshrl.u32 %v4501, 30
        %v4503 = vshll.u32 %v4502, 30
        %v4504 = vsub.s32 %v4500, %v4503
        %vm4505 = vcmp.lt.s32.totalorder %v4504, 0
        %v4506 = vsub.s32 0, %v4504
        %v4507 = vsel %vm4505, %v4506, %v4504
        %v4508 = vclz %v4507
        %v4509 = vsub.s32 %v4508, 2
        %vm4510 = vcmp.gt.s32.totalorder 0, %v4509
        %v4511 = vsel %vm4510, 0, %v4509
        %v4512 = vsub.s32 32, %v4511
        %v4513 = vshll.u32 %v4504, %v4511
        %v4514 = vshrl.u32 %v4496, %v4512
        %v4515 = vor.u32 %v4513, %v4514
        %v4516 = vsub.s32 4294967266, %v4511
        %v4517 = vadd.s32 %v4516, 127
        %v4518 = vshll.u32 %v4517, 23
        %v4519 = vor.u32 4788187, %v4518
        %v4520 = vand.u32 2147483647, %v4519
        %v4522 = vcvt.s32.f32 %v4515
        %v4523 = vmul.f32 %v4522, %v4520
        %v4524 = vxor.u32 %v4523, 2147483648
        %v4525 = vsel %vm4442, %v4524, %v4523
        %v4526 = vsub.s32 4, %v4502
        %v4527 = vsel %vm4442, %v4526, %v4502
        %v4528 = vsel %vm4441, %v4439, %v4525
        %v4529 = vsel %vm4441, 0, %v4527
        %v4530 = vcosq.f32.pop %v4528
        %v4531 = vsinq.f32.pop %v4528
        %vm4532 = vweird.f32 %v4439
        %v4533 = vadd.s32 %v4529, 3
        %v4534 = vand.u32 %v4533, 3
        %vm4535 = vcmp.lt.s32.totalorder %v4534, 2
        %vm4536 = vcmp.eq.s32.totalorder %v4534, 0
        %v4537 = vxor.u32 %v4531, 2147483648
        %v4538 = vsel %vm4536, %v4530, %v4537
        %vm4539 = vcmp.eq.s32.totalorder %v4534, 2
        %v4540 = vxor.u32 %v4530, 2147483648
        %v4541 = vsel %vm4539, %v4540, %v4531
        %v4542 = vsel %vm4535, %v4538, %v4541
        %v4543 = vsel %vm4532, nan, %v4542
        %s4544 = scalar_lea.vmem %s172, 240 [#allocation5]
        %4545 = vst.msk [vmem:[%s4544] sm:$0xff] %vm262, %v4543
        %v4546 = vand.u32 2147483647, %v4439
        %vm4547 = vcmp.le.f32.partialorder %v4546, 0.7853982
        %vm4548 = vcmp.lt.s32.totalorder %v4439, 0
        %v4549 = vand.u32 %v4439, 2139095040
        %v4550 = vshrl.u32 %v4549, 23
        %v4551 = vsub.s32 %v4550, 127
        %v4552 = vand.u32 2147483647, %v4439
        %v4553 = vand.u32 %v4552, 8388607
        %v4554 = vor.u32 %v4553, 8388608
        %v4555 = vsub.s32 0, %v4554
        %v4556 = vadd.s32 %v4551, 1
        %vm4557 = vcmp.gt.s32.totalorder %v4556, 0
        %v4558 = vsel %vm4557, %v4556, 0
        %v4559 = vshrl.u32 %v4558, 5
        %v4560 = vand.u32 %v4558, 31
        %v4561 = vsub.s32 32, %v4560
        %v4562 = vshrl.u32 683565275, %v4561
        %v4563 = vshll.u32 683565275, %v4560
        %v4564 = vshrl.u32 2475754826, %v4561
        %v4565 = vor.u32 %v4563, %v4564
        %v4566 = vshll.u32 2475754826, %v4560
        %v4567 = vshrl.u32 2131351028, %v4561
        %v4568 = vor.u32 %v4566, %v4567
        %v4569 = vshll.u32 2131351028, %v4560
        %v4570 = vshrl.u32 2102212464, %v4561
        %v4571 = vor.u32 %v4569, %v4570
        %v4572 = vshll.u32 2102212464, %v4560
        %v4573 = vshrl.u32 920167782, %v4561
        %v4574 = vor.u32 %v4572, %v4573
        %v4575 = vshll.u32 920167782, %v4560
        %v4576 = vshrl.u32 1326507024, %v4561
        %v4577 = vor.u32 %v4575, %v4576
        %vm4578 = vcmp.lt.s32.totalorder %v4559, 1
        %vm4579 = vcmp.lt.s32.totalorder %v4559, 2
        %vm4580 = vcmp.lt.s32.totalorder %v4559, 3
        %vm4581 = vcmp.lt.s32.totalorder %v4559, 4
        %v4582 = vsel %vm4578, %v4562, %v4565
        %v4583 = vsel %vm4581, %v4571, 2102212464
        %v4584 = vsel %vm4580, %v4568, %v4583
        %v4585 = vsel %vm4579, %v4582, %v4584
        %v4586 = vsel %vm4578, %v4565, %v4568
        %v4587 = vsel %vm4581, %v4574, 920167782
        %v4588 = vsel %vm4580, %v4571, %v4587
        %v4589 = vsel %vm4579, %v4586, %v4588
        %v4590 = vsel %vm4578, %v4568, %v4571
        %v4591 = vsel %vm4581, %v4577, 1326507024
        %v4592 = vsel %vm4580, %v4574, %v4591
        %v4593 = vsel %vm4579, %v4590, %v4592
        %v4594 = vshll.u32 %v4554, 8
        %v4595 = vmul.u32.u64.compose %v4594, %v4593
        %v4596 = vextract.low.u32 %v4595
        %v4597 = vextract.high.u32 %v4595
        %v4598 = vmul.u32.u64.compose %v4594, %v4589
        %v4599 = vextract.low.u32 %v4598
        %v4600 = vextract.high.u32 %v4598
        %v4601 = vmul.u32 %v4594, %v4585
        %v4602 = vadd.s32 %v4597, %v4599
        %vm4603 = vc.u32 %v4597, %v4599
        %v4604 = vadd.s32 %v4600, 1
        %v4605 = vsel %vm4603, %v4604, %v4600
        %v4606 = vadd.s32 %v4601, %v4605
        %v4607 = vadd.s32 %v4606, 536870912
        %v4608 = vshrl.u32 %v4607, 30
        %v4609 = vshll.u32 %v4608, 30
        %v4610 = vsub.s32 %v4606, %v4609
        %vm4611 = vcmp.lt.s32.totalorder %v4610, 0
        %v4612 = vsub.s32 0, %v4610
        %v4613 = vsel %vm4611, %v4612, %v4610
        %v4614 = vclz %v4613
        %v4615 = vsub.s32 %v4614, 2
        %vm4616 = vcmp.gt.s32.totalorder 0, %v4615
        %v4617 = vsel %vm4616, 0, %v4615
        %v4618 = vsub.s32 32, %v4617
        %v4619 = vshll.u32 %v4610, %v4617
        %v4620 = vshrl.u32 %v4602, %v4618
        %v4621 = vor.u32 %v4619, %v4620
        %v4622 = vsub.s32 4294967266, %v4617
        %v4623 = vadd.s32 %v4622, 127
        %v4624 = vshll.u32 %v4623, 23
        %v4625 = vor.u32 4788187, %v4624
        %v4626 = vand.u32 2147483647, %v4625
        %v4628 = vcvt.s32.f32 %v4621
        %v4629 = vmul.f32 %v4628, %v4626
        %v4630 = vxor.u32 %v4629, 2147483648
        %v4631 = vsel %vm4548, %v4630, %v4629
        %v4632 = vsub.s32 4, %v4608
        %v4633 = vsel %vm4548, %v4632, %v4608
        %v4634 = vsel %vm4547, %v4439, %v4631
        %v4635 = vsel %vm4547, 0, %v4633
        %v4636 = vcosq.f32.pop %v4634
        %v4637 = vsinq.f32.pop %v4634
        %vm4638 = vweird.f32 %v4439
        %v4639 = vand.u32 %v4635, 3
        %vm4640 = vcmp.lt.s32.totalorder %v4639, 2
        %vm4641 = vcmp.eq.s32.totalorder %v4639, 0
        %v4642 = vxor.u32 %v4637, 2147483648
        %v4643 = vsel %vm4641, %v4636, %v4642
        %vm4644 = vcmp.eq.s32.totalorder %v4639, 2
        %v4645 = vxor.u32 %v4636, 2147483648
        %v4646 = vsel %vm4644, %v4645, %v4637
        %v4647 = vsel %vm4640, %v4643, %v4646
        %v4648 = vsel %vm4638, nan, %v4647
        %s4649 = scalar_lea.vmem %s172, 328 [#allocation5]
        %4650 = vst.msk [vmem:[%s4649] sm:$0xff] %vm262, %v4648
        %v4651 = vmul.f32 %v403, 0.0005336699
        %v4652 = vand.u32 2147483647, %v4651
        %vm4653 = vcmp.le.f32.partialorder %v4652, 0.7853982
        %vm4654 = vcmp.lt.s32.totalorder %v4651, 0
        %v4655 = vand.u32 %v4651, 2139095040
        %v4656 = vshrl.u32 %v4655, 23
        %v4657 = vsub.s32 %v4656, 127
        %v4658 = vand.u32 2147483647, %v4651
        %v4659 = vand.u32 %v4658, 8388607
        %v4660 = vor.u32 %v4659, 8388608
        %v4661 = vsub.s32 0, %v4660
        %v4662 = vadd.s32 %v4657, 1
        %vm4663 = vcmp.gt.s32.totalorder %v4662, 0
        %v4664 = vsel %vm4663, %v4662, 0
        %v4665 = vshrl.u32 %v4664, 5
        %v4666 = vand.u32 %v4664, 31
        %v4667 = vsub.s32 32, %v4666
        %v4668 = vshrl.u32 683565275, %v4667
        %v4669 = vshll.u32 683565275, %v4666
        %v4670 = vshrl.u32 2475754826, %v4667
        %v4671 = vor.u32 %v4669, %v4670
        %v4672 = vshll.u32 2475754826, %v4666
        %v4673 = vshrl.u32 2131351028, %v4667
        %v4674 = vor.u32 %v4672, %v4673
        %v4675 = vshll.u32 2131351028, %v4666
        %v4676 = vshrl.u32 2102212464, %v4667
        %v4677 = vor.u32 %v4675, %v4676
        %v4678 = vshll.u32 2102212464, %v4666
        %v4679 = vshrl.u32 920167782, %v4667
        %v4680 = vor.u32 %v4678, %v4679
        %v4681 = vshll.u32 920167782, %v4666
        %v4682 = vshrl.u32 1326507024, %v4667
        %v4683 = vor.u32 %v4681, %v4682
        %vm4684 = vcmp.lt.s32.totalorder %v4665, 1
        %vm4685 = vcmp.lt.s32.totalorder %v4665, 2
        %vm4686 = vcmp.lt.s32.totalorder %v4665, 3
        %vm4687 = vcmp.lt.s32.totalorder %v4665, 4
        %v4688 = vsel %vm4684, %v4668, %v4671
        %v4689 = vsel %vm4687, %v4677, 2102212464
        %v4690 = vsel %vm4686, %v4674, %v4689
        %v4691 = vsel %vm4685, %v4688, %v4690
        %v4692 = vsel %vm4684, %v4671, %v4674
        %v4693 = vsel %vm4687, %v4680, 920167782
        %v4694 = vsel %vm4686, %v4677, %v4693
        %v4695 = vsel %vm4685, %v4692, %v4694
        %v4696 = vsel %vm4684, %v4674, %v4677
        %v4697 = vsel %vm4687, %v4683, 1326507024
        %v4698 = vsel %vm4686, %v4680, %v4697
        %v4699 = vsel %vm4685, %v4696, %v4698
        %v4700 = vshll.u32 %v4660, 8
        %v4701 = vmul.u32.u64.compose %v4700, %v4699
        %v4702 = vextract.low.u32 %v4701
        %v4703 = vextract.high.u32 %v4701
        %v4704 = vmul.u32.u64.compose %v4700, %v4695
        %v4705 = vextract.low.u32 %v4704
        %v4706 = vextract.high.u32 %v4704
        %v4707 = vmul.u32 %v4700, %v4691
        %v4708 = vadd.s32 %v4703, %v4705
        %vm4709 = vc.u32 %v4703, %v4705
        %v4710 = vadd.s32 %v4706, 1
        %v4711 = vsel %vm4709, %v4710, %v4706
        %v4712 = vadd.s32 %v4707, %v4711
        %v4713 = vadd.s32 %v4712, 536870912
        %v4714 = vshrl.u32 %v4713, 30
        %v4715 = vshll.u32 %v4714, 30
        %v4716 = vsub.s32 %v4712, %v4715
        %vm4717 = vcmp.lt.s32.totalorder %v4716, 0
        %v4718 = vsub.s32 0, %v4716
        %v4719 = vsel %vm4717, %v4718, %v4716
        %v4720 = vclz %v4719
        %v4721 = vsub.s32 %v4720, 2
        %vm4722 = vcmp.gt.s32.totalorder 0, %v4721
        %v4723 = vsel %vm4722, 0, %v4721
        %v4724 = vsub.s32 32, %v4723
        %v4725 = vshll.u32 %v4716, %v4723
        %v4726 = vshrl.u32 %v4708, %v4724
        %v4727 = vor.u32 %v4725, %v4726
        %v4728 = vsub.s32 4294967266, %v4723
        %v4729 = vadd.s32 %v4728, 127
        %v4730 = vshll.u32 %v4729, 23
        %v4731 = vor.u32 4788187, %v4730
        %v4732 = vand.u32 2147483647, %v4731
        %v4734 = vcvt.s32.f32 %v4727
        %v4735 = vmul.f32 %v4734, %v4732
        %v4736 = vxor.u32 %v4735, 2147483648
        %v4737 = vsel %vm4654, %v4736, %v4735
        %v4738 = vsub.s32 4, %v4714
        %v4739 = vsel %vm4654, %v4738, %v4714
        %v4740 = vsel %vm4653, %v4651, %v4737
        %v4741 = vsel %vm4653, 0, %v4739
        %v4742 = vcosq.f32.pop %v4740
        %v4743 = vsinq.f32.pop %v4740
        %vm4744 = vweird.f32 %v4651
        %v4745 = vadd.s32 %v4741, 3
        %v4746 = vand.u32 %v4745, 3
        %vm4747 = vcmp.lt.s32.totalorder %v4746, 2
        %vm4748 = vcmp.eq.s32.totalorder %v4746, 0
        %v4749 = vxor.u32 %v4743, 2147483648
        %v4750 = vsel %vm4748, %v4742, %v4749
        %vm4751 = vcmp.eq.s32.totalorder %v4746, 2
        %v4752 = vxor.u32 %v4742, 2147483648
        %v4753 = vsel %vm4751, %v4752, %v4743
        %v4754 = vsel %vm4747, %v4750, %v4753
        %v4755 = vsel %vm4744, nan, %v4754
        %s4756 = scalar_lea.vmem %s172, 248 [#allocation5]
        %4757 = vst.msk [vmem:[%s4756] sm:$0xff] %vm262, %v4755
        %v4758 = vand.u32 2147483647, %v4651
        %vm4759 = vcmp.le.f32.partialorder %v4758, 0.7853982
        %vm4760 = vcmp.lt.s32.totalorder %v4651, 0
        %v4761 = vand.u32 %v4651, 2139095040
        %v4762 = vshrl.u32 %v4761, 23
        %v4763 = vsub.s32 %v4762, 127
        %v4764 = vand.u32 2147483647, %v4651
        %v4765 = vand.u32 %v4764, 8388607
        %v4766 = vor.u32 %v4765, 8388608
        %v4767 = vsub.s32 0, %v4766
        %v4768 = vadd.s32 %v4763, 1
        %vm4769 = vcmp.gt.s32.totalorder %v4768, 0
        %v4770 = vsel %vm4769, %v4768, 0
        %v4771 = vshrl.u32 %v4770, 5
        %v4772 = vand.u32 %v4770, 31
        %v4773 = vsub.s32 32, %v4772
        %v4774 = vshrl.u32 683565275, %v4773
        %v4775 = vshll.u32 683565275, %v4772
        %v4776 = vshrl.u32 2475754826, %v4773
        %v4777 = vor.u32 %v4775, %v4776
        %v4778 = vshll.u32 2475754826, %v4772
        %v4779 = vshrl.u32 2131351028, %v4773
        %v4780 = vor.u32 %v4778, %v4779
        %v4781 = vshll.u32 2131351028, %v4772
        %v4782 = vshrl.u32 2102212464, %v4773
        %v4783 = vor.u32 %v4781, %v4782
        %v4784 = vshll.u32 2102212464, %v4772
        %v4785 = vshrl.u32 920167782, %v4773
        %v4786 = vor.u32 %v4784, %v4785
        %v4787 = vshll.u32 920167782, %v4772
        %v4788 = vshrl.u32 1326507024, %v4773
        %v4789 = vor.u32 %v4787, %v4788
        %vm4790 = vcmp.lt.s32.totalorder %v4771, 1
        %vm4791 = vcmp.lt.s32.totalorder %v4771, 2
        %vm4792 = vcmp.lt.s32.totalorder %v4771, 3
        %vm4793 = vcmp.lt.s32.totalorder %v4771, 4
        %v4794 = vsel %vm4790, %v4774, %v4777
        %v4795 = vsel %vm4793, %v4783, 2102212464
        %v4796 = vsel %vm4792, %v4780, %v4795
        %v4797 = vsel %vm4791, %v4794, %v4796
        %v4798 = vsel %vm4790, %v4777, %v4780
        %v4799 = vsel %vm4793, %v4786, 920167782
        %v4800 = vsel %vm4792, %v4783, %v4799
        %v4801 = vsel %vm4791, %v4798, %v4800
        %v4802 = vsel %vm4790, %v4780, %v4783
        %v4803 = vsel %vm4793, %v4789, 1326507024
        %v4804 = vsel %vm4792, %v4786, %v4803
        %v4805 = vsel %vm4791, %v4802, %v4804
        %v4806 = vshll.u32 %v4766, 8
        %v4807 = vmul.u32.u64.compose %v4806, %v4805
        %v4808 = vextract.low.u32 %v4807
        %v4809 = vextract.high.u32 %v4807
        %v4810 = vmul.u32.u64.compose %v4806, %v4801
        %v4811 = vextract.low.u32 %v4810
        %v4812 = vextract.high.u32 %v4810
        %v4813 = vmul.u32 %v4806, %v4797
        %v4814 = vadd.s32 %v4809, %v4811
        %vm4815 = vc.u32 %v4809, %v4811
        %v4816 = vadd.s32 %v4812, 1
        %v4817 = vsel %vm4815, %v4816, %v4812
        %v4818 = vadd.s32 %v4813, %v4817
        %v4819 = vadd.s32 %v4818, 536870912
        %v4820 = vshrl.u32 %v4819, 30
        %v4821 = vshll.u32 %v4820, 30
        %v4822 = vsub.s32 %v4818, %v4821
        %vm4823 = vcmp.lt.s32.totalorder %v4822, 0
        %v4824 = vsub.s32 0, %v4822
        %v4825 = vsel %vm4823, %v4824, %v4822
        %v4826 = vclz %v4825
        %v4827 = vsub.s32 %v4826, 2
        %vm4828 = vcmp.gt.s32.totalorder 0, %v4827
        %v4829 = vsel %vm4828, 0, %v4827
        %v4830 = vsub.s32 32, %v4829
        %v4831 = vshll.u32 %v4822, %v4829
        %v4832 = vshrl.u32 %v4814, %v4830
        %v4833 = vor.u32 %v4831, %v4832
        %v4834 = vsub.s32 4294967266, %v4829
        %v4835 = vadd.s32 %v4834, 127
        %v4836 = vshll.u32 %v4835, 23
        %v4837 = vor.u32 4788187, %v4836
        %v4838 = vand.u32 2147483647, %v4837
        %v4840 = vcvt.s32.f32 %v4833
        %v4841 = vmul.f32 %v4840, %v4838
        %v4842 = vxor.u32 %v4841, 2147483648
        %v4843 = vsel %vm4760, %v4842, %v4841
        %v4844 = vsub.s32 4, %v4820
        %v4845 = vsel %vm4760, %v4844, %v4820
        %v4846 = vsel %vm4759, %v4651, %v4843
        %v4847 = vsel %vm4759, 0, %v4845
        %v4848 = vcosq.f32.pop %v4846
        %v4849 = vsinq.f32.pop %v4846
        %vm4850 = vweird.f32 %v4651
        %v4851 = vand.u32 %v4847, 3
        %vm4852 = vcmp.lt.s32.totalorder %v4851, 2
        %vm4853 = vcmp.eq.s32.totalorder %v4851, 0
        %v4854 = vxor.u32 %v4849, 2147483648
        %v4855 = vsel %vm4853, %v4848, %v4854
        %vm4856 = vcmp.eq.s32.totalorder %v4851, 2
        %v4857 = vxor.u32 %v4848, 2147483648
        %v4858 = vsel %vm4856, %v4857, %v4849
        %v4859 = vsel %vm4852, %v4855, %v4858
        %v4860 = vsel %vm4850, nan, %v4859
        %s4861 = scalar_lea.vmem %s172, 336 [#allocation5]
        %4862 = vst.msk [vmem:[%s4861] sm:$0xff] %vm262, %v4860
        %v4863 = vmul.f32 %v403, 0.00023101296
        %v4864 = vand.u32 2147483647, %v4863
        %vm4865 = vcmp.le.f32.partialorder %v4864, 0.7853982
        %vm4866 = vcmp.lt.s32.totalorder %v4863, 0
        %v4867 = vand.u32 %v4863, 2139095040
        %v4868 = vshrl.u32 %v4867, 23
        %v4869 = vsub.s32 %v4868, 127
        %v4870 = vand.u32 2147483647, %v4863
        %v4871 = vand.u32 %v4870, 8388607
        %v4872 = vor.u32 %v4871, 8388608
        %v4873 = vsub.s32 0, %v4872
        %v4874 = vadd.s32 %v4869, 1
        %vm4875 = vcmp.gt.s32.totalorder %v4874, 0
        %v4876 = vsel %vm4875, %v4874, 0
        %v4877 = vshrl.u32 %v4876, 5
        %v4878 = vand.u32 %v4876, 31
        %v4879 = vsub.s32 32, %v4878
        %v4880 = vshrl.u32 683565275, %v4879
        %v4881 = vshll.u32 683565275, %v4878
        %v4882 = vshrl.u32 2475754826, %v4879
        %v4883 = vor.u32 %v4881, %v4882
        %v4884 = vshll.u32 2475754826, %v4878
        %v4885 = vshrl.u32 2131351028, %v4879
        %v4886 = vor.u32 %v4884, %v4885
        %v4887 = vshll.u32 2131351028, %v4878
        %v4888 = vshrl.u32 2102212464, %v4879
        %v4889 = vor.u32 %v4887, %v4888
        %v4890 = vshll.u32 2102212464, %v4878
        %v4891 = vshrl.u32 920167782, %v4879
        %v4892 = vor.u32 %v4890, %v4891
        %v4893 = vshll.u32 920167782, %v4878
        %v4894 = vshrl.u32 1326507024, %v4879
        %v4895 = vor.u32 %v4893, %v4894
        %vm4896 = vcmp.lt.s32.totalorder %v4877, 1
        %vm4897 = vcmp.lt.s32.totalorder %v4877, 2
        %vm4898 = vcmp.lt.s32.totalorder %v4877, 3
        %vm4899 = vcmp.lt.s32.totalorder %v4877, 4
        %v4900 = vsel %vm4896, %v4880, %v4883
        %v4901 = vsel %vm4899, %v4889, 2102212464
        %v4902 = vsel %vm4898, %v4886, %v4901
        %v4903 = vsel %vm4897, %v4900, %v4902
        %v4904 = vsel %vm4896, %v4883, %v4886
        %v4905 = vsel %vm4899, %v4892, 920167782
        %v4906 = vsel %vm4898, %v4889, %v4905
        %v4907 = vsel %vm4897, %v4904, %v4906
        %v4908 = vsel %vm4896, %v4886, %v4889
        %v4909 = vsel %vm4899, %v4895, 1326507024
        %v4910 = vsel %vm4898, %v4892, %v4909
        %v4911 = vsel %vm4897, %v4908, %v4910
        %v4912 = vshll.u32 %v4872, 8
        %v4913 = vmul.u32.u64.compose %v4912, %v4911
        %v4914 = vextract.low.u32 %v4913
        %v4915 = vextract.high.u32 %v4913
        %v4916 = vmul.u32.u64.compose %v4912, %v4907
        %v4917 = vextract.low.u32 %v4916
        %v4918 = vextract.high.u32 %v4916
        %v4919 = vmul.u32 %v4912, %v4903
        %v4920 = vadd.s32 %v4915, %v4917
        %vm4921 = vc.u32 %v4915, %v4917
        %v4922 = vadd.s32 %v4918, 1
        %v4923 = vsel %vm4921, %v4922, %v4918
        %v4924 = vadd.s32 %v4919, %v4923
        %v4925 = vadd.s32 %v4924, 536870912
        %v4926 = vshrl.u32 %v4925, 30
        %v4927 = vshll.u32 %v4926, 30
        %v4928 = vsub.s32 %v4924, %v4927
        %vm4929 = vcmp.lt.s32.totalorder %v4928, 0
        %v4930 = vsub.s32 0, %v4928
        %v4931 = vsel %vm4929, %v4930, %v4928
        %v4932 = vclz %v4931
        %v4933 = vsub.s32 %v4932, 2
        %vm4934 = vcmp.gt.s32.totalorder 0, %v4933
        %v4935 = vsel %vm4934, 0, %v4933
        %v4936 = vsub.s32 32, %v4935
        %v4937 = vshll.u32 %v4928, %v4935
        %v4938 = vshrl.u32 %v4920, %v4936
        %v4939 = vor.u32 %v4937, %v4938
        %v4940 = vsub.s32 4294967266, %v4935
        %v4941 = vadd.s32 %v4940, 127
        %v4942 = vshll.u32 %v4941, 23
        %v4943 = vor.u32 4788187, %v4942
        %v4944 = vand.u32 2147483647, %v4943
        %v4946 = vcvt.s32.f32 %v4939
        %v4947 = vmul.f32 %v4946, %v4944
        %v4948 = vxor.u32 %v4947, 2147483648
        %v4949 = vsel %vm4866, %v4948, %v4947
        %v4950 = vsub.s32 4, %v4926
        %v4951 = vsel %vm4866, %v4950, %v4926
        %v4952 = vsel %vm4865, %v4863, %v4949
        %v4953 = vsel %vm4865, 0, %v4951
        %v4954 = vcosq.f32.pop %v4952
        %v4955 = vsinq.f32.pop %v4952
        %vm4956 = vweird.f32 %v4863
        %v4957 = vadd.s32 %v4953, 3
        %v4958 = vand.u32 %v4957, 3
        %vm4959 = vcmp.lt.s32.totalorder %v4958, 2
        %vm4960 = vcmp.eq.s32.totalorder %v4958, 0
        %v4961 = vxor.u32 %v4955, 2147483648
        %v4962 = vsel %vm4960, %v4954, %v4961
        %vm4963 = vcmp.eq.s32.totalorder %v4958, 2
        %v4964 = vxor.u32 %v4954, 2147483648
        %v4965 = vsel %vm4963, %v4964, %v4955
        %v4966 = vsel %vm4959, %v4962, %v4965
        %v4967 = vsel %vm4956, nan, %v4966
        %s4968 = scalar_lea.vmem %s172, 256 [#allocation5]
        %4969 = vst.msk [vmem:[%s4968] sm:$0xff] %vm262, %v4967
        %v4970 = vand.u32 2147483647, %v4863
        %vm4971 = vcmp.le.f32.partialorder %v4970, 0.7853982
        %vm4972 = vcmp.lt.s32.totalorder %v4863, 0
        %v4973 = vand.u32 %v4863, 2139095040
        %v4974 = vshrl.u32 %v4973, 23
        %v4975 = vsub.s32 %v4974, 127
        %v4976 = vand.u32 2147483647, %v4863
        %v4977 = vand.u32 %v4976, 8388607
        %v4978 = vor.u32 %v4977, 8388608
        %v4979 = vsub.s32 0, %v4978
        %v4980 = vadd.s32 %v4975, 1
        %vm4981 = vcmp.gt.s32.totalorder %v4980, 0
        %v4982 = vsel %vm4981, %v4980, 0
        %v4983 = vshrl.u32 %v4982, 5
        %v4984 = vand.u32 %v4982, 31
        %v4985 = vsub.s32 32, %v4984
        %v4986 = vshrl.u32 683565275, %v4985
        %v4987 = vshll.u32 683565275, %v4984
        %v4988 = vshrl.u32 2475754826, %v4985
        %v4989 = vor.u32 %v4987, %v4988
        %v4990 = vshll.u32 2475754826, %v4984
        %v4991 = vshrl.u32 2131351028, %v4985
        %v4992 = vor.u32 %v4990, %v4991
        %v4993 = vshll.u32 2131351028, %v4984
        %v4994 = vshrl.u32 2102212464, %v4985
        %v4995 = vor.u32 %v4993, %v4994
        %v4996 = vshll.u32 2102212464, %v4984
        %v4997 = vshrl.u32 920167782, %v4985
        %v4998 = vor.u32 %v4996, %v4997
        %v4999 = vshll.u32 920167782, %v4984
        %v5000 = vshrl.u32 1326507024, %v4985
        %v5001 = vor.u32 %v4999, %v5000
        %vm5002 = vcmp.lt.s32.totalorder %v4983, 1
        %vm5003 = vcmp.lt.s32.totalorder %v4983, 2
        %vm5004 = vcmp.lt.s32.totalorder %v4983, 3
        %vm5005 = vcmp.lt.s32.totalorder %v4983, 4
        %v5006 = vsel %vm5002, %v4986, %v4989
        %v5007 = vsel %vm5005, %v4995, 2102212464
        %v5008 = vsel %vm5004, %v4992, %v5007
        %v5009 = vsel %vm5003, %v5006, %v5008
        %v5010 = vsel %vm5002, %v4989, %v4992
        %v5011 = vsel %vm5005, %v4998, 920167782
        %v5012 = vsel %vm5004, %v4995, %v5011
        %v5013 = vsel %vm5003, %v5010, %v5012
        %v5014 = vsel %vm5002, %v4992, %v4995
        %v5015 = vsel %vm5005, %v5001, 1326507024
        %v5016 = vsel %vm5004, %v4998, %v5015
        %v5017 = vsel %vm5003, %v5014, %v5016
        %v5018 = vshll.u32 %v4978, 8
        %v5019 = vmul.u32.u64.compose %v5018, %v5017
        %v5020 = vextract.low.u32 %v5019
        %v5021 = vextract.high.u32 %v5019
        %v5022 = vmul.u32.u64.compose %v5018, %v5013
        %v5023 = vextract.low.u32 %v5022
        %v5024 = vextract.high.u32 %v5022
        %v5025 = vmul.u32 %v5018, %v5009
        %v5026 = vadd.s32 %v5021, %v5023
        %vm5027 = vc.u32 %v5021, %v5023
        %v5028 = vadd.s32 %v5024, 1
        %v5029 = vsel %vm5027, %v5028, %v5024
        %v5030 = vadd.s32 %v5025, %v5029
        %v5031 = vadd.s32 %v5030, 536870912
        %v5032 = vshrl.u32 %v5031, 30
        %v5033 = vshll.u32 %v5032, 30
        %v5034 = vsub.s32 %v5030, %v5033
        %vm5035 = vcmp.lt.s32.totalorder %v5034, 0
        %v5036 = vsub.s32 0, %v5034
        %v5037 = vsel %vm5035, %v5036, %v5034
        %v5038 = vclz %v5037
        %v5039 = vsub.s32 %v5038, 2
        %vm5040 = vcmp.gt.s32.totalorder 0, %v5039
        %v5041 = vsel %vm5040, 0, %v5039
        %v5042 = vsub.s32 32, %v5041
        %v5043 = vshll.u32 %v5034, %v5041
        %v5044 = vshrl.u32 %v5026, %v5042
        %v5045 = vor.u32 %v5043, %v5044
        %v5046 = vsub.s32 4294967266, %v5041
        %v5047 = vadd.s32 %v5046, 127
        %v5048 = vshll.u32 %v5047, 23
        %v5049 = vor.u32 4788187, %v5048
        %v5050 = vand.u32 2147483647, %v5049
        %v5052 = vcvt.s32.f32 %v5045
        %v5053 = vmul.f32 %v5052, %v5050
        %v5054 = vxor.u32 %v5053, 2147483648
        %v5055 = vsel %vm4972, %v5054, %v5053
        %v5056 = vsub.s32 4, %v5032
        %v5057 = vsel %vm4972, %v5056, %v5032
        %v5058 = vsel %vm4971, %v4863, %v5055
        %v5059 = vsel %vm4971, 0, %v5057
        %v5060 = vcosq.f32.pop %v5058
        %v5061 = vsinq.f32.pop %v5058
        %vm5062 = vweird.f32 %v4863
        %v5063 = vand.u32 %v5059, 3
        %vm5064 = vcmp.lt.s32.totalorder %v5063, 2
        %vm5065 = vcmp.eq.s32.totalorder %v5063, 0
        %v5066 = vxor.u32 %v5061, 2147483648
        %v5067 = vsel %vm5065, %v5060, %v5066
        %vm5068 = vcmp.eq.s32.totalorder %v5063, 2
        %v5069 = vxor.u32 %v5060, 2147483648
        %v5070 = vsel %vm5068, %v5069, %v5061
        %v5071 = vsel %vm5064, %v5067, %v5070
        %v5072 = vsel %vm5062, nan, %v5071
        %s5073 = scalar_lea.vmem %s172, 344 [#allocation5]
        %5074 = vst.msk [vmem:[%s5073] sm:$0xff] %vm262, %v5072
        %v5075 = vand.u32 2147483647, %v413
        %vm5076 = vcmp.le.f32.partialorder %v5075, 0.7853982
        %vm5077 = vcmp.lt.s32.totalorder %v413, 0
        %v5078 = vand.u32 %v413, 2139095040
        %v5079 = vshrl.u32 %v5078, 23
        %v5080 = vsub.s32 %v5079, 127
        %v5081 = vand.u32 2147483647, %v413
        %v5082 = vand.u32 %v5081, 8388607
        %v5083 = vor.u32 %v5082, 8388608
        %v5084 = vsub.s32 0, %v5083
        %v5085 = vadd.s32 %v5080, 1
        %vm5086 = vcmp.gt.s32.totalorder %v5085, 0
        %v5087 = vsel %vm5086, %v5085, 0
        %v5088 = vshrl.u32 %v5087, 5
        %v5089 = vand.u32 %v5087, 31
        %v5090 = vsub.s32 32, %v5089
        %v5091 = vshrl.u32 683565275, %v5090
        %v5092 = vshll.u32 683565275, %v5089
        %v5093 = vshrl.u32 2475754826, %v5090
        %v5094 = vor.u32 %v5092, %v5093
        %v5095 = vshll.u32 2475754826, %v5089
        %v5096 = vshrl.u32 2131351028, %v5090
        %v5097 = vor.u32 %v5095, %v5096
        %v5098 = vshll.u32 2131351028, %v5089
        %v5099 = vshrl.u32 2102212464, %v5090
        %v5100 = vor.u32 %v5098, %v5099
        %v5101 = vshll.u32 2102212464, %v5089
        %v5102 = vshrl.u32 920167782, %v5090
        %v5103 = vor.u32 %v5101, %v5102
        %v5104 = vshll.u32 920167782, %v5089
        %v5105 = vshrl.u32 1326507024, %v5090
        %v5106 = vor.u32 %v5104, %v5105
        %vm5107 = vcmp.lt.s32.totalorder %v5088, 1
        %vm5108 = vcmp.lt.s32.totalorder %v5088, 2
        %vm5109 = vcmp.lt.s32.totalorder %v5088, 3
        %vm5110 = vcmp.lt.s32.totalorder %v5088, 4
        %v5111 = vsel %vm5107, %v5091, %v5094
        %v5112 = vsel %vm5110, %v5100, 2102212464
        %v5113 = vsel %vm5109, %v5097, %v5112
        %v5114 = vsel %vm5108, %v5111, %v5113
        %v5115 = vsel %vm5107, %v5094, %v5097
        %v5116 = vsel %vm5110, %v5103, 920167782
        %v5117 = vsel %vm5109, %v5100, %v5116
        %v5118 = vsel %vm5108, %v5115, %v5117
        %v5119 = vsel %vm5107, %v5097, %v5100
        %v5120 = vsel %vm5110, %v5106, 1326507024
        %v5121 = vsel %vm5109, %v5103, %v5120
        %v5122 = vsel %vm5108, %v5119, %v5121
        %v5123 = vshll.u32 %v5083, 8
        %v5124 = vmul.u32.u64.compose %v5123, %v5122
        %v5125 = vextract.low.u32 %v5124
        %v5126 = vextract.high.u32 %v5124
        %v5127 = vmul.u32.u64.compose %v5123, %v5118
        %v5128 = vextract.low.u32 %v5127
        %v5129 = vextract.high.u32 %v5127
        %v5130 = vmul.u32 %v5123, %v5114
        %v5131 = vadd.s32 %v5126, %v5128
        %vm5132 = vc.u32 %v5126, %v5128
        %v5133 = vadd.s32 %v5129, 1
        %v5134 = vsel %vm5132, %v5133, %v5129
        %v5135 = vadd.s32 %v5130, %v5134
        %v5136 = vadd.s32 %v5135, 536870912
        %v5137 = vshrl.u32 %v5136, 30
        %v5138 = vshll.u32 %v5137, 30
        %v5139 = vsub.s32 %v5135, %v5138
        %vm5140 = vcmp.lt.s32.totalorder %v5139, 0
        %v5141 = vsub.s32 0, %v5139
        %v5142 = vsel %vm5140, %v5141, %v5139
        %v5143 = vclz %v5142
        %v5144 = vsub.s32 %v5143, 2
        %vm5145 = vcmp.gt.s32.totalorder 0, %v5144
        %v5146 = vsel %vm5145, 0, %v5144
        %v5147 = vsub.s32 32, %v5146
        %v5148 = vshll.u32 %v5139, %v5146
        %v5149 = vshrl.u32 %v5131, %v5147
        %v5150 = vor.u32 %v5148, %v5149
        %v5151 = vsub.s32 4294967266, %v5146
        %v5152 = vadd.s32 %v5151, 127
        %v5153 = vshll.u32 %v5152, 23
        %v5154 = vor.u32 4788187, %v5153
        %v5155 = vand.u32 2147483647, %v5154
        %v5157 = vcvt.s32.f32 %v5150
        %v5158 = vmul.f32 %v5157, %v5155
        %v5159 = vxor.u32 %v5158, 2147483648
        %v5160 = vsel %vm5077, %v5159, %v5158
        %v5161 = vsub.s32 4, %v5137
        %v5162 = vsel %vm5077, %v5161, %v5137
        %v5163 = vsel %vm5076, %v413, %v5160
        %v5164 = vsel %vm5076, 0, %v5162
        %v5165 = vcosq.f32.pop %v5163
        %v5166 = vsinq.f32.pop %v5163
        %vm5167 = vweird.f32 %v413
        %v5168 = vadd.s32 %v5164, 3
        %v5169 = vand.u32 %v5168, 3
        %vm5170 = vcmp.lt.s32.totalorder %v5169, 2
        %vm5171 = vcmp.eq.s32.totalorder %v5169, 0
        %v5172 = vxor.u32 %v5166, 2147483648
        %v5173 = vsel %vm5171, %v5165, %v5172
        %vm5174 = vcmp.eq.s32.totalorder %v5169, 2
        %v5175 = vxor.u32 %v5165, 2147483648
        %v5176 = vsel %vm5174, %v5175, %v5166
        %v5177 = vsel %vm5170, %v5173, %v5176
        %v5178 = vsel %vm5167, nan, %v5177
        %s5179 = scalar_lea.vmem %s172, 352 [#allocation5]
        %5180 = vst.msk [vmem:[%s5179] sm:$0xff] %vm262, %v5178
        %v5181 = vand.u32 2147483647, %v413
        %vm5182 = vcmp.le.f32.partialorder %v5181, 0.7853982
        %vm5183 = vcmp.lt.s32.totalorder %v413, 0
        %v5184 = vand.u32 %v413, 2139095040
        %v5185 = vshrl.u32 %v5184, 23
        %v5186 = vsub.s32 %v5185, 127
        %v5187 = vand.u32 2147483647, %v413
        %v5188 = vand.u32 %v5187, 8388607
        %v5189 = vor.u32 %v5188, 8388608
        %v5190 = vsub.s32 0, %v5189
        %v5191 = vadd.s32 %v5186, 1
        %vm5192 = vcmp.gt.s32.totalorder %v5191, 0
        %v5193 = vsel %vm5192, %v5191, 0
        %v5194 = vshrl.u32 %v5193, 5
        %v5195 = vand.u32 %v5193, 31
        %v5196 = vsub.s32 32, %v5195
        %v5197 = vshrl.u32 683565275, %v5196
        %v5198 = vshll.u32 683565275, %v5195
        %v5199 = vshrl.u32 2475754826, %v5196
        %v5200 = vor.u32 %v5198, %v5199
        %v5201 = vshll.u32 2475754826, %v5195
        %v5202 = vshrl.u32 2131351028, %v5196
        %v5203 = vor.u32 %v5201, %v5202
        %v5204 = vshll.u32 2131351028, %v5195
        %v5205 = vshrl.u32 2102212464, %v5196
        %v5206 = vor.u32 %v5204, %v5205
        %v5207 = vshll.u32 2102212464, %v5195
        %v5208 = vshrl.u32 920167782, %v5196
        %v5209 = vor.u32 %v5207, %v5208
        %v5210 = vshll.u32 920167782, %v5195
        %v5211 = vshrl.u32 1326507024, %v5196
        %v5212 = vor.u32 %v5210, %v5211
        %vm5213 = vcmp.lt.s32.totalorder %v5194, 1
        %vm5214 = vcmp.lt.s32.totalorder %v5194, 2
        %vm5215 = vcmp.lt.s32.totalorder %v5194, 3
        %vm5216 = vcmp.lt.s32.totalorder %v5194, 4
        %v5217 = vsel %vm5213, %v5197, %v5200
        %v5218 = vsel %vm5216, %v5206, 2102212464
        %v5219 = vsel %vm5215, %v5203, %v5218
        %v5220 = vsel %vm5214, %v5217, %v5219
        %v5221 = vsel %vm5213, %v5200, %v5203
        %v5222 = vsel %vm5216, %v5209, 920167782
        %v5223 = vsel %vm5215, %v5206, %v5222
        %v5224 = vsel %vm5214, %v5221, %v5223
        %v5225 = vsel %vm5213, %v5203, %v5206
        %v5226 = vsel %vm5216, %v5212, 1326507024
        %v5227 = vsel %vm5215, %v5209, %v5226
        %v5228 = vsel %vm5214, %v5225, %v5227
        %v5229 = vshll.u32 %v5189, 8
        %v5230 = vmul.u32.u64.compose %v5229, %v5228
        %v5231 = vextract.low.u32 %v5230
        %v5232 = vextract.high.u32 %v5230
        %v5233 = vmul.u32.u64.compose %v5229, %v5224
        %v5234 = vextract.low.u32 %v5233
        %v5235 = vextract.high.u32 %v5233
        %v5236 = vmul.u32 %v5229, %v5220
        %v5237 = vadd.s32 %v5232, %v5234
        %vm5238 = vc.u32 %v5232, %v5234
        %v5239 = vadd.s32 %v5235, 1
        %v5240 = vsel %vm5238, %v5239, %v5235
        %v5241 = vadd.s32 %v5236, %v5240
        %v5242 = vadd.s32 %v5241, 536870912
        %v5243 = vshrl.u32 %v5242, 30
        %v5244 = vshll.u32 %v5243, 30
        %v5245 = vsub.s32 %v5241, %v5244
        %vm5246 = vcmp.lt.s32.totalorder %v5245, 0
        %v5247 = vsub.s32 0, %v5245
        %v5248 = vsel %vm5246, %v5247, %v5245
        %v5249 = vclz %v5248
        %v5250 = vsub.s32 %v5249, 2
        %vm5251 = vcmp.gt.s32.totalorder 0, %v5250
        %v5252 = vsel %vm5251, 0, %v5250
        %v5253 = vsub.s32 32, %v5252
        %v5254 = vshll.u32 %v5245, %v5252
        %v5255 = vshrl.u32 %v5237, %v5253
        %v5256 = vor.u32 %v5254, %v5255
        %v5257 = vsub.s32 4294967266, %v5252
        %v5258 = vadd.s32 %v5257, 127
        %v5259 = vshll.u32 %v5258, 23
        %v5260 = vor.u32 4788187, %v5259
        %v5261 = vand.u32 2147483647, %v5260
        %v5263 = vcvt.s32.f32 %v5256
        %v5264 = vmul.f32 %v5263, %v5261
        %v5265 = vxor.u32 %v5264, 2147483648
        %v5266 = vsel %vm5183, %v5265, %v5264
        %v5267 = vsub.s32 4, %v5243
        %v5268 = vsel %vm5183, %v5267, %v5243
        %v5269 = vsel %vm5182, %v413, %v5266
        %v5270 = vsel %vm5182, 0, %v5268
        %v5271 = vcosq.f32.pop %v5269
        %v5272 = vsinq.f32.pop %v5269
        %vm5273 = vweird.f32 %v413
        %v5274 = vand.u32 %v5270, 3
        %vm5275 = vcmp.lt.s32.totalorder %v5274, 2
        %vm5276 = vcmp.eq.s32.totalorder %v5274, 0
        %v5277 = vxor.u32 %v5272, 2147483648
        %v5278 = vsel %vm5276, %v5271, %v5277
        %vm5279 = vcmp.eq.s32.totalorder %v5274, 2
        %v5280 = vxor.u32 %v5271, 2147483648
        %v5281 = vsel %vm5279, %v5280, %v5272
        %v5282 = vsel %vm5275, %v5278, %v5281
        %v5283 = vsel %vm5273, nan, %v5282
        %s5284 = scalar_lea.vmem %s172, 440 [#allocation5]
        %5285 = vst.msk [vmem:[%s5284] sm:$0xff] %vm262, %v5283
        %v5286 = vmul.f32 %v413, 0.43287614
        %v5287 = vand.u32 2147483647, %v5286
        %vm5288 = vcmp.le.f32.partialorder %v5287, 0.7853982
        %vm5289 = vcmp.lt.s32.totalorder %v5286, 0
        %v5290 = vand.u32 %v5286, 2139095040
        %v5291 = vshrl.u32 %v5290, 23
        %v5292 = vsub.s32 %v5291, 127
        %v5293 = vand.u32 2147483647, %v5286
        %v5294 = vand.u32 %v5293, 8388607
        %v5295 = vor.u32 %v5294, 8388608
        %v5296 = vsub.s32 0, %v5295
        %v5297 = vadd.s32 %v5292, 1
        %vm5298 = vcmp.gt.s32.totalorder %v5297, 0
        %v5299 = vsel %vm5298, %v5297, 0
        %v5300 = vshrl.u32 %v5299, 5
        %v5301 = vand.u32 %v5299, 31
        %v5302 = vsub.s32 32, %v5301
        %v5303 = vshrl.u32 683565275, %v5302
        %v5304 = vshll.u32 683565275, %v5301
        %v5305 = vshrl.u32 2475754826, %v5302
        %v5306 = vor.u32 %v5304, %v5305
        %v5307 = vshll.u32 2475754826, %v5301
        %v5308 = vshrl.u32 2131351028, %v5302
        %v5309 = vor.u32 %v5307, %v5308
        %v5310 = vshll.u32 2131351028, %v5301
        %v5311 = vshrl.u32 2102212464, %v5302
        %v5312 = vor.u32 %v5310, %v5311
        %v5313 = vshll.u32 2102212464, %v5301
        %v5314 = vshrl.u32 920167782, %v5302
        %v5315 = vor.u32 %v5313, %v5314
        %v5316 = vshll.u32 920167782, %v5301
        %v5317 = vshrl.u32 1326507024, %v5302
        %v5318 = vor.u32 %v5316, %v5317
        %vm5319 = vcmp.lt.s32.totalorder %v5300, 1
        %vm5320 = vcmp.lt.s32.totalorder %v5300, 2
        %vm5321 = vcmp.lt.s32.totalorder %v5300, 3
        %vm5322 = vcmp.lt.s32.totalorder %v5300, 4
        %v5323 = vsel %vm5319, %v5303, %v5306
        %v5324 = vsel %vm5322, %v5312, 2102212464
        %v5325 = vsel %vm5321, %v5309, %v5324
        %v5326 = vsel %vm5320, %v5323, %v5325
        %v5327 = vsel %vm5319, %v5306, %v5309
        %v5328 = vsel %vm5322, %v5315, 920167782
        %v5329 = vsel %vm5321, %v5312, %v5328
        %v5330 = vsel %vm5320, %v5327, %v5329
        %v5331 = vsel %vm5319, %v5309, %v5312
        %v5332 = vsel %vm5322, %v5318, 1326507024
        %v5333 = vsel %vm5321, %v5315, %v5332
        %v5334 = vsel %vm5320, %v5331, %v5333
        %v5335 = vshll.u32 %v5295, 8
        %v5336 = vmul.u32.u64.compose %v5335, %v5334
        %v5337 = vextract.low.u32 %v5336
        %v5338 = vextract.high.u32 %v5336
        %v5339 = vmul.u32.u64.compose %v5335, %v5330
        %v5340 = vextract.low.u32 %v5339
        %v5341 = vextract.high.u32 %v5339
        %v5342 = vmul.u32 %v5335, %v5326
        %v5343 = vadd.s32 %v5338, %v5340
        %vm5344 = vc.u32 %v5338, %v5340
        %v5345 = vadd.s32 %v5341, 1
        %v5346 = vsel %vm5344, %v5345, %v5341
        %v5347 = vadd.s32 %v5342, %v5346
        %v5348 = vadd.s32 %v5347, 536870912
        %v5349 = vshrl.u32 %v5348, 30
        %v5350 = vshll.u32 %v5349, 30
        %v5351 = vsub.s32 %v5347, %v5350
        %vm5352 = vcmp.lt.s32.totalorder %v5351, 0
        %v5353 = vsub.s32 0, %v5351
        %v5354 = vsel %vm5352, %v5353, %v5351
        %v5355 = vclz %v5354
        %v5356 = vsub.s32 %v5355, 2
        %vm5357 = vcmp.gt.s32.totalorder 0, %v5356
        %v5358 = vsel %vm5357, 0, %v5356
        %v5359 = vsub.s32 32, %v5358
        %v5360 = vshll.u32 %v5351, %v5358
        %v5361 = vshrl.u32 %v5343, %v5359
        %v5362 = vor.u32 %v5360, %v5361
        %v5363 = vsub.s32 4294967266, %v5358
        %v5364 = vadd.s32 %v5363, 127
        %v5365 = vshll.u32 %v5364, 23
        %v5366 = vor.u32 4788187, %v5365
        %v5367 = vand.u32 2147483647, %v5366
        %v5369 = vcvt.s32.f32 %v5362
        %v5370 = vmul.f32 %v5369, %v5367
        %v5371 = vxor.u32 %v5370, 2147483648
        %v5372 = vsel %vm5289, %v5371, %v5370
        %v5373 = vsub.s32 4, %v5349
        %v5374 = vsel %vm5289, %v5373, %v5349
        %v5375 = vsel %vm5288, %v5286, %v5372
        %v5376 = vsel %vm5288, 0, %v5374
        %v5377 = vcosq.f32.pop %v5375
        %v5378 = vsinq.f32.pop %v5375
        %vm5379 = vweird.f32 %v5286
        %v5380 = vadd.s32 %v5376, 3
        %v5381 = vand.u32 %v5380, 3
        %vm5382 = vcmp.lt.s32.totalorder %v5381, 2
        %vm5383 = vcmp.eq.s32.totalorder %v5381, 0
        %v5384 = vxor.u32 %v5378, 2147483648
        %v5385 = vsel %vm5383, %v5377, %v5384
        %vm5386 = vcmp.eq.s32.totalorder %v5381, 2
        %v5387 = vxor.u32 %v5377, 2147483648
        %v5388 = vsel %vm5386, %v5387, %v5378
        %v5389 = vsel %vm5382, %v5385, %v5388
        %v5390 = vsel %vm5379, nan, %v5389
        %s5391 = scalar_lea.vmem %s172, 360 [#allocation5]
        %5392 = vst.msk [vmem:[%s5391] sm:$0xff] %vm262, %v5390
        %v5393 = vand.u32 2147483647, %v5286
        %vm5394 = vcmp.le.f32.partialorder %v5393, 0.7853982
        %vm5395 = vcmp.lt.s32.totalorder %v5286, 0
        %v5396 = vand.u32 %v5286, 2139095040
        %v5397 = vshrl.u32 %v5396, 23
        %v5398 = vsub.s32 %v5397, 127
        %v5399 = vand.u32 2147483647, %v5286
        %v5400 = vand.u32 %v5399, 8388607
        %v5401 = vor.u32 %v5400, 8388608
        %v5402 = vsub.s32 0, %v5401
        %v5403 = vadd.s32 %v5398, 1
        %vm5404 = vcmp.gt.s32.totalorder %v5403, 0
        %v5405 = vsel %vm5404, %v5403, 0
        %v5406 = vshrl.u32 %v5405, 5
        %v5407 = vand.u32 %v5405, 31
        %v5408 = vsub.s32 32, %v5407
        %v5409 = vshrl.u32 683565275, %v5408
        %v5410 = vshll.u32 683565275, %v5407
        %v5411 = vshrl.u32 2475754826, %v5408
        %v5412 = vor.u32 %v5410, %v5411
        %v5413 = vshll.u32 2475754826, %v5407
        %v5414 = vshrl.u32 2131351028, %v5408
        %v5415 = vor.u32 %v5413, %v5414
        %v5416 = vshll.u32 2131351028, %v5407
        %v5417 = vshrl.u32 2102212464, %v5408
        %v5418 = vor.u32 %v5416, %v5417
        %v5419 = vshll.u32 2102212464, %v5407
        %v5420 = vshrl.u32 920167782, %v5408
        %v5421 = vor.u32 %v5419, %v5420
        %v5422 = vshll.u32 920167782, %v5407
        %v5423 = vshrl.u32 1326507024, %v5408
        %v5424 = vor.u32 %v5422, %v5423
        %vm5425 = vcmp.lt.s32.totalorder %v5406, 1
        %vm5426 = vcmp.lt.s32.totalorder %v5406, 2
        %vm5427 = vcmp.lt.s32.totalorder %v5406, 3
        %vm5428 = vcmp.lt.s32.totalorder %v5406, 4
        %v5429 = vsel %vm5425, %v5409, %v5412
        %v5430 = vsel %vm5428, %v5418, 2102212464
        %v5431 = vsel %vm5427, %v5415, %v5430
        %v5432 = vsel %vm5426, %v5429, %v5431
        %v5433 = vsel %vm5425, %v5412, %v5415
        %v5434 = vsel %vm5428, %v5421, 920167782
        %v5435 = vsel %vm5427, %v5418, %v5434
        %v5436 = vsel %vm5426, %v5433, %v5435
        %v5437 = vsel %vm5425, %v5415, %v5418
        %v5438 = vsel %vm5428, %v5424, 1326507024
        %v5439 = vsel %vm5427, %v5421, %v5438
        %v5440 = vsel %vm5426, %v5437, %v5439
        %v5441 = vshll.u32 %v5401, 8
        %v5442 = vmul.u32.u64.compose %v5441, %v5440
        %v5443 = vextract.low.u32 %v5442
        %v5444 = vextract.high.u32 %v5442
        %v5445 = vmul.u32.u64.compose %v5441, %v5436
        %v5446 = vextract.low.u32 %v5445
        %v5447 = vextract.high.u32 %v5445
        %v5448 = vmul.u32 %v5441, %v5432
        %v5449 = vadd.s32 %v5444, %v5446
        %vm5450 = vc.u32 %v5444, %v5446
        %v5451 = vadd.s32 %v5447, 1
        %v5452 = vsel %vm5450, %v5451, %v5447
        %v5453 = vadd.s32 %v5448, %v5452
        %v5454 = vadd.s32 %v5453, 536870912
        %v5455 = vshrl.u32 %v5454, 30
        %v5456 = vshll.u32 %v5455, 30
        %v5457 = vsub.s32 %v5453, %v5456
        %vm5458 = vcmp.lt.s32.totalorder %v5457, 0
        %v5459 = vsub.s32 0, %v5457
        %v5460 = vsel %vm5458, %v5459, %v5457
        %v5461 = vclz %v5460
        %v5462 = vsub.s32 %v5461, 2
        %vm5463 = vcmp.gt.s32.totalorder 0, %v5462
        %v5464 = vsel %vm5463, 0, %v5462
        %v5465 = vsub.s32 32, %v5464
        %v5466 = vshll.u32 %v5457, %v5464
        %v5467 = vshrl.u32 %v5449, %v5465
        %v5468 = vor.u32 %v5466, %v5467
        %v5469 = vsub.s32 4294967266, %v5464
        %v5470 = vadd.s32 %v5469, 127
        %v5471 = vshll.u32 %v5470, 23
        %v5472 = vor.u32 4788187, %v5471
        %v5473 = vand.u32 2147483647, %v5472
        %v5475 = vcvt.s32.f32 %v5468
        %v5476 = vmul.f32 %v5475, %v5473
        %v5477 = vxor.u32 %v5476, 2147483648
        %v5478 = vsel %vm5395, %v5477, %v5476
        %v5479 = vsub.s32 4, %v5455
        %v5480 = vsel %vm5395, %v5479, %v5455
        %v5481 = vsel %vm5394, %v5286, %v5478
        %v5482 = vsel %vm5394, 0, %v5480
        %v5483 = vcosq.f32.pop %v5481
        %v5484 = vsinq.f32.pop %v5481
        %vm5485 = vweird.f32 %v5286
        %v5486 = vand.u32 %v5482, 3
        %vm5487 = vcmp.lt.s32.totalorder %v5486, 2
        %vm5488 = vcmp.eq.s32.totalorder %v5486, 0
        %v5489 = vxor.u32 %v5484, 2147483648
        %v5490 = vsel %vm5488, %v5483, %v5489
        %vm5491 = vcmp.eq.s32.totalorder %v5486, 2
        %v5492 = vxor.u32 %v5483, 2147483648
        %v5493 = vsel %vm5491, %v5492, %v5484
        %v5494 = vsel %vm5487, %v5490, %v5493
        %v5495 = vsel %vm5485, nan, %v5494
        %s5496 = scalar_lea.vmem %s172, 448 [#allocation5]
        %5497 = vst.msk [vmem:[%s5496] sm:$0xff] %vm262, %v5495
        %v5498 = vmul.f32 %v413, 0.18738174
        %v5499 = vand.u32 2147483647, %v5498
        %vm5500 = vcmp.le.f32.partialorder %v5499, 0.7853982
        %vm5501 = vcmp.lt.s32.totalorder %v5498, 0
        %v5502 = vand.u32 %v5498, 2139095040
        %v5503 = vshrl.u32 %v5502, 23
        %v5504 = vsub.s32 %v5503, 127
        %v5505 = vand.u32 2147483647, %v5498
        %v5506 = vand.u32 %v5505, 8388607
        %v5507 = vor.u32 %v5506, 8388608
        %v5508 = vsub.s32 0, %v5507
        %v5509 = vadd.s32 %v5504, 1
        %vm5510 = vcmp.gt.s32.totalorder %v5509, 0
        %v5511 = vsel %vm5510, %v5509, 0
        %v5512 = vshrl.u32 %v5511, 5
        %v5513 = vand.u32 %v5511, 31
        %v5514 = vsub.s32 32, %v5513
        %v5515 = vshrl.u32 683565275, %v5514
        %v5516 = vshll.u32 683565275, %v5513
        %v5517 = vshrl.u32 2475754826, %v5514
        %v5518 = vor.u32 %v5516, %v5517
        %v5519 = vshll.u32 2475754826, %v5513
        %v5520 = vshrl.u32 2131351028, %v5514
        %v5521 = vor.u32 %v5519, %v5520
        %v5522 = vshll.u32 2131351028, %v5513
        %v5523 = vshrl.u32 2102212464, %v5514
        %v5524 = vor.u32 %v5522, %v5523
        %v5525 = vshll.u32 2102212464, %v5513
        %v5526 = vshrl.u32 920167782, %v5514
        %v5527 = vor.u32 %v5525, %v5526
        %v5528 = vshll.u32 920167782, %v5513
        %v5529 = vshrl.u32 1326507024, %v5514
        %v5530 = vor.u32 %v5528, %v5529
        %vm5531 = vcmp.lt.s32.totalorder %v5512, 1
        %vm5532 = vcmp.lt.s32.totalorder %v5512, 2
        %vm5533 = vcmp.lt.s32.totalorder %v5512, 3
        %vm5534 = vcmp.lt.s32.totalorder %v5512, 4
        %v5535 = vsel %vm5531, %v5515, %v5518
        %v5536 = vsel %vm5534, %v5524, 2102212464
        %v5537 = vsel %vm5533, %v5521, %v5536
        %v5538 = vsel %vm5532, %v5535, %v5537
        %v5539 = vsel %vm5531, %v5518, %v5521
        %v5540 = vsel %vm5534, %v5527, 920167782
        %v5541 = vsel %vm5533, %v5524, %v5540
        %v5542 = vsel %vm5532, %v5539, %v5541
        %v5543 = vsel %vm5531, %v5521, %v5524
        %v5544 = vsel %vm5534, %v5530, 1326507024
        %v5545 = vsel %vm5533, %v5527, %v5544
        %v5546 = vsel %vm5532, %v5543, %v5545
        %v5547 = vshll.u32 %v5507, 8
        %v5548 = vmul.u32.u64.compose %v5547, %v5546
        %v5549 = vextract.low.u32 %v5548
        %v5550 = vextract.high.u32 %v5548
        %v5551 = vmul.u32.u64.compose %v5547, %v5542
        %v5552 = vextract.low.u32 %v5551
        %v5553 = vextract.high.u32 %v5551
        %v5554 = vmul.u32 %v5547, %v5538
        %v5555 = vadd.s32 %v5550, %v5552
        %vm5556 = vc.u32 %v5550, %v5552
        %v5557 = vadd.s32 %v5553, 1
        %v5558 = vsel %vm5556, %v5557, %v5553
        %v5559 = vadd.s32 %v5554, %v5558
        %v5560 = vadd.s32 %v5559, 536870912
        %v5561 = vshrl.u32 %v5560, 30
        %v5562 = vshll.u32 %v5561, 30
        %v5563 = vsub.s32 %v5559, %v5562
        %vm5564 = vcmp.lt.s32.totalorder %v5563, 0
        %v5565 = vsub.s32 0, %v5563
        %v5566 = vsel %vm5564, %v5565, %v5563
        %v5567 = vclz %v5566
        %v5568 = vsub.s32 %v5567, 2
        %vm5569 = vcmp.gt.s32.totalorder 0, %v5568
        %v5570 = vsel %vm5569, 0, %v5568
        %v5571 = vsub.s32 32, %v5570
        %v5572 = vshll.u32 %v5563, %v5570
        %v5573 = vshrl.u32 %v5555, %v5571
        %v5574 = vor.u32 %v5572, %v5573
        %v5575 = vsub.s32 4294967266, %v5570
        %v5576 = vadd.s32 %v5575, 127
        %v5577 = vshll.u32 %v5576, 23
        %v5578 = vor.u32 4788187, %v5577
        %v5579 = vand.u32 2147483647, %v5578
        %v5581 = vcvt.s32.f32 %v5574
        %v5582 = vmul.f32 %v5581, %v5579
        %v5583 = vxor.u32 %v5582, 2147483648
        %v5584 = vsel %vm5501, %v5583, %v5582
        %v5585 = vsub.s32 4, %v5561
        %v5586 = vsel %vm5501, %v5585, %v5561
        %v5587 = vsel %vm5500, %v5498, %v5584
        %v5588 = vsel %vm5500, 0, %v5586
        %v5589 = vcosq.f32.pop %v5587
        %v5590 = vsinq.f32.pop %v5587
        %vm5591 = vweird.f32 %v5498
        %v5592 = vadd.s32 %v5588, 3
        %v5593 = vand.u32 %v5592, 3
        %vm5594 = vcmp.lt.s32.totalorder %v5593, 2
        %vm5595 = vcmp.eq.s32.totalorder %v5593, 0
        %v5596 = vxor.u32 %v5590, 2147483648
        %v5597 = vsel %vm5595, %v5589, %v5596
        %vm5598 = vcmp.eq.s32.totalorder %v5593, 2
        %v5599 = vxor.u32 %v5589, 2147483648
        %v5600 = vsel %vm5598, %v5599, %v5590
        %v5601 = vsel %vm5594, %v5597, %v5600
        %v5602 = vsel %vm5591, nan, %v5601
        %s5603 = scalar_lea.vmem %s172, 368 [#allocation5]
        %5604 = vst.msk [vmem:[%s5603] sm:$0xff] %vm262, %v5602
        %v5605 = vand.u32 2147483647, %v5498
        %vm5606 = vcmp.le.f32.partialorder %v5605, 0.7853982
        %vm5607 = vcmp.lt.s32.totalorder %v5498, 0
        %v5608 = vand.u32 %v5498, 2139095040
        %v5609 = vshrl.u32 %v5608, 23
        %v5610 = vsub.s32 %v5609, 127
        %v5611 = vand.u32 2147483647, %v5498
        %v5612 = vand.u32 %v5611, 8388607
        %v5613 = vor.u32 %v5612, 8388608
        %v5614 = vsub.s32 0, %v5613
        %v5615 = vadd.s32 %v5610, 1
        %vm5616 = vcmp.gt.s32.totalorder %v5615, 0
        %v5617 = vsel %vm5616, %v5615, 0
        %v5618 = vshrl.u32 %v5617, 5
        %v5619 = vand.u32 %v5617, 31
        %v5620 = vsub.s32 32, %v5619
        %v5621 = vshrl.u32 683565275, %v5620
        %v5622 = vshll.u32 683565275, %v5619
        %v5623 = vshrl.u32 2475754826, %v5620
        %v5624 = vor.u32 %v5622, %v5623
        %v5625 = vshll.u32 2475754826, %v5619
        %v5626 = vshrl.u32 2131351028, %v5620
        %v5627 = vor.u32 %v5625, %v5626
        %v5628 = vshll.u32 2131351028, %v5619
        %v5629 = vshrl.u32 2102212464, %v5620
        %v5630 = vor.u32 %v5628, %v5629
        %v5631 = vshll.u32 2102212464, %v5619
        %v5632 = vshrl.u32 920167782, %v5620
        %v5633 = vor.u32 %v5631, %v5632
        %v5634 = vshll.u32 920167782, %v5619
        %v5635 = vshrl.u32 1326507024, %v5620
        %v5636 = vor.u32 %v5634, %v5635
        %vm5637 = vcmp.lt.s32.totalorder %v5618, 1
        %vm5638 = vcmp.lt.s32.totalorder %v5618, 2
        %vm5639 = vcmp.lt.s32.totalorder %v5618, 3
        %vm5640 = vcmp.lt.s32.totalorder %v5618, 4
        %v5641 = vsel %vm5637, %v5621, %v5624
        %v5642 = vsel %vm5640, %v5630, 2102212464
        %v5643 = vsel %vm5639, %v5627, %v5642
        %v5644 = vsel %vm5638, %v5641, %v5643
        %v5645 = vsel %vm5637, %v5624, %v5627
        %v5646 = vsel %vm5640, %v5633, 920167782
        %v5647 = vsel %vm5639, %v5630, %v5646
        %v5648 = vsel %vm5638, %v5645, %v5647
        %v5649 = vsel %vm5637, %v5627, %v5630
        %v5650 = vsel %vm5640, %v5636, 1326507024
        %v5651 = vsel %vm5639, %v5633, %v5650
        %v5652 = vsel %vm5638, %v5649, %v5651
        %v5653 = vshll.u32 %v5613, 8
        %v5654 = vmul.u32.u64.compose %v5653, %v5652
        %v5655 = vextract.low.u32 %v5654
        %v5656 = vextract.high.u32 %v5654
        %v5657 = vmul.u32.u64.compose %v5653, %v5648
        %v5658 = vextract.low.u32 %v5657
        %v5659 = vextract.high.u32 %v5657
        %v5660 = vmul.u32 %v5653, %v5644
        %v5661 = vadd.s32 %v5656, %v5658
        %vm5662 = vc.u32 %v5656, %v5658
        %v5663 = vadd.s32 %v5659, 1
        %v5664 = vsel %vm5662, %v5663, %v5659
        %v5665 = vadd.s32 %v5660, %v5664
        %v5666 = vadd.s32 %v5665, 536870912
        %v5667 = vshrl.u32 %v5666, 30
        %v5668 = vshll.u32 %v5667, 30
        %v5669 = vsub.s32 %v5665, %v5668
        %vm5670 = vcmp.lt.s32.totalorder %v5669, 0
        %v5671 = vsub.s32 0, %v5669
        %v5672 = vsel %vm5670, %v5671, %v5669
        %v5673 = vclz %v5672
        %v5674 = vsub.s32 %v5673, 2
        %vm5675 = vcmp.gt.s32.totalorder 0, %v5674
        %v5676 = vsel %vm5675, 0, %v5674
        %v5677 = vsub.s32 32, %v5676
        %v5678 = vshll.u32 %v5669, %v5676
        %v5679 = vshrl.u32 %v5661, %v5677
        %v5680 = vor.u32 %v5678, %v5679
        %v5681 = vsub.s32 4294967266, %v5676
        %v5682 = vadd.s32 %v5681, 127
        %v5683 = vshll.u32 %v5682, 23
        %v5684 = vor.u32 4788187, %v5683
        %v5685 = vand.u32 2147483647, %v5684
        %v5687 = vcvt.s32.f32 %v5680
        %v5688 = vmul.f32 %v5687, %v5685
        %v5689 = vxor.u32 %v5688, 2147483648
        %v5690 = vsel %vm5607, %v5689, %v5688
        %v5691 = vsub.s32 4, %v5667
        %v5692 = vsel %vm5607, %v5691, %v5667
        %v5693 = vsel %vm5606, %v5498, %v5690
        %v5694 = vsel %vm5606, 0, %v5692
        %v5695 = vcosq.f32.pop %v5693
        %v5696 = vsinq.f32.pop %v5693
        %vm5697 = vweird.f32 %v5498
        %v5698 = vand.u32 %v5694, 3
        %vm5699 = vcmp.lt.s32.totalorder %v5698, 2
        %vm5700 = vcmp.eq.s32.totalorder %v5698, 0
        %v5701 = vxor.u32 %v5696, 2147483648
        %v5702 = vsel %vm5700, %v5695, %v5701
        %vm5703 = vcmp.eq.s32.totalorder %v5698, 2
        %v5704 = vxor.u32 %v5695, 2147483648
        %v5705 = vsel %vm5703, %v5704, %v5696
        %v5706 = vsel %vm5699, %v5702, %v5705
        %v5707 = vsel %vm5697, nan, %v5706
        %s5708 = scalar_lea.vmem %s172, 456 [#allocation5]
        %5709 = vst.msk [vmem:[%s5708] sm:$0xff] %vm262, %v5707
        %v5710 = vmul.f32 %v413, 0.081113085
        %v5711 = vand.u32 2147483647, %v5710
        %vm5712 = vcmp.le.f32.partialorder %v5711, 0.7853982
        %vm5713 = vcmp.lt.s32.totalorder %v5710, 0
        %v5714 = vand.u32 %v5710, 2139095040
        %v5715 = vshrl.u32 %v5714, 23
        %v5716 = vsub.s32 %v5715, 127
        %v5717 = vand.u32 2147483647, %v5710
        %v5718 = vand.u32 %v5717, 8388607
        %v5719 = vor.u32 %v5718, 8388608
        %v5720 = vsub.s32 0, %v5719
        %v5721 = vadd.s32 %v5716, 1
        %vm5722 = vcmp.gt.s32.totalorder %v5721, 0
        %v5723 = vsel %vm5722, %v5721, 0
        %v5724 = vshrl.u32 %v5723, 5
        %v5725 = vand.u32 %v5723, 31
        %v5726 = vsub.s32 32, %v5725
        %v5727 = vshrl.u32 683565275, %v5726
        %v5728 = vshll.u32 683565275, %v5725
        %v5729 = vshrl.u32 2475754826, %v5726
        %v5730 = vor.u32 %v5728, %v5729
        %v5731 = vshll.u32 2475754826, %v5725
        %v5732 = vshrl.u32 2131351028, %v5726
        %v5733 = vor.u32 %v5731, %v5732
        %v5734 = vshll.u32 2131351028, %v5725
        %v5735 = vshrl.u32 2102212464, %v5726
        %v5736 = vor.u32 %v5734, %v5735
        %v5737 = vshll.u32 2102212464, %v5725
        %v5738 = vshrl.u32 920167782, %v5726
        %v5739 = vor.u32 %v5737, %v5738
        %v5740 = vshll.u32 920167782, %v5725
        %v5741 = vshrl.u32 1326507024, %v5726
        %v5742 = vor.u32 %v5740, %v5741
        %vm5743 = vcmp.lt.s32.totalorder %v5724, 1
        %vm5744 = vcmp.lt.s32.totalorder %v5724, 2
        %vm5745 = vcmp.lt.s32.totalorder %v5724, 3
        %vm5746 = vcmp.lt.s32.totalorder %v5724, 4
        %v5747 = vsel %vm5743, %v5727, %v5730
        %v5748 = vsel %vm5746, %v5736, 2102212464
        %v5749 = vsel %vm5745, %v5733, %v5748
        %v5750 = vsel %vm5744, %v5747, %v5749
        %v5751 = vsel %vm5743, %v5730, %v5733
        %v5752 = vsel %vm5746, %v5739, 920167782
        %v5753 = vsel %vm5745, %v5736, %v5752
        %v5754 = vsel %vm5744, %v5751, %v5753
        %v5755 = vsel %vm5743, %v5733, %v5736
        %v5756 = vsel %vm5746, %v5742, 1326507024
        %v5757 = vsel %vm5745, %v5739, %v5756
        %v5758 = vsel %vm5744, %v5755, %v5757
        %v5759 = vshll.u32 %v5719, 8
        %v5760 = vmul.u32.u64.compose %v5759, %v5758
        %v5761 = vextract.low.u32 %v5760
        %v5762 = vextract.high.u32 %v5760
        %v5763 = vmul.u32.u64.compose %v5759, %v5754
        %v5764 = vextract.low.u32 %v5763
        %v5765 = vextract.high.u32 %v5763
        %v5766 = vmul.u32 %v5759, %v5750
        %v5767 = vadd.s32 %v5762, %v5764
        %vm5768 = vc.u32 %v5762, %v5764
        %v5769 = vadd.s32 %v5765, 1
        %v5770 = vsel %vm5768, %v5769, %v5765
        %v5771 = vadd.s32 %v5766, %v5770
        %v5772 = vadd.s32 %v5771, 536870912
        %v5773 = vshrl.u32 %v5772, 30
        %v5774 = vshll.u32 %v5773, 30
        %v5775 = vsub.s32 %v5771, %v5774
        %vm5776 = vcmp.lt.s32.totalorder %v5775, 0
        %v5777 = vsub.s32 0, %v5775
        %v5778 = vsel %vm5776, %v5777, %v5775
        %v5779 = vclz %v5778
        %v5780 = vsub.s32 %v5779, 2
        %vm5781 = vcmp.gt.s32.totalorder 0, %v5780
        %v5782 = vsel %vm5781, 0, %v5780
        %v5783 = vsub.s32 32, %v5782
        %v5784 = vshll.u32 %v5775, %v5782
        %v5785 = vshrl.u32 %v5767, %v5783
        %v5786 = vor.u32 %v5784, %v5785
        %v5787 = vsub.s32 4294967266, %v5782
        %v5788 = vadd.s32 %v5787, 127
        %v5789 = vshll.u32 %v5788, 23
        %v5790 = vor.u32 4788187, %v5789
        %v5791 = vand.u32 2147483647, %v5790
        %v5793 = vcvt.s32.f32 %v5786
        %v5794 = vmul.f32 %v5793, %v5791
        %v5795 = vxor.u32 %v5794, 2147483648
        %v5796 = vsel %vm5713, %v5795, %v5794
        %v5797 = vsub.s32 4, %v5773
        %v5798 = vsel %vm5713, %v5797, %v5773
        %v5799 = vsel %vm5712, %v5710, %v5796
        %v5800 = vsel %vm5712, 0, %v5798
        %v5801 = vcosq.f32.pop %v5799
        %v5802 = vsinq.f32.pop %v5799
        %vm5803 = vweird.f32 %v5710
        %v5804 = vadd.s32 %v5800, 3
        %v5805 = vand.u32 %v5804, 3
        %vm5806 = vcmp.lt.s32.totalorder %v5805, 2
        %vm5807 = vcmp.eq.s32.totalorder %v5805, 0
        %v5808 = vxor.u32 %v5802, 2147483648
        %v5809 = vsel %vm5807, %v5801, %v5808
        %vm5810 = vcmp.eq.s32.totalorder %v5805, 2
        %v5811 = vxor.u32 %v5801, 2147483648
        %v5812 = vsel %vm5810, %v5811, %v5802
        %v5813 = vsel %vm5806, %v5809, %v5812
        %v5814 = vsel %vm5803, nan, %v5813
        %s5815 = scalar_lea.vmem %s172, 376 [#allocation5]
        %5816 = vst.msk [vmem:[%s5815] sm:$0xff] %vm262, %v5814
        %v5817 = vand.u32 2147483647, %v5710
        %vm5818 = vcmp.le.f32.partialorder %v5817, 0.7853982
        %vm5819 = vcmp.lt.s32.totalorder %v5710, 0
        %v5820 = vand.u32 %v5710, 2139095040
        %v5821 = vshrl.u32 %v5820, 23
        %v5822 = vsub.s32 %v5821, 127
        %v5823 = vand.u32 2147483647, %v5710
        %v5824 = vand.u32 %v5823, 8388607
        %v5825 = vor.u32 %v5824, 8388608
        %v5826 = vsub.s32 0, %v5825
        %v5827 = vadd.s32 %v5822, 1
        %vm5828 = vcmp.gt.s32.totalorder %v5827, 0
        %v5829 = vsel %vm5828, %v5827, 0
        %v5830 = vshrl.u32 %v5829, 5
        %v5831 = vand.u32 %v5829, 31
        %v5832 = vsub.s32 32, %v5831
        %v5833 = vshrl.u32 683565275, %v5832
        %v5834 = vshll.u32 683565275, %v5831
        %v5835 = vshrl.u32 2475754826, %v5832
        %v5836 = vor.u32 %v5834, %v5835
        %v5837 = vshll.u32 2475754826, %v5831
        %v5838 = vshrl.u32 2131351028, %v5832
        %v5839 = vor.u32 %v5837, %v5838
        %v5840 = vshll.u32 2131351028, %v5831
        %v5841 = vshrl.u32 2102212464, %v5832
        %v5842 = vor.u32 %v5840, %v5841
        %v5843 = vshll.u32 2102212464, %v5831
        %v5844 = vshrl.u32 920167782, %v5832
        %v5845 = vor.u32 %v5843, %v5844
        %v5846 = vshll.u32 920167782, %v5831
        %v5847 = vshrl.u32 1326507024, %v5832
        %v5848 = vor.u32 %v5846, %v5847
        %vm5849 = vcmp.lt.s32.totalorder %v5830, 1
        %vm5850 = vcmp.lt.s32.totalorder %v5830, 2
        %vm5851 = vcmp.lt.s32.totalorder %v5830, 3
        %vm5852 = vcmp.lt.s32.totalorder %v5830, 4
        %v5853 = vsel %vm5849, %v5833, %v5836
        %v5854 = vsel %vm5852, %v5842, 2102212464
        %v5855 = vsel %vm5851, %v5839, %v5854
        %v5856 = vsel %vm5850, %v5853, %v5855
        %v5857 = vsel %vm5849, %v5836, %v5839
        %v5858 = vsel %vm5852, %v5845, 920167782
        %v5859 = vsel %vm5851, %v5842, %v5858
        %v5860 = vsel %vm5850, %v5857, %v5859
        %v5861 = vsel %vm5849, %v5839, %v5842
        %v5862 = vsel %vm5852, %v5848, 1326507024
        %v5863 = vsel %vm5851, %v5845, %v5862
        %v5864 = vsel %vm5850, %v5861, %v5863
        %v5865 = vshll.u32 %v5825, 8
        %v5866 = vmul.u32.u64.compose %v5865, %v5864
        %v5867 = vextract.low.u32 %v5866
        %v5868 = vextract.high.u32 %v5866
        %v5869 = vmul.u32.u64.compose %v5865, %v5860
        %v5870 = vextract.low.u32 %v5869
        %v5871 = vextract.high.u32 %v5869
        %v5872 = vmul.u32 %v5865, %v5856
        %v5873 = vadd.s32 %v5868, %v5870
        %vm5874 = vc.u32 %v5868, %v5870
        %v5875 = vadd.s32 %v5871, 1
        %v5876 = vsel %vm5874, %v5875, %v5871
        %v5877 = vadd.s32 %v5872, %v5876
        %v5878 = vadd.s32 %v5877, 536870912
        %v5879 = vshrl.u32 %v5878, 30
        %v5880 = vshll.u32 %v5879, 30
        %v5881 = vsub.s32 %v5877, %v5880
        %vm5882 = vcmp.lt.s32.totalorder %v5881, 0
        %v5883 = vsub.s32 0, %v5881
        %v5884 = vsel %vm5882, %v5883, %v5881
        %v5885 = vclz %v5884
        %v5886 = vsub.s32 %v5885, 2
        %vm5887 = vcmp.gt.s32.totalorder 0, %v5886
        %v5888 = vsel %vm5887, 0, %v5886
        %v5889 = vsub.s32 32, %v5888
        %v5890 = vshll.u32 %v5881, %v5888
        %v5891 = vshrl.u32 %v5873, %v5889
        %v5892 = vor.u32 %v5890, %v5891
        %v5893 = vsub.s32 4294967266, %v5888
        %v5894 = vadd.s32 %v5893, 127
        %v5895 = vshll.u32 %v5894, 23
        %v5896 = vor.u32 4788187, %v5895
        %v5897 = vand.u32 2147483647, %v5896
        %v5899 = vcvt.s32.f32 %v5892
        %v5900 = vmul.f32 %v5899, %v5897
        %v5901 = vxor.u32 %v5900, 2147483648
        %v5902 = vsel %vm5819, %v5901, %v5900
        %v5903 = vsub.s32 4, %v5879
        %v5904 = vsel %vm5819, %v5903, %v5879
        %v5905 = vsel %vm5818, %v5710, %v5902
        %v5906 = vsel %vm5818, 0, %v5904
        %v5907 = vcosq.f32.pop %v5905
        %v5908 = vsinq.f32.pop %v5905
        %vm5909 = vweird.f32 %v5710
        %v5910 = vand.u32 %v5906, 3
        %vm5911 = vcmp.lt.s32.totalorder %v5910, 2
        %vm5912 = vcmp.eq.s32.totalorder %v5910, 0
        %v5913 = vxor.u32 %v5908, 2147483648
        %v5914 = vsel %vm5912, %v5907, %v5913
        %vm5915 = vcmp.eq.s32.totalorder %v5910, 2
        %v5916 = vxor.u32 %v5907, 2147483648
        %v5917 = vsel %vm5915, %v5916, %v5908
        %v5918 = vsel %vm5911, %v5914, %v5917
        %v5919 = vsel %vm5909, nan, %v5918
        %s5920 = scalar_lea.vmem %s172, 464 [#allocation5]
        %5921 = vst.msk [vmem:[%s5920] sm:$0xff] %vm262, %v5919
        %v5922 = vmul.f32 %v413, 0.03511192
        %v5923 = vand.u32 2147483647, %v5922
        %vm5924 = vcmp.le.f32.partialorder %v5923, 0.7853982
        %vm5925 = vcmp.lt.s32.totalorder %v5922, 0
        %v5926 = vand.u32 %v5922, 2139095040
        %v5927 = vshrl.u32 %v5926, 23
        %v5928 = vsub.s32 %v5927, 127
        %v5929 = vand.u32 2147483647, %v5922
        %v5930 = vand.u32 %v5929, 8388607
        %v5931 = vor.u32 %v5930, 8388608
        %v5932 = vsub.s32 0, %v5931
        %v5933 = vadd.s32 %v5928, 1
        %vm5934 = vcmp.gt.s32.totalorder %v5933, 0
        %v5935 = vsel %vm5934, %v5933, 0
        %v5936 = vshrl.u32 %v5935, 5
        %v5937 = vand.u32 %v5935, 31
        %v5938 = vsub.s32 32, %v5937
        %v5939 = vshrl.u32 683565275, %v5938
        %v5940 = vshll.u32 683565275, %v5937
        %v5941 = vshrl.u32 2475754826, %v5938
        %v5942 = vor.u32 %v5940, %v5941
        %v5943 = vshll.u32 2475754826, %v5937
        %v5944 = vshrl.u32 2131351028, %v5938
        %v5945 = vor.u32 %v5943, %v5944
        %v5946 = vshll.u32 2131351028, %v5937
        %v5947 = vshrl.u32 2102212464, %v5938
        %v5948 = vor.u32 %v5946, %v5947
        %v5949 = vshll.u32 2102212464, %v5937
        %v5950 = vshrl.u32 920167782, %v5938
        %v5951 = vor.u32 %v5949, %v5950
        %v5952 = vshll.u32 920167782, %v5937
        %v5953 = vshrl.u32 1326507024, %v5938
        %v5954 = vor.u32 %v5952, %v5953
        %vm5955 = vcmp.lt.s32.totalorder %v5936, 1
        %vm5956 = vcmp.lt.s32.totalorder %v5936, 2
        %vm5957 = vcmp.lt.s32.totalorder %v5936, 3
        %vm5958 = vcmp.lt.s32.totalorder %v5936, 4
        %v5959 = vsel %vm5955, %v5939, %v5942
        %v5960 = vsel %vm5958, %v5948, 2102212464
        %v5961 = vsel %vm5957, %v5945, %v5960
        %v5962 = vsel %vm5956, %v5959, %v5961
        %v5963 = vsel %vm5955, %v5942, %v5945
        %v5964 = vsel %vm5958, %v5951, 920167782
        %v5965 = vsel %vm5957, %v5948, %v5964
        %v5966 = vsel %vm5956, %v5963, %v5965
        %v5967 = vsel %vm5955, %v5945, %v5948
        %v5968 = vsel %vm5958, %v5954, 1326507024
        %v5969 = vsel %vm5957, %v5951, %v5968
        %v5970 = vsel %vm5956, %v5967, %v5969
        %v5971 = vshll.u32 %v5931, 8
        %v5972 = vmul.u32.u64.compose %v5971, %v5970
        %v5973 = vextract.low.u32 %v5972
        %v5974 = vextract.high.u32 %v5972
        %v5975 = vmul.u32.u64.compose %v5971, %v5966
        %v5976 = vextract.low.u32 %v5975
        %v5977 = vextract.high.u32 %v5975
        %v5978 = vmul.u32 %v5971, %v5962
        %v5979 = vadd.s32 %v5974, %v5976
        %vm5980 = vc.u32 %v5974, %v5976
        %v5981 = vadd.s32 %v5977, 1
        %v5982 = vsel %vm5980, %v5981, %v5977
        %v5983 = vadd.s32 %v5978, %v5982
        %v5984 = vadd.s32 %v5983, 536870912
        %v5985 = vshrl.u32 %v5984, 30
        %v5986 = vshll.u32 %v5985, 30
        %v5987 = vsub.s32 %v5983, %v5986
        %vm5988 = vcmp.lt.s32.totalorder %v5987, 0
        %v5989 = vsub.s32 0, %v5987
        %v5990 = vsel %vm5988, %v5989, %v5987
        %v5991 = vclz %v5990
        %v5992 = vsub.s32 %v5991, 2
        %vm5993 = vcmp.gt.s32.totalorder 0, %v5992
        %v5994 = vsel %vm5993, 0, %v5992
        %v5995 = vsub.s32 32, %v5994
        %v5996 = vshll.u32 %v5987, %v5994
        %v5997 = vshrl.u32 %v5979, %v5995
        %v5998 = vor.u32 %v5996, %v5997
        %v5999 = vsub.s32 4294967266, %v5994
        %v6000 = vadd.s32 %v5999, 127
        %v6001 = vshll.u32 %v6000, 23
        %v6002 = vor.u32 4788187, %v6001
        %v6003 = vand.u32 2147483647, %v6002
        %v6005 = vcvt.s32.f32 %v5998
        %v6006 = vmul.f32 %v6005, %v6003
        %v6007 = vxor.u32 %v6006, 2147483648
        %v6008 = vsel %vm5925, %v6007, %v6006
        %v6009 = vsub.s32 4, %v5985
        %v6010 = vsel %vm5925, %v6009, %v5985
        %v6011 = vsel %vm5924, %v5922, %v6008
        %v6012 = vsel %vm5924, 0, %v6010
        %v6013 = vcosq.f32.pop %v6011
        %v6014 = vsinq.f32.pop %v6011
        %vm6015 = vweird.f32 %v5922
        %v6016 = vadd.s32 %v6012, 3
        %v6017 = vand.u32 %v6016, 3
        %vm6018 = vcmp.lt.s32.totalorder %v6017, 2
        %vm6019 = vcmp.eq.s32.totalorder %v6017, 0
        %v6020 = vxor.u32 %v6014, 2147483648
        %v6021 = vsel %vm6019, %v6013, %v6020
        %vm6022 = vcmp.eq.s32.totalorder %v6017, 2
        %v6023 = vxor.u32 %v6013, 2147483648
        %v6024 = vsel %vm6022, %v6023, %v6014
        %v6025 = vsel %vm6018, %v6021, %v6024
        %v6026 = vsel %vm6015, nan, %v6025
        %s6027 = scalar_lea.vmem %s172, 384 [#allocation5]
        %6028 = vst.msk [vmem:[%s6027] sm:$0xff] %vm262, %v6026
        %v6029 = vand.u32 2147483647, %v5922
        %vm6030 = vcmp.le.f32.partialorder %v6029, 0.7853982
        %vm6031 = vcmp.lt.s32.totalorder %v5922, 0
        %v6032 = vand.u32 %v5922, 2139095040
        %v6033 = vshrl.u32 %v6032, 23
        %v6034 = vsub.s32 %v6033, 127
        %v6035 = vand.u32 2147483647, %v5922
        %v6036 = vand.u32 %v6035, 8388607
        %v6037 = vor.u32 %v6036, 8388608
        %v6038 = vsub.s32 0, %v6037
        %v6039 = vadd.s32 %v6034, 1
        %vm6040 = vcmp.gt.s32.totalorder %v6039, 0
        %v6041 = vsel %vm6040, %v6039, 0
        %v6042 = vshrl.u32 %v6041, 5
        %v6043 = vand.u32 %v6041, 31
        %v6044 = vsub.s32 32, %v6043
        %v6045 = vshrl.u32 683565275, %v6044
        %v6046 = vshll.u32 683565275, %v6043
        %v6047 = vshrl.u32 2475754826, %v6044
        %v6048 = vor.u32 %v6046, %v6047
        %v6049 = vshll.u32 2475754826, %v6043
        %v6050 = vshrl.u32 2131351028, %v6044
        %v6051 = vor.u32 %v6049, %v6050
        %v6052 = vshll.u32 2131351028, %v6043
        %v6053 = vshrl.u32 2102212464, %v6044
        %v6054 = vor.u32 %v6052, %v6053
        %v6055 = vshll.u32 2102212464, %v6043
        %v6056 = vshrl.u32 920167782, %v6044
        %v6057 = vor.u32 %v6055, %v6056
        %v6058 = vshll.u32 920167782, %v6043
        %v6059 = vshrl.u32 1326507024, %v6044
        %v6060 = vor.u32 %v6058, %v6059
        %vm6061 = vcmp.lt.s32.totalorder %v6042, 1
        %vm6062 = vcmp.lt.s32.totalorder %v6042, 2
        %vm6063 = vcmp.lt.s32.totalorder %v6042, 3
        %vm6064 = vcmp.lt.s32.totalorder %v6042, 4
        %v6065 = vsel %vm6061, %v6045, %v6048
        %v6066 = vsel %vm6064, %v6054, 2102212464
        %v6067 = vsel %vm6063, %v6051, %v6066
        %v6068 = vsel %vm6062, %v6065, %v6067
        %v6069 = vsel %vm6061, %v6048, %v6051
        %v6070 = vsel %vm6064, %v6057, 920167782
        %v6071 = vsel %vm6063, %v6054, %v6070
        %v6072 = vsel %vm6062, %v6069, %v6071
        %v6073 = vsel %vm6061, %v6051, %v6054
        %v6074 = vsel %vm6064, %v6060, 1326507024
        %v6075 = vsel %vm6063, %v6057, %v6074
        %v6076 = vsel %vm6062, %v6073, %v6075
        %v6077 = vshll.u32 %v6037, 8
        %v6078 = vmul.u32.u64.compose %v6077, %v6076
        %v6079 = vextract.low.u32 %v6078
        %v6080 = vextract.high.u32 %v6078
        %v6081 = vmul.u32.u64.compose %v6077, %v6072
        %v6082 = vextract.low.u32 %v6081
        %v6083 = vextract.high.u32 %v6081
        %v6084 = vmul.u32 %v6077, %v6068
        %v6085 = vadd.s32 %v6080, %v6082
        %vm6086 = vc.u32 %v6080, %v6082
        %v6087 = vadd.s32 %v6083, 1
        %v6088 = vsel %vm6086, %v6087, %v6083
        %v6089 = vadd.s32 %v6084, %v6088
        %v6090 = vadd.s32 %v6089, 536870912
        %v6091 = vshrl.u32 %v6090, 30
        %v6092 = vshll.u32 %v6091, 30
        %v6093 = vsub.s32 %v6089, %v6092
        %vm6094 = vcmp.lt.s32.totalorder %v6093, 0
        %v6095 = vsub.s32 0, %v6093
        %v6096 = vsel %vm6094, %v6095, %v6093
        %v6097 = vclz %v6096
        %v6098 = vsub.s32 %v6097, 2
        %vm6099 = vcmp.gt.s32.totalorder 0, %v6098
        %v6100 = vsel %vm6099, 0, %v6098
        %v6101 = vsub.s32 32, %v6100
        %v6102 = vshll.u32 %v6093, %v6100
        %v6103 = vshrl.u32 %v6085, %v6101
        %v6104 = vor.u32 %v6102, %v6103
        %v6105 = vsub.s32 4294967266, %v6100
        %v6106 = vadd.s32 %v6105, 127
        %v6107 = vshll.u32 %v6106, 23
        %v6108 = vor.u32 4788187, %v6107
        %v6109 = vand.u32 2147483647, %v6108
        %v6111 = vcvt.s32.f32 %v6104
        %v6112 = vmul.f32 %v6111, %v6109
        %v6113 = vxor.u32 %v6112, 2147483648
        %v6114 = vsel %vm6031, %v6113, %v6112
        %v6115 = vsub.s32 4, %v6091
        %v6116 = vsel %vm6031, %v6115, %v6091
        %v6117 = vsel %vm6030, %v5922, %v6114
        %v6118 = vsel %vm6030, 0, %v6116
        %v6119 = vcosq.f32.pop %v6117
        %v6120 = vsinq.f32.pop %v6117
        %vm6121 = vweird.f32 %v5922
        %v6122 = vand.u32 %v6118, 3
        %vm6123 = vcmp.lt.s32.totalorder %v6122, 2
        %vm6124 = vcmp.eq.s32.totalorder %v6122, 0
        %v6125 = vxor.u32 %v6120, 2147483648
        %v6126 = vsel %vm6124, %v6119, %v6125
        %vm6127 = vcmp.eq.s32.totalorder %v6122, 2
        %v6128 = vxor.u32 %v6119, 2147483648
        %v6129 = vsel %vm6127, %v6128, %v6120
        %v6130 = vsel %vm6123, %v6126, %v6129
        %v6131 = vsel %vm6121, nan, %v6130
        %s6132 = scalar_lea.vmem %s172, 472 [#allocation5]
        %6133 = vst.msk [vmem:[%s6132] sm:$0xff] %vm262, %v6131
        %v6134 = vmul.f32 %v413, 0.015199111
        %v6135 = vand.u32 2147483647, %v6134
        %vm6136 = vcmp.le.f32.partialorder %v6135, 0.7853982
        %vm6137 = vcmp.lt.s32.totalorder %v6134, 0
        %v6138 = vand.u32 %v6134, 2139095040
        %v6139 = vshrl.u32 %v6138, 23
        %v6140 = vsub.s32 %v6139, 127
        %v6141 = vand.u32 2147483647, %v6134
        %v6142 = vand.u32 %v6141, 8388607
        %v6143 = vor.u32 %v6142, 8388608
        %v6144 = vsub.s32 0, %v6143
        %v6145 = vadd.s32 %v6140, 1
        %vm6146 = vcmp.gt.s32.totalorder %v6145, 0
        %v6147 = vsel %vm6146, %v6145, 0
        %v6148 = vshrl.u32 %v6147, 5
        %v6149 = vand.u32 %v6147, 31
        %v6150 = vsub.s32 32, %v6149
        %v6151 = vshrl.u32 683565275, %v6150
        %v6152 = vshll.u32 683565275, %v6149
        %v6153 = vshrl.u32 2475754826, %v6150
        %v6154 = vor.u32 %v6152, %v6153
        %v6155 = vshll.u32 2475754826, %v6149
        %v6156 = vshrl.u32 2131351028, %v6150
        %v6157 = vor.u32 %v6155, %v6156
        %v6158 = vshll.u32 2131351028, %v6149
        %v6159 = vshrl.u32 2102212464, %v6150
        %v6160 = vor.u32 %v6158, %v6159
        %v6161 = vshll.u32 2102212464, %v6149
        %v6162 = vshrl.u32 920167782, %v6150
        %v6163 = vor.u32 %v6161, %v6162
        %v6164 = vshll.u32 920167782, %v6149
        %v6165 = vshrl.u32 1326507024, %v6150
        %v6166 = vor.u32 %v6164, %v6165
        %vm6167 = vcmp.lt.s32.totalorder %v6148, 1
        %vm6168 = vcmp.lt.s32.totalorder %v6148, 2
        %vm6169 = vcmp.lt.s32.totalorder %v6148, 3
        %vm6170 = vcmp.lt.s32.totalorder %v6148, 4
        %v6171 = vsel %vm6167, %v6151, %v6154
        %v6172 = vsel %vm6170, %v6160, 2102212464
        %v6173 = vsel %vm6169, %v6157, %v6172
        %v6174 = vsel %vm6168, %v6171, %v6173
        %v6175 = vsel %vm6167, %v6154, %v6157
        %v6176 = vsel %vm6170, %v6163, 920167782
        %v6177 = vsel %vm6169, %v6160, %v6176
        %v6178 = vsel %vm6168, %v6175, %v6177
        %v6179 = vsel %vm6167, %v6157, %v6160
        %v6180 = vsel %vm6170, %v6166, 1326507024
        %v6181 = vsel %vm6169, %v6163, %v6180
        %v6182 = vsel %vm6168, %v6179, %v6181
        %v6183 = vshll.u32 %v6143, 8
        %v6184 = vmul.u32.u64.compose %v6183, %v6182
        %v6185 = vextract.low.u32 %v6184
        %v6186 = vextract.high.u32 %v6184
        %v6187 = vmul.u32.u64.compose %v6183, %v6178
        %v6188 = vextract.low.u32 %v6187
        %v6189 = vextract.high.u32 %v6187
        %v6190 = vmul.u32 %v6183, %v6174
        %v6191 = vadd.s32 %v6186, %v6188
        %vm6192 = vc.u32 %v6186, %v6188
        %v6193 = vadd.s32 %v6189, 1
        %v6194 = vsel %vm6192, %v6193, %v6189
        %v6195 = vadd.s32 %v6190, %v6194
        %v6196 = vadd.s32 %v6195, 536870912
        %v6197 = vshrl.u32 %v6196, 30
        %v6198 = vshll.u32 %v6197, 30
        %v6199 = vsub.s32 %v6195, %v6198
        %vm6200 = vcmp.lt.s32.totalorder %v6199, 0
        %v6201 = vsub.s32 0, %v6199
        %v6202 = vsel %vm6200, %v6201, %v6199
        %v6203 = vclz %v6202
        %v6204 = vsub.s32 %v6203, 2
        %vm6205 = vcmp.gt.s32.totalorder 0, %v6204
        %v6206 = vsel %vm6205, 0, %v6204
        %v6207 = vsub.s32 32, %v6206
        %v6208 = vshll.u32 %v6199, %v6206
        %v6209 = vshrl.u32 %v6191, %v6207
        %v6210 = vor.u32 %v6208, %v6209
        %v6211 = vsub.s32 4294967266, %v6206
        %v6212 = vadd.s32 %v6211, 127
        %v6213 = vshll.u32 %v6212, 23
        %v6214 = vor.u32 4788187, %v6213
        %v6215 = vand.u32 2147483647, %v6214
        %v6217 = vcvt.s32.f32 %v6210
        %v6218 = vmul.f32 %v6217, %v6215
        %v6219 = vxor.u32 %v6218, 2147483648
        %v6220 = vsel %vm6137, %v6219, %v6218
        %v6221 = vsub.s32 4, %v6197
        %v6222 = vsel %vm6137, %v6221, %v6197
        %v6223 = vsel %vm6136, %v6134, %v6220
        %v6224 = vsel %vm6136, 0, %v6222
        %v6225 = vcosq.f32.pop %v6223
        %v6226 = vsinq.f32.pop %v6223
        %vm6227 = vweird.f32 %v6134
        %v6228 = vadd.s32 %v6224, 3
        %v6229 = vand.u32 %v6228, 3
        %vm6230 = vcmp.lt.s32.totalorder %v6229, 2
        %vm6231 = vcmp.eq.s32.totalorder %v6229, 0
        %v6232 = vxor.u32 %v6226, 2147483648
        %v6233 = vsel %vm6231, %v6225, %v6232
        %vm6234 = vcmp.eq.s32.totalorder %v6229, 2
        %v6235 = vxor.u32 %v6225, 2147483648
        %v6236 = vsel %vm6234, %v6235, %v6226
        %v6237 = vsel %vm6230, %v6233, %v6236
        %v6238 = vsel %vm6227, nan, %v6237
        %s6239 = scalar_lea.vmem %s172, 392 [#allocation5]
        %6240 = vst.msk [vmem:[%s6239] sm:$0xff] %vm262, %v6238
        %v6241 = vand.u32 2147483647, %v6134
        %vm6242 = vcmp.le.f32.partialorder %v6241, 0.7853982
        %vm6243 = vcmp.lt.s32.totalorder %v6134, 0
        %v6244 = vand.u32 %v6134, 2139095040
        %v6245 = vshrl.u32 %v6244, 23
        %v6246 = vsub.s32 %v6245, 127
        %v6247 = vand.u32 2147483647, %v6134
        %v6248 = vand.u32 %v6247, 8388607
        %v6249 = vor.u32 %v6248, 8388608
        %v6250 = vsub.s32 0, %v6249
        %v6251 = vadd.s32 %v6246, 1
        %vm6252 = vcmp.gt.s32.totalorder %v6251, 0
        %v6253 = vsel %vm6252, %v6251, 0
        %v6254 = vshrl.u32 %v6253, 5
        %v6255 = vand.u32 %v6253, 31
        %v6256 = vsub.s32 32, %v6255
        %v6257 = vshrl.u32 683565275, %v6256
        %v6258 = vshll.u32 683565275, %v6255
        %v6259 = vshrl.u32 2475754826, %v6256
        %v6260 = vor.u32 %v6258, %v6259
        %v6261 = vshll.u32 2475754826, %v6255
        %v6262 = vshrl.u32 2131351028, %v6256
        %v6263 = vor.u32 %v6261, %v6262
        %v6264 = vshll.u32 2131351028, %v6255
        %v6265 = vshrl.u32 2102212464, %v6256
        %v6266 = vor.u32 %v6264, %v6265
        %v6267 = vshll.u32 2102212464, %v6255
        %v6268 = vshrl.u32 920167782, %v6256
        %v6269 = vor.u32 %v6267, %v6268
        %v6270 = vshll.u32 920167782, %v6255
        %v6271 = vshrl.u32 1326507024, %v6256
        %v6272 = vor.u32 %v6270, %v6271
        %vm6273 = vcmp.lt.s32.totalorder %v6254, 1
        %vm6274 = vcmp.lt.s32.totalorder %v6254, 2
        %vm6275 = vcmp.lt.s32.totalorder %v6254, 3
        %vm6276 = vcmp.lt.s32.totalorder %v6254, 4
        %v6277 = vsel %vm6273, %v6257, %v6260
        %v6278 = vsel %vm6276, %v6266, 2102212464
        %v6279 = vsel %vm6275, %v6263, %v6278
        %v6280 = vsel %vm6274, %v6277, %v6279
        %v6281 = vsel %vm6273, %v6260, %v6263
        %v6282 = vsel %vm6276, %v6269, 920167782
        %v6283 = vsel %vm6275, %v6266, %v6282
        %v6284 = vsel %vm6274, %v6281, %v6283
        %v6285 = vsel %vm6273, %v6263, %v6266
        %v6286 = vsel %vm6276, %v6272, 1326507024
        %v6287 = vsel %vm6275, %v6269, %v6286
        %v6288 = vsel %vm6274, %v6285, %v6287
        %v6289 = vshll.u32 %v6249, 8
        %v6290 = vmul.u32.u64.compose %v6289, %v6288
        %v6291 = vextract.low.u32 %v6290
        %v6292 = vextract.high.u32 %v6290
        %v6293 = vmul.u32.u64.compose %v6289, %v6284
        %v6294 = vextract.low.u32 %v6293
        %v6295 = vextract.high.u32 %v6293
        %v6296 = vmul.u32 %v6289, %v6280
        %v6297 = vadd.s32 %v6292, %v6294
        %vm6298 = vc.u32 %v6292, %v6294
        %v6299 = vadd.s32 %v6295, 1
        %v6300 = vsel %vm6298, %v6299, %v6295
        %v6301 = vadd.s32 %v6296, %v6300
        %v6302 = vadd.s32 %v6301, 536870912
        %v6303 = vshrl.u32 %v6302, 30
        %v6304 = vshll.u32 %v6303, 30
        %v6305 = vsub.s32 %v6301, %v6304
        %vm6306 = vcmp.lt.s32.totalorder %v6305, 0
        %v6307 = vsub.s32 0, %v6305
        %v6308 = vsel %vm6306, %v6307, %v6305
        %v6309 = vclz %v6308
        %v6310 = vsub.s32 %v6309, 2
        %vm6311 = vcmp.gt.s32.totalorder 0, %v6310
        %v6312 = vsel %vm6311, 0, %v6310
        %v6313 = vsub.s32 32, %v6312
        %v6314 = vshll.u32 %v6305, %v6312
        %v6315 = vshrl.u32 %v6297, %v6313
        %v6316 = vor.u32 %v6314, %v6315
        %v6317 = vsub.s32 4294967266, %v6312
        %v6318 = vadd.s32 %v6317, 127
        %v6319 = vshll.u32 %v6318, 23
        %v6320 = vor.u32 4788187, %v6319
        %v6321 = vand.u32 2147483647, %v6320
        %v6323 = vcvt.s32.f32 %v6316
        %v6324 = vmul.f32 %v6323, %v6321
        %v6325 = vxor.u32 %v6324, 2147483648
        %v6326 = vsel %vm6243, %v6325, %v6324
        %v6327 = vsub.s32 4, %v6303
        %v6328 = vsel %vm6243, %v6327, %v6303
        %v6329 = vsel %vm6242, %v6134, %v6326
        %v6330 = vsel %vm6242, 0, %v6328
        %v6331 = vcosq.f32.pop %v6329
        %v6332 = vsinq.f32.pop %v6329
        %vm6333 = vweird.f32 %v6134
        %v6334 = vand.u32 %v6330, 3
        %vm6335 = vcmp.lt.s32.totalorder %v6334, 2
        %vm6336 = vcmp.eq.s32.totalorder %v6334, 0
        %v6337 = vxor.u32 %v6332, 2147483648
        %v6338 = vsel %vm6336, %v6331, %v6337
        %vm6339 = vcmp.eq.s32.totalorder %v6334, 2
        %v6340 = vxor.u32 %v6331, 2147483648
        %v6341 = vsel %vm6339, %v6340, %v6332
        %v6342 = vsel %vm6335, %v6338, %v6341
        %v6343 = vsel %vm6333, nan, %v6342
        %s6344 = scalar_lea.vmem %s172, 480 [#allocation5]
        %6345 = vst.msk [vmem:[%s6344] sm:$0xff] %vm262, %v6343
        %v6346 = vmul.f32 %v413, 0.006579332
        %v6347 = vand.u32 2147483647, %v6346
        %vm6348 = vcmp.le.f32.partialorder %v6347, 0.7853982
        %vm6349 = vcmp.lt.s32.totalorder %v6346, 0
        %v6350 = vand.u32 %v6346, 2139095040
        %v6351 = vshrl.u32 %v6350, 23
        %v6352 = vsub.s32 %v6351, 127
        %v6353 = vand.u32 2147483647, %v6346
        %v6354 = vand.u32 %v6353, 8388607
        %v6355 = vor.u32 %v6354, 8388608
        %v6356 = vsub.s32 0, %v6355
        %v6357 = vadd.s32 %v6352, 1
        %vm6358 = vcmp.gt.s32.totalorder %v6357, 0
        %v6359 = vsel %vm6358, %v6357, 0
        %v6360 = vshrl.u32 %v6359, 5
        %v6361 = vand.u32 %v6359, 31
        %v6362 = vsub.s32 32, %v6361
        %v6363 = vshrl.u32 683565275, %v6362
        %v6364 = vshll.u32 683565275, %v6361
        %v6365 = vshrl.u32 2475754826, %v6362
        %v6366 = vor.u32 %v6364, %v6365
        %v6367 = vshll.u32 2475754826, %v6361
        %v6368 = vshrl.u32 2131351028, %v6362
        %v6369 = vor.u32 %v6367, %v6368
        %v6370 = vshll.u32 2131351028, %v6361
        %v6371 = vshrl.u32 2102212464, %v6362
        %v6372 = vor.u32 %v6370, %v6371
        %v6373 = vshll.u32 2102212464, %v6361
        %v6374 = vshrl.u32 920167782, %v6362
        %v6375 = vor.u32 %v6373, %v6374
        %v6376 = vshll.u32 920167782, %v6361
        %v6377 = vshrl.u32 1326507024, %v6362
        %v6378 = vor.u32 %v6376, %v6377
        %vm6379 = vcmp.lt.s32.totalorder %v6360, 1
        %vm6380 = vcmp.lt.s32.totalorder %v6360, 2
        %vm6381 = vcmp.lt.s32.totalorder %v6360, 3
        %vm6382 = vcmp.lt.s32.totalorder %v6360, 4
        %v6383 = vsel %vm6379, %v6363, %v6366
        %v6384 = vsel %vm6382, %v6372, 2102212464
        %v6385 = vsel %vm6381, %v6369, %v6384
        %v6386 = vsel %vm6380, %v6383, %v6385
        %v6387 = vsel %vm6379, %v6366, %v6369
        %v6388 = vsel %vm6382, %v6375, 920167782
        %v6389 = vsel %vm6381, %v6372, %v6388
        %v6390 = vsel %vm6380, %v6387, %v6389
        %v6391 = vsel %vm6379, %v6369, %v6372
        %v6392 = vsel %vm6382, %v6378, 1326507024
        %v6393 = vsel %vm6381, %v6375, %v6392
        %v6394 = vsel %vm6380, %v6391, %v6393
        %v6395 = vshll.u32 %v6355, 8
        %v6396 = vmul.u32.u64.compose %v6395, %v6394
        %v6397 = vextract.low.u32 %v6396
        %v6398 = vextract.high.u32 %v6396
        %v6399 = vmul.u32.u64.compose %v6395, %v6390
        %v6400 = vextract.low.u32 %v6399
        %v6401 = vextract.high.u32 %v6399
        %v6402 = vmul.u32 %v6395, %v6386
        %v6403 = vadd.s32 %v6398, %v6400
        %vm6404 = vc.u32 %v6398, %v6400
        %v6405 = vadd.s32 %v6401, 1
        %v6406 = vsel %vm6404, %v6405, %v6401
        %v6407 = vadd.s32 %v6402, %v6406
        %v6408 = vadd.s32 %v6407, 536870912
        %v6409 = vshrl.u32 %v6408, 30
        %v6410 = vshll.u32 %v6409, 30
        %v6411 = vsub.s32 %v6407, %v6410
        %vm6412 = vcmp.lt.s32.totalorder %v6411, 0
        %v6413 = vsub.s32 0, %v6411
        %v6414 = vsel %vm6412, %v6413, %v6411
        %v6415 = vclz %v6414
        %v6416 = vsub.s32 %v6415, 2
        %vm6417 = vcmp.gt.s32.totalorder 0, %v6416
        %v6418 = vsel %vm6417, 0, %v6416
        %v6419 = vsub.s32 32, %v6418
        %v6420 = vshll.u32 %v6411, %v6418
        %v6421 = vshrl.u32 %v6403, %v6419
        %v6422 = vor.u32 %v6420, %v6421
        %v6423 = vsub.s32 4294967266, %v6418
        %v6424 = vadd.s32 %v6423, 127
        %v6425 = vshll.u32 %v6424, 23
        %v6426 = vor.u32 4788187, %v6425
        %v6427 = vand.u32 2147483647, %v6426
        %v6429 = vcvt.s32.f32 %v6422
        %v6430 = vmul.f32 %v6429, %v6427
        %v6431 = vxor.u32 %v6430, 2147483648
        %v6432 = vsel %vm6349, %v6431, %v6430
        %v6433 = vsub.s32 4, %v6409
        %v6434 = vsel %vm6349, %v6433, %v6409
        %v6435 = vsel %vm6348, %v6346, %v6432
        %v6436 = vsel %vm6348, 0, %v6434
        %v6437 = vcosq.f32.pop %v6435
        %v6438 = vsinq.f32.pop %v6435
        %vm6439 = vweird.f32 %v6346
        %v6440 = vadd.s32 %v6436, 3
        %v6441 = vand.u32 %v6440, 3
        %vm6442 = vcmp.lt.s32.totalorder %v6441, 2
        %vm6443 = vcmp.eq.s32.totalorder %v6441, 0
        %v6444 = vxor.u32 %v6438, 2147483648
        %v6445 = vsel %vm6443, %v6437, %v6444
        %vm6446 = vcmp.eq.s32.totalorder %v6441, 2
        %v6447 = vxor.u32 %v6437, 2147483648
        %v6448 = vsel %vm6446, %v6447, %v6438
        %v6449 = vsel %vm6442, %v6445, %v6448
        %v6450 = vsel %vm6439, nan, %v6449
        %s6451 = scalar_lea.vmem %s172, 400 [#allocation5]
        %6452 = vst.msk [vmem:[%s6451] sm:$0xff] %vm262, %v6450
        %v6453 = vand.u32 2147483647, %v6346
        %vm6454 = vcmp.le.f32.partialorder %v6453, 0.7853982
        %vm6455 = vcmp.lt.s32.totalorder %v6346, 0
        %v6456 = vand.u32 %v6346, 2139095040
        %v6457 = vshrl.u32 %v6456, 23
        %v6458 = vsub.s32 %v6457, 127
        %v6459 = vand.u32 2147483647, %v6346
        %v6460 = vand.u32 %v6459, 8388607
        %v6461 = vor.u32 %v6460, 8388608
        %v6462 = vsub.s32 0, %v6461
        %v6463 = vadd.s32 %v6458, 1
        %vm6464 = vcmp.gt.s32.totalorder %v6463, 0
        %v6465 = vsel %vm6464, %v6463, 0
        %v6466 = vshrl.u32 %v6465, 5
        %v6467 = vand.u32 %v6465, 31
        %v6468 = vsub.s32 32, %v6467
        %v6469 = vshrl.u32 683565275, %v6468
        %v6470 = vshll.u32 683565275, %v6467
        %v6471 = vshrl.u32 2475754826, %v6468
        %v6472 = vor.u32 %v6470, %v6471
        %v6473 = vshll.u32 2475754826, %v6467
        %v6474 = vshrl.u32 2131351028, %v6468
        %v6475 = vor.u32 %v6473, %v6474
        %v6476 = vshll.u32 2131351028, %v6467
        %v6477 = vshrl.u32 2102212464, %v6468
        %v6478 = vor.u32 %v6476, %v6477
        %v6479 = vshll.u32 2102212464, %v6467
        %v6480 = vshrl.u32 920167782, %v6468
        %v6481 = vor.u32 %v6479, %v6480
        %v6482 = vshll.u32 920167782, %v6467
        %v6483 = vshrl.u32 1326507024, %v6468
        %v6484 = vor.u32 %v6482, %v6483
        %vm6485 = vcmp.lt.s32.totalorder %v6466, 1
        %vm6486 = vcmp.lt.s32.totalorder %v6466, 2
        %vm6487 = vcmp.lt.s32.totalorder %v6466, 3
        %vm6488 = vcmp.lt.s32.totalorder %v6466, 4
        %v6489 = vsel %vm6485, %v6469, %v6472
        %v6490 = vsel %vm6488, %v6478, 2102212464
        %v6491 = vsel %vm6487, %v6475, %v6490
        %v6492 = vsel %vm6486, %v6489, %v6491
        %v6493 = vsel %vm6485, %v6472, %v6475
        %v6494 = vsel %vm6488, %v6481, 920167782
        %v6495 = vsel %vm6487, %v6478, %v6494
        %v6496 = vsel %vm6486, %v6493, %v6495
        %v6497 = vsel %vm6485, %v6475, %v6478
        %v6498 = vsel %vm6488, %v6484, 1326507024
        %v6499 = vsel %vm6487, %v6481, %v6498
        %v6500 = vsel %vm6486, %v6497, %v6499
        %v6501 = vshll.u32 %v6461, 8
        %v6502 = vmul.u32.u64.compose %v6501, %v6500
        %v6503 = vextract.low.u32 %v6502
        %v6504 = vextract.high.u32 %v6502
        %v6505 = vmul.u32.u64.compose %v6501, %v6496
        %v6506 = vextract.low.u32 %v6505
        %v6507 = vextract.high.u32 %v6505
        %v6508 = vmul.u32 %v6501, %v6492
        %v6509 = vadd.s32 %v6504, %v6506
        %vm6510 = vc.u32 %v6504, %v6506
        %v6511 = vadd.s32 %v6507, 1
        %v6512 = vsel %vm6510, %v6511, %v6507
        %v6513 = vadd.s32 %v6508, %v6512
        %v6514 = vadd.s32 %v6513, 536870912
        %v6515 = vshrl.u32 %v6514, 30
        %v6516 = vshll.u32 %v6515, 30
        %v6517 = vsub.s32 %v6513, %v6516
        %vm6518 = vcmp.lt.s32.totalorder %v6517, 0
        %v6519 = vsub.s32 0, %v6517
        %v6520 = vsel %vm6518, %v6519, %v6517
        %v6521 = vclz %v6520
        %v6522 = vsub.s32 %v6521, 2
        %vm6523 = vcmp.gt.s32.totalorder 0, %v6522
        %v6524 = vsel %vm6523, 0, %v6522
        %v6525 = vsub.s32 32, %v6524
        %v6526 = vshll.u32 %v6517, %v6524
        %v6527 = vshrl.u32 %v6509, %v6525
        %v6528 = vor.u32 %v6526, %v6527
        %v6529 = vsub.s32 4294967266, %v6524
        %v6530 = vadd.s32 %v6529, 127
        %v6531 = vshll.u32 %v6530, 23
        %v6532 = vor.u32 4788187, %v6531
        %v6533 = vand.u32 2147483647, %v6532
        %v6535 = vcvt.s32.f32 %v6528
        %v6536 = vmul.f32 %v6535, %v6533
        %v6537 = vxor.u32 %v6536, 2147483648
        %v6538 = vsel %vm6455, %v6537, %v6536
        %v6539 = vsub.s32 4, %v6515
        %v6540 = vsel %vm6455, %v6539, %v6515
        %v6541 = vsel %vm6454, %v6346, %v6538
        %v6542 = vsel %vm6454, 0, %v6540
        %v6543 = vcosq.f32.pop %v6541
        %v6544 = vsinq.f32.pop %v6541
        %vm6545 = vweird.f32 %v6346
        %v6546 = vand.u32 %v6542, 3
        %vm6547 = vcmp.lt.s32.totalorder %v6546, 2
        %vm6548 = vcmp.eq.s32.totalorder %v6546, 0
        %v6549 = vxor.u32 %v6544, 2147483648
        %v6550 = vsel %vm6548, %v6543, %v6549
        %vm6551 = vcmp.eq.s32.totalorder %v6546, 2
        %v6552 = vxor.u32 %v6543, 2147483648
        %v6553 = vsel %vm6551, %v6552, %v6544
        %v6554 = vsel %vm6547, %v6550, %v6553
        %v6555 = vsel %vm6545, nan, %v6554
        %s6556 = scalar_lea.vmem %s172, 488 [#allocation5]
        %6557 = vst.msk [vmem:[%s6556] sm:$0xff] %vm262, %v6555
        %v6558 = vmul.f32 %v413, 0.002848036
        %v6559 = vand.u32 2147483647, %v6558
        %vm6560 = vcmp.le.f32.partialorder %v6559, 0.7853982
        %vm6561 = vcmp.lt.s32.totalorder %v6558, 0
        %v6562 = vand.u32 %v6558, 2139095040
        %v6563 = vshrl.u32 %v6562, 23
        %v6564 = vsub.s32 %v6563, 127
        %v6565 = vand.u32 2147483647, %v6558
        %v6566 = vand.u32 %v6565, 8388607
        %v6567 = vor.u32 %v6566, 8388608
        %v6568 = vsub.s32 0, %v6567
        %v6569 = vadd.s32 %v6564, 1
        %vm6570 = vcmp.gt.s32.totalorder %v6569, 0
        %v6571 = vsel %vm6570, %v6569, 0
        %v6572 = vshrl.u32 %v6571, 5
        %v6573 = vand.u32 %v6571, 31
        %v6574 = vsub.s32 32, %v6573
        %v6575 = vshrl.u32 683565275, %v6574
        %v6576 = vshll.u32 683565275, %v6573
        %v6577 = vshrl.u32 2475754826, %v6574
        %v6578 = vor.u32 %v6576, %v6577
        %v6579 = vshll.u32 2475754826, %v6573
        %v6580 = vshrl.u32 2131351028, %v6574
        %v6581 = vor.u32 %v6579, %v6580
        %v6582 = vshll.u32 2131351028, %v6573
        %v6583 = vshrl.u32 2102212464, %v6574
        %v6584 = vor.u32 %v6582, %v6583
        %v6585 = vshll.u32 2102212464, %v6573
        %v6586 = vshrl.u32 920167782, %v6574
        %v6587 = vor.u32 %v6585, %v6586
        %v6588 = vshll.u32 920167782, %v6573
        %v6589 = vshrl.u32 1326507024, %v6574
        %v6590 = vor.u32 %v6588, %v6589
        %vm6591 = vcmp.lt.s32.totalorder %v6572, 1
        %vm6592 = vcmp.lt.s32.totalorder %v6572, 2
        %vm6593 = vcmp.lt.s32.totalorder %v6572, 3
        %vm6594 = vcmp.lt.s32.totalorder %v6572, 4
        %v6595 = vsel %vm6591, %v6575, %v6578
        %v6596 = vsel %vm6594, %v6584, 2102212464
        %v6597 = vsel %vm6593, %v6581, %v6596
        %v6598 = vsel %vm6592, %v6595, %v6597
        %v6599 = vsel %vm6591, %v6578, %v6581
        %v6600 = vsel %vm6594, %v6587, 920167782
        %v6601 = vsel %vm6593, %v6584, %v6600
        %v6602 = vsel %vm6592, %v6599, %v6601
        %v6603 = vsel %vm6591, %v6581, %v6584
        %v6604 = vsel %vm6594, %v6590, 1326507024
        %v6605 = vsel %vm6593, %v6587, %v6604
        %v6606 = vsel %vm6592, %v6603, %v6605
        %v6607 = vshll.u32 %v6567, 8
        %v6608 = vmul.u32.u64.compose %v6607, %v6606
        %v6609 = vextract.low.u32 %v6608
        %v6610 = vextract.high.u32 %v6608
        %v6611 = vmul.u32.u64.compose %v6607, %v6602
        %v6612 = vextract.low.u32 %v6611
        %v6613 = vextract.high.u32 %v6611
        %v6614 = vmul.u32 %v6607, %v6598
        %v6615 = vadd.s32 %v6610, %v6612
        %vm6616 = vc.u32 %v6610, %v6612
        %v6617 = vadd.s32 %v6613, 1
        %v6618 = vsel %vm6616, %v6617, %v6613
        %v6619 = vadd.s32 %v6614, %v6618
        %v6620 = vadd.s32 %v6619, 536870912
        %v6621 = vshrl.u32 %v6620, 30
        %v6622 = vshll.u32 %v6621, 30
        %v6623 = vsub.s32 %v6619, %v6622
        %vm6624 = vcmp.lt.s32.totalorder %v6623, 0
        %v6625 = vsub.s32 0, %v6623
        %v6626 = vsel %vm6624, %v6625, %v6623
        %v6627 = vclz %v6626
        %v6628 = vsub.s32 %v6627, 2
        %vm6629 = vcmp.gt.s32.totalorder 0, %v6628
        %v6630 = vsel %vm6629, 0, %v6628
        %v6631 = vsub.s32 32, %v6630
        %v6632 = vshll.u32 %v6623, %v6630
        %v6633 = vshrl.u32 %v6615, %v6631
        %v6634 = vor.u32 %v6632, %v6633
        %v6635 = vsub.s32 4294967266, %v6630
        %v6636 = vadd.s32 %v6635, 127
        %v6637 = vshll.u32 %v6636, 23
        %v6638 = vor.u32 4788187, %v6637
        %v6639 = vand.u32 2147483647, %v6638
        %v6641 = vcvt.s32.f32 %v6634
        %v6642 = vmul.f32 %v6641, %v6639
        %v6643 = vxor.u32 %v6642, 2147483648
        %v6644 = vsel %vm6561, %v6643, %v6642
        %v6645 = vsub.s32 4, %v6621
        %v6646 = vsel %vm6561, %v6645, %v6621
        %v6647 = vsel %vm6560, %v6558, %v6644
        %v6648 = vsel %vm6560, 0, %v6646
        %v6649 = vcosq.f32.pop %v6647
        %v6650 = vsinq.f32.pop %v6647
        %vm6651 = vweird.f32 %v6558
        %v6652 = vadd.s32 %v6648, 3
        %v6653 = vand.u32 %v6652, 3
        %vm6654 = vcmp.lt.s32.totalorder %v6653, 2
        %vm6655 = vcmp.eq.s32.totalorder %v6653, 0
        %v6656 = vxor.u32 %v6650, 2147483648
        %v6657 = vsel %vm6655, %v6649, %v6656
        %vm6658 = vcmp.eq.s32.totalorder %v6653, 2
        %v6659 = vxor.u32 %v6649, 2147483648
        %v6660 = vsel %vm6658, %v6659, %v6650
        %v6661 = vsel %vm6654, %v6657, %v6660
        %v6662 = vsel %vm6651, nan, %v6661
        %s6663 = scalar_lea.vmem %s172, 408 [#allocation5]
        %6664 = vst.msk [vmem:[%s6663] sm:$0xff] %vm262, %v6662
        %v6665 = vand.u32 2147483647, %v6558
        %vm6666 = vcmp.le.f32.partialorder %v6665, 0.7853982
        %vm6667 = vcmp.lt.s32.totalorder %v6558, 0
        %v6668 = vand.u32 %v6558, 2139095040
        %v6669 = vshrl.u32 %v6668, 23
        %v6670 = vsub.s32 %v6669, 127
        %v6671 = vand.u32 2147483647, %v6558
        %v6672 = vand.u32 %v6671, 8388607
        %v6673 = vor.u32 %v6672, 8388608
        %v6674 = vsub.s32 0, %v6673
        %v6675 = vadd.s32 %v6670, 1
        %vm6676 = vcmp.gt.s32.totalorder %v6675, 0
        %v6677 = vsel %vm6676, %v6675, 0
        %v6678 = vshrl.u32 %v6677, 5
        %v6679 = vand.u32 %v6677, 31
        %v6680 = vsub.s32 32, %v6679
        %v6681 = vshrl.u32 683565275, %v6680
        %v6682 = vshll.u32 683565275, %v6679
        %v6683 = vshrl.u32 2475754826, %v6680
        %v6684 = vor.u32 %v6682, %v6683
        %v6685 = vshll.u32 2475754826, %v6679
        %v6686 = vshrl.u32 2131351028, %v6680
        %v6687 = vor.u32 %v6685, %v6686
        %v6688 = vshll.u32 2131351028, %v6679
        %v6689 = vshrl.u32 2102212464, %v6680
        %v6690 = vor.u32 %v6688, %v6689
        %v6691 = vshll.u32 2102212464, %v6679
        %v6692 = vshrl.u32 920167782, %v6680
        %v6693 = vor.u32 %v6691, %v6692
        %v6694 = vshll.u32 920167782, %v6679
        %v6695 = vshrl.u32 1326507024, %v6680
        %v6696 = vor.u32 %v6694, %v6695
        %vm6697 = vcmp.lt.s32.totalorder %v6678, 1
        %vm6698 = vcmp.lt.s32.totalorder %v6678, 2
        %vm6699 = vcmp.lt.s32.totalorder %v6678, 3
        %vm6700 = vcmp.lt.s32.totalorder %v6678, 4
        %v6701 = vsel %vm6697, %v6681, %v6684
        %v6702 = vsel %vm6700, %v6690, 2102212464
        %v6703 = vsel %vm6699, %v6687, %v6702
        %v6704 = vsel %vm6698, %v6701, %v6703
        %v6705 = vsel %vm6697, %v6684, %v6687
        %v6706 = vsel %vm6700, %v6693, 920167782
        %v6707 = vsel %vm6699, %v6690, %v6706
        %v6708 = vsel %vm6698, %v6705, %v6707
        %v6709 = vsel %vm6697, %v6687, %v6690
        %v6710 = vsel %vm6700, %v6696, 1326507024
        %v6711 = vsel %vm6699, %v6693, %v6710
        %v6712 = vsel %vm6698, %v6709, %v6711
        %v6713 = vshll.u32 %v6673, 8
        %v6714 = vmul.u32.u64.compose %v6713, %v6712
        %v6715 = vextract.low.u32 %v6714
        %v6716 = vextract.high.u32 %v6714
        %v6717 = vmul.u32.u64.compose %v6713, %v6708
        %v6718 = vextract.low.u32 %v6717
        %v6719 = vextract.high.u32 %v6717
        %v6720 = vmul.u32 %v6713, %v6704
        %v6721 = vadd.s32 %v6716, %v6718
        %vm6722 = vc.u32 %v6716, %v6718
        %v6723 = vadd.s32 %v6719, 1
        %v6724 = vsel %vm6722, %v6723, %v6719
        %v6725 = vadd.s32 %v6720, %v6724
        %v6726 = vadd.s32 %v6725, 536870912
        %v6727 = vshrl.u32 %v6726, 30
        %v6728 = vshll.u32 %v6727, 30
        %v6729 = vsub.s32 %v6725, %v6728
        %vm6730 = vcmp.lt.s32.totalorder %v6729, 0
        %v6731 = vsub.s32 0, %v6729
        %v6732 = vsel %vm6730, %v6731, %v6729
        %v6733 = vclz %v6732
        %v6734 = vsub.s32 %v6733, 2
        %vm6735 = vcmp.gt.s32.totalorder 0, %v6734
        %v6736 = vsel %vm6735, 0, %v6734
        %v6737 = vsub.s32 32, %v6736
        %v6738 = vshll.u32 %v6729, %v6736
        %v6739 = vshrl.u32 %v6721, %v6737
        %v6740 = vor.u32 %v6738, %v6739
        %v6741 = vsub.s32 4294967266, %v6736
        %v6742 = vadd.s32 %v6741, 127
        %v6743 = vshll.u32 %v6742, 23
        %v6744 = vor.u32 4788187, %v6743
        %v6745 = vand.u32 2147483647, %v6744
        %v6747 = vcvt.s32.f32 %v6740
        %v6748 = vmul.f32 %v6747, %v6745
        %v6749 = vxor.u32 %v6748, 2147483648
        %v6750 = vsel %vm6667, %v6749, %v6748
        %v6751 = vsub.s32 4, %v6727
        %v6752 = vsel %vm6667, %v6751, %v6727
        %v6753 = vsel %vm6666, %v6558, %v6750
        %v6754 = vsel %vm6666, 0, %v6752
        %v6755 = vcosq.f32.pop %v6753
        %v6756 = vsinq.f32.pop %v6753
        %vm6757 = vweird.f32 %v6558
        %v6758 = vand.u32 %v6754, 3
        %vm6759 = vcmp.lt.s32.totalorder %v6758, 2
        %vm6760 = vcmp.eq.s32.totalorder %v6758, 0
        %v6761 = vxor.u32 %v6756, 2147483648
        %v6762 = vsel %vm6760, %v6755, %v6761
        %vm6763 = vcmp.eq.s32.totalorder %v6758, 2
        %v6764 = vxor.u32 %v6755, 2147483648
        %v6765 = vsel %vm6763, %v6764, %v6756
        %v6766 = vsel %vm6759, %v6762, %v6765
        %v6767 = vsel %vm6757, nan, %v6766
        %s6768 = scalar_lea.vmem %s172, 496 [#allocation5]
        %6769 = vst.msk [vmem:[%s6768] sm:$0xff] %vm262, %v6767
        %v6770 = vmul.f32 %v413, 0.0012328468
        %v6771 = vand.u32 2147483647, %v6770
        %vm6772 = vcmp.le.f32.partialorder %v6771, 0.7853982
        %vm6773 = vcmp.lt.s32.totalorder %v6770, 0
        %v6774 = vand.u32 %v6770, 2139095040
        %v6775 = vshrl.u32 %v6774, 23
        %v6776 = vsub.s32 %v6775, 127
        %v6777 = vand.u32 2147483647, %v6770
        %v6778 = vand.u32 %v6777, 8388607
        %v6779 = vor.u32 %v6778, 8388608
        %v6780 = vsub.s32 0, %v6779
        %v6781 = vadd.s32 %v6776, 1
        %vm6782 = vcmp.gt.s32.totalorder %v6781, 0
        %v6783 = vsel %vm6782, %v6781, 0
        %v6784 = vshrl.u32 %v6783, 5
        %v6785 = vand.u32 %v6783, 31
        %v6786 = vsub.s32 32, %v6785
        %v6787 = vshrl.u32 683565275, %v6786
        %v6788 = vshll.u32 683565275, %v6785
        %v6789 = vshrl.u32 2475754826, %v6786
        %v6790 = vor.u32 %v6788, %v6789
        %v6791 = vshll.u32 2475754826, %v6785
        %v6792 = vshrl.u32 2131351028, %v6786
        %v6793 = vor.u32 %v6791, %v6792
        %v6794 = vshll.u32 2131351028, %v6785
        %v6795 = vshrl.u32 2102212464, %v6786
        %v6796 = vor.u32 %v6794, %v6795
        %v6797 = vshll.u32 2102212464, %v6785
        %v6798 = vshrl.u32 920167782, %v6786
        %v6799 = vor.u32 %v6797, %v6798
        %v6800 = vshll.u32 920167782, %v6785
        %v6801 = vshrl.u32 1326507024, %v6786
        %v6802 = vor.u32 %v6800, %v6801
        %vm6803 = vcmp.lt.s32.totalorder %v6784, 1
        %vm6804 = vcmp.lt.s32.totalorder %v6784, 2
        %vm6805 = vcmp.lt.s32.totalorder %v6784, 3
        %vm6806 = vcmp.lt.s32.totalorder %v6784, 4
        %v6807 = vsel %vm6803, %v6787, %v6790
        %v6808 = vsel %vm6806, %v6796, 2102212464
        %v6809 = vsel %vm6805, %v6793, %v6808
        %v6810 = vsel %vm6804, %v6807, %v6809
        %v6811 = vsel %vm6803, %v6790, %v6793
        %v6812 = vsel %vm6806, %v6799, 920167782
        %v6813 = vsel %vm6805, %v6796, %v6812
        %v6814 = vsel %vm6804, %v6811, %v6813
        %v6815 = vsel %vm6803, %v6793, %v6796
        %v6816 = vsel %vm6806, %v6802, 1326507024
        %v6817 = vsel %vm6805, %v6799, %v6816
        %v6818 = vsel %vm6804, %v6815, %v6817
        %v6819 = vshll.u32 %v6779, 8
        %v6820 = vmul.u32.u64.compose %v6819, %v6818
        %v6821 = vextract.low.u32 %v6820
        %v6822 = vextract.high.u32 %v6820
        %v6823 = vmul.u32.u64.compose %v6819, %v6814
        %v6824 = vextract.low.u32 %v6823
        %v6825 = vextract.high.u32 %v6823
        %v6826 = vmul.u32 %v6819, %v6810
        %v6827 = vadd.s32 %v6822, %v6824
        %vm6828 = vc.u32 %v6822, %v6824
        %v6829 = vadd.s32 %v6825, 1
        %v6830 = vsel %vm6828, %v6829, %v6825
        %v6831 = vadd.s32 %v6826, %v6830
        %v6832 = vadd.s32 %v6831, 536870912
        %v6833 = vshrl.u32 %v6832, 30
        %v6834 = vshll.u32 %v6833, 30
        %v6835 = vsub.s32 %v6831, %v6834
        %vm6836 = vcmp.lt.s32.totalorder %v6835, 0
        %v6837 = vsub.s32 0, %v6835
        %v6838 = vsel %vm6836, %v6837, %v6835
        %v6839 = vclz %v6838
        %v6840 = vsub.s32 %v6839, 2
        %vm6841 = vcmp.gt.s32.totalorder 0, %v6840
        %v6842 = vsel %vm6841, 0, %v6840
        %v6843 = vsub.s32 32, %v6842
        %v6844 = vshll.u32 %v6835, %v6842
        %v6845 = vshrl.u32 %v6827, %v6843
        %v6846 = vor.u32 %v6844, %v6845
        %v6847 = vsub.s32 4294967266, %v6842
        %v6848 = vadd.s32 %v6847, 127
        %v6849 = vshll.u32 %v6848, 23
        %v6850 = vor.u32 4788187, %v6849
        %v6851 = vand.u32 2147483647, %v6850
        %v6853 = vcvt.s32.f32 %v6846
        %v6854 = vmul.f32 %v6853, %v6851
        %v6855 = vxor.u32 %v6854, 2147483648
        %v6856 = vsel %vm6773, %v6855, %v6854
        %v6857 = vsub.s32 4, %v6833
        %v6858 = vsel %vm6773, %v6857, %v6833
        %v6859 = vsel %vm6772, %v6770, %v6856
        %v6860 = vsel %vm6772, 0, %v6858
        %v6861 = vcosq.f32.pop %v6859
        %v6862 = vsinq.f32.pop %v6859
        %vm6863 = vweird.f32 %v6770
        %v6864 = vadd.s32 %v6860, 3
        %v6865 = vand.u32 %v6864, 3
        %vm6866 = vcmp.lt.s32.totalorder %v6865, 2
        %vm6867 = vcmp.eq.s32.totalorder %v6865, 0
        %v6868 = vxor.u32 %v6862, 2147483648
        %v6869 = vsel %vm6867, %v6861, %v6868
        %vm6870 = vcmp.eq.s32.totalorder %v6865, 2
        %v6871 = vxor.u32 %v6861, 2147483648
        %v6872 = vsel %vm6870, %v6871, %v6862
        %v6873 = vsel %vm6866, %v6869, %v6872
        %v6874 = vsel %vm6863, nan, %v6873
        %s6875 = scalar_lea.vmem %s172, 416 [#allocation5]
        %6876 = vst.msk [vmem:[%s6875] sm:$0xff] %vm262, %v6874
        %v6877 = vand.u32 2147483647, %v6770
        %vm6878 = vcmp.le.f32.partialorder %v6877, 0.7853982
        %vm6879 = vcmp.lt.s32.totalorder %v6770, 0
        %v6880 = vand.u32 %v6770, 2139095040
        %v6881 = vshrl.u32 %v6880, 23
        %v6882 = vsub.s32 %v6881, 127
        %v6883 = vand.u32 2147483647, %v6770
        %v6884 = vand.u32 %v6883, 8388607
        %v6885 = vor.u32 %v6884, 8388608
        %v6886 = vsub.s32 0, %v6885
        %v6887 = vadd.s32 %v6882, 1
        %vm6888 = vcmp.gt.s32.totalorder %v6887, 0
        %v6889 = vsel %vm6888, %v6887, 0
        %v6890 = vshrl.u32 %v6889, 5
        %v6891 = vand.u32 %v6889, 31
        %v6892 = vsub.s32 32, %v6891
        %v6893 = vshrl.u32 683565275, %v6892
        %v6894 = vshll.u32 683565275, %v6891
        %v6895 = vshrl.u32 2475754826, %v6892
        %v6896 = vor.u32 %v6894, %v6895
        %v6897 = vshll.u32 2475754826, %v6891
        %v6898 = vshrl.u32 2131351028, %v6892
        %v6899 = vor.u32 %v6897, %v6898
        %v6900 = vshll.u32 2131351028, %v6891
        %v6901 = vshrl.u32 2102212464, %v6892
        %v6902 = vor.u32 %v6900, %v6901
        %v6903 = vshll.u32 2102212464, %v6891
        %v6904 = vshrl.u32 920167782, %v6892
        %v6905 = vor.u32 %v6903, %v6904
        %v6906 = vshll.u32 920167782, %v6891
        %v6907 = vshrl.u32 1326507024, %v6892
        %v6908 = vor.u32 %v6906, %v6907
        %vm6909 = vcmp.lt.s32.totalorder %v6890, 1
        %vm6910 = vcmp.lt.s32.totalorder %v6890, 2
        %vm6911 = vcmp.lt.s32.totalorder %v6890, 3
        %vm6912 = vcmp.lt.s32.totalorder %v6890, 4
        %v6913 = vsel %vm6909, %v6893, %v6896
        %v6914 = vsel %vm6912, %v6902, 2102212464
        %v6915 = vsel %vm6911, %v6899, %v6914
        %v6916 = vsel %vm6910, %v6913, %v6915
        %v6917 = vsel %vm6909, %v6896, %v6899
        %v6918 = vsel %vm6912, %v6905, 920167782
        %v6919 = vsel %vm6911, %v6902, %v6918
        %v6920 = vsel %vm6910, %v6917, %v6919
        %v6921 = vsel %vm6909, %v6899, %v6902
        %v6922 = vsel %vm6912, %v6908, 1326507024
        %v6923 = vsel %vm6911, %v6905, %v6922
        %v6924 = vsel %vm6910, %v6921, %v6923
        %v6925 = vshll.u32 %v6885, 8
        %v6926 = vmul.u32.u64.compose %v6925, %v6924
        %v6927 = vextract.low.u32 %v6926
        %v6928 = vextract.high.u32 %v6926
        %v6929 = vmul.u32.u64.compose %v6925, %v6920
        %v6930 = vextract.low.u32 %v6929
        %v6931 = vextract.high.u32 %v6929
        %v6932 = vmul.u32 %v6925, %v6916
        %v6933 = vadd.s32 %v6928, %v6930
        %vm6934 = vc.u32 %v6928, %v6930
        %v6935 = vadd.s32 %v6931, 1
        %v6936 = vsel %vm6934, %v6935, %v6931
        %v6937 = vadd.s32 %v6932, %v6936
        %v6938 = vadd.s32 %v6937, 536870912
        %v6939 = vshrl.u32 %v6938, 30
        %v6940 = vshll.u32 %v6939, 30
        %v6941 = vsub.s32 %v6937, %v6940
        %vm6942 = vcmp.lt.s32.totalorder %v6941, 0
        %v6943 = vsub.s32 0, %v6941
        %v6944 = vsel %vm6942, %v6943, %v6941
        %v6945 = vclz %v6944
        %v6946 = vsub.s32 %v6945, 2
        %vm6947 = vcmp.gt.s32.totalorder 0, %v6946
        %v6948 = vsel %vm6947, 0, %v6946
        %v6949 = vsub.s32 32, %v6948
        %v6950 = vshll.u32 %v6941, %v6948
        %v6951 = vshrl.u32 %v6933, %v6949
        %v6952 = vor.u32 %v6950, %v6951
        %v6953 = vsub.s32 4294967266, %v6948
        %v6954 = vadd.s32 %v6953, 127
        %v6955 = vshll.u32 %v6954, 23
        %v6956 = vor.u32 4788187, %v6955
        %v6957 = vand.u32 2147483647, %v6956
        %v6959 = vcvt.s32.f32 %v6952
        %v6960 = vmul.f32 %v6959, %v6957
        %v6961 = vxor.u32 %v6960, 2147483648
        %v6962 = vsel %vm6879, %v6961, %v6960
        %v6963 = vsub.s32 4, %v6939
        %v6964 = vsel %vm6879, %v6963, %v6939
        %v6965 = vsel %vm6878, %v6770, %v6962
        %v6966 = vsel %vm6878, 0, %v6964
        %v6967 = vcosq.f32.pop %v6965
        %v6968 = vsinq.f32.pop %v6965
        %vm6969 = vweird.f32 %v6770
        %v6970 = vand.u32 %v6966, 3
        %vm6971 = vcmp.lt.s32.totalorder %v6970, 2
        %vm6972 = vcmp.eq.s32.totalorder %v6970, 0
        %v6973 = vxor.u32 %v6968, 2147483648
        %v6974 = vsel %vm6972, %v6967, %v6973
        %vm6975 = vcmp.eq.s32.totalorder %v6970, 2
        %v6976 = vxor.u32 %v6967, 2147483648
        %v6977 = vsel %vm6975, %v6976, %v6968
        %v6978 = vsel %vm6971, %v6974, %v6977
        %v6979 = vsel %vm6969, nan, %v6978
        %s6980 = scalar_lea.vmem %s172, 504 [#allocation5]
        %6981 = vst.msk [vmem:[%s6980] sm:$0xff] %vm262, %v6979
        %v6982 = vmul.f32 %v413, 0.0005336699
        %v6983 = vand.u32 2147483647, %v6982
        %vm6984 = vcmp.le.f32.partialorder %v6983, 0.7853982
        %vm6985 = vcmp.lt.s32.totalorder %v6982, 0
        %v6986 = vand.u32 %v6982, 2139095040
        %v6987 = vshrl.u32 %v6986, 23
        %v6988 = vsub.s32 %v6987, 127
        %v6989 = vand.u32 2147483647, %v6982
        %v6990 = vand.u32 %v6989, 8388607
        %v6991 = vor.u32 %v6990, 8388608
        %v6992 = vsub.s32 0, %v6991
        %v6993 = vadd.s32 %v6988, 1
        %vm6994 = vcmp.gt.s32.totalorder %v6993, 0
        %v6995 = vsel %vm6994, %v6993, 0
        %v6996 = vshrl.u32 %v6995, 5
        %v6997 = vand.u32 %v6995, 31
        %v6998 = vsub.s32 32, %v6997
        %v6999 = vshrl.u32 683565275, %v6998
        %v7000 = vshll.u32 683565275, %v6997
        %v7001 = vshrl.u32 2475754826, %v6998
        %v7002 = vor.u32 %v7000, %v7001
        %v7003 = vshll.u32 2475754826, %v6997
        %v7004 = vshrl.u32 2131351028, %v6998
        %v7005 = vor.u32 %v7003, %v7004
        %v7006 = vshll.u32 2131351028, %v6997
        %v7007 = vshrl.u32 2102212464, %v6998
        %v7008 = vor.u32 %v7006, %v7007
        %v7009 = vshll.u32 2102212464, %v6997
        %v7010 = vshrl.u32 920167782, %v6998
        %v7011 = vor.u32 %v7009, %v7010
        %v7012 = vshll.u32 920167782, %v6997
        %v7013 = vshrl.u32 1326507024, %v6998
        %v7014 = vor.u32 %v7012, %v7013
        %vm7015 = vcmp.lt.s32.totalorder %v6996, 1
        %vm7016 = vcmp.lt.s32.totalorder %v6996, 2
        %vm7017 = vcmp.lt.s32.totalorder %v6996, 3
        %vm7018 = vcmp.lt.s32.totalorder %v6996, 4
        %v7019 = vsel %vm7015, %v6999, %v7002
        %v7020 = vsel %vm7018, %v7008, 2102212464
        %v7021 = vsel %vm7017, %v7005, %v7020
        %v7022 = vsel %vm7016, %v7019, %v7021
        %v7023 = vsel %vm7015, %v7002, %v7005
        %v7024 = vsel %vm7018, %v7011, 920167782
        %v7025 = vsel %vm7017, %v7008, %v7024
        %v7026 = vsel %vm7016, %v7023, %v7025
        %v7027 = vsel %vm7015, %v7005, %v7008
        %v7028 = vsel %vm7018, %v7014, 1326507024
        %v7029 = vsel %vm7017, %v7011, %v7028
        %v7030 = vsel %vm7016, %v7027, %v7029
        %v7031 = vshll.u32 %v6991, 8
        %v7032 = vmul.u32.u64.compose %v7031, %v7030
        %v7033 = vextract.low.u32 %v7032
        %v7034 = vextract.high.u32 %v7032
        %v7035 = vmul.u32.u64.compose %v7031, %v7026
        %v7036 = vextract.low.u32 %v7035
        %v7037 = vextract.high.u32 %v7035
        %v7038 = vmul.u32 %v7031, %v7022
        %v7039 = vadd.s32 %v7034, %v7036
        %vm7040 = vc.u32 %v7034, %v7036
        %v7041 = vadd.s32 %v7037, 1
        %v7042 = vsel %vm7040, %v7041, %v7037
        %v7043 = vadd.s32 %v7038, %v7042
        %v7044 = vadd.s32 %v7043, 536870912
        %v7045 = vshrl.u32 %v7044, 30
        %v7046 = vshll.u32 %v7045, 30
        %v7047 = vsub.s32 %v7043, %v7046
        %vm7048 = vcmp.lt.s32.totalorder %v7047, 0
        %v7049 = vsub.s32 0, %v7047
        %v7050 = vsel %vm7048, %v7049, %v7047
        %v7051 = vclz %v7050
        %v7052 = vsub.s32 %v7051, 2
        %vm7053 = vcmp.gt.s32.totalorder 0, %v7052
        %v7054 = vsel %vm7053, 0, %v7052
        %v7055 = vsub.s32 32, %v7054
        %v7056 = vshll.u32 %v7047, %v7054
        %v7057 = vshrl.u32 %v7039, %v7055
        %v7058 = vor.u32 %v7056, %v7057
        %v7059 = vsub.s32 4294967266, %v7054
        %v7060 = vadd.s32 %v7059, 127
        %v7061 = vshll.u32 %v7060, 23
        %v7062 = vor.u32 4788187, %v7061
        %v7063 = vand.u32 2147483647, %v7062
        %v7065 = vcvt.s32.f32 %v7058
        %v7066 = vmul.f32 %v7065, %v7063
        %v7067 = vxor.u32 %v7066, 2147483648
        %v7068 = vsel %vm6985, %v7067, %v7066
        %v7069 = vsub.s32 4, %v7045
        %v7070 = vsel %vm6985, %v7069, %v7045
        %v7071 = vsel %vm6984, %v6982, %v7068
        %v7072 = vsel %vm6984, 0, %v7070
        %v7073 = vcosq.f32.pop %v7071
        %v7074 = vsinq.f32.pop %v7071
        %vm7075 = vweird.f32 %v6982
        %v7076 = vadd.s32 %v7072, 3
        %v7077 = vand.u32 %v7076, 3
        %vm7078 = vcmp.lt.s32.totalorder %v7077, 2
        %vm7079 = vcmp.eq.s32.totalorder %v7077, 0
        %v7080 = vxor.u32 %v7074, 2147483648
        %v7081 = vsel %vm7079, %v7073, %v7080
        %vm7082 = vcmp.eq.s32.totalorder %v7077, 2
        %v7083 = vxor.u32 %v7073, 2147483648
        %v7084 = vsel %vm7082, %v7083, %v7074
        %v7085 = vsel %vm7078, %v7081, %v7084
        %v7086 = vsel %vm7075, nan, %v7085
        %s7087 = scalar_lea.vmem %s172, 424 [#allocation5]
        %7088 = vst.msk [vmem:[%s7087] sm:$0xff] %vm262, %v7086
        %v7089 = vmul.f32 %v413, 0.00023101296
        %v7090 = vand.u32 2147483647, %v7089
        %vm7091 = vcmp.le.f32.partialorder %v7090, 0.7853982
        %vm7092 = vcmp.lt.s32.totalorder %v7089, 0
        %v7093 = vand.u32 %v7089, 2139095040
        %v7094 = vshrl.u32 %v7093, 23
        %v7095 = vsub.s32 %v7094, 127
        %v7096 = vand.u32 2147483647, %v7089
        %v7097 = vand.u32 %v7096, 8388607
        %v7098 = vor.u32 %v7097, 8388608
        %v7099 = vsub.s32 0, %v7098
        %v7100 = vadd.s32 %v7095, 1
        %vm7101 = vcmp.gt.s32.totalorder %v7100, 0
        %v7102 = vsel %vm7101, %v7100, 0
        %v7103 = vshrl.u32 %v7102, 5
        %v7104 = vand.u32 %v7102, 31
        %v7105 = vsub.s32 32, %v7104
        %v7106 = vshrl.u32 683565275, %v7105
        %v7107 = vshll.u32 683565275, %v7104
        %v7108 = vshrl.u32 2475754826, %v7105
        %v7109 = vor.u32 %v7107, %v7108
        %v7110 = vshll.u32 2475754826, %v7104
        %v7111 = vshrl.u32 2131351028, %v7105
        %v7112 = vor.u32 %v7110, %v7111
        %v7113 = vshll.u32 2131351028, %v7104
        %v7114 = vshrl.u32 2102212464, %v7105
        %v7115 = vor.u32 %v7113, %v7114
        %v7116 = vshll.u32 2102212464, %v7104
        %v7117 = vshrl.u32 920167782, %v7105
        %v7118 = vor.u32 %v7116, %v7117
        %v7119 = vshll.u32 920167782, %v7104
        %v7120 = vshrl.u32 1326507024, %v7105
        %v7121 = vor.u32 %v7119, %v7120
        %vm7122 = vcmp.lt.s32.totalorder %v7103, 1
        %vm7123 = vcmp.lt.s32.totalorder %v7103, 2
        %vm7124 = vcmp.lt.s32.totalorder %v7103, 3
        %vm7125 = vcmp.lt.s32.totalorder %v7103, 4
        %v7126 = vsel %vm7122, %v7106, %v7109
        %v7127 = vsel %vm7125, %v7115, 2102212464
        %v7128 = vsel %vm7124, %v7112, %v7127
        %v7129 = vsel %vm7123, %v7126, %v7128
        %v7130 = vsel %vm7122, %v7109, %v7112
        %v7131 = vsel %vm7125, %v7118, 920167782
        %v7132 = vsel %vm7124, %v7115, %v7131
        %v7133 = vsel %vm7123, %v7130, %v7132
        %v7134 = vsel %vm7122, %v7112, %v7115
        %v7135 = vsel %vm7125, %v7121, 1326507024
        %v7136 = vsel %vm7124, %v7118, %v7135
        %v7137 = vsel %vm7123, %v7134, %v7136
        %v7138 = vshll.u32 %v7098, 8
        %v7139 = vmul.u32.u64.compose %v7138, %v7137
        %v7140 = vextract.low.u32 %v7139
        %v7141 = vextract.high.u32 %v7139
        %v7142 = vmul.u32.u64.compose %v7138, %v7133
        %v7143 = vextract.low.u32 %v7142
        %v7144 = vextract.high.u32 %v7142
        %v7145 = vmul.u32 %v7138, %v7129
        %v7146 = vadd.s32 %v7141, %v7143
        %vm7147 = vc.u32 %v7141, %v7143
        %v7148 = vadd.s32 %v7144, 1
        %v7149 = vsel %vm7147, %v7148, %v7144
        %v7150 = vadd.s32 %v7145, %v7149
        %v7151 = vadd.s32 %v7150, 536870912
        %v7152 = vshrl.u32 %v7151, 30
        %v7153 = vshll.u32 %v7152, 30
        %v7154 = vsub.s32 %v7150, %v7153
        %vm7155 = vcmp.lt.s32.totalorder %v7154, 0
        %v7156 = vsub.s32 0, %v7154
        %v7157 = vsel %vm7155, %v7156, %v7154
        %v7158 = vclz %v7157
        %v7159 = vsub.s32 %v7158, 2
        %vm7160 = vcmp.gt.s32.totalorder 0, %v7159
        %v7161 = vsel %vm7160, 0, %v7159
        %v7162 = vsub.s32 32, %v7161
        %v7163 = vshll.u32 %v7154, %v7161
        %v7164 = vshrl.u32 %v7146, %v7162
        %v7165 = vor.u32 %v7163, %v7164
        %v7166 = vsub.s32 4294967266, %v7161
        %v7167 = vadd.s32 %v7166, 127
        %v7168 = vshll.u32 %v7167, 23
        %v7169 = vor.u32 4788187, %v7168
        %v7170 = vand.u32 2147483647, %v7169
        %v7172 = vcvt.s32.f32 %v7165
        %v7173 = vmul.f32 %v7172, %v7170
        %v7174 = vxor.u32 %v7173, 2147483648
        %v7175 = vsel %vm7092, %v7174, %v7173
        %v7176 = vsub.s32 4, %v7152
        %v7177 = vsel %vm7092, %v7176, %v7152
        %v7178 = vsel %vm7091, %v7089, %v7175
        %v7179 = vsel %vm7091, 0, %v7177
        %v7180 = vcosq.f32.pop %v7178
        %v7181 = vsinq.f32.pop %v7178
        %vm7182 = vweird.f32 %v7089
        %v7183 = vadd.s32 %v7179, 3
        %v7184 = vand.u32 %v7183, 3
        %vm7185 = vcmp.lt.s32.totalorder %v7184, 2
        %vm7186 = vcmp.eq.s32.totalorder %v7184, 0
        %v7187 = vxor.u32 %v7181, 2147483648
        %v7188 = vsel %vm7186, %v7180, %v7187
        %vm7189 = vcmp.eq.s32.totalorder %v7184, 2
        %v7190 = vxor.u32 %v7180, 2147483648
        %v7191 = vsel %vm7189, %v7190, %v7181
        %v7192 = vsel %vm7185, %v7188, %v7191
        %v7193 = vsel %vm7182, nan, %v7192
        %s7194 = scalar_lea.vmem %s172, 432 [#allocation5]
        %7195 = vst.msk [vmem:[%s7194] sm:$0xff] %vm262, %v7193
        %s7196 = sand.u32 %s88, 1
        %s7197 = scalar_lea.sflag [#allocation4], %s7196
        %s7198 = sand.u32 %s88, 1
        %s7199 = smul.addr %s7198, 512
        %s7200 = scalar_lea.vmem [#allocation5], %s7199
        // Predicated region
        $region33: #{tpu_custom_call.1} parent=27 // pred_check
          %p7201 = pneg %p98
        $region34: #{tpu_custom_call.1} parent=27 // pred_check_branch
          %7203 = sbr.rel (%p7201) target = $region36
        $region35: #{tpu_custom_call.1} parent=27 // pred_region
          %s7205 = ssub.s32 8192, 8192
          %7206 = vsyncadd %s7197, %s7205
          %s7207 = smul.addr %s23, 64
          %s7208 = sadd.s32 %s24, %s7207
          %s7209 = smul.addr %s7208, 128
          %s7210 = scalar_lea.hbm %s2, %s7209
          %s7211 = sshll.u32 %s7200, 4
          %s7212 = int_to_ptr.vmem [resolvable:$true] %s7211
          %7217 = dma.vmem_to_hbm [thread:$0]  %s7212, 8192, %s7210, %s7197, 128, 128, 8
        $region36: #{tpu_custom_call.1} parent=27 // pred_fallthru
          _
      $region28: #{tpu_custom_call.1} parent=5 // pred_fallthru
        _
      %p7218 = scmp.le.s32.totalorder 2, %s14
      // Predicated region
      $region37: #{tpu_custom_call.1} parent=5 // pred_check
        %p7219 = pneg %p7218
      $region38: #{tpu_custom_call.1} parent=5 // pred_check_branch
        %7221 = sbr.rel (%p7219) target = $region40
      $region39: #{tpu_custom_call.1} parent=5 // pred_region
        %s7222 = ssub.s32 %s14, 2
        // Predicated region
        $region41: #{tpu_custom_call.1} parent=39 // pred_check
          %p7223 = pneg %p104
        $region42: #{tpu_custom_call.1} parent=39 // pred_check_branch
          %7225 = sbr.rel (%p7223) target = $region44
        $region43: #{tpu_custom_call.1} parent=39 // pred_region
          %s7226 = sand.u32 %s89, 1
          %s7227 = scalar_lea.sflag [#allocation4], %s7226
          %s7228 = sand.u32 %s89, 1
          %s7229 = smul.addr %s7228, 512
          %s7230 = scalar_lea.vmem [#allocation5], %s7229
          %7231 = dma.done %s7227, 8192
        $region44: #{tpu_custom_call.1} parent=39 // pred_fallthru
          _
      $region40: #{tpu_custom_call.1} parent=5 // pred_fallthru
        _
    $region6: #{tpu_custom_call.1} parent=1 // loop_footer
      %s18 = sadd.s32 1, %s14
    $region7: #{tpu_custom_call.1} parent=1 // loop_footer_branch
      %13 = sbr.rel target = $region3
    $region8: #{tpu_custom_call.1} parent=1 // loop_exit
      _
    %7232 = vsyncpa [#allocation3], 1
    %s7233 = scalar_lea.sflag [#allocation3], 1
    %7234 = vsyncpa %s7233, 1
    %7235 = vsyncpa [#allocation4], 1
    %s7236 = scalar_lea.sflag [#allocation4], 1
    %7237 = vsyncpa %s7236, 1

</llo_original>
